<compile_context>
chip_gen: v7x
topology: tpu7x:2x2x1
jax: 0.10.0
libtpu: 0.0.40
codegen_flags: <defaults>
</compile_context>

<pallas_src>
import functools

import jax
import jax.numpy as jnp
from jax import lax
from jax.experimental import pallas as pl
from jax.experimental.pallas import tpu as pltpu


# ---------------------------------------------------------------------------
# Fused kernel
# ---------------------------------------------------------------------------
def out_block_kernel(x_ref, w1_ref, wm_ref, wb2_ref, wsq_ref, shift_ref, mask_ref,
                     o_ref, tpad_ref, catpad_ref, r_ref, *, H, W):
    """Fused outBlock forward for one image.

    x_ref:     (1, H*Wp, 36)   bf16  9-tap im2col of the zero-padded input
    w1_ref:    (36, 32)        bf16  layer1 weights (BN scale folded), im2col layout
    wm_ref:    (32, 128)       bf16  merged [shortcut | block-1x1] weights
    wb2_ref:   (3, 64, 192)    bf16  block 3x3 weights, 3 kw-taps stacked along N per kh
    wsq_ref:   (128, 72)       bf16  squash 3x3 weights, all 9 taps stacked along N
    shift_ref: (4, 128)        f32   packed per-channel shifts (BN/bias folded)
    mask_ref:  (H*Wp, 1)       f32   1.0 on valid columns of the Wp-strided layout
    o_ref:     (1, H*Wp, Cout) f32   output slab (overhang cols sliced off outside)
    tpad_ref:  (L, 64)  f32 scratch  zero-halo padded `t` image (block-part-1 output)
    catpad_ref:(L, 128) f32 scratch  zero-halo padded concat [x1 | x2]
    r_ref:     (L, 192) f32 scratch  stacked-tap matmul results (block2 & squash)
    """
    Wp = W + 2
    HWp = H * Wp
    L = tpad_ref.shape[0]
    cout = o_ref.shape[-1]
    f32, bf16 = jnp.float32, jnp.bfloat16

    top = Wp + 1               # flat offset of padded coord (row=1, col=1)
    bot = top + HWp            # == (H+1)*Wp + 1

    # Halo-only zeroing: rows [0, top) and [bot, L).  The interior [top, bot) is
    # fully rewritten every grid step (masked overhang columns land exactly on the
    # left/right halo columns), so this is also safe when the batch axis is split
    # across TensorCores ("parallel" grid axis).
    tpad_ref[0:top, :] = jnp.zeros((top, tpad_ref.shape[1]), f32)
    tpad_ref[bot:L, :] = jnp.zeros((L - bot, tpad_ref.shape[1]), f32)
    catpad_ref[0:top, :] = jnp.zeros((top, catpad_ref.shape[1]), f32)
    catpad_ref[bot:L, :] = jnp.zeros((L - bot, catpad_ref.shape[1]), f32)

    mask = mask_ref[...]                                     # (HWp, 1)

    # layer1: Conv3x3(Cin->32) + BN + ReLU, as a single im2col matmul.
    h = jnp.dot(x_ref[0], w1_ref[...], preferred_element_type=f32)
    h = jnp.maximum(h + shift_ref[0:1, 0:32], 0.0)           # (HWp, 32)

    # shortcut (32->64) and block part 1 (32->64) merged into one 32->128 1x1 conv.
    x1t = jnp.dot(h.astype(bf16), wm_ref[...], preferred_element_type=f32)
    x1t = jnp.maximum(x1t + shift_ref[1:2, :], 0.0) * mask   # (HWp, 128)

    # x1 goes straight into the padded concat buffer; t is re-padded for block2.
    # A uniform shift of Wp+1 places flat position i*Wp+j at padded coords (i+1,j+1);
    # masked overhang columns land exactly on the zero halo.
    catpad_ref[top:bot, 0:64] = x1t[:, 0:64]
    tpad_ref[top:bot, :] = x1t[:, 64:128]

    # block part 2: Conv3x3(64->64) + BN + ReLU.  The 3 kw-taps of each kernel row kh
    # share one (HWp+2, 64) x (64, 192) matmul; the tap sum is done with shifted
    # slice reads from r_ref (local row index of tap (kh, kw) is q + kw).
    acc2 = jnp.zeros((HWp, 64), f32)
    for kh in range(3):
        lhs = tpad_ref[kh * Wp:kh * Wp + HWp + 2, :].astype(bf16)
        r_ref[0:HWp + 2, :] = jnp.dot(lhs, wb2_ref[kh], preferred_element_type=f32)
        for kw in range(3):
            acc2 = acc2 + r_ref[kw:kw + HWp, kw * 64:(kw + 1) * 64]
    x2 = jnp.maximum(acc2 + shift_ref[2:3, 0:64], 0.0) * mask
    catpad_ref[top:bot, 64:128] = x2

    # squash: Conv3x3(128->Cout) + bias.  All 9 taps stacked along N: one
    # (L,128)x(128,9*Cout) matmul, then a 9-way shifted slice sum.
    r_ref[:, 0:9 * cout] = jnp.dot(catpad_ref[...].astype(bf16), wsq_ref[...],
                                   preferred_element_type=f32)      # (L, 72)
    y = jnp.zeros((HWp, cout), f32) + shift_ref[3:4, 0:cout]
    for t in range(9):
        off = (t // 3) * Wp + (t % 3)
        y = y + r_ref[off:off + HWp, t * cout:(t + 1) * cout]

    # Single contiguous slab store; the wrapper drops the Wp-W overhang columns.
    o_ref[0] = y


# ---------------------------------------------------------------------------
# Parameter construction / BN folding / packing
# ---------------------------------------------------------------------------
def _fold_bn_into_conv(w, b, bn, eps=1e-5):
    """Fold conv bias + inference BatchNorm into (scaled weights, shift)."""
    gamma, beta, mean, var = bn
    scale = gamma / jnp.sqrt(var + eps)              # (Cout,)
    shift = scale * (b - mean) + beta                # (Cout,)
    return w * scale, shift                          # w: (KH, KW, Cin, Cout)


def init_raw_params(in_channels, out_channels, key):
    """Deterministic synthetic parameters matching the PyTorch module's shapes."""
    ks = jax.random.split(key, 14)

    def conv_w(k, kh, kw, cin, cout):
        return 0.1 * jax.random.normal(k, (kh, kw, cin, cout), jnp.float32)

    def conv_b(k, cout):
        return 0.05 * jax.random.normal(k, (cout,), jnp.float32)

    def bn(k, c):
        kg, kb = jax.random.split(k)
        gamma = 1.0 + 0.1 * jax.random.normal(kg, (c,), jnp.float32)
        beta = 0.1 * jax.random.normal(kb, (c,), jnp.float32)
        mean = jnp.zeros((c,), jnp.float32)   # PyTorch default running_mean
        var = jnp.ones((c,), jnp.float32)     # PyTorch default running_var
        return (gamma, beta, mean, var)

    return dict(
        w1=conv_w(ks[0], 3, 3, in_channels, 32), b1=conv_b(ks[1], 32), bn1=bn(ks[2], 32),
        w_sc=conv_w(ks[3], 1, 1, 32, 64), b_sc=conv_b(ks[4], 64), bn_sc=bn(ks[5], 64),
        w_b1=conv_w(ks[6], 1, 1, 32, 64), b_b1=conv_b(ks[7], 64), bn_b1=bn(ks[8], 64),
        w_b2=conv_w(ks[9], 3, 3, 64, 64), b_b2=conv_b(ks[10], 64), bn_b2=bn(ks[11], 64),
        w_sq=conv_w(ks[12], 3, 3, 128, out_channels), b_sq=conv_b(ks[13], out_channels),
    )


def prepare_params(raw, out_channels):
    """Fold BN, merge/stack conv weights into MXU-friendly layouts, pack shifts."""
    w1, sh1 = _fold_bn_into_conv(raw["w1"], raw["b1"], raw["bn1"])
    wsc, shsc = _fold_bn_into_conv(raw["w_sc"], raw["b_sc"], raw["bn_sc"])
    wb1, shb1 = _fold_bn_into_conv(raw["w_b1"], raw["b_b1"], raw["bn_b1"])
    wb2, shb2 = _fold_bn_into_conv(raw["w_b2"], raw["b_b2"], raw["bn_b2"])

    cin = w1.shape[2]
    p = {}
    # layer1 weights in im2col layout (tap-major, channel-minor), matching x_col.
    p["w1"] = w1.reshape(9 * cin, 32).astype(jnp.bfloat16)
    # merged [shortcut | block-1x1] 1x1 conv: 32 -> 128.
    p["wm"] = jnp.concatenate([wsc.reshape(32, 64), wb1.reshape(32, 64)],
                              axis=-1).astype(jnp.bfloat16)
    # block 3x3 conv: the 3 kw-taps of each kernel row kh stacked along the output dim.
    p["wb2"] = jnp.transpose(wb2, (0, 2, 1, 3)).reshape(3, 64, 3 * 64).astype(jnp.bfloat16)
    # squash 3x3 conv: all 9 taps stacked along the output dim (tap-major, channel-minor).
    p["wsq"] = jnp.transpose(raw["w_sq"].reshape(9, 128, out_channels),
                             (1, 0, 2)).reshape(128, 9 * out_channels).astype(jnp.bfloat16)

    shifts = jnp.zeros((4, 128), jnp.float32)
    shifts = shifts.at[0, :32].set(sh1)
    shifts = shifts.at[1, :64].set(shsc)
    shifts = shifts.at[1, 64:128].set(shb1)
    shifts = shifts.at[2, :64].set(shb2)
    shifts = shifts.at[3, :out_channels].set(raw["b_sq"])
    p["shifts"] = shifts
    return p


# ---------------------------------------------------------------------------
# Forward wrapper
# ---------------------------------------------------------------------------
@jax.jit
def out_block_forward(x_nchw, prep):
    N, Cin, H, W = x_nchw.shape
    Wp = W + 2
    HWp = H * Wp
    L = (H + 2) * Wp + 8            # padded-image rows + slack so every tap slice fits
    cout = prep["wsq"].shape[-1] // 9

    # NCHW -> NHWC, zero-pad spatially, flatten to the Wp-strided layout, then build
    # the 9-tap im2col of the tiny Cin-channel input so layer1 becomes a single
    # (HWp, 9*Cin) x (9*Cin, 32) matmul in-kernel.  All cheap XLA ops on ~20 KB.
    x = jnp.transpose(x_nchw, (0, 2, 3, 1))
    xpf = jnp.pad(x, ((0, 0), (1, 1), (1, 1), (0, 0))).reshape(N, (H + 2) * Wp, Cin)
    xpf = jnp.pad(xpf, ((0, 0), (0, 8), (0, 0)))     # slack: overhang taps stay in-bounds
    offs = [kh * Wp + kw for kh in range(3) for kw in range(3)]
    x_col = jnp.concatenate([xpf[:, o:o + HWp, :] for o in offs],
                            axis=-1).astype(jnp.bfloat16)          # (N, HWp, 9*Cin)

    # Column-validity mask for the Wp-strided flat layout used in-kernel.
    col_valid = (jnp.arange(Wp) < W).astype(jnp.float32)
    mask = jnp.tile(col_valid, (H,)).reshape(HWp, 1)

    kernel = functools.partial(out_block_kernel, H=H, W=W)

    flops = 2 * N * H * W * (9 * Cin * 32 + 32 * 128 + 9 * 64 * 64 + 9 * 128 * cout)
    bytes_accessed = (x_col.size * 2 + prep["w1"].size * 2 + prep["wm"].size * 2
                      + prep["wb2"].size * 2 + prep["wsq"].size * 2
                      + prep["shifts"].size * 4 + mask.size * 4
                      + N * HWp * cout * 4)

    y = pl.pallas_call(
        kernel,
        out_shape=jax.ShapeDtypeStruct((N, HWp, cout), jnp.float32),
        grid=(N,),
        in_specs=[
            pl.BlockSpec((1, HWp, 9 * Cin), lambda n: (n, 0, 0)),
            pl.BlockSpec(prep["w1"].shape, lambda n: (0, 0)),
            pl.BlockSpec(prep["wm"].shape, lambda n: (0, 0)),
            pl.BlockSpec(prep["wb2"].shape, lambda n: (0, 0, 0)),
            pl.BlockSpec(prep["wsq"].shape, lambda n: (0, 0)),
            pl.BlockSpec((4, 128), lambda n: (0, 0)),
            pl.BlockSpec((HWp, 1), lambda n: (0, 0)),
        ],
        out_specs=pl.BlockSpec((1, HWp, cout), lambda n: (n, 0, 0)),
        scratch_shapes=[
            pltpu.VMEM((L, 64), jnp.float32),    # padded t  (block2 input)
            pltpu.VMEM((L, 128), jnp.float32),   # padded cat = [x1 | x2]
            pltpu.VMEM((L, 192), jnp.float32),   # stacked-tap matmul results
        ],
        compiler_params=pltpu.CompilerParams(dimension_semantics=("parallel",)),
        cost_estimate=pl.CostEstimate(flops=flops, transcendentals=0,
                                      bytes_accessed=bytes_accessed),
    )(x_col, prep["w1"], prep["wm"], prep["wb2"], prep["wsq"], prep["shifts"], mask)

    # Drop the Wp-W overhang columns and convert to NCHW (tiny XLA ops on ~18 KB).
    y = y.reshape(N, H, Wp, cout)[:, :, :W, :]
    return jnp.transpose(y, (0, 3, 1, 2))


# ---------------------------------------------------------------------------
# Pure-JAX reference (independent path: lax.conv_general_dilated)
# ---------------------------------------------------------------------------
def reference_forward(x_nchw, raw, eps=1e-5):
    x = jnp.transpose(x_nchw, (0, 2, 3, 1))

    def conv(v, w, b):
        return lax.conv_general_dilated(
            v, w, window_strides=(1, 1), padding="SAME",
            dimension_numbers=("NHWC", "HWIO", "NHWC")) + b

    def bn_relu(v, bn):
        gamma, beta, mean, var = bn
        return jnp.maximum((v - mean) * gamma / jnp.sqrt(var + eps) + beta, 0.0)

    h = bn_relu(conv(x, raw["w1"], raw["b1"]), raw["bn1"])
    x1 = bn_relu(conv(h, raw["w_sc"], raw["b_sc"]), raw["bn_sc"])
    t = bn_relu(conv(h, raw["w_b1"], raw["b_b1"]), raw["bn_b1"])
    x2 = bn_relu(conv(t, raw["w_b2"], raw["b_b2"]), raw["bn_b2"])
    cat = jnp.concatenate([x1, x2], axis=-1)
    y = conv(cat, raw["w_sq"], raw["b_sq"])
    return jnp.transpose(y, (0, 3, 1, 2))


if __name__ == "__main__":
    key = jax.random.PRNGKey(0)
    in_channels, out_channels = 4, 8
    N, H, W = 2, 16, 16

    k_x, k_p = jax.random.split(key)
    x = jax.random.normal(k_x, (N, in_channels, H, W), jnp.float32)
    raw = init_raw_params(in_channels, out_channels, k_p)
    prep = prepare_params(raw, out_channels)

    out = out_block_forward(x, prep)
    jax.block_until_ready(out)
    assert out.shape == (N, out_channels, H, W), out.shape

    # Correctness vs. independent pure-JAX reference (loose tol: bf16 MXU operands).
    ref = reference_forward(x, raw)
    assert bool(jnp.allclose(out, ref, rtol=5e-2, atol=1e-1)), \
        float(jnp.max(jnp.abs(out - ref)))

    print("KERNEL_OK")
</pallas_src>

<mosaic_0001>
module attributes {stable_mosaic.version = 11 : i64} {
  func.func @out_block_kernel(%arg0: i32, %arg1: memref<1x288x36xbf16, #tpu.memory_space<vmem>>, %arg2: memref<36x32xbf16, #tpu.memory_space<vmem>>, %arg3: memref<32x128xbf16, #tpu.memory_space<vmem>>, %arg4: memref<3x64x192xbf16, #tpu.memory_space<vmem>>, %arg5: memref<128x72xbf16, #tpu.memory_space<vmem>>, %arg6: memref<4x128xf32, #tpu.memory_space<vmem>>, %arg7: memref<288x1xf32, #tpu.memory_space<vmem>>, %arg8: memref<1x288x8xf32, #tpu.memory_space<vmem>>, %arg9: memref<332x64xf32, #tpu.memory_space<vmem>>, %arg10: memref<332x128xf32, #tpu.memory_space<vmem>>, %arg11: memref<332x192xf32, #tpu.memory_space<vmem>>) attributes {dimension_semantics = [#tpu.dimension_semantics<parallel>], iteration_bounds = array<i64: 2>, scalar_prefetch = 0 : i64, scratch_operands = 3 : i64, tpu.core_type = #tpu.core_type<tc>, window_params = [{transform_indices = @transform_0, window_bounds = array<i64: 1, 288, 36>}, {pipeline_mode = #tpu.pipeline_mode<synchronous>, transform_indices = @transform_1, window_bounds = array<i64: 36, 32>}, {pipeline_mode = #tpu.pipeline_mode<synchronous>, transform_indices = @transform_2, window_bounds = array<i64: 32, 128>}, {pipeline_mode = #tpu.pipeline_mode<synchronous>, transform_indices = @transform_3, window_bounds = array<i64: 3, 64, 192>}, {pipeline_mode = #tpu.pipeline_mode<synchronous>, transform_indices = @transform_4, window_bounds = array<i64: 128, 72>}, {pipeline_mode = #tpu.pipeline_mode<synchronous>, transform_indices = @transform_5, window_bounds = array<i64: 4, 128>}, {pipeline_mode = #tpu.pipeline_mode<synchronous>, transform_indices = @transform_6, window_bounds = array<i64: 288, 1>}, {transform_indices = @transform_7, window_bounds = array<i64: 1, 288, 8>}]} {
    %cst = arith.constant 0.000000e+00 : f32
    %0 = vector.broadcast %cst : f32 to vector<19x64xf32>
    %c0 = arith.constant 0 : index
    %c0_0 = arith.constant 0 : index
    %1 = vector.load %arg9[%c0, %c0_0] : memref<332x64xf32, #tpu.memory_space<vmem>>, vector<19x64xf32>
    tpu.vector_store %arg9[%c0, %c0_0], %0 {strides = array<i32>} : memref<332x64xf32, #tpu.memory_space<vmem>>, vector<19x64xf32>,
    %cst_1 = arith.constant 0.000000e+00 : f32
    %2 = vector.broadcast %cst_1 : f32 to vector<25x64xf32>
    %c307 = arith.constant 307 : index
    %c0_2 = arith.constant 0 : index
    %3 = vector.load %arg9[%c307, %c0_2] : memref<332x64xf32, #tpu.memory_space<vmem>>, vector<25x64xf32>
    tpu.vector_store %arg9[%c307, %c0_2], %2 {strides = array<i32>} : memref<332x64xf32, #tpu.memory_space<vmem>>, vector<25x64xf32>,
    %cst_3 = arith.constant 0.000000e+00 : f32
    %4 = vector.broadcast %cst_3 : f32 to vector<19x128xf32>
    %c0_4 = arith.constant 0 : index
    %c0_5 = arith.constant 0 : index
    %5 = vector.load %arg10[%c0_4, %c0_5] : memref<332x128xf32, #tpu.memory_space<vmem>>, vector<19x128xf32>
    tpu.vector_store %arg10[%c0_4, %c0_5], %4 {strides = array<i32>} : memref<332x128xf32, #tpu.memory_space<vmem>>, vector<19x128xf32>,
    %cst_6 = arith.constant 0.000000e+00 : f32
    %6 = vector.broadcast %cst_6 : f32 to vector<25x128xf32>
    %c307_7 = arith.constant 307 : index
    %c0_8 = arith.constant 0 : index
    %7 = vector.load %arg10[%c307_7, %c0_8] : memref<332x128xf32, #tpu.memory_space<vmem>>, vector<25x128xf32>
    tpu.vector_store %arg10[%c307_7, %c0_8], %6 {strides = array<i32>} : memref<332x128xf32, #tpu.memory_space<vmem>>, vector<25x128xf32>,
    %c0_9 = arith.constant 0 : index
    %c0_10 = arith.constant 0 : index
    %8 = vector.load %arg7[%c0_9, %c0_10] : memref<288x1xf32, #tpu.memory_space<vmem>>, vector<288x1xf32>
    %c0_11 = arith.constant 0 : index
    %c0_12 = arith.constant 0 : index
    %c0_13 = arith.constant 0 : index
    %9 = vector.load %arg1[%c0_11, %c0_12, %c0_13] : memref<1x288x36xbf16, #tpu.memory_space<vmem>>, vector<1x288x36xbf16>
    %10 = vector.shape_cast %9 : vector<1x288x36xbf16> to vector<288x36xbf16>
    %c0_14 = arith.constant 0 : index
    %c0_15 = arith.constant 0 : index
    %11 = vector.load %arg2[%c0_14, %c0_15] : memref<36x32xbf16, #tpu.memory_space<vmem>>, vector<36x32xbf16>
    %cst_16 = arith.constant dense<0.000000e+00> : vector<288x32xf32>
    %12 = tpu.matmul %10, %11, %cst_16 {dimension_numbers = #tpu.dot_dimension_numbers<[1], [0], [0], [1], [0, 0, 1, 1], [], []>} : vector<288x36xbf16>, vector<36x32xbf16>, vector<288x32xf32> -> vector<288x32xf32>
    %c0_17 = arith.constant 0 : index
    %c0_18 = arith.constant 0 : index
    %13 = vector.load %arg6[%c0_17, %c0_18] : memref<4x128xf32, #tpu.memory_space<vmem>>, vector<1x32xf32>
    %14 = vector.broadcast %13 : vector<1x32xf32> to vector<288x32xf32>
    %15 = arith.addf %12, %14 : vector<288x32xf32>
    %cst_19 = arith.constant 0.000000e+00 : f32
    %16 = vector.broadcast %cst_19 : f32 to vector<288x32xf32>
    %17 = arith.maximumf %15, %16 : vector<288x32xf32>
    %18 = arith.truncf %17 : vector<288x32xf32> to vector<288x32xbf16>
    %c0_20 = arith.constant 0 : index
    %c0_21 = arith.constant 0 : index
    %19 = vector.load %arg3[%c0_20, %c0_21] : memref<32x128xbf16, #tpu.memory_space<vmem>>, vector<32x128xbf16>
    %cst_22 = arith.constant dense<0.000000e+00> : vector<288x128xf32>
    %20 = tpu.matmul %18, %19, %cst_22 {dimension_numbers = #tpu.dot_dimension_numbers<[1], [0], [0], [1], [0, 0, 1, 1], [], []>} : vector<288x32xbf16>, vector<32x128xbf16>, vector<288x128xf32> -> vector<288x128xf32>
    %c1 = arith.constant 1 : index
    %c0_23 = arith.constant 0 : index
    %21 = vector.load %arg6[%c1, %c0_23] : memref<4x128xf32, #tpu.memory_space<vmem>>, vector<1x128xf32>
    %22 = vector.broadcast %21 : vector<1x128xf32> to vector<288x128xf32>
    %23 = arith.addf %20, %22 : vector<288x128xf32>
    %cst_24 = arith.constant 0.000000e+00 : f32
    %24 = vector.broadcast %cst_24 : f32 to vector<288x128xf32>
    %25 = arith.maximumf %23, %24 : vector<288x128xf32>
    %26 = vector.broadcast %8 : vector<288x1xf32> to vector<288x128xf32>
    %27 = arith.mulf %25, %26 : vector<288x128xf32>
    %28 = vector.extract_strided_slice %27 {offsets = [0, 0], sizes = [288, 64], strides = [1, 1]} : vector<288x128xf32> to vector<288x64xf32>
    %c19 = arith.constant 19 : index
    %c0_25 = arith.constant 0 : index
    %29 = vector.load %arg10[%c19, %c0_25] : memref<332x128xf32, #tpu.memory_space<vmem>>, vector<288x64xf32>
    tpu.vector_store %arg10[%c19, %c0_25], %28 {strides = array<i32>} : memref<332x128xf32, #tpu.memory_space<vmem>>, vector<288x64xf32>,
    %30 = vector.extract_strided_slice %27 {offsets = [0, 64], sizes = [288, 64], strides = [1, 1]} : vector<288x128xf32> to vector<288x64xf32>
    %c19_26 = arith.constant 19 : index
    %c0_27 = arith.constant 0 : index
    %31 = vector.load %arg9[%c19_26, %c0_27] : memref<332x64xf32, #tpu.memory_space<vmem>>, vector<288x64xf32>
    tpu.vector_store %arg9[%c19_26, %c0_27], %30 {strides = array<i32>} : memref<332x64xf32, #tpu.memory_space<vmem>>, vector<288x64xf32>,
    %cst_28 = arith.constant 0.000000e+00 : f32
    %32 = vector.broadcast %cst_28 : f32 to vector<288x64xf32>
    %c0_29 = arith.constant 0 : index
    %c0_30 = arith.constant 0 : index
    %33 = vector.load %arg9[%c0_29, %c0_30] : memref<332x64xf32, #tpu.memory_space<vmem>>, vector<290x64xf32>
    %34 = arith.truncf %33 : vector<290x64xf32> to vector<290x64xbf16>
    %c0_31 = arith.constant 0 : index
    %c0_32 = arith.constant 0 : index
    %c0_33 = arith.constant 0 : index
    %35 = vector.load %arg4[%c0_31, %c0_32, %c0_33] : memref<3x64x192xbf16, #tpu.memory_space<vmem>>, vector<1x64x192xbf16>
    %36 = vector.shape_cast %35 : vector<1x64x192xbf16> to vector<64x192xbf16>
    %cst_34 = arith.constant dense<0.000000e+00> : vector<290x192xf32>
    %37 = tpu.matmul %34, %36, %cst_34 {dimension_numbers = #tpu.dot_dimension_numbers<[1], [0], [0], [1], [0, 0, 1, 1], [], []>} : vector<290x64xbf16>, vector<64x192xbf16>, vector<290x192xf32> -> vector<290x192xf32>
    %c0_35 = arith.constant 0 : index
    %c0_36 = arith.constant 0 : index
    %38 = vector.load %arg11[%c0_35, %c0_36] : memref<332x192xf32, #tpu.memory_space<vmem>>, vector<290x192xf32>
    tpu.vector_store %arg11[%c0_35, %c0_36], %37 {strides = array<i32>} : memref<332x192xf32, #tpu.memory_space<vmem>>, vector<290x192xf32>,
    %c0_37 = arith.constant 0 : index
    %c0_38 = arith.constant 0 : index
    %39 = vector.load %arg11[%c0_37, %c0_38] : memref<332x192xf32, #tpu.memory_space<vmem>>, vector<288x64xf32>
    %40 = arith.addf %32, %39 : vector<288x64xf32>
    %c1_39 = arith.constant 1 : index
    %c64 = arith.constant 64 : index
    %41 = vector.load %arg11[%c1_39, %c64] : memref<332x192xf32, #tpu.memory_space<vmem>>, vector<288x64xf32>
    %42 = arith.addf %40, %41 : vector<288x64xf32>
    %c2 = arith.constant 2 : index
    %c128 = arith.constant 128 : index
    %43 = vector.load %arg11[%c2, %c128] : memref<332x192xf32, #tpu.memory_space<vmem>>, vector<288x64xf32>
    %44 = arith.addf %42, %43 : vector<288x64xf32>
    %c18 = arith.constant 18 : index
    %c0_40 = arith.constant 0 : index
    %45 = vector.load %arg9[%c18, %c0_40] : memref<332x64xf32, #tpu.memory_space<vmem>>, vector<290x64xf32>
    %46 = arith.truncf %45 : vector<290x64xf32> to vector<290x64xbf16>
    %c1_41 = arith.constant 1 : index
    %c0_42 = arith.constant 0 : index
    %c0_43 = arith.constant 0 : index
    %47 = vector.load %arg4[%c1_41, %c0_42, %c0_43] : memref<3x64x192xbf16, #tpu.memory_space<vmem>>, vector<1x64x192xbf16>
    %48 = vector.shape_cast %47 : vector<1x64x192xbf16> to vector<64x192xbf16>
    %cst_44 = arith.constant dense<0.000000e+00> : vector<290x192xf32>
    %49 = tpu.matmul %46, %48, %cst_44 {dimension_numbers = #tpu.dot_dimension_numbers<[1], [0], [0], [1], [0, 0, 1, 1], [], []>} : vector<290x64xbf16>, vector<64x192xbf16>, vector<290x192xf32> -> vector<290x192xf32>
    %c0_45 = arith.constant 0 : index
    %c0_46 = arith.constant 0 : index
    %50 = vector.load %arg11[%c0_45, %c0_46] : memref<332x192xf32, #tpu.memory_space<vmem>>, vector<290x192xf32>
    tpu.vector_store %arg11[%c0_45, %c0_46], %49 {strides = array<i32>} : memref<332x192xf32, #tpu.memory_space<vmem>>, vector<290x192xf32>,
    %c0_47 = arith.constant 0 : index
    %c0_48 = arith.constant 0 : index
    %51 = vector.load %arg11[%c0_47, %c0_48] : memref<332x192xf32, #tpu.memory_space<vmem>>, vector<288x64xf32>
    %52 = arith.addf %44, %51 : vector<288x64xf32>
    %c1_49 = arith.constant 1 : index
    %c64_50 = arith.constant 64 : index
    %53 = vector.load %arg11[%c1_49, %c64_50] : memref<332x192xf32, #tpu.memory_space<vmem>>, vector<288x64xf32>
    %54 = arith.addf %52, %53 : vector<288x64xf32>
    %c2_51 = arith.constant 2 : index
    %c128_52 = arith.constant 128 : index
    %55 = vector.load %arg11[%c2_51, %c128_52] : memref<332x192xf32, #tpu.memory_space<vmem>>, vector<288x64xf32>
    %56 = arith.addf %54, %55 : vector<288x64xf32>
    %c36 = arith.constant 36 : index
    %c0_53 = arith.constant 0 : index
    %57 = vector.load %arg9[%c36, %c0_53] : memref<332x64xf32, #tpu.memory_space<vmem>>, vector<290x64xf32>
    %58 = arith.truncf %57 : vector<290x64xf32> to vector<290x64xbf16>
    %c2_54 = arith.constant 2 : index
    %c0_55 = arith.constant 0 : index
    %c0_56 = arith.constant 0 : index
    %59 = vector.load %arg4[%c2_54, %c0_55, %c0_56] : memref<3x64x192xbf16, #tpu.memory_space<vmem>>, vector<1x64x192xbf16>
    %60 = vector.shape_cast %59 : vector<1x64x192xbf16> to vector<64x192xbf16>
    %cst_57 = arith.constant dense<0.000000e+00> : vector<290x192xf32>
    %61 = tpu.matmul %58, %60, %cst_57 {dimension_numbers = #tpu.dot_dimension_numbers<[1], [0], [0], [1], [0, 0, 1, 1], [], []>} : vector<290x64xbf16>, vector<64x192xbf16>, vector<290x192xf32> -> vector<290x192xf32>
    %c0_58 = arith.constant 0 : index
    %c0_59 = arith.constant 0 : index
    %62 = vector.load %arg11[%c0_58, %c0_59] : memref<332x192xf32, #tpu.memory_space<vmem>>, vector<290x192xf32>
    tpu.vector_store %arg11[%c0_58, %c0_59], %61 {strides = array<i32>} : memref<332x192xf32, #tpu.memory_space<vmem>>, vector<290x192xf32>,
    %c0_60 = arith.constant 0 : index
    %c0_61 = arith.constant 0 : index
    %63 = vector.load %arg11[%c0_60, %c0_61] : memref<332x192xf32, #tpu.memory_space<vmem>>, vector<288x64xf32>
    %64 = arith.addf %56, %63 : vector<288x64xf32>
    %c1_62 = arith.constant 1 : index
    %c64_63 = arith.constant 64 : index
    %65 = vector.load %arg11[%c1_62, %c64_63] : memref<332x192xf32, #tpu.memory_space<vmem>>, vector<288x64xf32>
    %66 = arith.addf %64, %65 : vector<288x64xf32>
    %c2_64 = arith.constant 2 : index
    %c128_65 = arith.constant 128 : index
    %67 = vector.load %arg11[%c2_64, %c128_65] : memref<332x192xf32, #tpu.memory_space<vmem>>, vector<288x64xf32>
    %68 = arith.addf %66, %67 : vector<288x64xf32>
    %c2_66 = arith.constant 2 : index
    %c0_67 = arith.constant 0 : index
    %69 = vector.load %arg6[%c2_66, %c0_67] : memref<4x128xf32, #tpu.memory_space<vmem>>, vector<1x64xf32>
    %70 = vector.broadcast %69 : vector<1x64xf32> to vector<288x64xf32>
    %71 = arith.addf %68, %70 : vector<288x64xf32>
    %cst_68 = arith.constant 0.000000e+00 : f32
    %72 = vector.broadcast %cst_68 : f32 to vector<288x64xf32>
    %73 = arith.maximumf %71, %72 : vector<288x64xf32>
    %74 = vector.broadcast %8 : vector<288x1xf32> to vector<288x64xf32>
    %75 = arith.mulf %73, %74 : vector<288x64xf32>
    %c19_69 = arith.constant 19 : index
    %c64_70 = arith.constant 64 : index
    %76 = vector.load %arg10[%c19_69, %c64_70] : memref<332x128xf32, #tpu.memory_space<vmem>>, vector<288x64xf32>
    tpu.vector_store %arg10[%c19_69, %c64_70], %75 {strides = array<i32>} : memref<332x128xf32, #tpu.memory_space<vmem>>, vector<288x64xf32>,
    %c0_71 = arith.constant 0 : index
    %c0_72 = arith.constant 0 : index
    %77 = vector.load %arg10[%c0_71, %c0_72] : memref<332x128xf32, #tpu.memory_space<vmem>>, vector<332x128xf32>
    %78 = arith.truncf %77 : vector<332x128xf32> to vector<332x128xbf16>
    %c0_73 = arith.constant 0 : index
    %c0_74 = arith.constant 0 : index
    %79 = vector.load %arg5[%c0_73, %c0_74] : memref<128x72xbf16, #tpu.memory_space<vmem>>, vector<128x72xbf16>
    %cst_75 = arith.constant dense<0.000000e+00> : vector<332x72xf32>
    %80 = tpu.matmul %78, %79, %cst_75 {dimension_numbers = #tpu.dot_dimension_numbers<[1], [0], [0], [1], [0, 0, 1, 1], [], []>} : vector<332x128xbf16>, vector<128x72xbf16>, vector<332x72xf32> -> vector<332x72xf32>
    %c0_76 = arith.constant 0 : index
    %c0_77 = arith.constant 0 : index
    %81 = vector.load %arg11[%c0_76, %c0_77] : memref<332x192xf32, #tpu.memory_space<vmem>>, vector<332x72xf32>
    tpu.vector_store %arg11[%c0_76, %c0_77], %80 {strides = array<i32>} : memref<332x192xf32, #tpu.memory_space<vmem>>, vector<332x72xf32>,
    %cst_78 = arith.constant 0.000000e+00 : f32
    %82 = vector.broadcast %cst_78 : f32 to vector<288x8xf32>
    %c3 = arith.constant 3 : index
    %c0_79 = arith.constant 0 : index
    %83 = vector.load %arg6[%c3, %c0_79] : memref<4x128xf32, #tpu.memory_space<vmem>>, vector<1x8xf32>
    %84 = vector.broadcast %83 : vector<1x8xf32> to vector<288x8xf32>
    %85 = arith.addf %82, %84 : vector<288x8xf32>
    %c0_80 = arith.constant 0 : index
    %c0_81 = arith.constant 0 : index
    %86 = vector.load %arg11[%c0_80, %c0_81] : memref<332x192xf32, #tpu.memory_space<vmem>>, vector<288x8xf32>
    %87 = arith.addf %85, %86 : vector<288x8xf32>
    %c1_82 = arith.constant 1 : index
    %c8 = arith.constant 8 : index
    %88 = vector.load %arg11[%c1_82, %c8] : memref<332x192xf32, #tpu.memory_space<vmem>>, vector<288x8xf32>
    %89 = arith.addf %87, %88 : vector<288x8xf32>
    %c2_83 = arith.constant 2 : index
    %c16 = arith.constant 16 : index
    %90 = vector.load %arg11[%c2_83, %c16] : memref<332x192xf32, #tpu.memory_space<vmem>>, vector<288x8xf32>
    %91 = arith.addf %89, %90 : vector<288x8xf32>
    %c18_84 = arith.constant 18 : index
    %c24 = arith.constant 24 : index
    %92 = vector.load %arg11[%c18_84, %c24] : memref<332x192xf32, #tpu.memory_space<vmem>>, vector<288x8xf32>
    %93 = arith.addf %91, %92 : vector<288x8xf32>
    %c19_85 = arith.constant 19 : index
    %c32 = arith.constant 32 : index
    %94 = vector.load %arg11[%c19_85, %c32] : memref<332x192xf32, #tpu.memory_space<vmem>>, vector<288x8xf32>
    %95 = arith.addf %93, %94 : vector<288x8xf32>
    %c20 = arith.constant 20 : index
    %c40 = arith.constant 40 : index
    %96 = vector.load %arg11[%c20, %c40] : memref<332x192xf32, #tpu.memory_space<vmem>>, vector<288x8xf32>
    %97 = arith.addf %95, %96 : vector<288x8xf32>
    %c36_86 = arith.constant 36 : index
    %c48 = arith.constant 48 : index
    %98 = vector.load %arg11[%c36_86, %c48] : memref<332x192xf32, #tpu.memory_space<vmem>>, vector<288x8xf32>
    %99 = arith.addf %97, %98 : vector<288x8xf32>
    %c37 = arith.constant 37 : index
    %c56 = arith.constant 56 : index
    %100 = vector.load %arg11[%c37, %c56] : memref<332x192xf32, #tpu.memory_space<vmem>>, vector<288x8xf32>
    %101 = arith.addf %99, %100 : vector<288x8xf32>
    %c38 = arith.constant 38 : index
    %c64_87 = arith.constant 64 : index
    %102 = vector.load %arg11[%c38, %c64_87] : memref<332x192xf32, #tpu.memory_space<vmem>>, vector<288x8xf32>
    %103 = arith.addf %101, %102 : vector<288x8xf32>
    %c0_88 = arith.constant 0 : index
    %c0_89 = arith.constant 0 : index
    %c0_90 = arith.constant 0 : index
    %104 = vector.load %arg8[%c0_88, %c0_89, %c0_90] : memref<1x288x8xf32, #tpu.memory_space<vmem>>, vector<1x288x8xf32>
    %105 = vector.shape_cast %104 : vector<1x288x8xf32> to vector<288x8xf32>
    %106 = vector.shape_cast %103 : vector<288x8xf32> to vector<1x288x8xf32>
    tpu.vector_store %arg8[%c0_88, %c0_89, %c0_90], %106 {strides = array<i32>} : memref<1x288x8xf32, #tpu.memory_space<vmem>>, vector<1x288x8xf32>,
    return
  }
  func.func @transform_0(%arg0: i32) -> (i32, i32, i32) {
    %c0_i32 = arith.constant 0 : i32
    %c0_i32_0 = arith.constant 0 : i32
    %c0_i32_1 = arith.constant 0 : i32
    return %arg0, %c0_i32, %c0_i32_0 : i32, i32, i32
  }
  func.func @transform_1(%arg0: i32) -> (i32, i32) {
    %c0_i32 = arith.constant 0 : i32
    %c0_i32_0 = arith.constant 0 : i32
    %c0_i32_1 = arith.constant 0 : i32
    return %c0_i32, %c0_i32_0 : i32, i32
  }
  func.func @transform_2(%arg0: i32) -> (i32, i32) {
    %c0_i32 = arith.constant 0 : i32
    %c0_i32_0 = arith.constant 0 : i32
    %c0_i32_1 = arith.constant 0 : i32
    return %c0_i32, %c0_i32_0 : i32, i32
  }
  func.func @transform_3(%arg0: i32) -> (i32, i32, i32) {
    %c0_i32 = arith.constant 0 : i32
    %c0_i32_0 = arith.constant 0 : i32
    %c0_i32_1 = arith.constant 0 : i32
    %c0_i32_2 = arith.constant 0 : i32
    return %c0_i32, %c0_i32_0, %c0_i32_1 : i32, i32, i32
  }
  func.func @transform_4(%arg0: i32) -> (i32, i32) {
    %c0_i32 = arith.constant 0 : i32
    %c0_i32_0 = arith.constant 0 : i32
    %c0_i32_1 = arith.constant 0 : i32
    return %c0_i32, %c0_i32_0 : i32, i32
  }
  func.func @transform_5(%arg0: i32) -> (i32, i32) {
    %c0_i32 = arith.constant 0 : i32
    %c0_i32_0 = arith.constant 0 : i32
    %c0_i32_1 = arith.constant 0 : i32
    return %c0_i32, %c0_i32_0 : i32, i32
  }
  func.func @transform_6(%arg0: i32) -> (i32, i32) {
    %c0_i32 = arith.constant 0 : i32
    %c0_i32_0 = arith.constant 0 : i32
    %c0_i32_1 = arith.constant 0 : i32
    return %c0_i32, %c0_i32_0 : i32, i32
  }
  func.func @transform_7(%arg0: i32) -> (i32, i32, i32) {
    %c0_i32 = arith.constant 0 : i32
    %c0_i32_0 = arith.constant 0 : i32
    %c0_i32_1 = arith.constant 0 : i32
    return %arg0, %c0_i32, %c0_i32_0 : i32, i32, i32
  }
}

</mosaic_0001>

<llo_original>
// kernel: tile.8
$region0: #{tile.8}
  #allocation0 [shape = 's32[1]{0}', space=sflag, size = 0x4, scoped, tag = 'scoped memory for tile.8']
  %s0 = inlined_call_operand.vmem [shape: f32[18], index: 0, kind: input, shape index: {}]
  %s1 = inlined_call_operand.vmem [shape: f32[16,18], index: 1, kind: output, shape index: {}]
  // Predicated region
  $region2: #{tile.8} parent=0 // pred_check
    _
  $region3: #{tile.8} parent=0 // pred_check_branch
    %3 = sbr.rel (0) target = $region5
  $region4: #{tile.8} parent=0 // pred_region
    _
  $region5: #{tile.8} parent=0 // pred_fallthru
    _
  %v4 = vld [vmem:[%s0] ss:$0 sm:$0xff]
  %5 = vst [vmem:[%s1] sm:$0xff] %v4
  %s6 = scalar_lea.vmem %s1, 8
  %7 = vst [vmem:[%s6] sm:$0xff] %v4

// kernel: tile.0
$region0: #{tile.0}
  %s0 = inlined_call_operand.vmem [shape: f32[16,18], index: 0, kind: input, shape index: {}]
  %s1 = inlined_call_operand.vmem [shape: f32[288,1], index: 1, kind: output, shape index: {}]
  %v2 = vld [vmem:[%s0] sm:$0xff]
  %vm3 = vcmask 7168
  %4 = vst.msk [vmem:[%s1] ss:$18 sm:$0xff] %vm3, %v2
  %s5 = scalar_lea.vmem %s0, 8
  %v6 = vld [vmem:[%s5] sm:$0xff]
  %vm7 = vcmask 7168
  %s8 = scalar_lea.vmem %s1, 144
  %9 = vst.msk [vmem:[%s8] ss:$18 sm:$0xff] %vm7, %v6
  %v10 = vld.sshfl [vmem:[%s0] sm:$0xff pattern:$0xf6d4b290]
  %11 = vrot.lane.b32.xlu0 %v10, 127
  %v12 = vpop.permute.xlu0 %11
  %vm13 = vcmask 7168
  %s14 = scalar_lea.vmem %s1, 1
  %15 = vst.msk [vmem:[%s14] ss:$162 sm:$0x3] %vm13, %v12
  %s16 = scalar_lea.vmem %s1, 4294967009
  %17 = vst.msk [vmem:[%s16] ss:$162 sm:$0xc] %vm13, %v12
  %s18 = scalar_lea.vmem %s1, 4294966721
  %19 = vst.msk [vmem:[%s18] ss:$162 sm:$0x30] %vm13, %v12
  %s20 = scalar_lea.vmem %s1, 4294966433
  %21 = vst.msk [vmem:[%s20] ss:$162 sm:$0xc0] %vm13, %v12
  %s22 = scalar_lea.vmem %s0, 1
  %v23 = vld.sshfl [vmem:[%s22] sm:$0xff pattern:$0x6d4b2907]
  %24 = vrot.lane.b32.xlu0 %v23, 127
  %v25 = vpop.permute.xlu0 %24
  %vm26 = vcmask 7168
  %s27 = scalar_lea.vmem %s1, 145
  %28 = vst.msk [vmem:[%s27] ss:$-126 sm:$0x3] %vm26, %v25
  %s29 = scalar_lea.vmem %s1, 433
  %30 = vst.msk [vmem:[%s29] ss:$-126 sm:$0xc] %vm26, %v25
  %s31 = scalar_lea.vmem %s1, 721
  %32 = vst.msk [vmem:[%s31] ss:$-126 sm:$0x30] %vm26, %v25
  %s33 = scalar_lea.vmem %s1, 1009
  %34 = vst.msk [vmem:[%s33] ss:$-126 sm:$0xc0] %vm26, %v25
  %v35 = vld.sshfl [vmem:[%s0] sm:$0xff pattern:$0x6d4b2907]
  %36 = vrot.lane.b32.xlu0 %v35, 126
  %v37 = vpop.permute.xlu0 %36
  %vm38 = vcmask 7168
  %s39 = scalar_lea.vmem %s1, 128
  %40 = vst.msk [vmem:[%s39] ss:$-126 sm:$0x3] %vm38, %v37
  %s41 = scalar_lea.vmem %s1, 416
  %42 = vst.msk [vmem:[%s41] ss:$-126 sm:$0xc] %vm38, %v37
  %s43 = scalar_lea.vmem %s1, 704
  %44 = vst.msk [vmem:[%s43] ss:$-126 sm:$0x30] %vm38, %v37
  %s45 = scalar_lea.vmem %s1, 992
  %46 = vst.msk [vmem:[%s45] ss:$-126 sm:$0xc0] %vm38, %v37
  %s47 = scalar_lea.vmem %s0, 1
  %v48 = vld.sshfl [vmem:[%s47] sm:$0xff pattern:$0xd4b2907e]
  %49 = vrot.lane.b32.xlu0 %v48, 126
  %v50 = vpop.permute.xlu0 %49
  %vm51 = vcmask 7168
  %s52 = scalar_lea.vmem %s1, 272
  %53 = vst.msk [vmem:[%s52] ss:$-126 sm:$0x7] %vm51, %v50
  %s54 = scalar_lea.vmem %s1, 560
  %55 = vst.msk [vmem:[%s54] ss:$-126 sm:$0x18] %vm51, %v50
  %s56 = scalar_lea.vmem %s1, 848
  %57 = vst.msk [vmem:[%s56] ss:$-126 sm:$0x60] %vm51, %v50
  %s58 = scalar_lea.vmem %s1, 247
  %59 = vst.msk [vmem:[%s58] sm:$0x80] %vm51, %v50
  %v60 = vld.sshfl [vmem:[%s0] sm:$0xff pattern:$0x6d4b2907]
  %61 = vrot.lane.b32.xlu0 %v60, 125
  %v62 = vpop.permute.xlu0 %61
  %vm63 = vcmask 7168
  %s64 = scalar_lea.vmem %s1, 129
  %65 = vst.msk [vmem:[%s64] ss:$-126 sm:$0x3] %vm63, %v62
  %s66 = scalar_lea.vmem %s1, 417
  %67 = vst.msk [vmem:[%s66] ss:$-126 sm:$0xc] %vm63, %v62
  %s68 = scalar_lea.vmem %s1, 705
  %69 = vst.msk [vmem:[%s68] ss:$-126 sm:$0x30] %vm63, %v62
  %s70 = scalar_lea.vmem %s1, 993
  %71 = vst.msk [vmem:[%s70] ss:$-126 sm:$0xc0] %vm63, %v62
  %s72 = scalar_lea.vmem %s0, 1
  %v73 = vld.sshfl [vmem:[%s72] sm:$0xff pattern:$0xd4b2907e]
  %74 = vrot.lane.b32.xlu0 %v73, 125
  %v75 = vpop.permute.xlu0 %74
  %vm76 = vcmask 7168
  %s77 = scalar_lea.vmem %s1, 273
  %78 = vst.msk [vmem:[%s77] ss:$-126 sm:$0x7] %vm76, %v75
  %s79 = scalar_lea.vmem %s1, 561
  %80 = vst.msk [vmem:[%s79] ss:$-126 sm:$0x18] %vm76, %v75
  %s81 = scalar_lea.vmem %s1, 849
  %82 = vst.msk [vmem:[%s81] ss:$-126 sm:$0x60] %vm76, %v75
  %s83 = scalar_lea.vmem %s1, 248
  %84 = vst.msk [vmem:[%s83] sm:$0x80] %vm76, %v75
  %v85 = vld.sshfl [vmem:[%s0] sm:$0xff pattern:$0xd4b2907e]
  %86 = vrot.lane.b32.xlu0 %v85, 124
  %v87 = vpop.permute.xlu0 %86
  %vm88 = vcmask 7168
  %s89 = scalar_lea.vmem %s1, 256
  %90 = vst.msk [vmem:[%s89] ss:$-126 sm:$0x7] %vm88, %v87
  %s91 = scalar_lea.vmem %s1, 544
  %92 = vst.msk [vmem:[%s91] ss:$-126 sm:$0x18] %vm88, %v87
  %s93 = scalar_lea.vmem %s1, 832
  %94 = vst.msk [vmem:[%s93] ss:$-126 sm:$0x60] %vm88, %v87
  %s95 = scalar_lea.vmem %s1, 231
  %96 = vst.msk [vmem:[%s95] sm:$0x80] %vm88, %v87
  %s97 = scalar_lea.vmem %s0, 1
  %v98 = vld.sshfl [vmem:[%s97] sm:$0xff pattern:$0x4b2907e5]
  %99 = vrot.lane.b32.xlu0 %v98, 124
  %v100 = vpop.permute.xlu0 %99
  %vm101 = vcmask 7168
  %s102 = scalar_lea.vmem %s1, 112
  %103 = vst.msk [vmem:[%s102] ss:$162 sm:$0x3] %vm101, %v100
  %s104 = scalar_lea.vmem %s1, 400
  %105 = vst.msk [vmem:[%s104] ss:$-126 sm:$0xc] %vm101, %v100
  %s106 = scalar_lea.vmem %s1, 688
  %107 = vst.msk [vmem:[%s106] ss:$-126 sm:$0x30] %vm101, %v100
  %s108 = scalar_lea.vmem %s1, 976
  %109 = vst.msk [vmem:[%s108] ss:$-126 sm:$0xc0] %vm101, %v100
  %v110 = vld.sshfl [vmem:[%s0] sm:$0xff pattern:$0xd4b2907e]
  %111 = vrot.lane.b32.xlu0 %v110, 123
  %v112 = vpop.permute.xlu0 %111
  %vm113 = vcmask 7168
  %s114 = scalar_lea.vmem %s1, 257
  %115 = vst.msk [vmem:[%s114] ss:$-126 sm:$0x7] %vm113, %v112
  %s116 = scalar_lea.vmem %s1, 545
  %117 = vst.msk [vmem:[%s116] ss:$-126 sm:$0x18] %vm113, %v112
  %s118 = scalar_lea.vmem %s1, 833
  %119 = vst.msk [vmem:[%s118] ss:$-126 sm:$0x60] %vm113, %v112
  %s120 = scalar_lea.vmem %s1, 232
  %121 = vst.msk [vmem:[%s120] sm:$0x80] %vm113, %v112
  %s122 = scalar_lea.vmem %s0, 1
  %v123 = vld.sshfl [vmem:[%s122] sm:$0xff pattern:$0x4b2907e5]
  %124 = vrot.lane.b32.xlu0 %v123, 123
  %v125 = vpop.permute.xlu0 %124
  %vm126 = vcmask 7168
  %s127 = scalar_lea.vmem %s1, 113
  %128 = vst.msk [vmem:[%s127] ss:$162 sm:$0x3] %vm126, %v125
  %s129 = scalar_lea.vmem %s1, 401
  %130 = vst.msk [vmem:[%s129] ss:$-126 sm:$0xc] %vm126, %v125
  %s131 = scalar_lea.vmem %s1, 689
  %132 = vst.msk [vmem:[%s131] ss:$-126 sm:$0x30] %vm126, %v125
  %s133 = scalar_lea.vmem %s1, 977
  %134 = vst.msk [vmem:[%s133] ss:$-126 sm:$0xc0] %vm126, %v125
  %v135 = vld.sshfl [vmem:[%s0] sm:$0xff pattern:$0x4b2907e5]
  %136 = vrot.lane.b32.xlu0 %v135, 122
  %v137 = vpop.permute.xlu0 %136
  %vm138 = vcmask 7168
  %s139 = scalar_lea.vmem %s1, 96
  %140 = vst.msk [vmem:[%s139] ss:$162 sm:$0x3] %vm138, %v137
  %s141 = scalar_lea.vmem %s1, 384
  %142 = vst.msk [vmem:[%s141] ss:$-126 sm:$0xc] %vm138, %v137
  %s143 = scalar_lea.vmem %s1, 672
  %144 = vst.msk [vmem:[%s143] ss:$-126 sm:$0x30] %vm138, %v137
  %s145 = scalar_lea.vmem %s1, 960
  %146 = vst.msk [vmem:[%s145] ss:$-126 sm:$0xc0] %vm138, %v137
  %s147 = scalar_lea.vmem %s0, 1
  %v148 = vld.sshfl [vmem:[%s147] sm:$0xff pattern:$0xb2907e5c]
  %149 = vrot.lane.b32.xlu0 %v148, 122
  %v150 = vpop.permute.xlu0 %149
  %vm151 = vcmask 7168
  %s152 = scalar_lea.vmem %s1, 240
  %153 = vst.msk [vmem:[%s152] ss:$-126 sm:$0x3] %vm151, %v150
  %s154 = scalar_lea.vmem %s1, 528
  %155 = vst.msk [vmem:[%s154] ss:$-126 sm:$0x1c] %vm151, %v150
  %s156 = scalar_lea.vmem %s1, 816
  %157 = vst.msk [vmem:[%s156] ss:$-126 sm:$0x60] %vm151, %v150
  %s158 = scalar_lea.vmem %s1, 215
  %159 = vst.msk [vmem:[%s158] sm:$0x80] %vm151, %v150
  %v160 = vld.sshfl [vmem:[%s0] sm:$0xff pattern:$0x4b2907e5]
  %161 = vrot.lane.b32.xlu0 %v160, 121
  %v162 = vpop.permute.xlu0 %161
  %vm163 = vcmask 7168
  %s164 = scalar_lea.vmem %s1, 97
  %165 = vst.msk [vmem:[%s164] ss:$162 sm:$0x3] %vm163, %v162
  %s166 = scalar_lea.vmem %s1, 385
  %167 = vst.msk [vmem:[%s166] ss:$-126 sm:$0xc] %vm163, %v162
  %s168 = scalar_lea.vmem %s1, 673
  %169 = vst.msk [vmem:[%s168] ss:$-126 sm:$0x30] %vm163, %v162
  %s170 = scalar_lea.vmem %s1, 961
  %171 = vst.msk [vmem:[%s170] ss:$-126 sm:$0xc0] %vm163, %v162
  %s172 = scalar_lea.vmem %s0, 1
  %v173 = vld.sshfl [vmem:[%s172] sm:$0xff pattern:$0xb2907e5c]
  %174 = vrot.lane.b32.xlu0 %v173, 121
  %v175 = vpop.permute.xlu0 %174
  %vm176 = vcmask 7168
  %s177 = scalar_lea.vmem %s1, 241
  %178 = vst.msk [vmem:[%s177] ss:$-126 sm:$0x3] %vm176, %v175
  %s179 = scalar_lea.vmem %s1, 529
  %180 = vst.msk [vmem:[%s179] ss:$-126 sm:$0x1c] %vm176, %v175
  %s181 = scalar_lea.vmem %s1, 817
  %182 = vst.msk [vmem:[%s181] ss:$-126 sm:$0x60] %vm176, %v175
  %s183 = scalar_lea.vmem %s1, 216
  %184 = vst.msk [vmem:[%s183] sm:$0x80] %vm176, %v175
  %v185 = vld.sshfl [vmem:[%s0] sm:$0xff pattern:$0xb2907e5c]
  %186 = vrot.lane.b32.xlu0 %v185, 120
  %v187 = vpop.permute.xlu0 %186
  %vm188 = vcmask 7168
  %s189 = scalar_lea.vmem %s1, 224
  %190 = vst.msk [vmem:[%s189] ss:$-126 sm:$0x3] %vm188, %v187
  %s191 = scalar_lea.vmem %s1, 512
  %192 = vst.msk [vmem:[%s191] ss:$-126 sm:$0x1c] %vm188, %v187
  %s193 = scalar_lea.vmem %s1, 800
  %194 = vst.msk [vmem:[%s193] ss:$-126 sm:$0x60] %vm188, %v187
  %s195 = scalar_lea.vmem %s1, 199
  %196 = vst.msk [vmem:[%s195] sm:$0x80] %vm188, %v187
  %s197 = scalar_lea.vmem %s0, 1
  %v198 = vld.sshfl [vmem:[%s197] sm:$0xff pattern:$0x2907e5c3]
  %199 = vrot.lane.b32.xlu0 %v198, 120
  %v200 = vpop.permute.xlu0 %199
  %vm201 = vcmask 7168
  %s202 = scalar_lea.vmem %s1, 80
  %203 = vst.msk [vmem:[%s202] ss:$162 sm:$0x3] %vm201, %v200
  %s204 = scalar_lea.vmem %s1, 4294967088
  %205 = vst.msk [vmem:[%s204] ss:$162 sm:$0xc] %vm201, %v200
  %s206 = scalar_lea.vmem %s1, 656
  %207 = vst.msk [vmem:[%s206] ss:$-126 sm:$0x30] %vm201, %v200
  %s208 = scalar_lea.vmem %s1, 944
  %209 = vst.msk [vmem:[%s208] ss:$-126 sm:$0xc0] %vm201, %v200
  %v210 = vld.sshfl [vmem:[%s0] sm:$0xff pattern:$0xb2907e5c]
  %211 = vrot.lane.b32.xlu0 %v210, 119
  %v212 = vpop.permute.xlu0 %211
  %vm213 = vcmask 7168
  %s214 = scalar_lea.vmem %s1, 225
  %215 = vst.msk [vmem:[%s214] ss:$-126 sm:$0x3] %vm213, %v212
  %s216 = scalar_lea.vmem %s1, 513
  %217 = vst.msk [vmem:[%s216] ss:$-126 sm:$0x1c] %vm213, %v212
  %s218 = scalar_lea.vmem %s1, 801
  %219 = vst.msk [vmem:[%s218] ss:$-126 sm:$0x60] %vm213, %v212
  %s220 = scalar_lea.vmem %s1, 200
  %221 = vst.msk [vmem:[%s220] sm:$0x80] %vm213, %v212
  %s222 = scalar_lea.vmem %s0, 1
  %v223 = vld.sshfl [vmem:[%s222] sm:$0xff pattern:$0x2907e5c3]
  %224 = vrot.lane.b32.xlu0 %v223, 119
  %v225 = vpop.permute.xlu0 %224
  %vm226 = vcmask 7168
  %s227 = scalar_lea.vmem %s1, 81
  %228 = vst.msk [vmem:[%s227] ss:$162 sm:$0x3] %vm226, %v225
  %s229 = scalar_lea.vmem %s1, 4294967089
  %230 = vst.msk [vmem:[%s229] ss:$162 sm:$0xc] %vm226, %v225
  %s231 = scalar_lea.vmem %s1, 657
  %232 = vst.msk [vmem:[%s231] ss:$-126 sm:$0x30] %vm226, %v225
  %s233 = scalar_lea.vmem %s1, 945
  %234 = vst.msk [vmem:[%s233] ss:$-126 sm:$0xc0] %vm226, %v225
  %v235 = vld.sshfl [vmem:[%s0] sm:$0xff pattern:$0x2907e5c3]
  %236 = vrot.lane.b32.xlu0 %v235, 118
  %v237 = vpop.permute.xlu0 %236
  %vm238 = vcmask 7168
  %s239 = scalar_lea.vmem %s1, 64
  %240 = vst.msk [vmem:[%s239] ss:$162 sm:$0x3] %vm238, %v237
  %s241 = scalar_lea.vmem %s1, 4294967072
  %242 = vst.msk [vmem:[%s241] ss:$162 sm:$0xc] %vm238, %v237
  %s243 = scalar_lea.vmem %s1, 640
  %244 = vst.msk [vmem:[%s243] ss:$-126 sm:$0x30] %vm238, %v237
  %s245 = scalar_lea.vmem %s1, 928
  %246 = vst.msk [vmem:[%s245] ss:$-126 sm:$0xc0] %vm238, %v237
  %s247 = scalar_lea.vmem %s0, 1
  %v248 = vld.sshfl [vmem:[%s247] sm:$0xff pattern:$0x907e5c3a]
  %249 = vrot.lane.b32.xlu0 %v248, 118
  %v250 = vpop.permute.xlu0 %249
  %vm251 = vcmask 7168
  %s252 = scalar_lea.vmem %s1, 208
  %253 = vst.msk [vmem:[%s252] ss:$-126 sm:$0x3] %vm251, %v250
  %s254 = scalar_lea.vmem %s1, 496
  %255 = vst.msk [vmem:[%s254] ss:$-126 sm:$0xc] %vm251, %v250
  %s256 = scalar_lea.vmem %s1, 784
  %257 = vst.msk [vmem:[%s256] ss:$-126 sm:$0x70] %vm251, %v250
  %s258 = scalar_lea.vmem %s1, 183
  %259 = vst.msk [vmem:[%s258] sm:$0x80] %vm251, %v250
  %v260 = vld.sshfl [vmem:[%s0] sm:$0xff pattern:$0x2907e5c3]
  %261 = vrot.lane.b32.xlu0 %v260, 117
  %v262 = vpop.permute.xlu0 %261
  %vm263 = vcmask 7168
  %s264 = scalar_lea.vmem %s1, 65
  %265 = vst.msk [vmem:[%s264] ss:$162 sm:$0x3] %vm263, %v262
  %s266 = scalar_lea.vmem %s1, 4294967073
  %267 = vst.msk [vmem:[%s266] ss:$162 sm:$0xc] %vm263, %v262
  %s268 = scalar_lea.vmem %s1, 641
  %269 = vst.msk [vmem:[%s268] ss:$-126 sm:$0x30] %vm263, %v262
  %s270 = scalar_lea.vmem %s1, 929
  %271 = vst.msk [vmem:[%s270] ss:$-126 sm:$0xc0] %vm263, %v262
  %s272 = scalar_lea.vmem %s0, 1
  %v273 = vld.sshfl [vmem:[%s272] sm:$0xff pattern:$0x907e5c3a]
  %274 = vrot.lane.b32.xlu0 %v273, 117
  %v275 = vpop.permute.xlu0 %274
  %vm276 = vcmask 7168
  %s277 = scalar_lea.vmem %s1, 209
  %278 = vst.msk [vmem:[%s277] ss:$-126 sm:$0x3] %vm276, %v275
  %s279 = scalar_lea.vmem %s1, 497
  %280 = vst.msk [vmem:[%s279] ss:$-126 sm:$0xc] %vm276, %v275
  %s281 = scalar_lea.vmem %s1, 785
  %282 = vst.msk [vmem:[%s281] ss:$-126 sm:$0x70] %vm276, %v275
  %s283 = scalar_lea.vmem %s1, 184
  %284 = vst.msk [vmem:[%s283] sm:$0x80] %vm276, %v275
  %v285 = vld.sshfl [vmem:[%s0] sm:$0xff pattern:$0x907e5c3a]
  %286 = vrot.lane.b32.xlu0 %v285, 116
  %v287 = vpop.permute.xlu0 %286
  %vm288 = vcmask 7168
  %s289 = scalar_lea.vmem %s1, 192
  %290 = vst.msk [vmem:[%s289] ss:$-126 sm:$0x3] %vm288, %v287
  %s291 = scalar_lea.vmem %s1, 480
  %292 = vst.msk [vmem:[%s291] ss:$-126 sm:$0xc] %vm288, %v287
  %s293 = scalar_lea.vmem %s1, 768
  %294 = vst.msk [vmem:[%s293] ss:$-126 sm:$0x70] %vm288, %v287
  %s295 = scalar_lea.vmem %s1, 167
  %296 = vst.msk [vmem:[%s295] sm:$0x80] %vm288, %v287
  %s297 = scalar_lea.vmem %s0, 1
  %v298 = vld.sshfl [vmem:[%s297] sm:$0xff pattern:$0x7e5c3a1]
  %299 = vrot.lane.b32.xlu0 %v298, 116
  %v300 = vpop.permute.xlu0 %299
  %vm301 = vcmask 7168
  %s302 = scalar_lea.vmem %s1, 48
  %303 = vst.msk [vmem:[%s302] ss:$162 sm:$0x3] %vm301, %v300
  %s304 = scalar_lea.vmem %s1, 4294967056
  %305 = vst.msk [vmem:[%s304] ss:$162 sm:$0xc] %vm301, %v300
  %s306 = scalar_lea.vmem %s1, 4294966768
  %307 = vst.msk [vmem:[%s306] ss:$162 sm:$0x30] %vm301, %v300
  %s308 = scalar_lea.vmem %s1, 912
  %309 = vst.msk [vmem:[%s308] ss:$-126 sm:$0xc0] %vm301, %v300
  %v310 = vld.sshfl [vmem:[%s0] sm:$0xff pattern:$0x907e5c3a]
  %311 = vrot.lane.b32.xlu0 %v310, 115
  %v312 = vpop.permute.xlu0 %311
  %vm313 = vcmask 7168
  %s314 = scalar_lea.vmem %s1, 193
  %315 = vst.msk [vmem:[%s314] ss:$-126 sm:$0x3] %vm313, %v312
  %s316 = scalar_lea.vmem %s1, 481
  %317 = vst.msk [vmem:[%s316] ss:$-126 sm:$0xc] %vm313, %v312
  %s318 = scalar_lea.vmem %s1, 769
  %319 = vst.msk [vmem:[%s318] ss:$-126 sm:$0x70] %vm313, %v312
  %s320 = scalar_lea.vmem %s1, 168
  %321 = vst.msk [vmem:[%s320] sm:$0x80] %vm313, %v312
  %s322 = scalar_lea.vmem %s0, 1
  %v323 = vld.sshfl [vmem:[%s322] sm:$0xff pattern:$0x7e5c3a1]
  %324 = vrot.lane.b32.xlu0 %v323, 115
  %v325 = vpop.permute.xlu0 %324
  %vm326 = vcmask 7168
  %s327 = scalar_lea.vmem %s1, 49
  %328 = vst.msk [vmem:[%s327] ss:$162 sm:$0x3] %vm326, %v325
  %s329 = scalar_lea.vmem %s1, 4294967057
  %330 = vst.msk [vmem:[%s329] ss:$162 sm:$0xc] %vm326, %v325
  %s331 = scalar_lea.vmem %s1, 4294966769
  %332 = vst.msk [vmem:[%s331] ss:$162 sm:$0x30] %vm326, %v325
  %s333 = scalar_lea.vmem %s1, 913
  %334 = vst.msk [vmem:[%s333] ss:$-126 sm:$0xc0] %vm326, %v325
  %v335 = vld.sshfl [vmem:[%s0] sm:$0xff pattern:$0x7e5c3a1]
  %336 = vrot.lane.b32.xlu0 %v335, 114
  %v337 = vpop.permute.xlu0 %336
  %vm338 = vcmask 7168
  %s339 = scalar_lea.vmem %s1, 32
  %340 = vst.msk [vmem:[%s339] ss:$162 sm:$0x3] %vm338, %v337
  %s341 = scalar_lea.vmem %s1, 4294967040
  %342 = vst.msk [vmem:[%s341] ss:$162 sm:$0xc] %vm338, %v337
  %s343 = scalar_lea.vmem %s1, 4294966752
  %344 = vst.msk [vmem:[%s343] ss:$162 sm:$0x30] %vm338, %v337
  %s345 = scalar_lea.vmem %s1, 896
  %346 = vst.msk [vmem:[%s345] ss:$-126 sm:$0xc0] %vm338, %v337
  %s347 = scalar_lea.vmem %s0, 2
  %v348 = vld.sshfl [vmem:[%s347] sm:$0xff pattern:$0x6d4b2907]
  %349 = vrot.lane.b32.xlu0 %v348, 114
  %v350 = vpop.permute.xlu0 %349
  %vm351 = vcmask 7168
  %s352 = scalar_lea.vmem %s1, 176
  %353 = vst.msk [vmem:[%s352] ss:$-126 sm:$0x3] %vm351, %v350
  %s354 = scalar_lea.vmem %s1, 464
  %355 = vst.msk [vmem:[%s354] ss:$-126 sm:$0xc] %vm351, %v350
  %s356 = scalar_lea.vmem %s1, 752
  %357 = vst.msk [vmem:[%s356] ss:$-126 sm:$0x30] %vm351, %v350
  %s358 = scalar_lea.vmem %s1, 1040
  %359 = vst.msk [vmem:[%s358] ss:$-126 sm:$0xc0] %vm351, %v350
  %v360 = vld.sshfl [vmem:[%s0] sm:$0xff pattern:$0x7e5c3a1]
  %361 = vrot.lane.b32.xlu0 %v360, 113
  %v362 = vpop.permute.xlu0 %361
  %vm363 = vcmask 7168
  %s364 = scalar_lea.vmem %s1, 33
  %365 = vst.msk [vmem:[%s364] ss:$162 sm:$0x3] %vm363, %v362
  %s366 = scalar_lea.vmem %s1, 4294967041
  %367 = vst.msk [vmem:[%s366] ss:$162 sm:$0xc] %vm363, %v362
  %s368 = scalar_lea.vmem %s1, 4294966753
  %369 = vst.msk [vmem:[%s368] ss:$162 sm:$0x30] %vm363, %v362
  %s370 = scalar_lea.vmem %s1, 897
  %371 = vst.msk [vmem:[%s370] ss:$-126 sm:$0xc0] %vm363, %v362
  %s372 = scalar_lea.vmem %s0, 2
  %v373 = vld.sshfl [vmem:[%s372] sm:$0xff pattern:$0x6d4b2907]
  %374 = vrot.lane.b32.xlu0 %v373, 113
  %v375 = vpop.permute.xlu0 %374
  %vm376 = vcmask 7168
  %s377 = scalar_lea.vmem %s1, 177
  %378 = vst.msk [vmem:[%s377] ss:$-126 sm:$0x3] %vm376, %v375
  %s379 = scalar_lea.vmem %s1, 465
  %380 = vst.msk [vmem:[%s379] ss:$-126 sm:$0xc] %vm376, %v375
  %s381 = scalar_lea.vmem %s1, 753
  %382 = vst.msk [vmem:[%s381] ss:$-126 sm:$0x30] %vm376, %v375
  %s383 = scalar_lea.vmem %s1, 1041
  %384 = vst.msk [vmem:[%s383] ss:$-126 sm:$0xc0] %vm376, %v375
  %s385 = scalar_lea.vmem %s0, 1
  %v386 = vld.sshfl [vmem:[%s385] sm:$0xff pattern:$0x6d4b2907]
  %387 = vrot.lane.b32.xlu0 %v386, 112
  %v388 = vpop.permute.xlu0 %387
  %vm389 = vcmask 7168
  %s390 = scalar_lea.vmem %s1, 160
  %391 = vst.msk [vmem:[%s390] ss:$-126 sm:$0x3] %vm389, %v388
  %s392 = scalar_lea.vmem %s1, 448
  %393 = vst.msk [vmem:[%s392] ss:$-126 sm:$0xc] %vm389, %v388
  %s394 = scalar_lea.vmem %s1, 736
  %395 = vst.msk [vmem:[%s394] ss:$-126 sm:$0x30] %vm389, %v388
  %s396 = scalar_lea.vmem %s1, 1024
  %397 = vst.msk [vmem:[%s396] ss:$-126 sm:$0xc0] %vm389, %v388
  %v398 = vld.sshfl [vmem:[%s0] sm:$0xff pattern:$0xf6d4b290]
  %399 = vrot.lane.b32.xlu0 %v398, 112
  %v400 = vpop.permute.xlu0 %399
  %vm401 = vcmask 7168
  %s402 = scalar_lea.vmem %s1, 16
  %403 = vst.msk [vmem:[%s402] ss:$162 sm:$0x3] %vm401, %v400
  %s404 = scalar_lea.vmem %s1, 4294967024
  %405 = vst.msk [vmem:[%s404] ss:$162 sm:$0xc] %vm401, %v400
  %s406 = scalar_lea.vmem %s1, 4294966736
  %407 = vst.msk [vmem:[%s406] ss:$162 sm:$0x30] %vm401, %v400
  %s408 = scalar_lea.vmem %s1, 4294966448
  %409 = vst.msk [vmem:[%s408] ss:$162 sm:$0xc0] %vm401, %v400
  %s410 = scalar_lea.vmem %s0, 1
  %v411 = vld.sshfl [vmem:[%s410] sm:$0xff pattern:$0x6d4b2907]
  %412 = vrot.lane.b32.xlu0 %v411, 111
  %v413 = vpop.permute.xlu0 %412
  %vm414 = vcmask 7168
  %s415 = scalar_lea.vmem %s1, 161
  %416 = vst.msk [vmem:[%s415] ss:$-126 sm:$0x3] %vm414, %v413
  %s417 = scalar_lea.vmem %s1, 449
  %418 = vst.msk [vmem:[%s417] ss:$-126 sm:$0xc] %vm414, %v413
  %s419 = scalar_lea.vmem %s1, 737
  %420 = vst.msk [vmem:[%s419] ss:$-126 sm:$0x30] %vm414, %v413
  %s421 = scalar_lea.vmem %s1, 1025
  %422 = vst.msk [vmem:[%s421] ss:$-126 sm:$0xc0] %vm414, %v413
  %v423 = vld.sshfl [vmem:[%s0] sm:$0xff pattern:$0xf6d4b290]
  %424 = vrot.lane.b32.xlu0 %v423, 111
  %v425 = vpop.permute.xlu0 %424
  %vm426 = vcmask 7168
  %s427 = scalar_lea.vmem %s1, 17
  %428 = vst.msk [vmem:[%s427] ss:$162 sm:$0x3] %vm426, %v425
  %s429 = scalar_lea.vmem %s1, 4294967025
  %430 = vst.msk [vmem:[%s429] ss:$162 sm:$0xc] %vm426, %v425
  %s431 = scalar_lea.vmem %s1, 4294966737
  %432 = vst.msk [vmem:[%s431] ss:$162 sm:$0x30] %vm426, %v425
  %s433 = scalar_lea.vmem %s1, 4294966449
  %434 = vst.msk [vmem:[%s433] ss:$162 sm:$0xc0] %vm426, %v425

// kernel: out_block_forward.1
$region0: #{out_block_forward.1}
  #allocation0 [shape = 'u32[]', space=smem, size = 0x4, offset = 0x4, fixed_abs, tag = 'smem constant byte address 0x4 - core index']
  #allocation1 [shape = 'u32[144,128]{1,0:T(1,128)}', space=vmem, size = 0x12000, scoped, tag = 'internal scratch']
  #allocation2 [shape = 'f32[332,64]{1,0:T(8,128)}', space=vmem, size = 0x2a000, scoped, tag = 'scratch operand']
  #allocation3 [shape = 'f32[332,128]{1,0:T(8,128)}', space=vmem, size = 0x2a000, scoped, tag = 'scratch operand']
  #allocation4 [shape = 'f32[332,192]{1,0:T(8,128)}', space=vmem, size = 0x54000, scoped, tag = 'scratch operand']
  %s0 = inlined_call_operand.vmem [shape: bf16[2,288,36], index: 0, kind: input, shape index: {}]
  %s1 = inlined_call_operand.vmem [shape: bf16[36,32], index: 1, kind: input, shape index: {}]
  %s2 = inlined_call_operand.vmem [shape: bf16[32,128], index: 2, kind: input, shape index: {}]
  %s3 = inlined_call_operand.vmem [shape: bf16[3,64,192], index: 3, kind: input, shape index: {}]
  %s4 = inlined_call_operand.vmem [shape: bf16[128,72], index: 4, kind: input, shape index: {}]
  %s5 = inlined_call_operand.vmem [shape: f32[4,128], index: 5, kind: input, shape index: {}]
  %s6 = inlined_call_operand.vmem [shape: f32[288,1], index: 6, kind: input, shape index: {}]
  %s7 = inlined_call_operand.vmem [shape: f32[2,288,8], index: 7, kind: output, shape index: {}]
  %s8 = sld [smem:[#allocation0]]
  $region61: #{out_block_forward.1} parent=0
    _
  %s10 = ssub.s32 1, %s8
  %s11 = scalar_select 0, %s10, %s8
  loop: start=0, step=1, limit=4
  $region2: #{out_block_forward.1} parent=0 // loop_pre_header
    _
  $region3: #{out_block_forward.1} parent=0 // loop_header
    %s13 = sphi 0, %s17
    %p14 = scmp.ge.s32.totalorder %s13, 4
    %s23 = sphi 0, %s25
    %s26 = sphi 0, %s23
    %s27 = sphi 0, %s26
    %s43 = sphi 0, %s27
    %s47 = sphi 0, %s47
    %s49 = sphi 0, %s47
    %s50 = sphi 0, %s49
    %s64 = sphi 0, %s50
    %s68 = sphi 0, %s68
    %s70 = sphi 0, %s68
    %s71 = sphi 0, %s70
    %s85 = sphi 0, %s71
    %s89 = sphi 0, %s89
    %s91 = sphi 0, %s89
    %s92 = sphi 0, %s91
    %s106 = sphi 0, %s92
    %s110 = sphi 0, %s110
    %s112 = sphi 0, %s110
    %s113 = sphi 0, %s112
    %s127 = sphi 0, %s113
    %s131 = sphi 0, %s131
    %s133 = sphi 0, %s131
    %s134 = sphi 0, %s133
    %s148 = sphi 0, %s134
    %s152 = sphi 0, %s152
    %s154 = sphi 0, %s152
    %s155 = sphi 0, %s154
    %s169 = sphi 0, %s155
    %s175 = sphi 0, %s177
    %s178 = sphi 0, %s175
    %s179 = sphi 0, %s178
    %s195 = sphi 0, %s179
  $region4: #{out_block_forward.1} parent=0 // loop_header_branch
    %16 = sbr.rel (%p14) target = $region8
  $region5: #{out_block_forward.1} parent=0 // loop_body
    %s18 = ssub.s32 %s13, 1
    %s19 = ssub.s32 %s13, 2
    %s20 = sadd.s32 %s13, 1
    %s21 = ssub.s32 %s13, %s20
    %p22 = scmp.eq.s32.totalorder %s21, 0
    %s24 = sadd.s32 %s23, 1
    %s25 = scalar_select %p22, %s23, %s24
    %p28 = pneg %p22
    %p29 = scmp.eq.s32.totalorder %s13, 1
    %p30 = por %p28, %p29
    %p31 = scmp.ne.s32.totalorder %s23, %s26
    %p32 = scmp.eq.s32.totalorder %s13, 0
    %p33 = por %p31, %p32
    %p34 = scmp.ne.s32.totalorder %s23, %s26
    %p35 = scmp.eq.s32.totalorder %s18, 1
    %p36 = por %p34, %p35
    %p37 = scmp.ne.s32.totalorder %s26, %s27
    %p38 = scmp.eq.s32.totalorder %s18, 0
    %p39 = por %p37, %p38
    %p40 = scmp.ne.s32.totalorder %s26, %s27
    %p41 = scmp.eq.s32.totalorder %s19, 1
    %p42 = por %p40, %p41
    %p44 = scmp.ne.s32.totalorder %s27, %s43
    %p45 = scmp.eq.s32.totalorder %s19, 0
    %p46 = por %p44, %p45
    %s48 = sadd.s32 %s47, 1
    %p51 = scmp.eq.s32.totalorder %s13, 1
    %p52 = scmp.ne.s32.totalorder %s47, %s49
    %p53 = scmp.eq.s32.totalorder %s13, 0
    %p54 = por %p52, %p53
    %p55 = scmp.ne.s32.totalorder %s47, %s49
    %p56 = scmp.eq.s32.totalorder %s18, 1
    %p57 = por %p55, %p56
    %p58 = scmp.ne.s32.totalorder %s49, %s50
    %p59 = scmp.eq.s32.totalorder %s18, 0
    %p60 = por %p58, %p59
    %p61 = scmp.ne.s32.totalorder %s49, %s50
    %p62 = scmp.eq.s32.totalorder %s19, 1
    %p63 = por %p61, %p62
    %p65 = scmp.ne.s32.totalorder %s50, %s64
    %p66 = scmp.eq.s32.totalorder %s19, 0
    %p67 = por %p65, %p66
    %s69 = sadd.s32 %s68, 1
    %p72 = scmp.eq.s32.totalorder %s13, 1
    %p73 = scmp.ne.s32.totalorder %s68, %s70
    %p74 = scmp.eq.s32.totalorder %s13, 0
    %p75 = por %p73, %p74
    %p76 = scmp.ne.s32.totalorder %s68, %s70
    %p77 = scmp.eq.s32.totalorder %s18, 1
    %p78 = por %p76, %p77
    %p79 = scmp.ne.s32.totalorder %s70, %s71
    %p80 = scmp.eq.s32.totalorder %s18, 0
    %p81 = por %p79, %p80
    %p82 = scmp.ne.s32.totalorder %s70, %s71
    %p83 = scmp.eq.s32.totalorder %s19, 1
    %p84 = por %p82, %p83
    %p86 = scmp.ne.s32.totalorder %s71, %s85
    %p87 = scmp.eq.s32.totalorder %s19, 0
    %p88 = por %p86, %p87
    %s90 = sadd.s32 %s89, 1
    %p93 = scmp.eq.s32.totalorder %s13, 1
    %p94 = scmp.ne.s32.totalorder %s89, %s91
    %p95 = scmp.eq.s32.totalorder %s13, 0
    %p96 = por %p94, %p95
    %p97 = scmp.ne.s32.totalorder %s89, %s91
    %p98 = scmp.eq.s32.totalorder %s18, 1
    %p99 = por %p97, %p98
    %p100 = scmp.ne.s32.totalorder %s91, %s92
    %p101 = scmp.eq.s32.totalorder %s18, 0
    %p102 = por %p100, %p101
    %p103 = scmp.ne.s32.totalorder %s91, %s92
    %p104 = scmp.eq.s32.totalorder %s19, 1
    %p105 = por %p103, %p104
    %p107 = scmp.ne.s32.totalorder %s92, %s106
    %p108 = scmp.eq.s32.totalorder %s19, 0
    %p109 = por %p107, %p108
    %s111 = sadd.s32 %s110, 1
    %p114 = scmp.eq.s32.totalorder %s13, 1
    %p115 = scmp.ne.s32.totalorder %s110, %s112
    %p116 = scmp.eq.s32.totalorder %s13, 0
    %p117 = por %p115, %p116
    %p118 = scmp.ne.s32.totalorder %s110, %s112
    %p119 = scmp.eq.s32.totalorder %s18, 1
    %p120 = por %p118, %p119
    %p121 = scmp.ne.s32.totalorder %s112, %s113
    %p122 = scmp.eq.s32.totalorder %s18, 0
    %p123 = por %p121, %p122
    %p124 = scmp.ne.s32.totalorder %s112, %s113
    %p125 = scmp.eq.s32.totalorder %s19, 1
    %p126 = por %p124, %p125
    %p128 = scmp.ne.s32.totalorder %s113, %s127
    %p129 = scmp.eq.s32.totalorder %s19, 0
    %p130 = por %p128, %p129
    %s132 = sadd.s32 %s131, 1
    %p135 = scmp.eq.s32.totalorder %s13, 1
    %p136 = scmp.ne.s32.totalorder %s131, %s133
    %p137 = scmp.eq.s32.totalorder %s13, 0
    %p138 = por %p136, %p137
    %p139 = scmp.ne.s32.totalorder %s131, %s133
    %p140 = scmp.eq.s32.totalorder %s18, 1
    %p141 = por %p139, %p140
    %p142 = scmp.ne.s32.totalorder %s133, %s134
    %p143 = scmp.eq.s32.totalorder %s18, 0
    %p144 = por %p142, %p143
    %p145 = scmp.ne.s32.totalorder %s133, %s134
    %p146 = scmp.eq.s32.totalorder %s19, 1
    %p147 = por %p145, %p146
    %p149 = scmp.ne.s32.totalorder %s134, %s148
    %p150 = scmp.eq.s32.totalorder %s19, 0
    %p151 = por %p149, %p150
    %s153 = sadd.s32 %s152, 1
    %p156 = scmp.eq.s32.totalorder %s13, 1
    %p157 = scmp.ne.s32.totalorder %s152, %s154
    %p158 = scmp.eq.s32.totalorder %s13, 0
    %p159 = por %p157, %p158
    %p160 = scmp.ne.s32.totalorder %s152, %s154
    %p161 = scmp.eq.s32.totalorder %s18, 1
    %p162 = por %p160, %p161
    %p163 = scmp.ne.s32.totalorder %s154, %s155
    %p164 = scmp.eq.s32.totalorder %s18, 0
    %p165 = por %p163, %p164
    %p166 = scmp.ne.s32.totalorder %s154, %s155
    %p167 = scmp.eq.s32.totalorder %s19, 1
    %p168 = por %p166, %p167
    %p170 = scmp.ne.s32.totalorder %s155, %s169
    %p171 = scmp.eq.s32.totalorder %s19, 0
    %p172 = por %p170, %p171
    %s173 = ssub.s32 %s13, %s20
    %p174 = scmp.eq.s32.totalorder %s173, 0
    %s176 = sadd.s32 %s175, 1
    %s177 = scalar_select %p174, %s175, %s176
    %p180 = pneg %p174
    %p181 = scmp.eq.s32.totalorder %s13, 1
    %p182 = por %p180, %p181
    %p183 = scmp.ne.s32.totalorder %s175, %s178
    %p184 = scmp.eq.s32.totalorder %s13, 0
    %p185 = por %p183, %p184
    %p186 = scmp.ne.s32.totalorder %s175, %s178
    %p187 = scmp.eq.s32.totalorder %s18, 1
    %p188 = por %p186, %p187
    %p189 = scmp.ne.s32.totalorder %s178, %s179
    %p190 = scmp.eq.s32.totalorder %s18, 0
    %p191 = por %p189, %p190
    %p192 = scmp.ne.s32.totalorder %s178, %s179
    %p193 = scmp.eq.s32.totalorder %s19, 1
    %p194 = por %p192, %p193
    %p196 = scmp.ne.s32.totalorder %s179, %s195
    %p197 = scmp.eq.s32.totalorder %s19, 0
    %p198 = por %p196, %p197
    %p199 = scmp.le.s32.totalorder 1, %s13
    %p200 = scmp.lt.s32.totalorder %s13, 3
    %p201 = pnand %p199, %p200
    %p202 = pneg %p201
    // Predicated region
    $region9: #{out_block_forward.1} parent=5 // pred_check
      _
    $region10: #{out_block_forward.1} parent=5 // pred_check_branch
      %204 = sbr.rel (%p201) target = $region12
    $region11: #{out_block_forward.1} parent=5 // pred_region
      %s205 = ssub.s32 %s13, 1
      // Predicated region
      $region13: #{out_block_forward.1} parent=11 // pred_check
        %p206 = pneg %p60
      $region14: #{out_block_forward.1} parent=11 // pred_check_branch
        %208 = sbr.rel (%p206) target = $region16
      $region15: #{out_block_forward.1} parent=11 // pred_region
        _
      $region16: #{out_block_forward.1} parent=11 // pred_fallthru
        _
      // Predicated region
      $region17: #{out_block_forward.1} parent=11 // pred_check
        %p209 = pneg %p81
      $region18: #{out_block_forward.1} parent=11 // pred_check_branch
        %211 = sbr.rel (%p209) target = $region20
      $region19: #{out_block_forward.1} parent=11 // pred_region
        _
      $region20: #{out_block_forward.1} parent=11 // pred_fallthru
        _
      // Predicated region
      $region21: #{out_block_forward.1} parent=11 // pred_check
        %p212 = pneg %p102
      $region22: #{out_block_forward.1} parent=11 // pred_check_branch
        %214 = sbr.rel (%p212) target = $region24
      $region23: #{out_block_forward.1} parent=11 // pred_region
        _
      $region24: #{out_block_forward.1} parent=11 // pred_fallthru
        _
      // Predicated region
      $region25: #{out_block_forward.1} parent=11 // pred_check
        %p215 = pneg %p123
      $region26: #{out_block_forward.1} parent=11 // pred_check_branch
        %217 = sbr.rel (%p215) target = $region28
      $region27: #{out_block_forward.1} parent=11 // pred_region
        _
      $region28: #{out_block_forward.1} parent=11 // pred_fallthru
        _
      // Predicated region
      $region29: #{out_block_forward.1} parent=11 // pred_check
        %p218 = pneg %p144
      $region30: #{out_block_forward.1} parent=11 // pred_check_branch
        %220 = sbr.rel (%p218) target = $region32
      $region31: #{out_block_forward.1} parent=11 // pred_region
        _
      $region32: #{out_block_forward.1} parent=11 // pred_fallthru
        _
      // Predicated region
      $region33: #{out_block_forward.1} parent=11 // pred_check
        %p221 = pneg %p165
      $region34: #{out_block_forward.1} parent=11 // pred_check_branch
        %223 = sbr.rel (%p221) target = $region36
      $region35: #{out_block_forward.1} parent=11 // pred_region
        _
      $region36: #{out_block_forward.1} parent=11 // pred_fallthru
        _
    $region12: #{out_block_forward.1} parent=5 // pred_fallthru
      _
    %p224 = scmp.lt.s32.totalorder %s13, 2
    // Predicated region
    $region37: #{out_block_forward.1} parent=5 // pred_check
      %p225 = pneg %p224
    $region38: #{out_block_forward.1} parent=5 // pred_check_branch
      %227 = sbr.rel (%p225) target = $region40
    $region39: #{out_block_forward.1} parent=5 // pred_region
      // Predicated region
      $region41: #{out_block_forward.1} parent=39 // pred_check
        %p228 = pneg %p33
      $region42: #{out_block_forward.1} parent=39 // pred_check_branch
        %230 = sbr.rel (%p228) target = $region44
      $region43: #{out_block_forward.1} parent=39 // pred_region
        %p231 = scmp.lt.s32.totalorder %s13, 1
        %s232 = scalar_select %p231, %s13, 1
        %s233 = smul.addr %s232, 36
        %s234 = smul.addr %s233, 4
        %s235 = scalar_lea.vmem %s0, %s234
      $region44: #{out_block_forward.1} parent=39 // pred_fallthru
        _
    $region40: #{out_block_forward.1} parent=5 // pred_fallthru
      _
    %p236 = scmp.le.s32.totalorder 1, %s13
    %p237 = scmp.lt.s32.totalorder %s13, 3
    %p238 = pnand %p236, %p237
    %p239 = pneg %p238
    // Predicated region
    $region45: #{out_block_forward.1} parent=5 // pred_check
      _
    $region46: #{out_block_forward.1} parent=5 // pred_check_branch
      %241 = sbr.rel (%p238) target = $region48
    $region47: #{out_block_forward.1} parent=5 // pred_region
      %s242 = ssub.s32 %s13, 1
      %p243 = scmp.lt.s32.totalorder %s18, 1
      %s244 = scalar_select %p243, %s18, 1
      %s245 = smul.addr %s244, 36
      %s246 = smul.addr %s245, 4
      %s247 = scalar_lea.vmem %s0, %s246
      %p248 = pneg %p39
      %p249 = pneg %p36
      %p250 = pneg %p60
      %p251 = pneg %p57
      %p252 = pneg %p81
      %p253 = pneg %p78
      %p254 = pneg %p102
      %p255 = pneg %p99
      %p256 = pneg %p123
      %p257 = pneg %p120
      %p258 = pneg %p144
      %p259 = pneg %p141
      %p260 = pneg %p165
      %p261 = pneg %p162
      %p262 = pneg %p191
      %p263 = pneg %p188
      %p264 = scmp.lt.s32.totalorder %s18, 1
      %s265 = scalar_select %p264, %s18, 1
      %s266 = smul.addr %s265, 36
      %s267 = smul.addr %s266, 8
      %s268 = scalar_lea.vmem %s7, %s267
      %p269 = scmp.lt.s32.totalorder %s18, 1
      %s270 = scalar_select %p269, %s18, 1
      %s271 = smul.addr %s270, 36
      %s272 = smul.addr %s271, 4
      %s273 = scalar_lea.vmem %s0, %s272
      %p274 = scmp.lt.s32.totalorder %s18, 1
      %s275 = scalar_select %p274, %s18, 1
      %s276 = smul.addr %s275, 36
      %s277 = smul.addr %s276, 8
      %s278 = scalar_lea.vmem %s7, %s277
      %vm280 = vcmask 523264
      %281 = vst.msk [vmem:[#allocation2] sm:$0xff] %vm280, 0.0
      %282 = vst.msk [vmem:[#allocation2 + $0x8] sm:$0xff] %vm280, 0.0
      %vm283 = vcmask 518144
      %284 = vst.msk [vmem:[#allocation2 + $0x10] sm:$0x7] %vm283, 0.0
      %285 = vst.msk [vmem:[#allocation2 + $0x133] sm:$0xff] %vm280, 0.0
      %286 = vst.msk [vmem:[#allocation2 + $0x13b] sm:$0xff] %vm280, 0.0
      %287 = vst.msk [vmem:[#allocation2 + $0x143] sm:$0xff] %vm280, 0.0
      %vm288 = vcmask 516096
      %289 = vst.msk [vmem:[#allocation2 + $0x14b] sm:$0x1] %vm288, 0.0
      %290 = vst [vmem:[#allocation3] sm:$0xff] 0.0
      %291 = vst [vmem:[#allocation3 + $0x8] sm:$0xff] 0.0
      %292 = vst [vmem:[#allocation3 + $0x10] sm:$0x7] 0.0
      %293 = vst [vmem:[#allocation3 + $0x133] sm:$0xff] 0.0
      %294 = vst [vmem:[#allocation3 + $0x13b] sm:$0xff] 0.0
      %295 = vst [vmem:[#allocation3 + $0x143] sm:$0xff] 0.0
      %296 = vst [vmem:[#allocation3 + $0x14b] sm:$0x1] 0.0
      %v297 = vld [vmem:[%s6] sm:$0xff]
      %v298 = vld [vmem:[%s6 + $0x8] sm:$0xff]
      %v299 = vld [vmem:[%s6 + $0x10] sm:$0xff]
      %v300 = vld [vmem:[%s6 + $0x18] sm:$0xff]
      %v301 = vld [vmem:[%s6 + $0x20] sm:$0xff]
      %v302 = vld [vmem:[%s6 + $0x28] sm:$0xff]
      %v303 = vld [vmem:[%s6 + $0x30] sm:$0xff]
      %v304 = vld [vmem:[%s6 + $0x38] sm:$0xff]
      %v305 = vld [vmem:[%s6 + $0x40] sm:$0xff]
      %v306 = vld [vmem:[%s6 + $0x48] sm:$0xff]
      %v307 = vld [vmem:[%s6 + $0x50] sm:$0xff]
      %v308 = vld [vmem:[%s6 + $0x58] sm:$0xff]
      %v309 = vld [vmem:[%s6 + $0x60] sm:$0xff]
      %v310 = vld [vmem:[%s6 + $0x68] sm:$0xff]
      %v311 = vld [vmem:[%s6 + $0x70] sm:$0xff]
      %v312 = vld [vmem:[%s6 + $0x78] sm:$0xff]
      %v313 = vld [vmem:[%s6 + $0x80] sm:$0xff]
      %v314 = vld [vmem:[%s6 + $0x88] sm:$0xff]
      %v315 = vld [vmem:[%s6 + $0x90] sm:$0xff]
      %v316 = vld [vmem:[%s6 + $0x98] sm:$0xff]
      %v317 = vld [vmem:[%s6 + $0xa0] sm:$0xff]
      %v318 = vld [vmem:[%s6 + $0xa8] sm:$0xff]
      %v319 = vld [vmem:[%s6 + $0xb0] sm:$0xff]
      %v320 = vld [vmem:[%s6 + $0xb8] sm:$0xff]
      %v321 = vld [vmem:[%s6 + $0xc0] sm:$0xff]
      %v322 = vld [vmem:[%s6 + $0xc8] sm:$0xff]
      %v323 = vld [vmem:[%s6 + $0xd0] sm:$0xff]
      %v324 = vld [vmem:[%s6 + $0xd8] sm:$0xff]
      %v325 = vld [vmem:[%s6 + $0xe0] sm:$0xff]
      %v326 = vld [vmem:[%s6 + $0xe8] sm:$0xff]
      %v327 = vld [vmem:[%s6 + $0xf0] sm:$0xff]
      %v328 = vld [vmem:[%s6 + $0xf8] sm:$0xff]
      %v329 = vld [vmem:[%s6 + $0x100] sm:$0xff]
      %v330 = vld [vmem:[%s6 + $0x108] sm:$0xff]
      %v331 = vld [vmem:[%s6 + $0x110] sm:$0xff]
      %v332 = vld [vmem:[%s6 + $0x118] sm:$0xff]
      %v333 = vld [vmem:[%s273] sm:$0xf]
      %v334 = vld [vmem:[%s273 + $0x4] sm:$0xf]
      %v335 = vld [vmem:[%s273 + $0x8] sm:$0xf]
      %v336 = vld [vmem:[%s273 + $0xc] sm:$0xf]
      %v337 = vld [vmem:[%s273 + $0x10] sm:$0xf]
      %v338 = vld [vmem:[%s273 + $0x14] sm:$0xf]
      %v339 = vld [vmem:[%s273 + $0x18] sm:$0xf]
      %v340 = vld [vmem:[%s273 + $0x1c] sm:$0xf]
      %v341 = vld [vmem:[%s273 + $0x20] sm:$0xf]
      %v342 = vld [vmem:[%s273 + $0x24] sm:$0xf]
      %v343 = vld [vmem:[%s273 + $0x28] sm:$0xf]
      %v344 = vld [vmem:[%s273 + $0x2c] sm:$0xf]
      %v345 = vld [vmem:[%s273 + $0x30] sm:$0xf]
      %v346 = vld [vmem:[%s273 + $0x34] sm:$0xf]
      %v347 = vld [vmem:[%s273 + $0x38] sm:$0xf]
      %v348 = vld [vmem:[%s273 + $0x3c] sm:$0xf]
      %v349 = vld [vmem:[%s273 + $0x40] sm:$0xf]
      %v350 = vld [vmem:[%s273 + $0x44] sm:$0xf]
      %v351 = vld [vmem:[%s273 + $0x48] sm:$0xf]
      %v352 = vld [vmem:[%s273 + $0x4c] sm:$0xf]
      %v353 = vld [vmem:[%s273 + $0x50] sm:$0xf]
      %v354 = vld [vmem:[%s273 + $0x54] sm:$0xf]
      %v355 = vld [vmem:[%s273 + $0x58] sm:$0xf]
      %v356 = vld [vmem:[%s273 + $0x5c] sm:$0xf]
      %v357 = vld [vmem:[%s273 + $0x60] sm:$0xf]
      %v358 = vld [vmem:[%s273 + $0x64] sm:$0xf]
      %v359 = vld [vmem:[%s273 + $0x68] sm:$0xf]
      %v360 = vld [vmem:[%s273 + $0x6c] sm:$0xf]
      %v361 = vld [vmem:[%s273 + $0x70] sm:$0xf]
      %v362 = vld [vmem:[%s273 + $0x74] sm:$0xf]
      %v363 = vld [vmem:[%s273 + $0x78] sm:$0xf]
      %v364 = vld [vmem:[%s273 + $0x7c] sm:$0xf]
      %v365 = vld [vmem:[%s273 + $0x80] sm:$0xf]
      %v366 = vld [vmem:[%s273 + $0x84] sm:$0xf]
      %v367 = vld [vmem:[%s273 + $0x88] sm:$0xf]
      %v368 = vld [vmem:[%s273 + $0x8c] sm:$0xf]
      %v369 = vld [vmem:[%s1] sm:$0xf]
      %v370 = vld [vmem:[%s1 + $0x4] sm:$0xf]
      %v371 = vld [vmem:[%s1 + $0x8] sm:$0xf]
      %v372 = vld [vmem:[%s1 + $0xc] sm:$0xf]
      %v373 = vld [vmem:[%s1 + $0x10] sm:$0x3]
      %v374 = vld [vmem:[%s5] sm:$0x1]
      %v375 = vlaneseq
      %v376 = vshrl.u32 %v375, 7
      %v377 = vsub.s32 0, %v376
      %v378 = vrot.slane %v374, %v377
      %v415 = vunpack.c.l.b16 %v333
      %v416 = vunpack.c.l.b16 %v334
      %v417 = vunpack.c.l.b16 %v335
      %v418 = vunpack.c.l.b16 %v336
      %v419 = vunpack.c.l.b16 %v337
      %v420 = vunpack.c.l.b16 %v338
      %v421 = vunpack.c.l.b16 %v339
      %v422 = vunpack.c.l.b16 %v340
      %v423 = vunpack.c.l.b16 %v341
      %v424 = vunpack.c.l.b16 %v342
      %v425 = vunpack.c.l.b16 %v343
      %v426 = vunpack.c.l.b16 %v344
      %v427 = vunpack.c.l.b16 %v345
      %v428 = vunpack.c.l.b16 %v346
      %v429 = vunpack.c.l.b16 %v347
      %v430 = vunpack.c.l.b16 %v348
      %v431 = vunpack.c.l.b16 %v349
      %v432 = vunpack.c.l.b16 %v350
      %v433 = vunpack.c.l.b16 %v351
      %v434 = vunpack.c.l.b16 %v352
      %v435 = vunpack.c.l.b16 %v353
      %v436 = vunpack.c.l.b16 %v354
      %v437 = vunpack.c.l.b16 %v355
      %v438 = vunpack.c.l.b16 %v356
      %v439 = vunpack.c.l.b16 %v357
      %v440 = vunpack.c.l.b16 %v358
      %v441 = vunpack.c.l.b16 %v359
      %v442 = vunpack.c.l.b16 %v360
      %v443 = vunpack.c.l.b16 %v361
      %v444 = vunpack.c.l.b16 %v362
      %v445 = vunpack.c.l.b16 %v363
      %v446 = vunpack.c.l.b16 %v364
      %v447 = vunpack.c.l.b16 %v365
      %v448 = vunpack.c.l.b16 %v366
      %v449 = vunpack.c.l.b16 %v367
      %v450 = vunpack.c.l.b16 %v368
      %v451 = vpack.c.b16 %v416, %v415
      %v452 = vpack.c.b16 %v418, %v417
      %v453 = vpack.c.b16 %v420, %v419
      %v454 = vpack.c.b16 %v422, %v421
      %v455 = vpack.c.b16 %v424, %v423
      %v456 = vpack.c.b16 %v426, %v425
      %v457 = vpack.c.b16 %v428, %v427
      %v458 = vpack.c.b16 %v430, %v429
      %v459 = vpack.c.b16 %v432, %v431
      %v460 = vpack.c.b16 %v434, %v433
      %v461 = vpack.c.b16 %v436, %v435
      %v462 = vpack.c.b16 %v438, %v437
      %v463 = vpack.c.b16 %v440, %v439
      %v464 = vpack.c.b16 %v442, %v441
      %v465 = vpack.c.b16 %v444, %v443
      %v466 = vpack.c.b16 %v446, %v445
      %v467 = vpack.c.b16 %v448, %v447
      %v468 = vpack.c.b16 %v450, %v449
      %v474 = vunpack.c.l.b16 %v369
      %v475 = vunpack.c.l.b16 %v370
      %v476 = vunpack.c.l.b16 %v371
      %v477 = vunpack.c.l.b16 %v372
      %v478 = vunpack.c.l.b16 %v373
      %v479 = vpack.c.b16 %v475, %v474
      %v480 = vpack.c.b16 %v477, %v476
      %v481 = vpack.c.b16 %v478, %v478
      %vm484 = vcmask 293888
      %v486 = vsel %vm484, %v451, 0
      %v489 = vsel %vm484, %v452, 0
      %v492 = vsel %vm484, %v453, 0
      %v495 = vsel %vm484, %v454, 0
      %v498 = vsel %vm484, %v455, 0
      %v501 = vsel %vm484, %v456, 0
      %v504 = vsel %vm484, %v457, 0
      %v507 = vsel %vm484, %v458, 0
      %v510 = vsel %vm484, %v459, 0
      %v513 = vsel %vm484, %v460, 0
      %v516 = vsel %vm484, %v461, 0
      %v519 = vsel %vm484, %v462, 0
      %v522 = vsel %vm484, %v463, 0
      %v525 = vsel %vm484, %v464, 0
      %v528 = vsel %vm484, %v465, 0
      %v531 = vsel %vm484, %v466, 0
      %v534 = vsel %vm484, %v467, 0
      %v537 = vsel %vm484, %v468, 0
      %vm539 = vcmask 1041408
      %v541 = vsel %vm539, %v481, 0
      %543 = vmatprep.subr.bf16.mxu0 0
      %544 = vmatpush1.bf16.msra.mxu0 %v479
      %545 = vmatprep.subr.bf16.mxu0 0
      %546 = vmatpush1.bf16.msra.mxu0 %v480
      %547 = vmatprep.subr.bf16.mxu0 0
      %548 = vmatpush1.bf16.msra.mxu0 %v541
      %549 = vmatprep.subr.bf16.mxu0 0
      %550 = vmatpush1.bf16.msra.mxu0 0
      %551 = vmatprep.subr.bf16.mxu0 0
      %552 = vmatpush1.bf16.msra.mxu0 0
      %553 = vmatprep.subr.bf16.mxu0 0
      %554 = vmatpush1.bf16.msra.mxu0 0
      %555 = vmatprep.subr.bf16.mxu0 0
      %556 = vmatpush1.bf16.msra.mxu0 0
      %557 = vmatprep.subr.bf16.mxu0 0
      %558 = vmatpush1.bf16.msra.mxu0 0
      %559 = vmatprep.subr.bf16.mxu0 0
      %560 = vmatpush1.bf16.msra.mxu0 0
      %561 = vmatprep.subr.bf16.mxu0 0
      %562 = vmatpush1.bf16.msra.mxu0 0
      %563 = vmatprep.subr.bf16.mxu0 0
      %564 = vmatpush1.bf16.msra.mxu0 0
      %565 = vmatprep.subr.bf16.mxu0 0
      %566 = vmatpush1.bf16.msra.mxu0 0
      %567 = vmatprep.subr.bf16.mxu0 0
      %568 = vmatpush1.bf16.msra.mxu0 0
      %569 = vmatprep.subr.bf16.mxu0 0
      %570 = vmatpush1.bf16.msra.mxu0 0
      %571 = vmatprep.subr.bf16.mxu0 0
      %572 = vmatpush1.bf16.msra.mxu0 0
      %573 = vmatprep.subr.bf16.mxu0 0
      %574 = vmatpush1.bf16.msra.mxu0 0
      %575 = vmatprep.mubr.bf16.mxu0 0
      %576 = vmatmul.mubr.bf16.gmra.mrb[0].mxu0 %v486
      %v577 = vpop.f32.mrb[0].mxu0
      %v578 = vadd.f32 %v378, %v577
      %v579 = vpop.f32.mrb[0].mxu0
      %v580 = vpop.f32.mrb[0].mxu0
      %v581 = vadd.f32 %v378, %v580
      %v582 = vpop.f32.mrb[0].mxu0
      %583 = vmatprep.mubr.bf16.mxu0 0
      %584 = vmatmul.mubr.bf16.gmra.mrb[0].mxu0 %v489
      %v585 = vpop.f32.mrb[0].mxu0
      %v586 = vadd.f32 %v378, %v585
      %v587 = vpop.f32.mrb[0].mxu0
      %v588 = vpop.f32.mrb[0].mxu0
      %v589 = vadd.f32 %v378, %v588
      %v590 = vpop.f32.mrb[0].mxu0
      %591 = vmatprep.mubr.bf16.mxu0 0
      %592 = vmatmul.mubr.bf16.gmra.mrb[0].mxu0 %v492
      %v593 = vpop.f32.mrb[0].mxu0
      %v594 = vadd.f32 %v378, %v593
      %v595 = vpop.f32.mrb[0].mxu0
      %v596 = vpop.f32.mrb[0].mxu0
      %v597 = vadd.f32 %v378, %v596
      %v598 = vpop.f32.mrb[0].mxu0
      %599 = vmatprep.mubr.bf16.mxu0 0
      %600 = vmatmul.mubr.bf16.gmra.mrb[0].mxu0 %v495
      %v601 = vpop.f32.mrb[0].mxu0
      %v602 = vadd.f32 %v378, %v601
      %v603 = vpop.f32.mrb[0].mxu0
      %v604 = vpop.f32.mrb[0].mxu0
      %v605 = vadd.f32 %v378, %v604
      %v606 = vpop.f32.mrb[0].mxu0
      %607 = vmatprep.mubr.bf16.mxu0 0
      %608 = vmatmul.mubr.bf16.gmra.mrb[0].mxu0 %v498
      %v609 = vpop.f32.mrb[0].mxu0
      %v610 = vadd.f32 %v378, %v609
      %v611 = vpop.f32.mrb[0].mxu0
      %v612 = vpop.f32.mrb[0].mxu0
      %v613 = vadd.f32 %v378, %v612
      %v614 = vpop.f32.mrb[0].mxu0
      %615 = vmatprep.mubr.bf16.mxu0 0
      %616 = vmatmul.mubr.bf16.gmra.mrb[0].mxu0 %v501
      %v617 = vpop.f32.mrb[0].mxu0
      %v618 = vadd.f32 %v378, %v617
      %v619 = vpop.f32.mrb[0].mxu0
      %v620 = vpop.f32.mrb[0].mxu0
      %v621 = vadd.f32 %v378, %v620
      %v622 = vpop.f32.mrb[0].mxu0
      %623 = vmatprep.mubr.bf16.mxu0 0
      %624 = vmatmul.mubr.bf16.gmra.mrb[0].mxu0 %v504
      %v625 = vpop.f32.mrb[0].mxu0
      %v626 = vadd.f32 %v378, %v625
      %v627 = vpop.f32.mrb[0].mxu0
      %v628 = vpop.f32.mrb[0].mxu0
      %v629 = vadd.f32 %v378, %v628
      %v630 = vpop.f32.mrb[0].mxu0
      %631 = vmatprep.mubr.bf16.mxu0 0
      %632 = vmatmul.mubr.bf16.gmra.mrb[0].mxu0 %v507
      %v633 = vpop.f32.mrb[0].mxu0
      %v634 = vadd.f32 %v378, %v633
      %v635 = vpop.f32.mrb[0].mxu0
      %v636 = vpop.f32.mrb[0].mxu0
      %v637 = vadd.f32 %v378, %v636
      %v638 = vpop.f32.mrb[0].mxu0
      %639 = vmatprep.mubr.bf16.mxu0 0
      %640 = vmatmul.mubr.bf16.gmra.mrb[0].mxu0 %v510
      %v641 = vpop.f32.mrb[0].mxu0
      %v642 = vadd.f32 %v378, %v641
      %v643 = vpop.f32.mrb[0].mxu0
      %v644 = vpop.f32.mrb[0].mxu0
      %v645 = vadd.f32 %v378, %v644
      %v646 = vpop.f32.mrb[0].mxu0
      %647 = vmatprep.mubr.bf16.mxu0 0
      %648 = vmatmul.mubr.bf16.gmra.mrb[0].mxu0 %v513
      %v649 = vpop.f32.mrb[0].mxu0
      %v650 = vadd.f32 %v378, %v649
      %v651 = vpop.f32.mrb[0].mxu0
      %v652 = vpop.f32.mrb[0].mxu0
      %v653 = vadd.f32 %v378, %v652
      %v654 = vpop.f32.mrb[0].mxu0
      %655 = vmatprep.mubr.bf16.mxu0 0
      %656 = vmatmul.mubr.bf16.gmra.mrb[0].mxu0 %v516
      %v657 = vpop.f32.mrb[0].mxu0
      %v658 = vadd.f32 %v378, %v657
      %v659 = vpop.f32.mrb[0].mxu0
      %v660 = vpop.f32.mrb[0].mxu0
      %v661 = vadd.f32 %v378, %v660
      %v662 = vpop.f32.mrb[0].mxu0
      %663 = vmatprep.mubr.bf16.mxu0 0
      %664 = vmatmul.mubr.bf16.gmra.mrb[0].mxu0 %v519
      %v665 = vpop.f32.mrb[0].mxu0
      %v666 = vadd.f32 %v378, %v665
      %v667 = vpop.f32.mrb[0].mxu0
      %v668 = vpop.f32.mrb[0].mxu0
      %v669 = vadd.f32 %v378, %v668
      %v670 = vpop.f32.mrb[0].mxu0
      %671 = vmatprep.mubr.bf16.mxu0 0
      %672 = vmatmul.mubr.bf16.gmra.mrb[0].mxu0 %v522
      %v673 = vpop.f32.mrb[0].mxu0
      %v674 = vadd.f32 %v378, %v673
      %v675 = vpop.f32.mrb[0].mxu0
      %v676 = vpop.f32.mrb[0].mxu0
      %v677 = vadd.f32 %v378, %v676
      %v678 = vpop.f32.mrb[0].mxu0
      %679 = vmatprep.mubr.bf16.mxu0 0
      %680 = vmatmul.mubr.bf16.gmra.mrb[0].mxu0 %v525
      %v681 = vpop.f32.mrb[0].mxu0
      %v682 = vadd.f32 %v378, %v681
      %v683 = vpop.f32.mrb[0].mxu0
      %v684 = vpop.f32.mrb[0].mxu0
      %v685 = vadd.f32 %v378, %v684
      %v686 = vpop.f32.mrb[0].mxu0
      %687 = vmatprep.mubr.bf16.mxu0 0
      %688 = vmatmul.mubr.bf16.gmra.mrb[0].mxu0 %v528
      %v689 = vpop.f32.mrb[0].mxu0
      %v690 = vadd.f32 %v378, %v689
      %v691 = vpop.f32.mrb[0].mxu0
      %v692 = vpop.f32.mrb[0].mxu0
      %v693 = vadd.f32 %v378, %v692
      %v694 = vpop.f32.mrb[0].mxu0
      %695 = vmatprep.mubr.bf16.mxu0 0
      %696 = vmatmul.mubr.bf16.gmra.mrb[0].mxu0 %v531
      %v697 = vpop.f32.mrb[0].mxu0
      %v698 = vadd.f32 %v378, %v697
      %v699 = vpop.f32.mrb[0].mxu0
      %v700 = vpop.f32.mrb[0].mxu0
      %v701 = vadd.f32 %v378, %v700
      %v702 = vpop.f32.mrb[0].mxu0
      %703 = vmatprep.mubr.bf16.mxu0 0
      %704 = vmatmul.mubr.bf16.gmra.mrb[0].mxu0 %v534
      %v705 = vpop.f32.mrb[0].mxu0
      %v706 = vadd.f32 %v378, %v705
      %v707 = vpop.f32.mrb[0].mxu0
      %v708 = vpop.f32.mrb[0].mxu0
      %v709 = vadd.f32 %v378, %v708
      %v710 = vpop.f32.mrb[0].mxu0
      %711 = vmatprep.mubr.bf16.mxu0 0
      %712 = vmatmul.mubr.bf16.gmra.mrb[0].mxu0 %v537
      %v713 = vpop.f32.mrb[0].mxu0
      %v714 = vadd.f32 %v378, %v713
      %v715 = vpop.f32.mrb[0].mxu0
      %v716 = vpop.f32.mrb[0].mxu0
      %v717 = vadd.f32 %v378, %v716
      %v718 = vpop.f32.mrb[0].mxu0
      %719 = vdwg.mxu0
      %v720 = vmax.f32 %v578, 0.0
      %v721 = vmax.f32 %v581, 0.0
      %v722 = vmax.f32 %v586, 0.0
      %v723 = vmax.f32 %v589, 0.0
      %v724 = vmax.f32 %v594, 0.0
      %v725 = vmax.f32 %v597, 0.0
      %v726 = vmax.f32 %v602, 0.0
      %v727 = vmax.f32 %v605, 0.0
      %v728 = vmax.f32 %v610, 0.0
      %v729 = vmax.f32 %v613, 0.0
      %v730 = vmax.f32 %v618, 0.0
      %v731 = vmax.f32 %v621, 0.0
      %v732 = vmax.f32 %v626, 0.0
      %v733 = vmax.f32 %v629, 0.0
      %v734 = vmax.f32 %v634, 0.0
      %v735 = vmax.f32 %v637, 0.0
      %v736 = vmax.f32 %v642, 0.0
      %v737 = vmax.f32 %v645, 0.0
      %v738 = vmax.f32 %v650, 0.0
      %v739 = vmax.f32 %v653, 0.0
      %v740 = vmax.f32 %v658, 0.0
      %v741 = vmax.f32 %v661, 0.0
      %v742 = vmax.f32 %v666, 0.0
      %v743 = vmax.f32 %v669, 0.0
      %v744 = vmax.f32 %v674, 0.0
      %v745 = vmax.f32 %v677, 0.0
      %v746 = vmax.f32 %v682, 0.0
      %v747 = vmax.f32 %v685, 0.0
      %v748 = vmax.f32 %v690, 0.0
      %v749 = vmax.f32 %v693, 0.0
      %v750 = vmax.f32 %v698, 0.0
      %v751 = vmax.f32 %v701, 0.0
      %v752 = vmax.f32 %v706, 0.0
      %v753 = vmax.f32 %v709, 0.0
      %v754 = vmax.f32 %v714, 0.0
      %v755 = vmax.f32 %v717, 0.0
      %v756 = vpack.c.bf16 %v721, %v720
      %v757 = vpack.c.bf16 %v723, %v722
      %v758 = vpack.c.bf16 %v725, %v724
      %v759 = vpack.c.bf16 %v727, %v726
      %v760 = vpack.c.bf16 %v729, %v728
      %v761 = vpack.c.bf16 %v731, %v730
      %v762 = vpack.c.bf16 %v733, %v732
      %v763 = vpack.c.bf16 %v735, %v734
      %v764 = vpack.c.bf16 %v737, %v736
      %v765 = vpack.c.bf16 %v739, %v738
      %v766 = vpack.c.bf16 %v741, %v740
      %v767 = vpack.c.bf16 %v743, %v742
      %v768 = vpack.c.bf16 %v745, %v744
      %v769 = vpack.c.bf16 %v747, %v746
      %v770 = vpack.c.bf16 %v749, %v748
      %v771 = vpack.c.bf16 %v751, %v750
      %v772 = vpack.c.bf16 %v753, %v752
      %v773 = vpack.c.bf16 %v755, %v754
      %v774 = vld [vmem:[%s2] sm:$0xf]
      %v775 = vld [vmem:[%s2 + $0x4] sm:$0xf]
      %v776 = vld [vmem:[%s2 + $0x8] sm:$0xf]
      %v777 = vld [vmem:[%s2 + $0xc] sm:$0xf]
      %v778 = vld [vmem:[%s5 + $0x1] sm:$0x1]
      %v779 = vlaneseq
      %v780 = vshrl.u32 %v779, 7
      %v781 = vsub.s32 0, %v780
      %v782 = vrot.slane %v778, %v781
      %v787 = vunpack.c.l.b16 %v774
      %v788 = vunpack.c.l.b16 %v775
      %v789 = vunpack.c.l.b16 %v776
      %v790 = vunpack.c.l.b16 %v777
      %v791 = vpack.c.b16 %v788, %v787
      %v792 = vpack.c.b16 %v790, %v789
      %vm795 = vcmask 261120
      %v797 = vsel %vm795, %v756, 0
      %v800 = vsel %vm795, %v757, 0
      %v803 = vsel %vm795, %v758, 0
      %v806 = vsel %vm795, %v759, 0
      %v809 = vsel %vm795, %v760, 0
      %v812 = vsel %vm795, %v761, 0
      %v815 = vsel %vm795, %v762, 0
      %v818 = vsel %vm795, %v763, 0
      %v821 = vsel %vm795, %v764, 0
      %v824 = vsel %vm795, %v765, 0
      %v827 = vsel %vm795, %v766, 0
      %v830 = vsel %vm795, %v767, 0
      %v833 = vsel %vm795, %v768, 0
      %v836 = vsel %vm795, %v769, 0
      %v839 = vsel %vm795, %v770, 0
      %v842 = vsel %vm795, %v771, 0
      %v845 = vsel %vm795, %v772, 0
      %v848 = vsel %vm795, %v773, 0
      %850 = vmatprep.subr.bf16.mxu0 0
      %851 = vmatpush1.bf16.msra.mxu0 %v791
      %852 = vmatprep.subr.bf16.mxu0 0
      %853 = vmatpush1.bf16.msra.mxu0 %v792
      %854 = vmatprep.subr.bf16.mxu0 0
      %855 = vmatpush1.bf16.msra.mxu0 0
      %856 = vmatprep.subr.bf16.mxu0 0
      %857 = vmatpush1.bf16.msra.mxu0 0
      %858 = vmatprep.subr.bf16.mxu0 0
      %859 = vmatpush1.bf16.msra.mxu0 0
      %860 = vmatprep.subr.bf16.mxu0 0
      %861 = vmatpush1.bf16.msra.mxu0 0
      %862 = vmatprep.subr.bf16.mxu0 0
      %863 = vmatpush1.bf16.msra.mxu0 0
      %864 = vmatprep.subr.bf16.mxu0 0
      %865 = vmatpush1.bf16.msra.mxu0 0
      %866 = vmatprep.subr.bf16.mxu0 0
      %867 = vmatpush1.bf16.msra.mxu0 0
      %868 = vmatprep.subr.bf16.mxu0 0
      %869 = vmatpush1.bf16.msra.mxu0 0
      %870 = vmatprep.subr.bf16.mxu0 0
      %871 = vmatpush1.bf16.msra.mxu0 0
      %872 = vmatprep.subr.bf16.mxu0 0
      %873 = vmatpush1.bf16.msra.mxu0 0
      %874 = vmatprep.subr.bf16.mxu0 0
      %875 = vmatpush1.bf16.msra.mxu0 0
      %876 = vmatprep.subr.bf16.mxu0 0
      %877 = vmatpush1.bf16.msra.mxu0 0
      %878 = vmatprep.subr.bf16.mxu0 0
      %879 = vmatpush1.bf16.msra.mxu0 0
      %880 = vmatprep.subr.bf16.mxu0 0
      %881 = vmatpush1.bf16.msra.mxu0 0
      %882 = vmatprep.mubr.bf16.mxu0 0
      %883 = vmatmul.mubr.bf16.gmra.mrb[0].mxu0 %v797
      %v884 = vpop.f32.mrb[0].mxu0
      %v885 = vadd.f32 %v782, %v884
      %v886 = vpop.f32.mrb[0].mxu0
      %v887 = vpop.f32.mrb[0].mxu0
      %v888 = vadd.f32 %v782, %v887
      %v889 = vpop.f32.mrb[0].mxu0
      %890 = vmatprep.mubr.bf16.mxu0 0
      %891 = vmatmul.mubr.bf16.gmra.mrb[0].mxu0 %v800
      %v892 = vpop.f32.mrb[0].mxu0
      %v893 = vadd.f32 %v782, %v892
      %v894 = vpop.f32.mrb[0].mxu0
      %v895 = vpop.f32.mrb[0].mxu0
      %v896 = vadd.f32 %v782, %v895
      %v897 = vpop.f32.mrb[0].mxu0
      %898 = vmatprep.mubr.bf16.mxu0 0
      %899 = vmatmul.mubr.bf16.gmra.mrb[0].mxu0 %v803
      %v900 = vpop.f32.mrb[0].mxu0
      %v901 = vadd.f32 %v782, %v900
      %v902 = vpop.f32.mrb[0].mxu0
      %v903 = vpop.f32.mrb[0].mxu0
      %v904 = vadd.f32 %v782, %v903
      %v905 = vpop.f32.mrb[0].mxu0
      %906 = vmatprep.mubr.bf16.mxu0 0
      %907 = vmatmul.mubr.bf16.gmra.mrb[0].mxu0 %v806
      %v908 = vpop.f32.mrb[0].mxu0
      %v909 = vadd.f32 %v782, %v908
      %v910 = vpop.f32.mrb[0].mxu0
      %v911 = vpop.f32.mrb[0].mxu0
      %v912 = vadd.f32 %v782, %v911
      %v913 = vpop.f32.mrb[0].mxu0
      %914 = vmatprep.mubr.bf16.mxu0 0
      %915 = vmatmul.mubr.bf16.gmra.mrb[0].mxu0 %v809
      %v916 = vpop.f32.mrb[0].mxu0
      %v917 = vadd.f32 %v782, %v916
      %v918 = vpop.f32.mrb[0].mxu0
      %v919 = vpop.f32.mrb[0].mxu0
      %v920 = vadd.f32 %v782, %v919
      %v921 = vpop.f32.mrb[0].mxu0
      %922 = vmatprep.mubr.bf16.mxu0 0
      %923 = vmatmul.mubr.bf16.gmra.mrb[0].mxu0 %v812
      %v924 = vpop.f32.mrb[0].mxu0
      %v925 = vadd.f32 %v782, %v924
      %v926 = vpop.f32.mrb[0].mxu0
      %v927 = vpop.f32.mrb[0].mxu0
      %v928 = vadd.f32 %v782, %v927
      %v929 = vpop.f32.mrb[0].mxu0
      %930 = vmatprep.mubr.bf16.mxu0 0
      %931 = vmatmul.mubr.bf16.gmra.mrb[0].mxu0 %v815
      %v932 = vpop.f32.mrb[0].mxu0
      %v933 = vadd.f32 %v782, %v932
      %v934 = vpop.f32.mrb[0].mxu0
      %v935 = vpop.f32.mrb[0].mxu0
      %v936 = vadd.f32 %v782, %v935
      %v937 = vpop.f32.mrb[0].mxu0
      %938 = vmatprep.mubr.bf16.mxu0 0
      %939 = vmatmul.mubr.bf16.gmra.mrb[0].mxu0 %v818
      %v940 = vpop.f32.mrb[0].mxu0
      %v941 = vadd.f32 %v782, %v940
      %v942 = vpop.f32.mrb[0].mxu0
      %v943 = vpop.f32.mrb[0].mxu0
      %v944 = vadd.f32 %v782, %v943
      %v945 = vpop.f32.mrb[0].mxu0
      %946 = vmatprep.mubr.bf16.mxu0 0
      %947 = vmatmul.mubr.bf16.gmra.mrb[0].mxu0 %v821
      %v948 = vpop.f32.mrb[0].mxu0
      %v949 = vadd.f32 %v782, %v948
      %v950 = vpop.f32.mrb[0].mxu0
      %v951 = vpop.f32.mrb[0].mxu0
      %v952 = vadd.f32 %v782, %v951
      %v953 = vpop.f32.mrb[0].mxu0
      %954 = vmatprep.mubr.bf16.mxu0 0
      %955 = vmatmul.mubr.bf16.gmra.mrb[0].mxu0 %v824
      %v956 = vpop.f32.mrb[0].mxu0
      %v957 = vadd.f32 %v782, %v956
      %v958 = vpop.f32.mrb[0].mxu0
      %v959 = vpop.f32.mrb[0].mxu0
      %v960 = vadd.f32 %v782, %v959
      %v961 = vpop.f32.mrb[0].mxu0
      %962 = vmatprep.mubr.bf16.mxu0 0
      %963 = vmatmul.mubr.bf16.gmra.mrb[0].mxu0 %v827
      %v964 = vpop.f32.mrb[0].mxu0
      %v965 = vadd.f32 %v782, %v964
      %v966 = vpop.f32.mrb[0].mxu0
      %v967 = vpop.f32.mrb[0].mxu0
      %v968 = vadd.f32 %v782, %v967
      %v969 = vpop.f32.mrb[0].mxu0
      %970 = vmatprep.mubr.bf16.mxu0 0
      %971 = vmatmul.mubr.bf16.gmra.mrb[0].mxu0 %v830
      %v972 = vpop.f32.mrb[0].mxu0
      %v973 = vadd.f32 %v782, %v972
      %v974 = vpop.f32.mrb[0].mxu0
      %v975 = vpop.f32.mrb[0].mxu0
      %v976 = vadd.f32 %v782, %v975
      %v977 = vpop.f32.mrb[0].mxu0
      %978 = vmatprep.mubr.bf16.mxu0 0
      %979 = vmatmul.mubr.bf16.gmra.mrb[0].mxu0 %v833
      %v980 = vpop.f32.mrb[0].mxu0
      %v981 = vadd.f32 %v782, %v980
      %v982 = vpop.f32.mrb[0].mxu0
      %v983 = vpop.f32.mrb[0].mxu0
      %v984 = vadd.f32 %v782, %v983
      %v985 = vpop.f32.mrb[0].mxu0
      %986 = vmatprep.mubr.bf16.mxu0 0
      %987 = vmatmul.mubr.bf16.gmra.mrb[0].mxu0 %v836
      %v988 = vpop.f32.mrb[0].mxu0
      %v989 = vadd.f32 %v782, %v988
      %v990 = vpop.f32.mrb[0].mxu0
      %v991 = vpop.f32.mrb[0].mxu0
      %v992 = vadd.f32 %v782, %v991
      %v993 = vpop.f32.mrb[0].mxu0
      %994 = vmatprep.mubr.bf16.mxu0 0
      %995 = vmatmul.mubr.bf16.gmra.mrb[0].mxu0 %v839
      %v996 = vpop.f32.mrb[0].mxu0
      %v997 = vadd.f32 %v782, %v996
      %v998 = vpop.f32.mrb[0].mxu0
      %v999 = vpop.f32.mrb[0].mxu0
      %v1000 = vadd.f32 %v782, %v999
      %v1001 = vpop.f32.mrb[0].mxu0
      %1002 = vmatprep.mubr.bf16.mxu0 0
      %1003 = vmatmul.mubr.bf16.gmra.mrb[0].mxu0 %v842
      %v1004 = vpop.f32.mrb[0].mxu0
      %v1005 = vadd.f32 %v782, %v1004
      %v1006 = vpop.f32.mrb[0].mxu0
      %v1007 = vpop.f32.mrb[0].mxu0
      %v1008 = vadd.f32 %v782, %v1007
      %v1009 = vpop.f32.mrb[0].mxu0
      %1010 = vmatprep.mubr.bf16.mxu0 0
      %1011 = vmatmul.mubr.bf16.gmra.mrb[0].mxu0 %v845
      %v1012 = vpop.f32.mrb[0].mxu0
      %v1013 = vadd.f32 %v782, %v1012
      %v1014 = vpop.f32.mrb[0].mxu0
      %v1015 = vpop.f32.mrb[0].mxu0
      %v1016 = vadd.f32 %v782, %v1015
      %v1017 = vpop.f32.mrb[0].mxu0
      %1018 = vmatprep.mubr.bf16.mxu0 0
      %1019 = vmatmul.mubr.bf16.gmra.mrb[0].mxu0 %v848
      %v1020 = vpop.f32.mrb[0].mxu0
      %v1021 = vadd.f32 %v782, %v1020
      %v1022 = vpop.f32.mrb[0].mxu0
      %v1023 = vpop.f32.mrb[0].mxu0
      %v1024 = vadd.f32 %v782, %v1023
      %v1025 = vpop.f32.mrb[0].mxu0
      %1026 = vdwg.mxu0
      %v1027 = vmax.f32 %v885, 0.0
      %v1028 = vmax.f32 %v888, 0.0
      %v1029 = vmax.f32 %v893, 0.0
      %v1030 = vmax.f32 %v896, 0.0
      %v1031 = vmax.f32 %v901, 0.0
      %v1032 = vmax.f32 %v904, 0.0
      %v1033 = vmax.f32 %v909, 0.0
      %v1034 = vmax.f32 %v912, 0.0
      %v1035 = vmax.f32 %v917, 0.0
      %v1036 = vmax.f32 %v920, 0.0
      %v1037 = vmax.f32 %v925, 0.0
      %v1038 = vmax.f32 %v928, 0.0
      %v1039 = vmax.f32 %v933, 0.0
      %v1040 = vmax.f32 %v936, 0.0
      %v1041 = vmax.f32 %v941, 0.0
      %v1042 = vmax.f32 %v944, 0.0
      %v1043 = vmax.f32 %v949, 0.0
      %v1044 = vmax.f32 %v952, 0.0
      %v1045 = vmax.f32 %v957, 0.0
      %v1046 = vmax.f32 %v960, 0.0
      %v1047 = vmax.f32 %v965, 0.0
      %v1048 = vmax.f32 %v968, 0.0
      %v1049 = vmax.f32 %v973, 0.0
      %v1050 = vmax.f32 %v976, 0.0
      %v1051 = vmax.f32 %v981, 0.0
      %v1052 = vmax.f32 %v984, 0.0
      %v1053 = vmax.f32 %v989, 0.0
      %v1054 = vmax.f32 %v992, 0.0
      %v1055 = vmax.f32 %v997, 0.0
      %v1056 = vmax.f32 %v1000, 0.0
      %v1057 = vmax.f32 %v1005, 0.0
      %v1058 = vmax.f32 %v1008, 0.0
      %v1059 = vmax.f32 %v1013, 0.0
      %v1060 = vmax.f32 %v1016, 0.0
      %v1061 = vmax.f32 %v1021, 0.0
      %v1062 = vmax.f32 %v1024, 0.0
      %1064 = vset.pattern.permute.xlu0 0
      %1065 = vperm.xlu0 %1064, %v297
      %v1066 = vpop.permute.xlu0 %1065
      %1069 = vset.pattern.permute.xlu0 0
      %1070 = vperm.xlu0 %1069, %v298
      %v1071 = vpop.permute.xlu0 %1070
      %1074 = vset.pattern.permute.xlu0 0
      %1075 = vperm.xlu0 %1074, %v299
      %v1076 = vpop.permute.xlu0 %1075
      %1079 = vset.pattern.permute.xlu0 0
      %1080 = vperm.xlu0 %1079, %v300
      %v1081 = vpop.permute.xlu0 %1080
      %1084 = vset.pattern.permute.xlu0 0
      %1085 = vperm.xlu0 %1084, %v301
      %v1086 = vpop.permute.xlu0 %1085
      %1089 = vset.pattern.permute.xlu0 0
      %1090 = vperm.xlu0 %1089, %v302
      %v1091 = vpop.permute.xlu0 %1090
      %1094 = vset.pattern.permute.xlu0 0
      %1095 = vperm.xlu0 %1094, %v303
      %v1096 = vpop.permute.xlu0 %1095
      %1099 = vset.pattern.permute.xlu0 0
      %1100 = vperm.xlu0 %1099, %v304
      %v1101 = vpop.permute.xlu0 %1100
      %1104 = vset.pattern.permute.xlu0 0
      %1105 = vperm.xlu0 %1104, %v305
      %v1106 = vpop.permute.xlu0 %1105
      %1109 = vset.pattern.permute.xlu0 0
      %1110 = vperm.xlu0 %1109, %v306
      %v1111 = vpop.permute.xlu0 %1110
      %1114 = vset.pattern.permute.xlu0 0
      %1115 = vperm.xlu0 %1114, %v307
      %v1116 = vpop.permute.xlu0 %1115
      %1119 = vset.pattern.permute.xlu0 0
      %1120 = vperm.xlu0 %1119, %v308
      %v1121 = vpop.permute.xlu0 %1120
      %1124 = vset.pattern.permute.xlu0 0
      %1125 = vperm.xlu0 %1124, %v309
      %v1126 = vpop.permute.xlu0 %1125
      %1129 = vset.pattern.permute.xlu0 0
      %1130 = vperm.xlu0 %1129, %v310
      %v1131 = vpop.permute.xlu0 %1130
      %1134 = vset.pattern.permute.xlu0 0
      %1135 = vperm.xlu0 %1134, %v311
      %v1136 = vpop.permute.xlu0 %1135
      %1139 = vset.pattern.permute.xlu0 0
      %1140 = vperm.xlu0 %1139, %v312
      %v1141 = vpop.permute.xlu0 %1140
      %1144 = vset.pattern.permute.xlu0 0
      %1145 = vperm.xlu0 %1144, %v313
      %v1146 = vpop.permute.xlu0 %1145
      %1149 = vset.pattern.permute.xlu0 0
      %1150 = vperm.xlu0 %1149, %v314
      %v1151 = vpop.permute.xlu0 %1150
      %1154 = vset.pattern.permute.xlu0 0
      %1155 = vperm.xlu0 %1154, %v315
      %v1156 = vpop.permute.xlu0 %1155
      %1159 = vset.pattern.permute.xlu0 0
      %1160 = vperm.xlu0 %1159, %v316
      %v1161 = vpop.permute.xlu0 %1160
      %1164 = vset.pattern.permute.xlu0 0
      %1165 = vperm.xlu0 %1164, %v317
      %v1166 = vpop.permute.xlu0 %1165
      %1169 = vset.pattern.permute.xlu0 0
      %1170 = vperm.xlu0 %1169, %v318
      %v1171 = vpop.permute.xlu0 %1170
      %1174 = vset.pattern.permute.xlu0 0
      %1175 = vperm.xlu0 %1174, %v319
      %v1176 = vpop.permute.xlu0 %1175
      %1179 = vset.pattern.permute.xlu0 0
      %1180 = vperm.xlu0 %1179, %v320
      %v1181 = vpop.permute.xlu0 %1180
      %1184 = vset.pattern.permute.xlu0 0
      %1185 = vperm.xlu0 %1184, %v321
      %v1186 = vpop.permute.xlu0 %1185
      %1189 = vset.pattern.permute.xlu0 0
      %1190 = vperm.xlu0 %1189, %v322
      %v1191 = vpop.permute.xlu0 %1190
      %1194 = vset.pattern.permute.xlu0 0
      %1195 = vperm.xlu0 %1194, %v323
      %v1196 = vpop.permute.xlu0 %1195
      %1199 = vset.pattern.permute.xlu0 0
      %1200 = vperm.xlu0 %1199, %v324
      %v1201 = vpop.permute.xlu0 %1200
      %1204 = vset.pattern.permute.xlu0 0
      %1205 = vperm.xlu0 %1204, %v325
      %v1206 = vpop.permute.xlu0 %1205
      %1209 = vset.pattern.permute.xlu0 0
      %1210 = vperm.xlu0 %1209, %v326
      %v1211 = vpop.permute.xlu0 %1210
      %1214 = vset.pattern.permute.xlu0 0
      %1215 = vperm.xlu0 %1214, %v327
      %v1216 = vpop.permute.xlu0 %1215
      %1219 = vset.pattern.permute.xlu0 0
      %1220 = vperm.xlu0 %1219, %v328
      %v1221 = vpop.permute.xlu0 %1220
      %1224 = vset.pattern.permute.xlu0 0
      %1225 = vperm.xlu0 %1224, %v329
      %v1226 = vpop.permute.xlu0 %1225
      %1229 = vset.pattern.permute.xlu0 0
      %1230 = vperm.xlu0 %1229, %v330
      %v1231 = vpop.permute.xlu0 %1230
      %1234 = vset.pattern.permute.xlu0 0
      %1235 = vperm.xlu0 %1234, %v331
      %v1236 = vpop.permute.xlu0 %1235
      %1239 = vset.pattern.permute.xlu0 0
      %1240 = vperm.xlu0 %1239, %v332
      %v1241 = vpop.permute.xlu0 %1240
      %v1243 = vmul.f32 %v1027, %v1066
      %v1244 = vmul.f32 %v1028, %v1071
      %v1245 = vmul.f32 %v1029, %v1076
      %v1246 = vmul.f32 %v1030, %v1081
      %v1247 = vmul.f32 %v1031, %v1086
      %v1248 = vmul.f32 %v1032, %v1091
      %v1249 = vmul.f32 %v1033, %v1096
      %v1250 = vmul.f32 %v1034, %v1101
      %v1251 = vmul.f32 %v1035, %v1106
      %v1252 = vmul.f32 %v1036, %v1111
      %v1253 = vmul.f32 %v1037, %v1116
      %v1254 = vmul.f32 %v1038, %v1121
      %v1255 = vmul.f32 %v1039, %v1126
      %v1256 = vmul.f32 %v1040, %v1131
      %v1257 = vmul.f32 %v1041, %v1136
      %v1258 = vmul.f32 %v1042, %v1141
      %v1259 = vmul.f32 %v1043, %v1146
      %v1260 = vmul.f32 %v1044, %v1151
      %v1261 = vmul.f32 %v1045, %v1156
      %v1262 = vmul.f32 %v1046, %v1161
      %v1263 = vmul.f32 %v1047, %v1166
      %v1264 = vmul.f32 %v1048, %v1171
      %v1265 = vmul.f32 %v1049, %v1176
      %v1266 = vmul.f32 %v1050, %v1181
      %v1267 = vmul.f32 %v1051, %v1186
      %v1268 = vmul.f32 %v1052, %v1191
      %v1269 = vmul.f32 %v1053, %v1196
      %v1270 = vmul.f32 %v1054, %v1201
      %v1271 = vmul.f32 %v1055, %v1206
      %v1272 = vmul.f32 %v1056, %v1211
      %v1273 = vmul.f32 %v1057, %v1216
      %v1274 = vmul.f32 %v1058, %v1221
      %v1275 = vmul.f32 %v1059, %v1226
      %v1276 = vmul.f32 %v1060, %v1231
      %v1277 = vmul.f32 %v1061, %v1236
      %v1278 = vmul.f32 %v1062, %v1241
      %1279 = vst.msk [vmem:[#allocation3 + $0x13] sm:$0xff] %vm280, %v1243
      %1280 = vst.msk [vmem:[#allocation3 + $0x1b] sm:$0xff] %vm280, %v1244
      %1281 = vst.msk [vmem:[#allocation3 + $0x23] sm:$0xff] %vm280, %v1245
      %1282 = vst.msk [vmem:[#allocation3 + $0x2b] sm:$0xff] %vm280, %v1246
      %1283 = vst.msk [vmem:[#allocation3 + $0x33] sm:$0xff] %vm280, %v1247
      %1284 = vst.msk [vmem:[#allocation3 + $0x3b] sm:$0xff] %vm280, %v1248
      %1285 = vst.msk [vmem:[#allocation3 + $0x43] sm:$0xff] %vm280, %v1249
      %1286 = vst.msk [vmem:[#allocation3 + $0x4b] sm:$0xff] %vm280, %v1250
      %1287 = vst.msk [vmem:[#allocation3 + $0x53] sm:$0xff] %vm280, %v1251
      %1288 = vst.msk [vmem:[#allocation3 + $0x5b] sm:$0xff] %vm280, %v1252
      %1289 = vst.msk [vmem:[#allocation3 + $0x63] sm:$0xff] %vm280, %v1253
      %1290 = vst.msk [vmem:[#allocation3 + $0x6b] sm:$0xff] %vm280, %v1254
      %1291 = vst.msk [vmem:[#allocation3 + $0x73] sm:$0xff] %vm280, %v1255
      %1292 = vst.msk [vmem:[#allocation3 + $0x7b] sm:$0xff] %vm280, %v1256
      %1293 = vst.msk [vmem:[#allocation3 + $0x83] sm:$0xff] %vm280, %v1257
      %1294 = vst.msk [vmem:[#allocation3 + $0x8b] sm:$0xff] %vm280, %v1258
      %1295 = vst.msk [vmem:[#allocation3 + $0x93] sm:$0xff] %vm280, %v1259
      %1296 = vst.msk [vmem:[#allocation3 + $0x9b] sm:$0xff] %vm280, %v1260
      %1297 = vst.msk [vmem:[#allocation3 + $0xa3] sm:$0xff] %vm280, %v1261
      %1298 = vst.msk [vmem:[#allocation3 + $0xab] sm:$0xff] %vm280, %v1262
      %1299 = vst.msk [vmem:[#allocation3 + $0xb3] sm:$0xff] %vm280, %v1263
      %1300 = vst.msk [vmem:[#allocation3 + $0xbb] sm:$0xff] %vm280, %v1264
      %1301 = vst.msk [vmem:[#allocation3 + $0xc3] sm:$0xff] %vm280, %v1265
      %1302 = vst.msk [vmem:[#allocation3 + $0xcb] sm:$0xff] %vm280, %v1266
      %1303 = vst.msk [vmem:[#allocation3 + $0xd3] sm:$0xff] %vm280, %v1267
      %1304 = vst.msk [vmem:[#allocation3 + $0xdb] sm:$0xff] %vm280, %v1268
      %1305 = vst.msk [vmem:[#allocation3 + $0xe3] sm:$0xff] %vm280, %v1269
      %1306 = vst.msk [vmem:[#allocation3 + $0xeb] sm:$0xff] %vm280, %v1270
      %1307 = vst.msk [vmem:[#allocation3 + $0xf3] sm:$0xff] %vm280, %v1271
      %1308 = vst.msk [vmem:[#allocation3 + $0xfb] sm:$0xff] %vm280, %v1272
      %1309 = vst.msk [vmem:[#allocation3 + $0x103] sm:$0xff] %vm280, %v1273
      %1310 = vst.msk [vmem:[#allocation3 + $0x10b] sm:$0xff] %vm280, %v1274
      %1311 = vst.msk [vmem:[#allocation3 + $0x113] sm:$0xff] %vm280, %v1275
      %1312 = vst.msk [vmem:[#allocation3 + $0x11b] sm:$0xff] %vm280, %v1276
      %1313 = vst.msk [vmem:[#allocation3 + $0x123] sm:$0xff] %vm280, %v1277
      %1314 = vst.msk [vmem:[#allocation3 + $0x12b] sm:$0xff] %vm280, %v1278
      %1351 = vrot.lane.b32.xlu0 %v1243, 64
      %v1352 = vpop.permute.xlu0 %1351
      %1353 = vrot.lane.b32.xlu0 %v1244, 64
      %v1354 = vpop.permute.xlu0 %1353
      %1355 = vrot.lane.b32.xlu0 %v1245, 64
      %v1356 = vpop.permute.xlu0 %1355
      %1357 = vrot.lane.b32.xlu0 %v1246, 64
      %v1358 = vpop.permute.xlu0 %1357
      %1359 = vrot.lane.b32.xlu0 %v1247, 64
      %v1360 = vpop.permute.xlu0 %1359
      %1361 = vrot.lane.b32.xlu0 %v1248, 64
      %v1362 = vpop.permute.xlu0 %1361
      %1363 = vrot.lane.b32.xlu0 %v1249, 64
      %v1364 = vpop.permute.xlu0 %1363
      %1365 = vrot.lane.b32.xlu0 %v1250, 64
      %v1366 = vpop.permute.xlu0 %1365
      %1367 = vrot.lane.b32.xlu0 %v1251, 64
      %v1368 = vpop.permute.xlu0 %1367
      %1369 = vrot.lane.b32.xlu0 %v1252, 64
      %v1370 = vpop.permute.xlu0 %1369
      %1371 = vrot.lane.b32.xlu0 %v1253, 64
      %v1372 = vpop.permute.xlu0 %1371
      %1373 = vrot.lane.b32.xlu0 %v1254, 64
      %v1374 = vpop.permute.xlu0 %1373
      %1375 = vrot.lane.b32.xlu0 %v1255, 64
      %v1376 = vpop.permute.xlu0 %1375
      %1377 = vrot.lane.b32.xlu0 %v1256, 64
      %v1378 = vpop.permute.xlu0 %1377
      %1379 = vrot.lane.b32.xlu0 %v1257, 64
      %v1380 = vpop.permute.xlu0 %1379
      %1381 = vrot.lane.b32.xlu0 %v1258, 64
      %v1382 = vpop.permute.xlu0 %1381
      %1383 = vrot.lane.b32.xlu0 %v1259, 64
      %v1384 = vpop.permute.xlu0 %1383
      %1385 = vrot.lane.b32.xlu0 %v1260, 64
      %v1386 = vpop.permute.xlu0 %1385
      %1387 = vrot.lane.b32.xlu0 %v1261, 64
      %v1388 = vpop.permute.xlu0 %1387
      %1389 = vrot.lane.b32.xlu0 %v1262, 64
      %v1390 = vpop.permute.xlu0 %1389
      %1391 = vrot.lane.b32.xlu0 %v1263, 64
      %v1392 = vpop.permute.xlu0 %1391
      %1393 = vrot.lane.b32.xlu0 %v1264, 64
      %v1394 = vpop.permute.xlu0 %1393
      %1395 = vrot.lane.b32.xlu0 %v1265, 64
      %v1396 = vpop.permute.xlu0 %1395
      %1397 = vrot.lane.b32.xlu0 %v1266, 64
      %v1398 = vpop.permute.xlu0 %1397
      %1399 = vrot.lane.b32.xlu0 %v1267, 64
      %v1400 = vpop.permute.xlu0 %1399
      %1401 = vrot.lane.b32.xlu0 %v1268, 64
      %v1402 = vpop.permute.xlu0 %1401
      %1403 = vrot.lane.b32.xlu0 %v1269, 64
      %v1404 = vpop.permute.xlu0 %1403
      %1405 = vrot.lane.b32.xlu0 %v1270, 64
      %v1406 = vpop.permute.xlu0 %1405
      %1407 = vrot.lane.b32.xlu0 %v1271, 64
      %v1408 = vpop.permute.xlu0 %1407
      %1409 = vrot.lane.b32.xlu0 %v1272, 64
      %v1410 = vpop.permute.xlu0 %1409
      %1411 = vrot.lane.b32.xlu0 %v1273, 64
      %v1412 = vpop.permute.xlu0 %1411
      %1413 = vrot.lane.b32.xlu0 %v1274, 64
      %v1414 = vpop.permute.xlu0 %1413
      %1415 = vrot.lane.b32.xlu0 %v1275, 64
      %v1416 = vpop.permute.xlu0 %1415
      %1417 = vrot.lane.b32.xlu0 %v1276, 64
      %v1418 = vpop.permute.xlu0 %1417
      %1419 = vrot.lane.b32.xlu0 %v1277, 64
      %v1420 = vpop.permute.xlu0 %1419
      %1421 = vrot.lane.b32.xlu0 %v1278, 64
      %v1422 = vpop.permute.xlu0 %1421
      %1459 = vst.msk [vmem:[#allocation2 + $0x13] sm:$0xff] %vm280, %v1352
      %1460 = vst.msk [vmem:[#allocation2 + $0x1b] sm:$0xff] %vm280, %v1354
      %1461 = vst.msk [vmem:[#allocation2 + $0x23] sm:$0xff] %vm280, %v1356
      %1462 = vst.msk [vmem:[#allocation2 + $0x2b] sm:$0xff] %vm280, %v1358
      %1463 = vst.msk [vmem:[#allocation2 + $0x33] sm:$0xff] %vm280, %v1360
      %1464 = vst.msk [vmem:[#allocation2 + $0x3b] sm:$0xff] %vm280, %v1362
      %1465 = vst.msk [vmem:[#allocation2 + $0x43] sm:$0xff] %vm280, %v1364
      %1466 = vst.msk [vmem:[#allocation2 + $0x4b] sm:$0xff] %vm280, %v1366
      %1467 = vst.msk [vmem:[#allocation2 + $0x53] sm:$0xff] %vm280, %v1368
      %1468 = vst.msk [vmem:[#allocation2 + $0x5b] sm:$0xff] %vm280, %v1370
      %1469 = vst.msk [vmem:[#allocation2 + $0x63] sm:$0xff] %vm280, %v1372
      %1470 = vst.msk [vmem:[#allocation2 + $0x6b] sm:$0xff] %vm280, %v1374
      %1471 = vst.msk [vmem:[#allocation2 + $0x73] sm:$0xff] %vm280, %v1376
      %1472 = vst.msk [vmem:[#allocation2 + $0x7b] sm:$0xff] %vm280, %v1378
      %1473 = vst.msk [vmem:[#allocation2 + $0x83] sm:$0xff] %vm280, %v1380
      %1474 = vst.msk [vmem:[#allocation2 + $0x8b] sm:$0xff] %vm280, %v1382
      %1475 = vst.msk [vmem:[#allocation2 + $0x93] sm:$0xff] %vm280, %v1384
      %1476 = vst.msk [vmem:[#allocation2 + $0x9b] sm:$0xff] %vm280, %v1386
      %1477 = vst.msk [vmem:[#allocation2 + $0xa3] sm:$0xff] %vm280, %v1388
      %1478 = vst.msk [vmem:[#allocation2 + $0xab] sm:$0xff] %vm280, %v1390
      %1479 = vst.msk [vmem:[#allocation2 + $0xb3] sm:$0xff] %vm280, %v1392
      %1480 = vst.msk [vmem:[#allocation2 + $0xbb] sm:$0xff] %vm280, %v1394
      %1481 = vst.msk [vmem:[#allocation2 + $0xc3] sm:$0xff] %vm280, %v1396
      %1482 = vst.msk [vmem:[#allocation2 + $0xcb] sm:$0xff] %vm280, %v1398
      %1483 = vst.msk [vmem:[#allocation2 + $0xd3] sm:$0xff] %vm280, %v1400
      %1484 = vst.msk [vmem:[#allocation2 + $0xdb] sm:$0xff] %vm280, %v1402
      %1485 = vst.msk [vmem:[#allocation2 + $0xe3] sm:$0xff] %vm280, %v1404
      %1486 = vst.msk [vmem:[#allocation2 + $0xeb] sm:$0xff] %vm280, %v1406
      %1487 = vst.msk [vmem:[#allocation2 + $0xf3] sm:$0xff] %vm280, %v1408
      %1488 = vst.msk [vmem:[#allocation2 + $0xfb] sm:$0xff] %vm280, %v1410
      %1489 = vst.msk [vmem:[#allocation2 + $0x103] sm:$0xff] %vm280, %v1412
      %1490 = vst.msk [vmem:[#allocation2 + $0x10b] sm:$0xff] %vm280, %v1414
      %1491 = vst.msk [vmem:[#allocation2 + $0x113] sm:$0xff] %vm280, %v1416
      %1492 = vst.msk [vmem:[#allocation2 + $0x11b] sm:$0xff] %vm280, %v1418
      %1493 = vst.msk [vmem:[#allocation2 + $0x123] sm:$0xff] %vm280, %v1420
      %1494 = vst.msk [vmem:[#allocation2 + $0x12b] sm:$0xff] %vm280, %v1422
      %v1495 = vld [vmem:[#allocation2] sm:$0xff]
      %v1496 = vld [vmem:[#allocation2 + $0x8] sm:$0xff]
      %v1497 = vld [vmem:[#allocation2 + $0x10] sm:$0xff]
      %v1498 = vld [vmem:[#allocation2 + $0x18] sm:$0xff]
      %v1499 = vld [vmem:[#allocation2 + $0x20] sm:$0xff]
      %v1500 = vld [vmem:[#allocation2 + $0x28] sm:$0xff]
      %v1501 = vld [vmem:[#allocation2 + $0x30] sm:$0xff]
      %v1502 = vld [vmem:[#allocation2 + $0x38] sm:$0xff]
      %v1503 = vld [vmem:[#allocation2 + $0x40] sm:$0xff]
      %v1504 = vld [vmem:[#allocation2 + $0x48] sm:$0xff]
      %v1505 = vld [vmem:[#allocation2 + $0x50] sm:$0xff]
      %v1506 = vld [vmem:[#allocation2 + $0x58] sm:$0xff]
      %v1507 = vld [vmem:[#allocation2 + $0x60] sm:$0xff]
      %v1508 = vld [vmem:[#allocation2 + $0x68] sm:$0xff]
      %v1509 = vld [vmem:[#allocation2 + $0x70] sm:$0xff]
      %v1510 = vld [vmem:[#allocation2 + $0x78] sm:$0xff]
      %v1511 = vld [vmem:[#allocation2 + $0x80] sm:$0xff]
      %v1512 = vld [vmem:[#allocation2 + $0x88] sm:$0xff]
      %v1513 = vld [vmem:[#allocation2 + $0x90] sm:$0xff]
      %v1514 = vld [vmem:[#allocation2 + $0x98] sm:$0xff]
      %v1515 = vld [vmem:[#allocation2 + $0xa0] sm:$0xff]
      %v1516 = vld [vmem:[#allocation2 + $0xa8] sm:$0xff]
      %v1517 = vld [vmem:[#allocation2 + $0xb0] sm:$0xff]
      %v1518 = vld [vmem:[#allocation2 + $0xb8] sm:$0xff]
      %v1519 = vld [vmem:[#allocation2 + $0xc0] sm:$0xff]
      %v1520 = vld [vmem:[#allocation2 + $0xc8] sm:$0xff]
      %v1521 = vld [vmem:[#allocation2 + $0xd0] sm:$0xff]
      %v1522 = vld [vmem:[#allocation2 + $0xd8] sm:$0xff]
      %v1523 = vld [vmem:[#allocation2 + $0xe0] sm:$0xff]
      %v1524 = vld [vmem:[#allocation2 + $0xe8] sm:$0xff]
      %v1525 = vld [vmem:[#allocation2 + $0xf0] sm:$0xff]
      %v1526 = vld [vmem:[#allocation2 + $0xf8] sm:$0xff]
      %v1527 = vld [vmem:[#allocation2 + $0x100] sm:$0xff]
      %v1528 = vld [vmem:[#allocation2 + $0x108] sm:$0xff]
      %v1529 = vld [vmem:[#allocation2 + $0x110] sm:$0xff]
      %v1530 = vld [vmem:[#allocation2 + $0x118] sm:$0xff]
      %v1531 = vld [vmem:[#allocation2 + $0x120] sm:$0x3]
      %v1532 = vpack.c.bf16 %v1496, %v1495
      %v1533 = vpack.c.bf16 %v1498, %v1497
      %v1534 = vpack.c.bf16 %v1500, %v1499
      %v1535 = vpack.c.bf16 %v1502, %v1501
      %v1536 = vpack.c.bf16 %v1504, %v1503
      %v1537 = vpack.c.bf16 %v1506, %v1505
      %v1538 = vpack.c.bf16 %v1508, %v1507
      %v1539 = vpack.c.bf16 %v1510, %v1509
      %v1540 = vpack.c.bf16 %v1512, %v1511
      %v1541 = vpack.c.bf16 %v1514, %v1513
      %v1542 = vpack.c.bf16 %v1516, %v1515
      %v1543 = vpack.c.bf16 %v1518, %v1517
      %v1544 = vpack.c.bf16 %v1520, %v1519
      %v1545 = vpack.c.bf16 %v1522, %v1521
      %v1546 = vpack.c.bf16 %v1524, %v1523
      %v1547 = vpack.c.bf16 %v1526, %v1525
      %v1548 = vpack.c.bf16 %v1528, %v1527
      %v1549 = vpack.c.bf16 %v1530, %v1529
      %v1550 = vpack.c.bf16 %v1531, %v1531
      %v1551 = vld [vmem:[%s3] sm:$0xff]
      %v1552 = vld [vmem:[%s3 + $0x8] sm:$0xff]
      %v1553 = vld [vmem:[%s3 + $0x10] sm:$0xff]
      %v1554 = vld [vmem:[%s3 + $0x18] sm:$0xff]
      %v1555 = vld [vmem:[%s3 + $0x20] sm:$0xff]
      %v1556 = vld [vmem:[%s3 + $0x28] sm:$0xff]
      %v1557 = vld [vmem:[%s3 + $0x30] sm:$0xff]
      %v1558 = vld [vmem:[%s3 + $0x38] sm:$0xff]
      %v1567 = vunpack.c.l.b16 %v1551
      %v1568 = vunpack.c.h.b16 %v1551
      %v1569 = vunpack.c.l.b16 %v1552
      %v1570 = vunpack.c.h.b16 %v1552
      %v1571 = vunpack.c.l.b16 %v1553
      %v1572 = vunpack.c.h.b16 %v1553
      %v1573 = vunpack.c.l.b16 %v1554
      %v1574 = vunpack.c.h.b16 %v1554
      %v1575 = vunpack.c.l.b16 %v1555
      %v1576 = vunpack.c.h.b16 %v1555
      %v1577 = vunpack.c.l.b16 %v1556
      %v1578 = vunpack.c.h.b16 %v1556
      %v1579 = vunpack.c.l.b16 %v1557
      %v1580 = vunpack.c.h.b16 %v1557
      %v1581 = vunpack.c.l.b16 %v1558
      %v1582 = vunpack.c.h.b16 %v1558
      %v1583 = vpack.c.b16 %v1569, %v1567
      %v1584 = vpack.c.b16 %v1570, %v1568
      %v1585 = vpack.c.b16 %v1573, %v1571
      %v1586 = vpack.c.b16 %v1574, %v1572
      %v1587 = vpack.c.b16 %v1577, %v1575
      %v1588 = vpack.c.b16 %v1578, %v1576
      %v1589 = vpack.c.b16 %v1581, %v1579
      %v1590 = vpack.c.b16 %v1582, %v1580
      %v1600 = vsel %vm280, %v1532, 0
      %v1603 = vsel %vm280, %v1533, 0
      %v1606 = vsel %vm280, %v1534, 0
      %v1609 = vsel %vm280, %v1535, 0
      %v1612 = vsel %vm280, %v1536, 0
      %v1615 = vsel %vm280, %v1537, 0
      %v1618 = vsel %vm280, %v1538, 0
      %v1621 = vsel %vm280, %v1539, 0
      %v1624 = vsel %vm280, %v1540, 0
      %v1627 = vsel %vm280, %v1541, 0
      %v1630 = vsel %vm280, %v1542, 0
      %v1633 = vsel %vm280, %v1543, 0
      %v1636 = vsel %vm280, %v1544, 0
      %v1639 = vsel %vm280, %v1545, 0
      %v1642 = vsel %vm280, %v1546, 0
      %v1645 = vsel %vm280, %v1547, 0
      %v1648 = vsel %vm280, %v1548, 0
      %v1651 = vsel %vm280, %v1549, 0
      %v1654 = vsel %vm280, %v1550, 0
      %1656 = vmatprep.subr.bf16.mxu0 %v1584
      %1657 = vmatpush1.bf16.msra.mxu0 %v1583
      %1658 = vmatprep.subr.bf16.mxu0 %v1586
      %1659 = vmatpush1.bf16.msra.mxu0 %v1585
      %1660 = vmatprep.subr.bf16.mxu0 %v1588
      %1661 = vmatpush1.bf16.msra.mxu0 %v1587
      %1662 = vmatprep.subr.bf16.mxu0 %v1590
      %1663 = vmatpush1.bf16.msra.mxu0 %v1589
      %1664 = vmatprep.subr.bf16.mxu0 0
      %1665 = vmatpush1.bf16.msra.mxu0 0
      %1666 = vmatprep.subr.bf16.mxu0 0
      %1667 = vmatpush1.bf16.msra.mxu0 0
      %1668 = vmatprep.subr.bf16.mxu0 0
      %1669 = vmatpush1.bf16.msra.mxu0 0
      %1670 = vmatprep.subr.bf16.mxu0 0
      %1671 = vmatpush1.bf16.msra.mxu0 0
      %1672 = vmatprep.subr.bf16.mxu0 0
      %1673 = vmatpush1.bf16.msra.mxu0 0
      %1674 = vmatprep.subr.bf16.mxu0 0
      %1675 = vmatpush1.bf16.msra.mxu0 0
      %1676 = vmatprep.subr.bf16.mxu0 0
      %1677 = vmatpush1.bf16.msra.mxu0 0
      %1678 = vmatprep.subr.bf16.mxu0 0
      %1679 = vmatpush1.bf16.msra.mxu0 0
      %1680 = vmatprep.subr.bf16.mxu0 0
      %1681 = vmatpush1.bf16.msra.mxu0 0
      %1682 = vmatprep.subr.bf16.mxu0 0
      %1683 = vmatpush1.bf16.msra.mxu0 0
      %1684 = vmatprep.subr.bf16.mxu0 0
      %1685 = vmatpush1.bf16.msra.mxu0 0
      %1686 = vmatprep.subr.bf16.mxu0 0
      %1687 = vmatpush1.bf16.msra.mxu0 0
      %1688 = vmatprep.mubr.bf16.mxu0 0
      %1689 = vmatmul.mubr.bf16.gmra.mrb[0].mxu0 %v1600
      %v1690 = vpop.f32.mrb[0].mxu0
      %v1691 = vadd.f32 0.0, %v1690
      %v1692 = vpop.f32.mrb[0].mxu0
      %v1693 = vadd.f32 0.0, %v1692
      %v1694 = vpop.f32.mrb[0].mxu0
      %v1695 = vadd.f32 0.0, %v1694
      %v1696 = vpop.f32.mrb[0].mxu0
      %v1697 = vadd.f32 0.0, %v1696
      %1698 = vmatprep.mubr.bf16.mxu0 0
      %1699 = vmatmul.mubr.bf16.gmra.mrb[0].mxu0 %v1603
      %v1700 = vpop.f32.mrb[0].mxu0
      %v1701 = vadd.f32 0.0, %v1700
      %v1702 = vpop.f32.mrb[0].mxu0
      %v1703 = vadd.f32 0.0, %v1702
      %v1704 = vpop.f32.mrb[0].mxu0
      %v1705 = vadd.f32 0.0, %v1704
      %v1706 = vpop.f32.mrb[0].mxu0
      %v1707 = vadd.f32 0.0, %v1706
      %1708 = vmatprep.mubr.bf16.mxu0 0
      %1709 = vmatmul.mubr.bf16.gmra.mrb[0].mxu0 %v1606
      %v1710 = vpop.f32.mrb[0].mxu0
      %v1711 = vadd.f32 0.0, %v1710
      %v1712 = vpop.f32.mrb[0].mxu0
      %v1713 = vadd.f32 0.0, %v1712
      %v1714 = vpop.f32.mrb[0].mxu0
      %v1715 = vadd.f32 0.0, %v1714
      %v1716 = vpop.f32.mrb[0].mxu0
      %v1717 = vadd.f32 0.0, %v1716
      %1718 = vmatprep.mubr.bf16.mxu0 0
      %1719 = vmatmul.mubr.bf16.gmra.mrb[0].mxu0 %v1609
      %v1720 = vpop.f32.mrb[0].mxu0
      %v1721 = vadd.f32 0.0, %v1720
      %v1722 = vpop.f32.mrb[0].mxu0
      %v1723 = vadd.f32 0.0, %v1722
      %v1724 = vpop.f32.mrb[0].mxu0
      %v1725 = vadd.f32 0.0, %v1724
      %v1726 = vpop.f32.mrb[0].mxu0
      %v1727 = vadd.f32 0.0, %v1726
      %1728 = vmatprep.mubr.bf16.mxu0 0
      %1729 = vmatmul.mubr.bf16.gmra.mrb[0].mxu0 %v1612
      %v1730 = vpop.f32.mrb[0].mxu0
      %v1731 = vadd.f32 0.0, %v1730
      %v1732 = vpop.f32.mrb[0].mxu0
      %v1733 = vadd.f32 0.0, %v1732
      %v1734 = vpop.f32.mrb[0].mxu0
      %v1735 = vadd.f32 0.0, %v1734
      %v1736 = vpop.f32.mrb[0].mxu0
      %v1737 = vadd.f32 0.0, %v1736
      %1738 = vmatprep.mubr.bf16.mxu0 0
      %1739 = vmatmul.mubr.bf16.gmra.mrb[0].mxu0 %v1615
      %v1740 = vpop.f32.mrb[0].mxu0
      %v1741 = vadd.f32 0.0, %v1740
      %v1742 = vpop.f32.mrb[0].mxu0
      %v1743 = vadd.f32 0.0, %v1742
      %v1744 = vpop.f32.mrb[0].mxu0
      %v1745 = vadd.f32 0.0, %v1744
      %v1746 = vpop.f32.mrb[0].mxu0
      %v1747 = vadd.f32 0.0, %v1746
      %1748 = vmatprep.mubr.bf16.mxu0 0
      %1749 = vmatmul.mubr.bf16.gmra.mrb[0].mxu0 %v1618
      %v1750 = vpop.f32.mrb[0].mxu0
      %v1751 = vadd.f32 0.0, %v1750
      %v1752 = vpop.f32.mrb[0].mxu0
      %v1753 = vadd.f32 0.0, %v1752
      %v1754 = vpop.f32.mrb[0].mxu0
      %v1755 = vadd.f32 0.0, %v1754
      %v1756 = vpop.f32.mrb[0].mxu0
      %v1757 = vadd.f32 0.0, %v1756
      %1758 = vmatprep.mubr.bf16.mxu0 0
      %1759 = vmatmul.mubr.bf16.gmra.mrb[0].mxu0 %v1621
      %v1760 = vpop.f32.mrb[0].mxu0
      %v1761 = vadd.f32 0.0, %v1760
      %v1762 = vpop.f32.mrb[0].mxu0
      %v1763 = vadd.f32 0.0, %v1762
      %v1764 = vpop.f32.mrb[0].mxu0
      %v1765 = vadd.f32 0.0, %v1764
      %v1766 = vpop.f32.mrb[0].mxu0
      %v1767 = vadd.f32 0.0, %v1766
      %1768 = vmatprep.mubr.bf16.mxu0 0
      %1769 = vmatmul.mubr.bf16.gmra.mrb[0].mxu0 %v1624
      %v1770 = vpop.f32.mrb[0].mxu0
      %v1771 = vadd.f32 0.0, %v1770
      %v1772 = vpop.f32.mrb[0].mxu0
      %v1773 = vadd.f32 0.0, %v1772
      %v1774 = vpop.f32.mrb[0].mxu0
      %v1775 = vadd.f32 0.0, %v1774
      %v1776 = vpop.f32.mrb[0].mxu0
      %v1777 = vadd.f32 0.0, %v1776
      %1778 = vmatprep.mubr.bf16.mxu0 0
      %1779 = vmatmul.mubr.bf16.gmra.mrb[0].mxu0 %v1627
      %v1780 = vpop.f32.mrb[0].mxu0
      %v1781 = vadd.f32 0.0, %v1780
      %v1782 = vpop.f32.mrb[0].mxu0
      %v1783 = vadd.f32 0.0, %v1782
      %v1784 = vpop.f32.mrb[0].mxu0
      %v1785 = vadd.f32 0.0, %v1784
      %v1786 = vpop.f32.mrb[0].mxu0
      %v1787 = vadd.f32 0.0, %v1786
      %1788 = vmatprep.mubr.bf16.mxu0 0
      %1789 = vmatmul.mubr.bf16.gmra.mrb[0].mxu0 %v1630
      %v1790 = vpop.f32.mrb[0].mxu0
      %v1791 = vadd.f32 0.0, %v1790
      %v1792 = vpop.f32.mrb[0].mxu0
      %v1793 = vadd.f32 0.0, %v1792
      %v1794 = vpop.f32.mrb[0].mxu0
      %v1795 = vadd.f32 0.0, %v1794
      %v1796 = vpop.f32.mrb[0].mxu0
      %v1797 = vadd.f32 0.0, %v1796
      %1798 = vmatprep.mubr.bf16.mxu0 0
      %1799 = vmatmul.mubr.bf16.gmra.mrb[0].mxu0 %v1633
      %v1800 = vpop.f32.mrb[0].mxu0
      %v1801 = vadd.f32 0.0, %v1800
      %v1802 = vpop.f32.mrb[0].mxu0
      %v1803 = vadd.f32 0.0, %v1802
      %v1804 = vpop.f32.mrb[0].mxu0
      %v1805 = vadd.f32 0.0, %v1804
      %v1806 = vpop.f32.mrb[0].mxu0
      %v1807 = vadd.f32 0.0, %v1806
      %1808 = vmatprep.mubr.bf16.mxu0 0
      %1809 = vmatmul.mubr.bf16.gmra.mrb[0].mxu0 %v1636
      %v1810 = vpop.f32.mrb[0].mxu0
      %v1811 = vadd.f32 0.0, %v1810
      %v1812 = vpop.f32.mrb[0].mxu0
      %v1813 = vadd.f32 0.0, %v1812
      %v1814 = vpop.f32.mrb[0].mxu0
      %v1815 = vadd.f32 0.0, %v1814
      %v1816 = vpop.f32.mrb[0].mxu0
      %v1817 = vadd.f32 0.0, %v1816
      %1818 = vmatprep.mubr.bf16.mxu0 0
      %1819 = vmatmul.mubr.bf16.gmra.mrb[0].mxu0 %v1639
      %v1820 = vpop.f32.mrb[0].mxu0
      %v1821 = vadd.f32 0.0, %v1820
      %v1822 = vpop.f32.mrb[0].mxu0
      %v1823 = vadd.f32 0.0, %v1822
      %v1824 = vpop.f32.mrb[0].mxu0
      %v1825 = vadd.f32 0.0, %v1824
      %v1826 = vpop.f32.mrb[0].mxu0
      %v1827 = vadd.f32 0.0, %v1826
      %1828 = vmatprep.mubr.bf16.mxu0 0
      %1829 = vmatmul.mubr.bf16.gmra.mrb[0].mxu0 %v1642
      %v1830 = vpop.f32.mrb[0].mxu0
      %v1831 = vadd.f32 0.0, %v1830
      %v1832 = vpop.f32.mrb[0].mxu0
      %v1833 = vadd.f32 0.0, %v1832
      %v1834 = vpop.f32.mrb[0].mxu0
      %v1835 = vadd.f32 0.0, %v1834
      %v1836 = vpop.f32.mrb[0].mxu0
      %v1837 = vadd.f32 0.0, %v1836
      %1838 = vmatprep.mubr.bf16.mxu0 0
      %1839 = vmatmul.mubr.bf16.gmra.mrb[0].mxu0 %v1645
      %v1840 = vpop.f32.mrb[0].mxu0
      %v1841 = vadd.f32 0.0, %v1840
      %v1842 = vpop.f32.mrb[0].mxu0
      %v1843 = vadd.f32 0.0, %v1842
      %v1844 = vpop.f32.mrb[0].mxu0
      %v1845 = vadd.f32 0.0, %v1844
      %v1846 = vpop.f32.mrb[0].mxu0
      %v1847 = vadd.f32 0.0, %v1846
      %1848 = vmatprep.mubr.bf16.mxu0 0
      %1849 = vmatmul.mubr.bf16.gmra.mrb[0].mxu0 %v1648
      %v1850 = vpop.f32.mrb[0].mxu0
      %v1851 = vadd.f32 0.0, %v1850
      %v1852 = vpop.f32.mrb[0].mxu0
      %v1853 = vadd.f32 0.0, %v1852
      %v1854 = vpop.f32.mrb[0].mxu0
      %v1855 = vadd.f32 0.0, %v1854
      %v1856 = vpop.f32.mrb[0].mxu0
      %v1857 = vadd.f32 0.0, %v1856
      %1858 = vmatprep.mubr.bf16.mxu0 0
      %1859 = vmatmul.mubr.bf16.gmra.mrb[0].mxu0 %v1651
      %v1860 = vpop.f32.mrb[0].mxu0
      %v1861 = vadd.f32 0.0, %v1860
      %v1862 = vpop.f32.mrb[0].mxu0
      %v1863 = vadd.f32 0.0, %v1862
      %v1864 = vpop.f32.mrb[0].mxu0
      %v1865 = vadd.f32 0.0, %v1864
      %v1866 = vpop.f32.mrb[0].mxu0
      %v1867 = vadd.f32 0.0, %v1866
      %1868 = vmatprep.mubr.bf16.mxu0 0
      %1869 = vmatmul.mubr.bf16.gmra.mrb[0].mxu0 %v1654
      %v1870 = vpop.f32.mrb[0].mxu0
      %v1871 = vadd.f32 0.0, %v1870
      %v1872 = vpop.f32.mrb[0].mxu0
      %v1873 = vadd.f32 0.0, %v1872
      %v1874 = vpop.f32.mrb[0].mxu0
      %v1875 = vpop.f32.mrb[0].mxu0
      %1876 = vdwg.mxu0
      %1877 = vst [vmem:[#allocation4] sm:$0xff] %v1691
      %1878 = vst.msk [vmem:[#allocation4 + $0x8] sm:$0xff] %vm280, %v1693
      %1879 = vst [vmem:[#allocation4 + $0x10] sm:$0xff] %v1695
      %1880 = vst.msk [vmem:[#allocation4 + $0x18] sm:$0xff] %vm280, %v1697
      %1881 = vst [vmem:[#allocation4 + $0x20] sm:$0xff] %v1701
      %1882 = vst.msk [vmem:[#allocation4 + $0x28] sm:$0xff] %vm280, %v1703
      %1883 = vst [vmem:[#allocation4 + $0x30] sm:$0xff] %v1705
      %1884 = vst.msk [vmem:[#allocation4 + $0x38] sm:$0xff] %vm280, %v1707
      %1885 = vst [vmem:[#allocation4 + $0x40] sm:$0xff] %v1711
      %1886 = vst.msk [vmem:[#allocation4 + $0x48] sm:$0xff] %vm280, %v1713
      %1887 = vst [vmem:[#allocation4 + $0x50] sm:$0xff] %v1715
      %1888 = vst.msk [vmem:[#allocation4 + $0x58] sm:$0xff] %vm280, %v1717
      %1889 = vst [vmem:[#allocation4 + $0x60] sm:$0xff] %v1721
      %1890 = vst.msk [vmem:[#allocation4 + $0x68] sm:$0xff] %vm280, %v1723
      %1891 = vst [vmem:[#allocation4 + $0x70] sm:$0xff] %v1725
      %1892 = vst.msk [vmem:[#allocation4 + $0x78] sm:$0xff] %vm280, %v1727
      %1893 = vst [vmem:[#allocation4 + $0x80] sm:$0xff] %v1731
      %1894 = vst.msk [vmem:[#allocation4 + $0x88] sm:$0xff] %vm280, %v1733
      %1895 = vst [vmem:[#allocation4 + $0x90] sm:$0xff] %v1735
      %1896 = vst.msk [vmem:[#allocation4 + $0x98] sm:$0xff] %vm280, %v1737
      %1897 = vst [vmem:[#allocation4 + $0xa0] sm:$0xff] %v1741
      %1898 = vst.msk [vmem:[#allocation4 + $0xa8] sm:$0xff] %vm280, %v1743
      %1899 = vst [vmem:[#allocation4 + $0xb0] sm:$0xff] %v1745
      %1900 = vst.msk [vmem:[#allocation4 + $0xb8] sm:$0xff] %vm280, %v1747
      %1901 = vst [vmem:[#allocation4 + $0xc0] sm:$0xff] %v1751
      %1902 = vst.msk [vmem:[#allocation4 + $0xc8] sm:$0xff] %vm280, %v1753
      %1903 = vst [vmem:[#allocation4 + $0xd0] sm:$0xff] %v1755
      %1904 = vst.msk [vmem:[#allocation4 + $0xd8] sm:$0xff] %vm280, %v1757
      %1905 = vst [vmem:[#allocation4 + $0xe0] sm:$0xff] %v1761
      %1906 = vst.msk [vmem:[#allocation4 + $0xe8] sm:$0xff] %vm280, %v1763
      %1907 = vst [vmem:[#allocation4 + $0xf0] sm:$0xff] %v1765
      %1908 = vst.msk [vmem:[#allocation4 + $0xf8] sm:$0xff] %vm280, %v1767
      %1909 = vst [vmem:[#allocation4 + $0x100] sm:$0xff] %v1771
      %1910 = vst.msk [vmem:[#allocation4 + $0x108] sm:$0xff] %vm280, %v1773
      %1911 = vst [vmem:[#allocation4 + $0x110] sm:$0xff] %v1775
      %1912 = vst.msk [vmem:[#allocation4 + $0x118] sm:$0xff] %vm280, %v1777
      %1913 = vst [vmem:[#allocation4 + $0x120] sm:$0xff] %v1781
      %1914 = vst.msk [vmem:[#allocation4 + $0x128] sm:$0xff] %vm280, %v1783
      %1915 = vst [vmem:[#allocation4 + $0x130] sm:$0xff] %v1785
      %1916 = vst.msk [vmem:[#allocation4 + $0x138] sm:$0xff] %vm280, %v1787
      %1917 = vst [vmem:[#allocation4 + $0x140] sm:$0xff] %v1791
      %1918 = vst.msk [vmem:[#allocation4 + $0x148] sm:$0xff] %vm280, %v1793
      %1919 = vst [vmem:[#allocation4 + $0x150] sm:$0xff] %v1795
      %1920 = vst.msk [vmem:[#allocation4 + $0x158] sm:$0xff] %vm280, %v1797
      %1921 = vst [vmem:[#allocation4 + $0x160] sm:$0xff] %v1801
      %1922 = vst.msk [vmem:[#allocation4 + $0x168] sm:$0xff] %vm280, %v1803
      %1923 = vst [vmem:[#allocation4 + $0x170] sm:$0xff] %v1805
      %1924 = vst.msk [vmem:[#allocation4 + $0x178] sm:$0xff] %vm280, %v1807
      %1925 = vst [vmem:[#allocation4 + $0x180] sm:$0xff] %v1811
      %1926 = vst.msk [vmem:[#allocation4 + $0x188] sm:$0xff] %vm280, %v1813
      %1927 = vst [vmem:[#allocation4 + $0x190] sm:$0xff] %v1815
      %1928 = vst.msk [vmem:[#allocation4 + $0x198] sm:$0xff] %vm280, %v1817
      %1929 = vst [vmem:[#allocation4 + $0x1a0] sm:$0xff] %v1821
      %1930 = vst.msk [vmem:[#allocation4 + $0x1a8] sm:$0xff] %vm280, %v1823
      %1931 = vst [vmem:[#allocation4 + $0x1b0] sm:$0xff] %v1825
      %1932 = vst.msk [vmem:[#allocation4 + $0x1b8] sm:$0xff] %vm280, %v1827
      %1933 = vst [vmem:[#allocation4 + $0x1c0] sm:$0xff] %v1831
      %1934 = vst.msk [vmem:[#allocation4 + $0x1c8] sm:$0xff] %vm280, %v1833
      %1935 = vst [vmem:[#allocation4 + $0x1d0] sm:$0xff] %v1835
      %1936 = vst.msk [vmem:[#allocation4 + $0x1d8] sm:$0xff] %vm280, %v1837
      %1937 = vst [vmem:[#allocation4 + $0x1e0] sm:$0xff] %v1841
      %1938 = vst.msk [vmem:[#allocation4 + $0x1e8] sm:$0xff] %vm280, %v1843
      %1939 = vst [vmem:[#allocation4 + $0x1f0] sm:$0xff] %v1845
      %1940 = vst.msk [vmem:[#allocation4 + $0x1f8] sm:$0xff] %vm280, %v1847
      %1941 = vst [vmem:[#allocation4 + $0x200] sm:$0xff] %v1851
      %1942 = vst.msk [vmem:[#allocation4 + $0x208] sm:$0xff] %vm280, %v1853
      %1943 = vst [vmem:[#allocation4 + $0x210] sm:$0xff] %v1855
      %1944 = vst.msk [vmem:[#allocation4 + $0x218] sm:$0xff] %vm280, %v1857
      %1945 = vst [vmem:[#allocation4 + $0x220] sm:$0xff] %v1861
      %1946 = vst.msk [vmem:[#allocation4 + $0x228] sm:$0xff] %vm280, %v1863
      %1947 = vst [vmem:[#allocation4 + $0x230] sm:$0xff] %v1865
      %1948 = vst.msk [vmem:[#allocation4 + $0x238] sm:$0xff] %vm280, %v1867
      %1949 = vst [vmem:[#allocation4 + $0x240] sm:$0x3] %v1871
      %vm1950 = vcmask 517120
      %1951 = vst.msk [vmem:[#allocation4 + $0x248] sm:$0x3] %vm1950, %v1873
      %v1952 = vld [vmem:[#allocation4] sm:$0xff]
      %v1953 = vld [vmem:[#allocation4 + $0x10] sm:$0xff]
      %v1954 = vld [vmem:[#allocation4 + $0x20] sm:$0xff]
      %v1955 = vld [vmem:[#allocation4 + $0x30] sm:$0xff]
      %v1956 = vld [vmem:[#allocation4 + $0x40] sm:$0xff]
      %v1957 = vld [vmem:[#allocation4 + $0x50] sm:$0xff]
      %v1958 = vld [vmem:[#allocation4 + $0x60] sm:$0xff]
      %v1959 = vld [vmem:[#allocation4 + $0x70] sm:$0xff]
      %v1960 = vld [vmem:[#allocation4 + $0x80] sm:$0xff]
      %v1961 = vld [vmem:[#allocation4 + $0x90] sm:$0xff]
      %v1962 = vld [vmem:[#allocation4 + $0xa0] sm:$0xff]
      %v1963 = vld [vmem:[#allocation4 + $0xb0] sm:$0xff]
      %v1964 = vld [vmem:[#allocation4 + $0xc0] sm:$0xff]
      %v1965 = vld [vmem:[#allocation4 + $0xd0] sm:$0xff]
      %v1966 = vld [vmem:[#allocation4 + $0xe0] sm:$0xff]
      %v1967 = vld [vmem:[#allocation4 + $0xf0] sm:$0xff]
      %v1968 = vld [vmem:[#allocation4 + $0x100] sm:$0xff]
      %v1969 = vld [vmem:[#allocation4 + $0x110] sm:$0xff]
      %v1970 = vld [vmem:[#allocation4 + $0x120] sm:$0xff]
      %v1971 = vld [vmem:[#allocation4 + $0x130] sm:$0xff]
      %v1972 = vld [vmem:[#allocation4 + $0x140] sm:$0xff]
      %v1973 = vld [vmem:[#allocation4 + $0x150] sm:$0xff]
      %v1974 = vld [vmem:[#allocation4 + $0x160] sm:$0xff]
      %v1975 = vld [vmem:[#allocation4 + $0x170] sm:$0xff]
      %v1976 = vld [vmem:[#allocation4 + $0x180] sm:$0xff]
      %v1977 = vld [vmem:[#allocation4 + $0x190] sm:$0xff]
      %v1978 = vld [vmem:[#allocation4 + $0x1a0] sm:$0xff]
      %v1979 = vld [vmem:[#allocation4 + $0x1b0] sm:$0xff]
      %v1980 = vld [vmem:[#allocation4 + $0x1c0] sm:$0xff]
      %v1981 = vld [vmem:[#allocation4 + $0x1d0] sm:$0xff]
      %v1982 = vld [vmem:[#allocation4 + $0x1e0] sm:$0xff]
      %v1983 = vld [vmem:[#allocation4 + $0x1f0] sm:$0xff]
      %v1984 = vld [vmem:[#allocation4 + $0x200] sm:$0xff]
      %v1985 = vld [vmem:[#allocation4 + $0x210] sm:$0xff]
      %v1986 = vld [vmem:[#allocation4 + $0x220] sm:$0xff]
      %v1987 = vld [vmem:[#allocation4 + $0x230] sm:$0xff]
      %v1988 = vadd.f32 %v1952, 0.0
      %v1989 = vadd.f32 %v1953, 0.0
      %v1990 = vadd.f32 %v1954, 0.0
      %v1991 = vadd.f32 %v1955, 0.0
      %v1992 = vadd.f32 %v1956, 0.0
      %v1993 = vadd.f32 %v1957, 0.0
      %v1994 = vadd.f32 %v1958, 0.0
      %v1995 = vadd.f32 %v1959, 0.0
      %v1996 = vadd.f32 %v1960, 0.0
      %v1997 = vadd.f32 %v1961, 0.0
      %v1998 = vadd.f32 %v1962, 0.0
      %v1999 = vadd.f32 %v1963, 0.0
      %v2000 = vadd.f32 %v1964, 0.0
      %v2001 = vadd.f32 %v1965, 0.0
      %v2002 = vadd.f32 %v1966, 0.0
      %v2003 = vadd.f32 %v1967, 0.0
      %v2004 = vadd.f32 %v1968, 0.0
      %v2005 = vadd.f32 %v1969, 0.0
      %v2006 = vadd.f32 %v1970, 0.0
      %v2007 = vadd.f32 %v1971, 0.0
      %v2008 = vadd.f32 %v1972, 0.0
      %v2009 = vadd.f32 %v1973, 0.0
      %v2010 = vadd.f32 %v1974, 0.0
      %v2011 = vadd.f32 %v1975, 0.0
      %v2012 = vadd.f32 %v1976, 0.0
      %v2013 = vadd.f32 %v1977, 0.0
      %v2014 = vadd.f32 %v1978, 0.0
      %v2015 = vadd.f32 %v1979, 0.0
      %v2016 = vadd.f32 %v1980, 0.0
      %v2017 = vadd.f32 %v1981, 0.0
      %v2018 = vadd.f32 %v1982, 0.0
      %v2019 = vadd.f32 %v1983, 0.0
      %v2020 = vadd.f32 %v1984, 0.0
      %v2021 = vadd.f32 %v1985, 0.0
      %v2022 = vadd.f32 %v1986, 0.0
      %v2023 = vadd.f32 %v1987, 0.0
      %v2024 = vld [vmem:[#allocation4] sm:$0xfe]
      %v2025 = vld [vmem:[#allocation4 + $0x240] sm:$0x1]
      %vm2063 = vcmask 1046528
      %v2064 = vrot.slane %v2024, 1
      %v2065 = vrot.slane %v1953, 1
      %v2066 = vsel %vm2063, %v2064, %v2065
      %v2067 = vrot.slane %v1954, 1
      %v2068 = vsel %vm2063, %v2065, %v2067
      %v2069 = vrot.slane %v1955, 1
      %v2070 = vsel %vm2063, %v2067, %v2069
      %v2071 = vrot.slane %v1956, 1
      %v2072 = vsel %vm2063, %v2069, %v2071
      %v2073 = vrot.slane %v1957, 1
      %v2074 = vsel %vm2063, %v2071, %v2073
      %v2075 = vrot.slane %v1958, 1
      %v2076 = vsel %vm2063, %v2073, %v2075
      %v2077 = vrot.slane %v1959, 1
      %v2078 = vsel %vm2063, %v2075, %v2077
      %v2079 = vrot.slane %v1960, 1
      %v2080 = vsel %vm2063, %v2077, %v2079
      %v2081 = vrot.slane %v1961, 1
      %v2082 = vsel %vm2063, %v2079, %v2081
      %v2083 = vrot.slane %v1962, 1
      %v2084 = vsel %vm2063, %v2081, %v2083
      %v2085 = vrot.slane %v1963, 1
      %v2086 = vsel %vm2063, %v2083, %v2085
      %v2087 = vrot.slane %v1964, 1
      %v2088 = vsel %vm2063, %v2085, %v2087
      %v2089 = vrot.slane %v1965, 1
      %v2090 = vsel %vm2063, %v2087, %v2089
      %v2091 = vrot.slane %v1966, 1
      %v2092 = vsel %vm2063, %v2089, %v2091
      %v2093 = vrot.slane %v1967, 1
      %v2094 = vsel %vm2063, %v2091, %v2093
      %v2095 = vrot.slane %v1968, 1
      %v2096 = vsel %vm2063, %v2093, %v2095
      %v2097 = vrot.slane %v1969, 1
      %v2098 = vsel %vm2063, %v2095, %v2097
      %v2099 = vrot.slane %v1970, 1
      %v2100 = vsel %vm2063, %v2097, %v2099
      %v2101 = vrot.slane %v1971, 1
      %v2102 = vsel %vm2063, %v2099, %v2101
      %v2103 = vrot.slane %v1972, 1
      %v2104 = vsel %vm2063, %v2101, %v2103
      %v2105 = vrot.slane %v1973, 1
      %v2106 = vsel %vm2063, %v2103, %v2105
      %v2107 = vrot.slane %v1974, 1
      %v2108 = vsel %vm2063, %v2105, %v2107
      %v2109 = vrot.slane %v1975, 1
      %v2110 = vsel %vm2063, %v2107, %v2109
      %v2111 = vrot.slane %v1976, 1
      %v2112 = vsel %vm2063, %v2109, %v2111
      %v2113 = vrot.slane %v1977, 1
      %v2114 = vsel %vm2063, %v2111, %v2113
      %v2115 = vrot.slane %v1978, 1
      %v2116 = vsel %vm2063, %v2113, %v2115
      %v2117 = vrot.slane %v1979, 1
      %v2118 = vsel %vm2063, %v2115, %v2117
      %v2119 = vrot.slane %v1980, 1
      %v2120 = vsel %vm2063, %v2117, %v2119
      %v2121 = vrot.slane %v1981, 1
      %v2122 = vsel %vm2063, %v2119, %v2121
      %v2123 = vrot.slane %v1982, 1
      %v2124 = vsel %vm2063, %v2121, %v2123
      %v2125 = vrot.slane %v1983, 1
      %v2126 = vsel %vm2063, %v2123, %v2125
      %v2127 = vrot.slane %v1984, 1
      %v2128 = vsel %vm2063, %v2125, %v2127
      %v2129 = vrot.slane %v1985, 1
      %v2130 = vsel %vm2063, %v2127, %v2129
      %v2131 = vrot.slane %v1986, 1
      %v2132 = vsel %vm2063, %v2129, %v2131
      %v2133 = vrot.slane %v1987, 1
      %v2134 = vsel %vm2063, %v2131, %v2133
      %v2135 = vrot.slane %v2025, 1
      %v2136 = vsel %vm2063, %v2133, %v2135
      %2137 = vrot.lane.b32.xlu0 %v2066, 64
      %v2138 = vpop.permute.xlu0 %2137
      %2139 = vrot.lane.b32.xlu0 %v2068, 64
      %v2140 = vpop.permute.xlu0 %2139
      %2141 = vrot.lane.b32.xlu0 %v2070, 64
      %v2142 = vpop.permute.xlu0 %2141
      %2143 = vrot.lane.b32.xlu0 %v2072, 64
      %v2144 = vpop.permute.xlu0 %2143
      %2145 = vrot.lane.b32.xlu0 %v2074, 64
      %v2146 = vpop.permute.xlu0 %2145
      %2147 = vrot.lane.b32.xlu0 %v2076, 64
      %v2148 = vpop.permute.xlu0 %2147
      %2149 = vrot.lane.b32.xlu0 %v2078, 64
      %v2150 = vpop.permute.xlu0 %2149
      %2151 = vrot.lane.b32.xlu0 %v2080, 64
      %v2152 = vpop.permute.xlu0 %2151
      %2153 = vrot.lane.b32.xlu0 %v2082, 64
      %v2154 = vpop.permute.xlu0 %2153
      %2155 = vrot.lane.b32.xlu0 %v2084, 64
      %v2156 = vpop.permute.xlu0 %2155
      %2157 = vrot.lane.b32.xlu0 %v2086, 64
      %v2158 = vpop.permute.xlu0 %2157
      %2159 = vrot.lane.b32.xlu0 %v2088, 64
      %v2160 = vpop.permute.xlu0 %2159
      %2161 = vrot.lane.b32.xlu0 %v2090, 64
      %v2162 = vpop.permute.xlu0 %2161
      %2163 = vrot.lane.b32.xlu0 %v2092, 64
      %v2164 = vpop.permute.xlu0 %2163
      %2165 = vrot.lane.b32.xlu0 %v2094, 64
      %v2166 = vpop.permute.xlu0 %2165
      %2167 = vrot.lane.b32.xlu0 %v2096, 64
      %v2168 = vpop.permute.xlu0 %2167
      %2169 = vrot.lane.b32.xlu0 %v2098, 64
      %v2170 = vpop.permute.xlu0 %2169
      %2171 = vrot.lane.b32.xlu0 %v2100, 64
      %v2172 = vpop.permute.xlu0 %2171
      %2173 = vrot.lane.b32.xlu0 %v2102, 64
      %v2174 = vpop.permute.xlu0 %2173
      %2175 = vrot.lane.b32.xlu0 %v2104, 64
      %v2176 = vpop.permute.xlu0 %2175
      %2177 = vrot.lane.b32.xlu0 %v2106, 64
      %v2178 = vpop.permute.xlu0 %2177
      %2179 = vrot.lane.b32.xlu0 %v2108, 64
      %v2180 = vpop.permute.xlu0 %2179
      %2181 = vrot.lane.b32.xlu0 %v2110, 64
      %v2182 = vpop.permute.xlu0 %2181
      %2183 = vrot.lane.b32.xlu0 %v2112, 64
      %v2184 = vpop.permute.xlu0 %2183
      %2185 = vrot.lane.b32.xlu0 %v2114, 64
      %v2186 = vpop.permute.xlu0 %2185
      %2187 = vrot.lane.b32.xlu0 %v2116, 64
      %v2188 = vpop.permute.xlu0 %2187
      %2189 = vrot.lane.b32.xlu0 %v2118, 64
      %v2190 = vpop.permute.xlu0 %2189
      %2191 = vrot.lane.b32.xlu0 %v2120, 64
      %v2192 = vpop.permute.xlu0 %2191
      %2193 = vrot.lane.b32.xlu0 %v2122, 64
      %v2194 = vpop.permute.xlu0 %2193
      %2195 = vrot.lane.b32.xlu0 %v2124, 64
      %v2196 = vpop.permute.xlu0 %2195
      %2197 = vrot.lane.b32.xlu0 %v2126, 64
      %v2198 = vpop.permute.xlu0 %2197
      %2199 = vrot.lane.b32.xlu0 %v2128, 64
      %v2200 = vpop.permute.xlu0 %2199
      %2201 = vrot.lane.b32.xlu0 %v2130, 64
      %v2202 = vpop.permute.xlu0 %2201
      %2203 = vrot.lane.b32.xlu0 %v2132, 64
      %v2204 = vpop.permute.xlu0 %2203
      %2205 = vrot.lane.b32.xlu0 %v2134, 64
      %v2206 = vpop.permute.xlu0 %2205
      %2207 = vrot.lane.b32.xlu0 %v2136, 64
      %v2208 = vpop.permute.xlu0 %2207
      %v2245 = vadd.f32 %v1988, %v2138
      %v2246 = vadd.f32 %v1989, %v2140
      %v2247 = vadd.f32 %v1990, %v2142
      %v2248 = vadd.f32 %v1991, %v2144
      %v2249 = vadd.f32 %v1992, %v2146
      %v2250 = vadd.f32 %v1993, %v2148
      %v2251 = vadd.f32 %v1994, %v2150
      %v2252 = vadd.f32 %v1995, %v2152
      %v2253 = vadd.f32 %v1996, %v2154
      %v2254 = vadd.f32 %v1997, %v2156
      %v2255 = vadd.f32 %v1998, %v2158
      %v2256 = vadd.f32 %v1999, %v2160
      %v2257 = vadd.f32 %v2000, %v2162
      %v2258 = vadd.f32 %v2001, %v2164
      %v2259 = vadd.f32 %v2002, %v2166
      %v2260 = vadd.f32 %v2003, %v2168
      %v2261 = vadd.f32 %v2004, %v2170
      %v2262 = vadd.f32 %v2005, %v2172
      %v2263 = vadd.f32 %v2006, %v2174
      %v2264 = vadd.f32 %v2007, %v2176
      %v2265 = vadd.f32 %v2008, %v2178
      %v2266 = vadd.f32 %v2009, %v2180
      %v2267 = vadd.f32 %v2010, %v2182
      %v2268 = vadd.f32 %v2011, %v2184
      %v2269 = vadd.f32 %v2012, %v2186
      %v2270 = vadd.f32 %v2013, %v2188
      %v2271 = vadd.f32 %v2014, %v2190
      %v2272 = vadd.f32 %v2015, %v2192
      %v2273 = vadd.f32 %v2016, %v2194
      %v2274 = vadd.f32 %v2017, %v2196
      %v2275 = vadd.f32 %v2018, %v2198
      %v2276 = vadd.f32 %v2019, %v2200
      %v2277 = vadd.f32 %v2020, %v2202
      %v2278 = vadd.f32 %v2021, %v2204
      %v2279 = vadd.f32 %v2022, %v2206
      %v2280 = vadd.f32 %v2023, %v2208
      %v2281 = vld [vmem:[#allocation4 + $0x8] sm:$0xfc]
      %v2282 = vld [vmem:[#allocation4 + $0x18] sm:$0xff]
      %v2283 = vld [vmem:[#allocation4 + $0x28] sm:$0xff]
      %v2284 = vld [vmem:[#allocation4 + $0x38] sm:$0xff]
      %v2285 = vld [vmem:[#allocation4 + $0x48] sm:$0xff]
      %v2286 = vld [vmem:[#allocation4 + $0x58] sm:$0xff]
      %v2287 = vld [vmem:[#allocation4 + $0x68] sm:$0xff]
      %v2288 = vld [vmem:[#allocation4 + $0x78] sm:$0xff]
      %v2289 = vld [vmem:[#allocation4 + $0x88] sm:$0xff]
      %v2290 = vld [vmem:[#allocation4 + $0x98] sm:$0xff]
      %v2291 = vld [vmem:[#allocation4 + $0xa8] sm:$0xff]
      %v2292 = vld [vmem:[#allocation4 + $0xb8] sm:$0xff]
      %v2293 = vld [vmem:[#allocation4 + $0xc8] sm:$0xff]
      %v2294 = vld [vmem:[#allocation4 + $0xd8] sm:$0xff]
      %v2295 = vld [vmem:[#allocation4 + $0xe8] sm:$0xff]
      %v2296 = vld [vmem:[#allocation4 + $0xf8] sm:$0xff]
      %v2297 = vld [vmem:[#allocation4 + $0x108] sm:$0xff]
      %v2298 = vld [vmem:[#allocation4 + $0x118] sm:$0xff]
      %v2299 = vld [vmem:[#allocation4 + $0x128] sm:$0xff]
      %v2300 = vld [vmem:[#allocation4 + $0x138] sm:$0xff]
      %v2301 = vld [vmem:[#allocation4 + $0x148] sm:$0xff]
      %v2302 = vld [vmem:[#allocation4 + $0x158] sm:$0xff]
      %v2303 = vld [vmem:[#allocation4 + $0x168] sm:$0xff]
      %v2304 = vld [vmem:[#allocation4 + $0x178] sm:$0xff]
      %v2305 = vld [vmem:[#allocation4 + $0x188] sm:$0xff]
      %v2306 = vld [vmem:[#allocation4 + $0x198] sm:$0xff]
      %v2307 = vld [vmem:[#allocation4 + $0x1a8] sm:$0xff]
      %v2308 = vld [vmem:[#allocation4 + $0x1b8] sm:$0xff]
      %v2309 = vld [vmem:[#allocation4 + $0x1c8] sm:$0xff]
      %v2310 = vld [vmem:[#allocation4 + $0x1d8] sm:$0xff]
      %v2311 = vld [vmem:[#allocation4 + $0x1e8] sm:$0xff]
      %v2312 = vld [vmem:[#allocation4 + $0x1f8] sm:$0xff]
      %v2313 = vld [vmem:[#allocation4 + $0x208] sm:$0xff]
      %v2314 = vld [vmem:[#allocation4 + $0x218] sm:$0xff]
      %v2315 = vld [vmem:[#allocation4 + $0x228] sm:$0xff]
      %v2316 = vld [vmem:[#allocation4 + $0x238] sm:$0xff]
      %v2317 = vld [vmem:[#allocation4 + $0x248] sm:$0x3]
      %vm2355 = vcmask 1045504
      %v2356 = vrot.slane %v2281, 2
      %v2357 = vrot.slane %v2282, 2
      %v2358 = vsel %vm2355, %v2356, %v2357
      %v2359 = vrot.slane %v2283, 2
      %v2360 = vsel %vm2355, %v2357, %v2359
      %v2361 = vrot.slane %v2284, 2
      %v2362 = vsel %vm2355, %v2359, %v2361
      %v2363 = vrot.slane %v2285, 2
      %v2364 = vsel %vm2355, %v2361, %v2363
      %v2365 = vrot.slane %v2286, 2
      %v2366 = vsel %vm2355, %v2363, %v2365
      %v2367 = vrot.slane %v2287, 2
      %v2368 = vsel %vm2355, %v2365, %v2367
      %v2369 = vrot.slane %v2288, 2
      %v2370 = vsel %vm2355, %v2367, %v2369
      %v2371 = vrot.slane %v2289, 2
      %v2372 = vsel %vm2355, %v2369, %v2371
      %v2373 = vrot.slane %v2290, 2
      %v2374 = vsel %vm2355, %v2371, %v2373
      %v2375 = vrot.slane %v2291, 2
      %v2376 = vsel %vm2355, %v2373, %v2375
      %v2377 = vrot.slane %v2292, 2
      %v2378 = vsel %vm2355, %v2375, %v2377
      %v2379 = vrot.slane %v2293, 2
      %v2380 = vsel %vm2355, %v2377, %v2379
      %v2381 = vrot.slane %v2294, 2
      %v2382 = vsel %vm2355, %v2379, %v2381
      %v2383 = vrot.slane %v2295, 2
      %v2384 = vsel %vm2355, %v2381, %v2383
      %v2385 = vrot.slane %v2296, 2
      %v2386 = vsel %vm2355, %v2383, %v2385
      %v2387 = vrot.slane %v2297, 2
      %v2388 = vsel %vm2355, %v2385, %v2387
      %v2389 = vrot.slane %v2298, 2
      %v2390 = vsel %vm2355, %v2387, %v2389
      %v2391 = vrot.slane %v2299, 2
      %v2392 = vsel %vm2355, %v2389, %v2391
      %v2393 = vrot.slane %v2300, 2
      %v2394 = vsel %vm2355, %v2391, %v2393
      %v2395 = vrot.slane %v2301, 2
      %v2396 = vsel %vm2355, %v2393, %v2395
      %v2397 = vrot.slane %v2302, 2
      %v2398 = vsel %vm2355, %v2395, %v2397
      %v2399 = vrot.slane %v2303, 2
      %v2400 = vsel %vm2355, %v2397, %v2399
      %v2401 = vrot.slane %v2304, 2
      %v2402 = vsel %vm2355, %v2399, %v2401
      %v2403 = vrot.slane %v2305, 2
      %v2404 = vsel %vm2355, %v2401, %v2403
      %v2405 = vrot.slane %v2306, 2
      %v2406 = vsel %vm2355, %v2403, %v2405
      %v2407 = vrot.slane %v2307, 2
      %v2408 = vsel %vm2355, %v2405, %v2407
      %v2409 = vrot.slane %v2308, 2
      %v2410 = vsel %vm2355, %v2407, %v2409
      %v2411 = vrot.slane %v2309, 2
      %v2412 = vsel %vm2355, %v2409, %v2411
      %v2413 = vrot.slane %v2310, 2
      %v2414 = vsel %vm2355, %v2411, %v2413
      %v2415 = vrot.slane %v2311, 2
      %v2416 = vsel %vm2355, %v2413, %v2415
      %v2417 = vrot.slane %v2312, 2
      %v2418 = vsel %vm2355, %v2415, %v2417
      %v2419 = vrot.slane %v2313, 2
      %v2420 = vsel %vm2355, %v2417, %v2419
      %v2421 = vrot.slane %v2314, 2
      %v2422 = vsel %vm2355, %v2419, %v2421
      %v2423 = vrot.slane %v2315, 2
      %v2424 = vsel %vm2355, %v2421, %v2423
      %v2425 = vrot.slane %v2316, 2
      %v2426 = vsel %vm2355, %v2423, %v2425
      %v2427 = vrot.slane %v2317, 2
      %v2428 = vsel %vm2355, %v2425, %v2427
      %v2465 = vadd.f32 %v2245, %v2358
      %v2466 = vadd.f32 %v2246, %v2360
      %v2467 = vadd.f32 %v2247, %v2362
      %v2468 = vadd.f32 %v2248, %v2364
      %v2469 = vadd.f32 %v2249, %v2366
      %v2470 = vadd.f32 %v2250, %v2368
      %v2471 = vadd.f32 %v2251, %v2370
      %v2472 = vadd.f32 %v2252, %v2372
      %v2473 = vadd.f32 %v2253, %v2374
      %v2474 = vadd.f32 %v2254, %v2376
      %v2475 = vadd.f32 %v2255, %v2378
      %v2476 = vadd.f32 %v2256, %v2380
      %v2477 = vadd.f32 %v2257, %v2382
      %v2478 = vadd.f32 %v2258, %v2384
      %v2479 = vadd.f32 %v2259, %v2386
      %v2480 = vadd.f32 %v2260, %v2388
      %v2481 = vadd.f32 %v2261, %v2390
      %v2482 = vadd.f32 %v2262, %v2392
      %v2483 = vadd.f32 %v2263, %v2394
      %v2484 = vadd.f32 %v2264, %v2396
      %v2485 = vadd.f32 %v2265, %v2398
      %v2486 = vadd.f32 %v2266, %v2400
      %v2487 = vadd.f32 %v2267, %v2402
      %v2488 = vadd.f32 %v2268, %v2404
      %v2489 = vadd.f32 %v2269, %v2406
      %v2490 = vadd.f32 %v2270, %v2408
      %v2491 = vadd.f32 %v2271, %v2410
      %v2492 = vadd.f32 %v2272, %v2412
      %v2493 = vadd.f32 %v2273, %v2414
      %v2494 = vadd.f32 %v2274, %v2416
      %v2495 = vadd.f32 %v2275, %v2418
      %v2496 = vadd.f32 %v2276, %v2420
      %v2497 = vadd.f32 %v2277, %v2422
      %v2498 = vadd.f32 %v2278, %v2424
      %v2499 = vadd.f32 %v2279, %v2426
      %v2500 = vadd.f32 %v2280, %v2428
      %v2501 = vld [vmem:[#allocation2 + $0x12] sm:$0xff]
      %v2502 = vld [vmem:[#allocation2 + $0x1a] sm:$0xff]
      %v2503 = vld [vmem:[#allocation2 + $0x22] sm:$0xff]
      %v2504 = vld [vmem:[#allocation2 + $0x2a] sm:$0xff]
      %v2505 = vld [vmem:[#allocation2 + $0x32] sm:$0xff]
      %v2506 = vld [vmem:[#allocation2 + $0x3a] sm:$0xff]
      %v2507 = vld [vmem:[#allocation2 + $0x42] sm:$0xff]
      %v2508 = vld [vmem:[#allocation2 + $0x4a] sm:$0xff]
      %v2509 = vld [vmem:[#allocation2 + $0x52] sm:$0xff]
      %v2510 = vld [vmem:[#allocation2 + $0x5a] sm:$0xff]
      %v2511 = vld [vmem:[#allocation2 + $0x62] sm:$0xff]
      %v2512 = vld [vmem:[#allocation2 + $0x6a] sm:$0xff]
      %v2513 = vld [vmem:[#allocation2 + $0x72] sm:$0xff]
      %v2514 = vld [vmem:[#allocation2 + $0x7a] sm:$0xff]
      %v2515 = vld [vmem:[#allocation2 + $0x82] sm:$0xff]
      %v2516 = vld [vmem:[#allocation2 + $0x8a] sm:$0xff]
      %v2517 = vld [vmem:[#allocation2 + $0x92] sm:$0xff]
      %v2518 = vld [vmem:[#allocation2 + $0x9a] sm:$0xff]
      %v2519 = vld [vmem:[#allocation2 + $0xa2] sm:$0xff]
      %v2520 = vld [vmem:[#allocation2 + $0xaa] sm:$0xff]
      %v2521 = vld [vmem:[#allocation2 + $0xb2] sm:$0xff]
      %v2522 = vld [vmem:[#allocation2 + $0xba] sm:$0xff]
      %v2523 = vld [vmem:[#allocation2 + $0xc2] sm:$0xff]
      %v2524 = vld [vmem:[#allocation2 + $0xca] sm:$0xff]
      %v2525 = vld [vmem:[#allocation2 + $0xd2] sm:$0xff]
      %v2526 = vld [vmem:[#allocation2 + $0xda] sm:$0xff]
      %v2527 = vld [vmem:[#allocation2 + $0xe2] sm:$0xff]
      %v2528 = vld [vmem:[#allocation2 + $0xea] sm:$0xff]
      %v2529 = vld [vmem:[#allocation2 + $0xf2] sm:$0xff]
      %v2530 = vld [vmem:[#allocation2 + $0xfa] sm:$0xff]
      %v2531 = vld [vmem:[#allocation2 + $0x102] sm:$0xff]
      %v2532 = vld [vmem:[#allocation2 + $0x10a] sm:$0xff]
      %v2533 = vld [vmem:[#allocation2 + $0x112] sm:$0xff]
      %v2534 = vld [vmem:[#allocation2 + $0x11a] sm:$0xff]
      %v2535 = vld [vmem:[#allocation2 + $0x122] sm:$0xff]
      %v2536 = vld [vmem:[#allocation2 + $0x12a] sm:$0xff]
      %v2537 = vld [vmem:[#allocation2 + $0x132] sm:$0x3]
      %v2538 = vpack.c.bf16 %v2502, %v2501
      %v2539 = vpack.c.bf16 %v2504, %v2503
      %v2540 = vpack.c.bf16 %v2506, %v2505
      %v2541 = vpack.c.bf16 %v2508, %v2507
      %v2542 = vpack.c.bf16 %v2510, %v2509
      %v2543 = vpack.c.bf16 %v2512, %v2511
      %v2544 = vpack.c.bf16 %v2514, %v2513
      %v2545 = vpack.c.bf16 %v2516, %v2515
      %v2546 = vpack.c.bf16 %v2518, %v2517
      %v2547 = vpack.c.bf16 %v2520, %v2519
      %v2548 = vpack.c.bf16 %v2522, %v2521
      %v2549 = vpack.c.bf16 %v2524, %v2523
      %v2550 = vpack.c.bf16 %v2526, %v2525
      %v2551 = vpack.c.bf16 %v2528, %v2527
      %v2552 = vpack.c.bf16 %v2530, %v2529
      %v2553 = vpack.c.bf16 %v2532, %v2531
      %v2554 = vpack.c.bf16 %v2534, %v2533
      %v2555 = vpack.c.bf16 %v2536, %v2535
      %v2556 = vpack.c.bf16 %v2537, %v2537
      %s2557 = scalar_lea.vmem %s3, 64
      %v2558 = vld [vmem:[%s2557] sm:$0xff]
      %v2559 = vld [vmem:[%s2557 + $0x8] sm:$0xff]
      %v2560 = vld [vmem:[%s2557 + $0x10] sm:$0xff]
      %v2561 = vld [vmem:[%s2557 + $0x18] sm:$0xff]
      %v2562 = vld [vmem:[%s2557 + $0x20] sm:$0xff]
      %v2563 = vld [vmem:[%s2557 + $0x28] sm:$0xff]
      %v2564 = vld [vmem:[%s2557 + $0x30] sm:$0xff]
      %v2565 = vld [vmem:[%s2557 + $0x38] sm:$0xff]
      %v2574 = vunpack.c.l.b16 %v2558
      %v2575 = vunpack.c.h.b16 %v2558
      %v2576 = vunpack.c.l.b16 %v2559
      %v2577 = vunpack.c.h.b16 %v2559
      %v2578 = vunpack.c.l.b16 %v2560
      %v2579 = vunpack.c.h.b16 %v2560
      %v2580 = vunpack.c.l.b16 %v2561
      %v2581 = vunpack.c.h.b16 %v2561
      %v2582 = vunpack.c.l.b16 %v2562
      %v2583 = vunpack.c.h.b16 %v2562
      %v2584 = vunpack.c.l.b16 %v2563
      %v2585 = vunpack.c.h.b16 %v2563
      %v2586 = vunpack.c.l.b16 %v2564
      %v2587 = vunpack.c.h.b16 %v2564
      %v2588 = vunpack.c.l.b16 %v2565
      %v2589 = vunpack.c.h.b16 %v2565
      %v2590 = vpack.c.b16 %v2576, %v2574
      %v2591 = vpack.c.b16 %v2577, %v2575
      %v2592 = vpack.c.b16 %v2580, %v2578
      %v2593 = vpack.c.b16 %v2581, %v2579
      %v2594 = vpack.c.b16 %v2584, %v2582
      %v2595 = vpack.c.b16 %v2585, %v2583
      %v2596 = vpack.c.b16 %v2588, %v2586
      %v2597 = vpack.c.b16 %v2589, %v2587
      %v2607 = vsel %vm280, %v2538, 0
      %v2610 = vsel %vm280, %v2539, 0
      %v2613 = vsel %vm280, %v2540, 0
      %v2616 = vsel %vm280, %v2541, 0
      %v2619 = vsel %vm280, %v2542, 0
      %v2622 = vsel %vm280, %v2543, 0
      %v2625 = vsel %vm280, %v2544, 0
      %v2628 = vsel %vm280, %v2545, 0
      %v2631 = vsel %vm280, %v2546, 0
      %v2634 = vsel %vm280, %v2547, 0
      %v2637 = vsel %vm280, %v2548, 0
      %v2640 = vsel %vm280, %v2549, 0
      %v2643 = vsel %vm280, %v2550, 0
      %v2646 = vsel %vm280, %v2551, 0
      %v2649 = vsel %vm280, %v2552, 0
      %v2652 = vsel %vm280, %v2553, 0
      %v2655 = vsel %vm280, %v2554, 0
      %v2658 = vsel %vm280, %v2555, 0
      %v2661 = vsel %vm280, %v2556, 0
      %2663 = vmatprep.subr.bf16.mxu0 %v2591
      %2664 = vmatpush1.bf16.msra.mxu0 %v2590
      %2665 = vmatprep.subr.bf16.mxu0 %v2593
      %2666 = vmatpush1.bf16.msra.mxu0 %v2592
      %2667 = vmatprep.subr.bf16.mxu0 %v2595
      %2668 = vmatpush1.bf16.msra.mxu0 %v2594
      %2669 = vmatprep.subr.bf16.mxu0 %v2597
      %2670 = vmatpush1.bf16.msra.mxu0 %v2596
      %2671 = vmatprep.subr.bf16.mxu0 0
      %2672 = vmatpush1.bf16.msra.mxu0 0
      %2673 = vmatprep.subr.bf16.mxu0 0
      %2674 = vmatpush1.bf16.msra.mxu0 0
      %2675 = vmatprep.subr.bf16.mxu0 0
      %2676 = vmatpush1.bf16.msra.mxu0 0
      %2677 = vmatprep.subr.bf16.mxu0 0
      %2678 = vmatpush1.bf16.msra.mxu0 0
      %2679 = vmatprep.subr.bf16.mxu0 0
      %2680 = vmatpush1.bf16.msra.mxu0 0
      %2681 = vmatprep.subr.bf16.mxu0 0
      %2682 = vmatpush1.bf16.msra.mxu0 0
      %2683 = vmatprep.subr.bf16.mxu0 0
      %2684 = vmatpush1.bf16.msra.mxu0 0
      %2685 = vmatprep.subr.bf16.mxu0 0
      %2686 = vmatpush1.bf16.msra.mxu0 0
      %2687 = vmatprep.subr.bf16.mxu0 0
      %2688 = vmatpush1.bf16.msra.mxu0 0
      %2689 = vmatprep.subr.bf16.mxu0 0
      %2690 = vmatpush1.bf16.msra.mxu0 0
      %2691 = vmatprep.subr.bf16.mxu0 0
      %2692 = vmatpush1.bf16.msra.mxu0 0
      %2693 = vmatprep.subr.bf16.mxu0 0
      %2694 = vmatpush1.bf16.msra.mxu0 0
      %2695 = vmatprep.mubr.bf16.mxu0 0
      %2696 = vmatmul.mubr.bf16.gmra.mrb[0].mxu0 %v2607
      %v2697 = vpop.f32.mrb[0].mxu0
      %v2698 = vadd.f32 0.0, %v2697
      %v2699 = vpop.f32.mrb[0].mxu0
      %v2700 = vadd.f32 0.0, %v2699
      %v2701 = vpop.f32.mrb[0].mxu0
      %v2702 = vadd.f32 0.0, %v2701
      %v2703 = vpop.f32.mrb[0].mxu0
      %v2704 = vadd.f32 0.0, %v2703
      %2705 = vmatprep.mubr.bf16.mxu0 0
      %2706 = vmatmul.mubr.bf16.gmra.mrb[0].mxu0 %v2610
      %v2707 = vpop.f32.mrb[0].mxu0
      %v2708 = vadd.f32 0.0, %v2707
      %v2709 = vpop.f32.mrb[0].mxu0
      %v2710 = vadd.f32 0.0, %v2709
      %v2711 = vpop.f32.mrb[0].mxu0
      %v2712 = vadd.f32 0.0, %v2711
      %v2713 = vpop.f32.mrb[0].mxu0
      %v2714 = vadd.f32 0.0, %v2713
      %2715 = vmatprep.mubr.bf16.mxu0 0
      %2716 = vmatmul.mubr.bf16.gmra.mrb[0].mxu0 %v2613
      %v2717 = vpop.f32.mrb[0].mxu0
      %v2718 = vadd.f32 0.0, %v2717
      %v2719 = vpop.f32.mrb[0].mxu0
      %v2720 = vadd.f32 0.0, %v2719
      %v2721 = vpop.f32.mrb[0].mxu0
      %v2722 = vadd.f32 0.0, %v2721
      %v2723 = vpop.f32.mrb[0].mxu0
      %v2724 = vadd.f32 0.0, %v2723
      %2725 = vmatprep.mubr.bf16.mxu0 0
      %2726 = vmatmul.mubr.bf16.gmra.mrb[0].mxu0 %v2616
      %v2727 = vpop.f32.mrb[0].mxu0
      %v2728 = vadd.f32 0.0, %v2727
      %v2729 = vpop.f32.mrb[0].mxu0
      %v2730 = vadd.f32 0.0, %v2729
      %v2731 = vpop.f32.mrb[0].mxu0
      %v2732 = vadd.f32 0.0, %v2731
      %v2733 = vpop.f32.mrb[0].mxu0
      %v2734 = vadd.f32 0.0, %v2733
      %2735 = vmatprep.mubr.bf16.mxu0 0
      %2736 = vmatmul.mubr.bf16.gmra.mrb[0].mxu0 %v2619
      %v2737 = vpop.f32.mrb[0].mxu0
      %v2738 = vadd.f32 0.0, %v2737
      %v2739 = vpop.f32.mrb[0].mxu0
      %v2740 = vadd.f32 0.0, %v2739
      %v2741 = vpop.f32.mrb[0].mxu0
      %v2742 = vadd.f32 0.0, %v2741
      %v2743 = vpop.f32.mrb[0].mxu0
      %v2744 = vadd.f32 0.0, %v2743
      %2745 = vmatprep.mubr.bf16.mxu0 0
      %2746 = vmatmul.mubr.bf16.gmra.mrb[0].mxu0 %v2622
      %v2747 = vpop.f32.mrb[0].mxu0
      %v2748 = vadd.f32 0.0, %v2747
      %v2749 = vpop.f32.mrb[0].mxu0
      %v2750 = vadd.f32 0.0, %v2749
      %v2751 = vpop.f32.mrb[0].mxu0
      %v2752 = vadd.f32 0.0, %v2751
      %v2753 = vpop.f32.mrb[0].mxu0
      %v2754 = vadd.f32 0.0, %v2753
      %2755 = vmatprep.mubr.bf16.mxu0 0
      %2756 = vmatmul.mubr.bf16.gmra.mrb[0].mxu0 %v2625
      %v2757 = vpop.f32.mrb[0].mxu0
      %v2758 = vadd.f32 0.0, %v2757
      %v2759 = vpop.f32.mrb[0].mxu0
      %v2760 = vadd.f32 0.0, %v2759
      %v2761 = vpop.f32.mrb[0].mxu0
      %v2762 = vadd.f32 0.0, %v2761
      %v2763 = vpop.f32.mrb[0].mxu0
      %v2764 = vadd.f32 0.0, %v2763
      %2765 = vmatprep.mubr.bf16.mxu0 0
      %2766 = vmatmul.mubr.bf16.gmra.mrb[0].mxu0 %v2628
      %v2767 = vpop.f32.mrb[0].mxu0
      %v2768 = vadd.f32 0.0, %v2767
      %v2769 = vpop.f32.mrb[0].mxu0
      %v2770 = vadd.f32 0.0, %v2769
      %v2771 = vpop.f32.mrb[0].mxu0
      %v2772 = vadd.f32 0.0, %v2771
      %v2773 = vpop.f32.mrb[0].mxu0
      %v2774 = vadd.f32 0.0, %v2773
      %2775 = vmatprep.mubr.bf16.mxu0 0
      %2776 = vmatmul.mubr.bf16.gmra.mrb[0].mxu0 %v2631
      %v2777 = vpop.f32.mrb[0].mxu0
      %v2778 = vadd.f32 0.0, %v2777
      %v2779 = vpop.f32.mrb[0].mxu0
      %v2780 = vadd.f32 0.0, %v2779
      %v2781 = vpop.f32.mrb[0].mxu0
      %v2782 = vadd.f32 0.0, %v2781
      %v2783 = vpop.f32.mrb[0].mxu0
      %v2784 = vadd.f32 0.0, %v2783
      %2785 = vmatprep.mubr.bf16.mxu0 0
      %2786 = vmatmul.mubr.bf16.gmra.mrb[0].mxu0 %v2634
      %v2787 = vpop.f32.mrb[0].mxu0
      %v2788 = vadd.f32 0.0, %v2787
      %v2789 = vpop.f32.mrb[0].mxu0
      %v2790 = vadd.f32 0.0, %v2789
      %v2791 = vpop.f32.mrb[0].mxu0
      %v2792 = vadd.f32 0.0, %v2791
      %v2793 = vpop.f32.mrb[0].mxu0
      %v2794 = vadd.f32 0.0, %v2793
      %2795 = vmatprep.mubr.bf16.mxu0 0
      %2796 = vmatmul.mubr.bf16.gmra.mrb[0].mxu0 %v2637
      %v2797 = vpop.f32.mrb[0].mxu0
      %v2798 = vadd.f32 0.0, %v2797
      %v2799 = vpop.f32.mrb[0].mxu0
      %v2800 = vadd.f32 0.0, %v2799
      %v2801 = vpop.f32.mrb[0].mxu0
      %v2802 = vadd.f32 0.0, %v2801
      %v2803 = vpop.f32.mrb[0].mxu0
      %v2804 = vadd.f32 0.0, %v2803
      %2805 = vmatprep.mubr.bf16.mxu0 0
      %2806 = vmatmul.mubr.bf16.gmra.mrb[0].mxu0 %v2640
      %v2807 = vpop.f32.mrb[0].mxu0
      %v2808 = vadd.f32 0.0, %v2807
      %v2809 = vpop.f32.mrb[0].mxu0
      %v2810 = vadd.f32 0.0, %v2809
      %v2811 = vpop.f32.mrb[0].mxu0
      %v2812 = vadd.f32 0.0, %v2811
      %v2813 = vpop.f32.mrb[0].mxu0
      %v2814 = vadd.f32 0.0, %v2813
      %2815 = vmatprep.mubr.bf16.mxu0 0
      %2816 = vmatmul.mubr.bf16.gmra.mrb[0].mxu0 %v2643
      %v2817 = vpop.f32.mrb[0].mxu0
      %v2818 = vadd.f32 0.0, %v2817
      %v2819 = vpop.f32.mrb[0].mxu0
      %v2820 = vadd.f32 0.0, %v2819
      %v2821 = vpop.f32.mrb[0].mxu0
      %v2822 = vadd.f32 0.0, %v2821
      %v2823 = vpop.f32.mrb[0].mxu0
      %v2824 = vadd.f32 0.0, %v2823
      %2825 = vmatprep.mubr.bf16.mxu0 0
      %2826 = vmatmul.mubr.bf16.gmra.mrb[0].mxu0 %v2646
      %v2827 = vpop.f32.mrb[0].mxu0
      %v2828 = vadd.f32 0.0, %v2827
      %v2829 = vpop.f32.mrb[0].mxu0
      %v2830 = vadd.f32 0.0, %v2829
      %v2831 = vpop.f32.mrb[0].mxu0
      %v2832 = vadd.f32 0.0, %v2831
      %v2833 = vpop.f32.mrb[0].mxu0
      %v2834 = vadd.f32 0.0, %v2833
      %2835 = vmatprep.mubr.bf16.mxu0 0
      %2836 = vmatmul.mubr.bf16.gmra.mrb[0].mxu0 %v2649
      %v2837 = vpop.f32.mrb[0].mxu0
      %v2838 = vadd.f32 0.0, %v2837
      %v2839 = vpop.f32.mrb[0].mxu0
      %v2840 = vadd.f32 0.0, %v2839
      %v2841 = vpop.f32.mrb[0].mxu0
      %v2842 = vadd.f32 0.0, %v2841
      %v2843 = vpop.f32.mrb[0].mxu0
      %v2844 = vadd.f32 0.0, %v2843
      %2845 = vmatprep.mubr.bf16.mxu0 0
      %2846 = vmatmul.mubr.bf16.gmra.mrb[0].mxu0 %v2652
      %v2847 = vpop.f32.mrb[0].mxu0
      %v2848 = vadd.f32 0.0, %v2847
      %v2849 = vpop.f32.mrb[0].mxu0
      %v2850 = vadd.f32 0.0, %v2849
      %v2851 = vpop.f32.mrb[0].mxu0
      %v2852 = vadd.f32 0.0, %v2851
      %v2853 = vpop.f32.mrb[0].mxu0
      %v2854 = vadd.f32 0.0, %v2853
      %2855 = vmatprep.mubr.bf16.mxu0 0
      %2856 = vmatmul.mubr.bf16.gmra.mrb[0].mxu0 %v2655
      %v2857 = vpop.f32.mrb[0].mxu0
      %v2858 = vadd.f32 0.0, %v2857
      %v2859 = vpop.f32.mrb[0].mxu0
      %v2860 = vadd.f32 0.0, %v2859
      %v2861 = vpop.f32.mrb[0].mxu0
      %v2862 = vadd.f32 0.0, %v2861
      %v2863 = vpop.f32.mrb[0].mxu0
      %v2864 = vadd.f32 0.0, %v2863
      %2865 = vmatprep.mubr.bf16.mxu0 0
      %2866 = vmatmul.mubr.bf16.gmra.mrb[0].mxu0 %v2658
      %v2867 = vpop.f32.mrb[0].mxu0
      %v2868 = vadd.f32 0.0, %v2867
      %v2869 = vpop.f32.mrb[0].mxu0
      %v2870 = vadd.f32 0.0, %v2869
      %v2871 = vpop.f32.mrb[0].mxu0
      %v2872 = vadd.f32 0.0, %v2871
      %v2873 = vpop.f32.mrb[0].mxu0
      %v2874 = vadd.f32 0.0, %v2873
      %2875 = vmatprep.mubr.bf16.mxu0 0
      %2876 = vmatmul.mubr.bf16.gmra.mrb[0].mxu0 %v2661
      %v2877 = vpop.f32.mrb[0].mxu0
      %v2878 = vadd.f32 0.0, %v2877
      %v2879 = vpop.f32.mrb[0].mxu0
      %v2880 = vadd.f32 0.0, %v2879
      %v2881 = vpop.f32.mrb[0].mxu0
      %v2882 = vpop.f32.mrb[0].mxu0
      %2883 = vdwg.mxu0
      %2884 = vst [vmem:[#allocation4] sm:$0xff] %v2698
      %2885 = vst.msk [vmem:[#allocation4 + $0x8] sm:$0xff] %vm280, %v2700
      %2886 = vst [vmem:[#allocation4 + $0x10] sm:$0xff] %v2702
      %2887 = vst.msk [vmem:[#allocation4 + $0x18] sm:$0xff] %vm280, %v2704
      %2888 = vst [vmem:[#allocation4 + $0x20] sm:$0xff] %v2708
      %2889 = vst.msk [vmem:[#allocation4 + $0x28] sm:$0xff] %vm280, %v2710
      %2890 = vst [vmem:[#allocation4 + $0x30] sm:$0xff] %v2712
      %2891 = vst.msk [vmem:[#allocation4 + $0x38] sm:$0xff] %vm280, %v2714
      %2892 = vst [vmem:[#allocation4 + $0x40] sm:$0xff] %v2718
      %2893 = vst.msk [vmem:[#allocation4 + $0x48] sm:$0xff] %vm280, %v2720
      %2894 = vst [vmem:[#allocation4 + $0x50] sm:$0xff] %v2722
      %2895 = vst.msk [vmem:[#allocation4 + $0x58] sm:$0xff] %vm280, %v2724
      %2896 = vst [vmem:[#allocation4 + $0x60] sm:$0xff] %v2728
      %2897 = vst.msk [vmem:[#allocation4 + $0x68] sm:$0xff] %vm280, %v2730
      %2898 = vst [vmem:[#allocation4 + $0x70] sm:$0xff] %v2732
      %2899 = vst.msk [vmem:[#allocation4 + $0x78] sm:$0xff] %vm280, %v2734
      %2900 = vst [vmem:[#allocation4 + $0x80] sm:$0xff] %v2738
      %2901 = vst.msk [vmem:[#allocation4 + $0x88] sm:$0xff] %vm280, %v2740
      %2902 = vst [vmem:[#allocation4 + $0x90] sm:$0xff] %v2742
      %2903 = vst.msk [vmem:[#allocation4 + $0x98] sm:$0xff] %vm280, %v2744
      %2904 = vst [vmem:[#allocation4 + $0xa0] sm:$0xff] %v2748
      %2905 = vst.msk [vmem:[#allocation4 + $0xa8] sm:$0xff] %vm280, %v2750
      %2906 = vst [vmem:[#allocation4 + $0xb0] sm:$0xff] %v2752
      %2907 = vst.msk [vmem:[#allocation4 + $0xb8] sm:$0xff] %vm280, %v2754
      %2908 = vst [vmem:[#allocation4 + $0xc0] sm:$0xff] %v2758
      %2909 = vst.msk [vmem:[#allocation4 + $0xc8] sm:$0xff] %vm280, %v2760
      %2910 = vst [vmem:[#allocation4 + $0xd0] sm:$0xff] %v2762
      %2911 = vst.msk [vmem:[#allocation4 + $0xd8] sm:$0xff] %vm280, %v2764
      %2912 = vst [vmem:[#allocation4 + $0xe0] sm:$0xff] %v2768
      %2913 = vst.msk [vmem:[#allocation4 + $0xe8] sm:$0xff] %vm280, %v2770
      %2914 = vst [vmem:[#allocation4 + $0xf0] sm:$0xff] %v2772
      %2915 = vst.msk [vmem:[#allocation4 + $0xf8] sm:$0xff] %vm280, %v2774
      %2916 = vst [vmem:[#allocation4 + $0x100] sm:$0xff] %v2778
      %2917 = vst.msk [vmem:[#allocation4 + $0x108] sm:$0xff] %vm280, %v2780
      %2918 = vst [vmem:[#allocation4 + $0x110] sm:$0xff] %v2782
      %2919 = vst.msk [vmem:[#allocation4 + $0x118] sm:$0xff] %vm280, %v2784
      %2920 = vst [vmem:[#allocation4 + $0x120] sm:$0xff] %v2788
      %2921 = vst.msk [vmem:[#allocation4 + $0x128] sm:$0xff] %vm280, %v2790
      %2922 = vst [vmem:[#allocation4 + $0x130] sm:$0xff] %v2792
      %2923 = vst.msk [vmem:[#allocation4 + $0x138] sm:$0xff] %vm280, %v2794
      %2924 = vst [vmem:[#allocation4 + $0x140] sm:$0xff] %v2798
      %2925 = vst.msk [vmem:[#allocation4 + $0x148] sm:$0xff] %vm280, %v2800
      %2926 = vst [vmem:[#allocation4 + $0x150] sm:$0xff] %v2802
      %2927 = vst.msk [vmem:[#allocation4 + $0x158] sm:$0xff] %vm280, %v2804
      %2928 = vst [vmem:[#allocation4 + $0x160] sm:$0xff] %v2808
      %2929 = vst.msk [vmem:[#allocation4 + $0x168] sm:$0xff] %vm280, %v2810
      %2930 = vst [vmem:[#allocation4 + $0x170] sm:$0xff] %v2812
      %2931 = vst.msk [vmem:[#allocation4 + $0x178] sm:$0xff] %vm280, %v2814
      %2932 = vst [vmem:[#allocation4 + $0x180] sm:$0xff] %v2818
      %2933 = vst.msk [vmem:[#allocation4 + $0x188] sm:$0xff] %vm280, %v2820
      %2934 = vst [vmem:[#allocation4 + $0x190] sm:$0xff] %v2822
      %2935 = vst.msk [vmem:[#allocation4 + $0x198] sm:$0xff] %vm280, %v2824
      %2936 = vst [vmem:[#allocation4 + $0x1a0] sm:$0xff] %v2828
      %2937 = vst.msk [vmem:[#allocation4 + $0x1a8] sm:$0xff] %vm280, %v2830
      %2938 = vst [vmem:[#allocation4 + $0x1b0] sm:$0xff] %v2832
      %2939 = vst.msk [vmem:[#allocation4 + $0x1b8] sm:$0xff] %vm280, %v2834
      %2940 = vst [vmem:[#allocation4 + $0x1c0] sm:$0xff] %v2838
      %2941 = vst.msk [vmem:[#allocation4 + $0x1c8] sm:$0xff] %vm280, %v2840
      %2942 = vst [vmem:[#allocation4 + $0x1d0] sm:$0xff] %v2842
      %2943 = vst.msk [vmem:[#allocation4 + $0x1d8] sm:$0xff] %vm280, %v2844
      %2944 = vst [vmem:[#allocation4 + $0x1e0] sm:$0xff] %v2848
      %2945 = vst.msk [vmem:[#allocation4 + $0x1e8] sm:$0xff] %vm280, %v2850
      %2946 = vst [vmem:[#allocation4 + $0x1f0] sm:$0xff] %v2852
      %2947 = vst.msk [vmem:[#allocation4 + $0x1f8] sm:$0xff] %vm280, %v2854
      %2948 = vst [vmem:[#allocation4 + $0x200] sm:$0xff] %v2858
      %2949 = vst.msk [vmem:[#allocation4 + $0x208] sm:$0xff] %vm280, %v2860
      %2950 = vst [vmem:[#allocation4 + $0x210] sm:$0xff] %v2862
      %2951 = vst.msk [vmem:[#allocation4 + $0x218] sm:$0xff] %vm280, %v2864
      %2952 = vst [vmem:[#allocation4 + $0x220] sm:$0xff] %v2868
      %2953 = vst.msk [vmem:[#allocation4 + $0x228] sm:$0xff] %vm280, %v2870
      %2954 = vst [vmem:[#allocation4 + $0x230] sm:$0xff] %v2872
      %2955 = vst.msk [vmem:[#allocation4 + $0x238] sm:$0xff] %vm280, %v2874
      %2956 = vst [vmem:[#allocation4 + $0x240] sm:$0x3] %v2878
      %2957 = vst.msk [vmem:[#allocation4 + $0x248] sm:$0x3] %vm1950, %v2880
      %v2958 = vld [vmem:[#allocation4] sm:$0xff]
      %v2959 = vld [vmem:[#allocation4 + $0x10] sm:$0xff]
      %v2960 = vld [vmem:[#allocation4 + $0x20] sm:$0xff]
      %v2961 = vld [vmem:[#allocation4 + $0x30] sm:$0xff]
      %v2962 = vld [vmem:[#allocation4 + $0x40] sm:$0xff]
      %v2963 = vld [vmem:[#allocation4 + $0x50] sm:$0xff]
      %v2964 = vld [vmem:[#allocation4 + $0x60] sm:$0xff]
      %v2965 = vld [vmem:[#allocation4 + $0x70] sm:$0xff]
      %v2966 = vld [vmem:[#allocation4 + $0x80] sm:$0xff]
      %v2967 = vld [vmem:[#allocation4 + $0x90] sm:$0xff]
      %v2968 = vld [vmem:[#allocation4 + $0xa0] sm:$0xff]
      %v2969 = vld [vmem:[#allocation4 + $0xb0] sm:$0xff]
      %v2970 = vld [vmem:[#allocation4 + $0xc0] sm:$0xff]
      %v2971 = vld [vmem:[#allocation4 + $0xd0] sm:$0xff]
      %v2972 = vld [vmem:[#allocation4 + $0xe0] sm:$0xff]
      %v2973 = vld [vmem:[#allocation4 + $0xf0] sm:$0xff]
      %v2974 = vld [vmem:[#allocation4 + $0x100] sm:$0xff]
      %v2975 = vld [vmem:[#allocation4 + $0x110] sm:$0xff]
      %v2976 = vld [vmem:[#allocation4 + $0x120] sm:$0xff]
      %v2977 = vld [vmem:[#allocation4 + $0x130] sm:$0xff]
      %v2978 = vld [vmem:[#allocation4 + $0x140] sm:$0xff]
      %v2979 = vld [vmem:[#allocation4 + $0x150] sm:$0xff]
      %v2980 = vld [vmem:[#allocation4 + $0x160] sm:$0xff]
      %v2981 = vld [vmem:[#allocation4 + $0x170] sm:$0xff]
      %v2982 = vld [vmem:[#allocation4 + $0x180] sm:$0xff]
      %v2983 = vld [vmem:[#allocation4 + $0x190] sm:$0xff]
      %v2984 = vld [vmem:[#allocation4 + $0x1a0] sm:$0xff]
      %v2985 = vld [vmem:[#allocation4 + $0x1b0] sm:$0xff]
      %v2986 = vld [vmem:[#allocation4 + $0x1c0] sm:$0xff]
      %v2987 = vld [vmem:[#allocation4 + $0x1d0] sm:$0xff]
      %v2988 = vld [vmem:[#allocation4 + $0x1e0] sm:$0xff]
      %v2989 = vld [vmem:[#allocation4 + $0x1f0] sm:$0xff]
      %v2990 = vld [vmem:[#allocation4 + $0x200] sm:$0xff]
      %v2991 = vld [vmem:[#allocation4 + $0x210] sm:$0xff]
      %v2992 = vld [vmem:[#allocation4 + $0x220] sm:$0xff]
      %v2993 = vld [vmem:[#allocation4 + $0x230] sm:$0xff]
      %v2994 = vadd.f32 %v2465, %v2958
      %v2995 = vadd.f32 %v2466, %v2959
      %v2996 = vadd.f32 %v2467, %v2960
      %v2997 = vadd.f32 %v2468, %v2961
      %v2998 = vadd.f32 %v2469, %v2962
      %v2999 = vadd.f32 %v2470, %v2963
      %v3000 = vadd.f32 %v2471, %v2964
      %v3001 = vadd.f32 %v2472, %v2965
      %v3002 = vadd.f32 %v2473, %v2966
      %v3003 = vadd.f32 %v2474, %v2967
      %v3004 = vadd.f32 %v2475, %v2968
      %v3005 = vadd.f32 %v2476, %v2969
      %v3006 = vadd.f32 %v2477, %v2970
      %v3007 = vadd.f32 %v2478, %v2971
      %v3008 = vadd.f32 %v2479, %v2972
      %v3009 = vadd.f32 %v2480, %v2973
      %v3010 = vadd.f32 %v2481, %v2974
      %v3011 = vadd.f32 %v2482, %v2975
      %v3012 = vadd.f32 %v2483, %v2976
      %v3013 = vadd.f32 %v2484, %v2977
      %v3014 = vadd.f32 %v2485, %v2978
      %v3015 = vadd.f32 %v2486, %v2979
      %v3016 = vadd.f32 %v2487, %v2980
      %v3017 = vadd.f32 %v2488, %v2981
      %v3018 = vadd.f32 %v2489, %v2982
      %v3019 = vadd.f32 %v2490, %v2983
      %v3020 = vadd.f32 %v2491, %v2984
      %v3021 = vadd.f32 %v2492, %v2985
      %v3022 = vadd.f32 %v2493, %v2986
      %v3023 = vadd.f32 %v2494, %v2987
      %v3024 = vadd.f32 %v2495, %v2988
      %v3025 = vadd.f32 %v2496, %v2989
      %v3026 = vadd.f32 %v2497, %v2990
      %v3027 = vadd.f32 %v2498, %v2991
      %v3028 = vadd.f32 %v2499, %v2992
      %v3029 = vadd.f32 %v2500, %v2993
      %v3030 = vld [vmem:[#allocation4] sm:$0xfe]
      %v3031 = vld [vmem:[#allocation4 + $0x240] sm:$0x1]
      %v3069 = vrot.slane %v3030, 1
      %v3070 = vrot.slane %v2959, 1
      %v3071 = vsel %vm2063, %v3069, %v3070
      %v3072 = vrot.slane %v2960, 1
      %v3073 = vsel %vm2063, %v3070, %v3072
      %v3074 = vrot.slane %v2961, 1
      %v3075 = vsel %vm2063, %v3072, %v3074
      %v3076 = vrot.slane %v2962, 1
      %v3077 = vsel %vm2063, %v3074, %v3076
      %v3078 = vrot.slane %v2963, 1
      %v3079 = vsel %vm2063, %v3076, %v3078
      %v3080 = vrot.slane %v2964, 1
      %v3081 = vsel %vm2063, %v3078, %v3080
      %v3082 = vrot.slane %v2965, 1
      %v3083 = vsel %vm2063, %v3080, %v3082
      %v3084 = vrot.slane %v2966, 1
      %v3085 = vsel %vm2063, %v3082, %v3084
      %v3086 = vrot.slane %v2967, 1
      %v3087 = vsel %vm2063, %v3084, %v3086
      %v3088 = vrot.slane %v2968, 1
      %v3089 = vsel %vm2063, %v3086, %v3088
      %v3090 = vrot.slane %v2969, 1
      %v3091 = vsel %vm2063, %v3088, %v3090
      %v3092 = vrot.slane %v2970, 1
      %v3093 = vsel %vm2063, %v3090, %v3092
      %v3094 = vrot.slane %v2971, 1
      %v3095 = vsel %vm2063, %v3092, %v3094
      %v3096 = vrot.slane %v2972, 1
      %v3097 = vsel %vm2063, %v3094, %v3096
      %v3098 = vrot.slane %v2973, 1
      %v3099 = vsel %vm2063, %v3096, %v3098
      %v3100 = vrot.slane %v2974, 1
      %v3101 = vsel %vm2063, %v3098, %v3100
      %v3102 = vrot.slane %v2975, 1
      %v3103 = vsel %vm2063, %v3100, %v3102
      %v3104 = vrot.slane %v2976, 1
      %v3105 = vsel %vm2063, %v3102, %v3104
      %v3106 = vrot.slane %v2977, 1
      %v3107 = vsel %vm2063, %v3104, %v3106
      %v3108 = vrot.slane %v2978, 1
      %v3109 = vsel %vm2063, %v3106, %v3108
      %v3110 = vrot.slane %v2979, 1
      %v3111 = vsel %vm2063, %v3108, %v3110
      %v3112 = vrot.slane %v2980, 1
      %v3113 = vsel %vm2063, %v3110, %v3112
      %v3114 = vrot.slane %v2981, 1
      %v3115 = vsel %vm2063, %v3112, %v3114
      %v3116 = vrot.slane %v2982, 1
      %v3117 = vsel %vm2063, %v3114, %v3116
      %v3118 = vrot.slane %v2983, 1
      %v3119 = vsel %vm2063, %v3116, %v3118
      %v3120 = vrot.slane %v2984, 1
      %v3121 = vsel %vm2063, %v3118, %v3120
      %v3122 = vrot.slane %v2985, 1
      %v3123 = vsel %vm2063, %v3120, %v3122
      %v3124 = vrot.slane %v2986, 1
      %v3125 = vsel %vm2063, %v3122, %v3124
      %v3126 = vrot.slane %v2987, 1
      %v3127 = vsel %vm2063, %v3124, %v3126
      %v3128 = vrot.slane %v2988, 1
      %v3129 = vsel %vm2063, %v3126, %v3128
      %v3130 = vrot.slane %v2989, 1
      %v3131 = vsel %vm2063, %v3128, %v3130
      %v3132 = vrot.slane %v2990, 1
      %v3133 = vsel %vm2063, %v3130, %v3132
      %v3134 = vrot.slane %v2991, 1
      %v3135 = vsel %vm2063, %v3132, %v3134
      %v3136 = vrot.slane %v2992, 1
      %v3137 = vsel %vm2063, %v3134, %v3136
      %v3138 = vrot.slane %v2993, 1
      %v3139 = vsel %vm2063, %v3136, %v3138
      %v3140 = vrot.slane %v3031, 1
      %v3141 = vsel %vm2063, %v3138, %v3140
      %3142 = vrot.lane.b32.xlu0 %v3071, 64
      %v3143 = vpop.permute.xlu0 %3142
      %3144 = vrot.lane.b32.xlu0 %v3073, 64
      %v3145 = vpop.permute.xlu0 %3144
      %3146 = vrot.lane.b32.xlu0 %v3075, 64
      %v3147 = vpop.permute.xlu0 %3146
      %3148 = vrot.lane.b32.xlu0 %v3077, 64
      %v3149 = vpop.permute.xlu0 %3148
      %3150 = vrot.lane.b32.xlu0 %v3079, 64
      %v3151 = vpop.permute.xlu0 %3150
      %3152 = vrot.lane.b32.xlu0 %v3081, 64
      %v3153 = vpop.permute.xlu0 %3152
      %3154 = vrot.lane.b32.xlu0 %v3083, 64
      %v3155 = vpop.permute.xlu0 %3154
      %3156 = vrot.lane.b32.xlu0 %v3085, 64
      %v3157 = vpop.permute.xlu0 %3156
      %3158 = vrot.lane.b32.xlu0 %v3087, 64
      %v3159 = vpop.permute.xlu0 %3158
      %3160 = vrot.lane.b32.xlu0 %v3089, 64
      %v3161 = vpop.permute.xlu0 %3160
      %3162 = vrot.lane.b32.xlu0 %v3091, 64
      %v3163 = vpop.permute.xlu0 %3162
      %3164 = vrot.lane.b32.xlu0 %v3093, 64
      %v3165 = vpop.permute.xlu0 %3164
      %3166 = vrot.lane.b32.xlu0 %v3095, 64
      %v3167 = vpop.permute.xlu0 %3166
      %3168 = vrot.lane.b32.xlu0 %v3097, 64
      %v3169 = vpop.permute.xlu0 %3168
      %3170 = vrot.lane.b32.xlu0 %v3099, 64
      %v3171 = vpop.permute.xlu0 %3170
      %3172 = vrot.lane.b32.xlu0 %v3101, 64
      %v3173 = vpop.permute.xlu0 %3172
      %3174 = vrot.lane.b32.xlu0 %v3103, 64
      %v3175 = vpop.permute.xlu0 %3174
      %3176 = vrot.lane.b32.xlu0 %v3105, 64
      %v3177 = vpop.permute.xlu0 %3176
      %3178 = vrot.lane.b32.xlu0 %v3107, 64
      %v3179 = vpop.permute.xlu0 %3178
      %3180 = vrot.lane.b32.xlu0 %v3109, 64
      %v3181 = vpop.permute.xlu0 %3180
      %3182 = vrot.lane.b32.xlu0 %v3111, 64
      %v3183 = vpop.permute.xlu0 %3182
      %3184 = vrot.lane.b32.xlu0 %v3113, 64
      %v3185 = vpop.permute.xlu0 %3184
      %3186 = vrot.lane.b32.xlu0 %v3115, 64
      %v3187 = vpop.permute.xlu0 %3186
      %3188 = vrot.lane.b32.xlu0 %v3117, 64
      %v3189 = vpop.permute.xlu0 %3188
      %3190 = vrot.lane.b32.xlu0 %v3119, 64
      %v3191 = vpop.permute.xlu0 %3190
      %3192 = vrot.lane.b32.xlu0 %v3121, 64
      %v3193 = vpop.permute.xlu0 %3192
      %3194 = vrot.lane.b32.xlu0 %v3123, 64
      %v3195 = vpop.permute.xlu0 %3194
      %3196 = vrot.lane.b32.xlu0 %v3125, 64
      %v3197 = vpop.permute.xlu0 %3196
      %3198 = vrot.lane.b32.xlu0 %v3127, 64
      %v3199 = vpop.permute.xlu0 %3198
      %3200 = vrot.lane.b32.xlu0 %v3129, 64
      %v3201 = vpop.permute.xlu0 %3200
      %3202 = vrot.lane.b32.xlu0 %v3131, 64
      %v3203 = vpop.permute.xlu0 %3202
      %3204 = vrot.lane.b32.xlu0 %v3133, 64
      %v3205 = vpop.permute.xlu0 %3204
      %3206 = vrot.lane.b32.xlu0 %v3135, 64
      %v3207 = vpop.permute.xlu0 %3206
      %3208 = vrot.lane.b32.xlu0 %v3137, 64
      %v3209 = vpop.permute.xlu0 %3208
      %3210 = vrot.lane.b32.xlu0 %v3139, 64
      %v3211 = vpop.permute.xlu0 %3210
      %3212 = vrot.lane.b32.xlu0 %v3141, 64
      %v3213 = vpop.permute.xlu0 %3212
      %v3250 = vadd.f32 %v2994, %v3143
      %v3251 = vadd.f32 %v2995, %v3145
      %v3252 = vadd.f32 %v2996, %v3147
      %v3253 = vadd.f32 %v2997, %v3149
      %v3254 = vadd.f32 %v2998, %v3151
      %v3255 = vadd.f32 %v2999, %v3153
      %v3256 = vadd.f32 %v3000, %v3155
      %v3257 = vadd.f32 %v3001, %v3157
      %v3258 = vadd.f32 %v3002, %v3159
      %v3259 = vadd.f32 %v3003, %v3161
      %v3260 = vadd.f32 %v3004, %v3163
      %v3261 = vadd.f32 %v3005, %v3165
      %v3262 = vadd.f32 %v3006, %v3167
      %v3263 = vadd.f32 %v3007, %v3169
      %v3264 = vadd.f32 %v3008, %v3171
      %v3265 = vadd.f32 %v3009, %v3173
      %v3266 = vadd.f32 %v3010, %v3175
      %v3267 = vadd.f32 %v3011, %v3177
      %v3268 = vadd.f32 %v3012, %v3179
      %v3269 = vadd.f32 %v3013, %v3181
      %v3270 = vadd.f32 %v3014, %v3183
      %v3271 = vadd.f32 %v3015, %v3185
      %v3272 = vadd.f32 %v3016, %v3187
      %v3273 = vadd.f32 %v3017, %v3189
      %v3274 = vadd.f32 %v3018, %v3191
      %v3275 = vadd.f32 %v3019, %v3193
      %v3276 = vadd.f32 %v3020, %v3195
      %v3277 = vadd.f32 %v3021, %v3197
      %v3278 = vadd.f32 %v3022, %v3199
      %v3279 = vadd.f32 %v3023, %v3201
      %v3280 = vadd.f32 %v3024, %v3203
      %v3281 = vadd.f32 %v3025, %v3205
      %v3282 = vadd.f32 %v3026, %v3207
      %v3283 = vadd.f32 %v3027, %v3209
      %v3284 = vadd.f32 %v3028, %v3211
      %v3285 = vadd.f32 %v3029, %v3213
      %v3286 = vld [vmem:[#allocation4 + $0x8] sm:$0xfc]
      %v3287 = vld [vmem:[#allocation4 + $0x18] sm:$0xff]
      %v3288 = vld [vmem:[#allocation4 + $0x28] sm:$0xff]
      %v3289 = vld [vmem:[#allocation4 + $0x38] sm:$0xff]
      %v3290 = vld [vmem:[#allocation4 + $0x48] sm:$0xff]
      %v3291 = vld [vmem:[#allocation4 + $0x58] sm:$0xff]
      %v3292 = vld [vmem:[#allocation4 + $0x68] sm:$0xff]
      %v3293 = vld [vmem:[#allocation4 + $0x78] sm:$0xff]
      %v3294 = vld [vmem:[#allocation4 + $0x88] sm:$0xff]
      %v3295 = vld [vmem:[#allocation4 + $0x98] sm:$0xff]
      %v3296 = vld [vmem:[#allocation4 + $0xa8] sm:$0xff]
      %v3297 = vld [vmem:[#allocation4 + $0xb8] sm:$0xff]
      %v3298 = vld [vmem:[#allocation4 + $0xc8] sm:$0xff]
      %v3299 = vld [vmem:[#allocation4 + $0xd8] sm:$0xff]
      %v3300 = vld [vmem:[#allocation4 + $0xe8] sm:$0xff]
      %v3301 = vld [vmem:[#allocation4 + $0xf8] sm:$0xff]
      %v3302 = vld [vmem:[#allocation4 + $0x108] sm:$0xff]
      %v3303 = vld [vmem:[#allocation4 + $0x118] sm:$0xff]
      %v3304 = vld [vmem:[#allocation4 + $0x128] sm:$0xff]
      %v3305 = vld [vmem:[#allocation4 + $0x138] sm:$0xff]
      %v3306 = vld [vmem:[#allocation4 + $0x148] sm:$0xff]
      %v3307 = vld [vmem:[#allocation4 + $0x158] sm:$0xff]
      %v3308 = vld [vmem:[#allocation4 + $0x168] sm:$0xff]
      %v3309 = vld [vmem:[#allocation4 + $0x178] sm:$0xff]
      %v3310 = vld [vmem:[#allocation4 + $0x188] sm:$0xff]
      %v3311 = vld [vmem:[#allocation4 + $0x198] sm:$0xff]
      %v3312 = vld [vmem:[#allocation4 + $0x1a8] sm:$0xff]
      %v3313 = vld [vmem:[#allocation4 + $0x1b8] sm:$0xff]
      %v3314 = vld [vmem:[#allocation4 + $0x1c8] sm:$0xff]
      %v3315 = vld [vmem:[#allocation4 + $0x1d8] sm:$0xff]
      %v3316 = vld [vmem:[#allocation4 + $0x1e8] sm:$0xff]
      %v3317 = vld [vmem:[#allocation4 + $0x1f8] sm:$0xff]
      %v3318 = vld [vmem:[#allocation4 + $0x208] sm:$0xff]
      %v3319 = vld [vmem:[#allocation4 + $0x218] sm:$0xff]
      %v3320 = vld [vmem:[#allocation4 + $0x228] sm:$0xff]
      %v3321 = vld [vmem:[#allocation4 + $0x238] sm:$0xff]
      %v3322 = vld [vmem:[#allocation4 + $0x248] sm:$0x3]
      %v3360 = vrot.slane %v3286, 2
      %v3361 = vrot.slane %v3287, 2
      %v3362 = vsel %vm2355, %v3360, %v3361
      %v3363 = vrot.slane %v3288, 2
      %v3364 = vsel %vm2355, %v3361, %v3363
      %v3365 = vrot.slane %v3289, 2
      %v3366 = vsel %vm2355, %v3363, %v3365
      %v3367 = vrot.slane %v3290, 2
      %v3368 = vsel %vm2355, %v3365, %v3367
      %v3369 = vrot.slane %v3291, 2
      %v3370 = vsel %vm2355, %v3367, %v3369
      %v3371 = vrot.slane %v3292, 2
      %v3372 = vsel %vm2355, %v3369, %v3371
      %v3373 = vrot.slane %v3293, 2
      %v3374 = vsel %vm2355, %v3371, %v3373
      %v3375 = vrot.slane %v3294, 2
      %v3376 = vsel %vm2355, %v3373, %v3375
      %v3377 = vrot.slane %v3295, 2
      %v3378 = vsel %vm2355, %v3375, %v3377
      %v3379 = vrot.slane %v3296, 2
      %v3380 = vsel %vm2355, %v3377, %v3379
      %v3381 = vrot.slane %v3297, 2
      %v3382 = vsel %vm2355, %v3379, %v3381
      %v3383 = vrot.slane %v3298, 2
      %v3384 = vsel %vm2355, %v3381, %v3383
      %v3385 = vrot.slane %v3299, 2
      %v3386 = vsel %vm2355, %v3383, %v3385
      %v3387 = vrot.slane %v3300, 2
      %v3388 = vsel %vm2355, %v3385, %v3387
      %v3389 = vrot.slane %v3301, 2
      %v3390 = vsel %vm2355, %v3387, %v3389
      %v3391 = vrot.slane %v3302, 2
      %v3392 = vsel %vm2355, %v3389, %v3391
      %v3393 = vrot.slane %v3303, 2
      %v3394 = vsel %vm2355, %v3391, %v3393
      %v3395 = vrot.slane %v3304, 2
      %v3396 = vsel %vm2355, %v3393, %v3395
      %v3397 = vrot.slane %v3305, 2
      %v3398 = vsel %vm2355, %v3395, %v3397
      %v3399 = vrot.slane %v3306, 2
      %v3400 = vsel %vm2355, %v3397, %v3399
      %v3401 = vrot.slane %v3307, 2
      %v3402 = vsel %vm2355, %v3399, %v3401
      %v3403 = vrot.slane %v3308, 2
      %v3404 = vsel %vm2355, %v3401, %v3403
      %v3405 = vrot.slane %v3309, 2
      %v3406 = vsel %vm2355, %v3403, %v3405
      %v3407 = vrot.slane %v3310, 2
      %v3408 = vsel %vm2355, %v3405, %v3407
      %v3409 = vrot.slane %v3311, 2
      %v3410 = vsel %vm2355, %v3407, %v3409
      %v3411 = vrot.slane %v3312, 2
      %v3412 = vsel %vm2355, %v3409, %v3411
      %v3413 = vrot.slane %v3313, 2
      %v3414 = vsel %vm2355, %v3411, %v3413
      %v3415 = vrot.slane %v3314, 2
      %v3416 = vsel %vm2355, %v3413, %v3415
      %v3417 = vrot.slane %v3315, 2
      %v3418 = vsel %vm2355, %v3415, %v3417
      %v3419 = vrot.slane %v3316, 2
      %v3420 = vsel %vm2355, %v3417, %v3419
      %v3421 = vrot.slane %v3317, 2
      %v3422 = vsel %vm2355, %v3419, %v3421
      %v3423 = vrot.slane %v3318, 2
      %v3424 = vsel %vm2355, %v3421, %v3423
      %v3425 = vrot.slane %v3319, 2
      %v3426 = vsel %vm2355, %v3423, %v3425
      %v3427 = vrot.slane %v3320, 2
      %v3428 = vsel %vm2355, %v3425, %v3427
      %v3429 = vrot.slane %v3321, 2
      %v3430 = vsel %vm2355, %v3427, %v3429
      %v3431 = vrot.slane %v3322, 2
      %v3432 = vsel %vm2355, %v3429, %v3431
      %v3469 = vadd.f32 %v3250, %v3362
      %v3470 = vadd.f32 %v3251, %v3364
      %v3471 = vadd.f32 %v3252, %v3366
      %v3472 = vadd.f32 %v3253, %v3368
      %v3473 = vadd.f32 %v3254, %v3370
      %v3474 = vadd.f32 %v3255, %v3372
      %v3475 = vadd.f32 %v3256, %v3374
      %v3476 = vadd.f32 %v3257, %v3376
      %v3477 = vadd.f32 %v3258, %v3378
      %v3478 = vadd.f32 %v3259, %v3380
      %v3479 = vadd.f32 %v3260, %v3382
      %v3480 = vadd.f32 %v3261, %v3384
      %v3481 = vadd.f32 %v3262, %v3386
      %v3482 = vadd.f32 %v3263, %v3388
      %v3483 = vadd.f32 %v3264, %v3390
      %v3484 = vadd.f32 %v3265, %v3392
      %v3485 = vadd.f32 %v3266, %v3394
      %v3486 = vadd.f32 %v3267, %v3396
      %v3487 = vadd.f32 %v3268, %v3398
      %v3488 = vadd.f32 %v3269, %v3400
      %v3489 = vadd.f32 %v3270, %v3402
      %v3490 = vadd.f32 %v3271, %v3404
      %v3491 = vadd.f32 %v3272, %v3406
      %v3492 = vadd.f32 %v3273, %v3408
      %v3493 = vadd.f32 %v3274, %v3410
      %v3494 = vadd.f32 %v3275, %v3412
      %v3495 = vadd.f32 %v3276, %v3414
      %v3496 = vadd.f32 %v3277, %v3416
      %v3497 = vadd.f32 %v3278, %v3418
      %v3498 = vadd.f32 %v3279, %v3420
      %v3499 = vadd.f32 %v3280, %v3422
      %v3500 = vadd.f32 %v3281, %v3424
      %v3501 = vadd.f32 %v3282, %v3426
      %v3502 = vadd.f32 %v3283, %v3428
      %v3503 = vadd.f32 %v3284, %v3430
      %v3504 = vadd.f32 %v3285, %v3432
      %v3505 = vld [vmem:[#allocation2 + $0x24] sm:$0xff]
      %v3506 = vld [vmem:[#allocation2 + $0x2c] sm:$0xff]
      %v3507 = vld [vmem:[#allocation2 + $0x34] sm:$0xff]
      %v3508 = vld [vmem:[#allocation2 + $0x3c] sm:$0xff]
      %v3509 = vld [vmem:[#allocation2 + $0x44] sm:$0xff]
      %v3510 = vld [vmem:[#allocation2 + $0x4c] sm:$0xff]
      %v3511 = vld [vmem:[#allocation2 + $0x54] sm:$0xff]
      %v3512 = vld [vmem:[#allocation2 + $0x5c] sm:$0xff]
      %v3513 = vld [vmem:[#allocation2 + $0x64] sm:$0xff]
      %v3514 = vld [vmem:[#allocation2 + $0x6c] sm:$0xff]
      %v3515 = vld [vmem:[#allocation2 + $0x74] sm:$0xff]
      %v3516 = vld [vmem:[#allocation2 + $0x7c] sm:$0xff]
      %v3517 = vld [vmem:[#allocation2 + $0x84] sm:$0xff]
      %v3518 = vld [vmem:[#allocation2 + $0x8c] sm:$0xff]
      %v3519 = vld [vmem:[#allocation2 + $0x94] sm:$0xff]
      %v3520 = vld [vmem:[#allocation2 + $0x9c] sm:$0xff]
      %v3521 = vld [vmem:[#allocation2 + $0xa4] sm:$0xff]
      %v3522 = vld [vmem:[#allocation2 + $0xac] sm:$0xff]
      %v3523 = vld [vmem:[#allocation2 + $0xb4] sm:$0xff]
      %v3524 = vld [vmem:[#allocation2 + $0xbc] sm:$0xff]
      %v3525 = vld [vmem:[#allocation2 + $0xc4] sm:$0xff]
      %v3526 = vld [vmem:[#allocation2 + $0xcc] sm:$0xff]
      %v3527 = vld [vmem:[#allocation2 + $0xd4] sm:$0xff]
      %v3528 = vld [vmem:[#allocation2 + $0xdc] sm:$0xff]
      %v3529 = vld [vmem:[#allocation2 + $0xe4] sm:$0xff]
      %v3530 = vld [vmem:[#allocation2 + $0xec] sm:$0xff]
      %v3531 = vld [vmem:[#allocation2 + $0xf4] sm:$0xff]
      %v3532 = vld [vmem:[#allocation2 + $0xfc] sm:$0xff]
      %v3533 = vld [vmem:[#allocation2 + $0x104] sm:$0xff]
      %v3534 = vld [vmem:[#allocation2 + $0x10c] sm:$0xff]
      %v3535 = vld [vmem:[#allocation2 + $0x114] sm:$0xff]
      %v3536 = vld [vmem:[#allocation2 + $0x11c] sm:$0xff]
      %v3537 = vld [vmem:[#allocation2 + $0x124] sm:$0xff]
      %v3538 = vld [vmem:[#allocation2 + $0x12c] sm:$0xff]
      %v3539 = vld [vmem:[#allocation2 + $0x134] sm:$0xff]
      %v3540 = vld [vmem:[#allocation2 + $0x13c] sm:$0xff]
      %v3541 = vld [vmem:[#allocation2 + $0x144] sm:$0x3]
      %v3542 = vpack.c.bf16 %v3506, %v3505
      %v3543 = vpack.c.bf16 %v3508, %v3507
      %v3544 = vpack.c.bf16 %v3510, %v3509
      %v3545 = vpack.c.bf16 %v3512, %v3511
      %v3546 = vpack.c.bf16 %v3514, %v3513
      %v3547 = vpack.c.bf16 %v3516, %v3515
      %v3548 = vpack.c.bf16 %v3518, %v3517
      %v3549 = vpack.c.bf16 %v3520, %v3519
      %v3550 = vpack.c.bf16 %v3522, %v3521
      %v3551 = vpack.c.bf16 %v3524, %v3523
      %v3552 = vpack.c.bf16 %v3526, %v3525
      %v3553 = vpack.c.bf16 %v3528, %v3527
      %v3554 = vpack.c.bf16 %v3530, %v3529
      %v3555 = vpack.c.bf16 %v3532, %v3531
      %v3556 = vpack.c.bf16 %v3534, %v3533
      %v3557 = vpack.c.bf16 %v3536, %v3535
      %v3558 = vpack.c.bf16 %v3538, %v3537
      %v3559 = vpack.c.bf16 %v3540, %v3539
      %v3560 = vpack.c.bf16 %v3541, %v3541
      %s3561 = scalar_lea.vmem %s3, 128
      %v3562 = vld [vmem:[%s3561] sm:$0xff]
      %v3563 = vld [vmem:[%s3561 + $0x8] sm:$0xff]
      %v3564 = vld [vmem:[%s3561 + $0x10] sm:$0xff]
      %v3565 = vld [vmem:[%s3561 + $0x18] sm:$0xff]
      %v3566 = vld [vmem:[%s3561 + $0x20] sm:$0xff]
      %v3567 = vld [vmem:[%s3561 + $0x28] sm:$0xff]
      %v3568 = vld [vmem:[%s3561 + $0x30] sm:$0xff]
      %v3569 = vld [vmem:[%s3561 + $0x38] sm:$0xff]
      %v3578 = vunpack.c.l.b16 %v3562
      %v3579 = vunpack.c.h.b16 %v3562
      %v3580 = vunpack.c.l.b16 %v3563
      %v3581 = vunpack.c.h.b16 %v3563
      %v3582 = vunpack.c.l.b16 %v3564
      %v3583 = vunpack.c.h.b16 %v3564
      %v3584 = vunpack.c.l.b16 %v3565
      %v3585 = vunpack.c.h.b16 %v3565
      %v3586 = vunpack.c.l.b16 %v3566
      %v3587 = vunpack.c.h.b16 %v3566
      %v3588 = vunpack.c.l.b16 %v3567
      %v3589 = vunpack.c.h.b16 %v3567
      %v3590 = vunpack.c.l.b16 %v3568
      %v3591 = vunpack.c.h.b16 %v3568
      %v3592 = vunpack.c.l.b16 %v3569
      %v3593 = vunpack.c.h.b16 %v3569
      %v3594 = vpack.c.b16 %v3580, %v3578
      %v3595 = vpack.c.b16 %v3581, %v3579
      %v3596 = vpack.c.b16 %v3584, %v3582
      %v3597 = vpack.c.b16 %v3585, %v3583
      %v3598 = vpack.c.b16 %v3588, %v3586
      %v3599 = vpack.c.b16 %v3589, %v3587
      %v3600 = vpack.c.b16 %v3592, %v3590
      %v3601 = vpack.c.b16 %v3593, %v3591
      %v3611 = vsel %vm280, %v3542, 0
      %v3614 = vsel %vm280, %v3543, 0
      %v3617 = vsel %vm280, %v3544, 0
      %v3620 = vsel %vm280, %v3545, 0
      %v3623 = vsel %vm280, %v3546, 0
      %v3626 = vsel %vm280, %v3547, 0
      %v3629 = vsel %vm280, %v3548, 0
      %v3632 = vsel %vm280, %v3549, 0
      %v3635 = vsel %vm280, %v3550, 0
      %v3638 = vsel %vm280, %v3551, 0
      %v3641 = vsel %vm280, %v3552, 0
      %v3644 = vsel %vm280, %v3553, 0
      %v3647 = vsel %vm280, %v3554, 0
      %v3650 = vsel %vm280, %v3555, 0
      %v3653 = vsel %vm280, %v3556, 0
      %v3656 = vsel %vm280, %v3557, 0
      %v3659 = vsel %vm280, %v3558, 0
      %v3662 = vsel %vm280, %v3559, 0
      %v3665 = vsel %vm280, %v3560, 0
      %3667 = vmatprep.subr.bf16.mxu0 %v3595
      %3668 = vmatpush1.bf16.msra.mxu0 %v3594
      %3669 = vmatprep.subr.bf16.mxu0 %v3597
      %3670 = vmatpush1.bf16.msra.mxu0 %v3596
      %3671 = vmatprep.subr.bf16.mxu0 %v3599
      %3672 = vmatpush1.bf16.msra.mxu0 %v3598
      %3673 = vmatprep.subr.bf16.mxu0 %v3601
      %3674 = vmatpush1.bf16.msra.mxu0 %v3600
      %3675 = vmatprep.subr.bf16.mxu0 0
      %3676 = vmatpush1.bf16.msra.mxu0 0
      %3677 = vmatprep.subr.bf16.mxu0 0
      %3678 = vmatpush1.bf16.msra.mxu0 0
      %3679 = vmatprep.subr.bf16.mxu0 0
      %3680 = vmatpush1.bf16.msra.mxu0 0
      %3681 = vmatprep.subr.bf16.mxu0 0
      %3682 = vmatpush1.bf16.msra.mxu0 0
      %3683 = vmatprep.subr.bf16.mxu0 0
      %3684 = vmatpush1.bf16.msra.mxu0 0
      %3685 = vmatprep.subr.bf16.mxu0 0
      %3686 = vmatpush1.bf16.msra.mxu0 0
      %3687 = vmatprep.subr.bf16.mxu0 0
      %3688 = vmatpush1.bf16.msra.mxu0 0
      %3689 = vmatprep.subr.bf16.mxu0 0
      %3690 = vmatpush1.bf16.msra.mxu0 0
      %3691 = vmatprep.subr.bf16.mxu0 0
      %3692 = vmatpush1.bf16.msra.mxu0 0
      %3693 = vmatprep.subr.bf16.mxu0 0
      %3694 = vmatpush1.bf16.msra.mxu0 0
      %3695 = vmatprep.subr.bf16.mxu0 0
      %3696 = vmatpush1.bf16.msra.mxu0 0
      %3697 = vmatprep.subr.bf16.mxu0 0
      %3698 = vmatpush1.bf16.msra.mxu0 0
      %3699 = vmatprep.mubr.bf16.mxu0 0
      %3700 = vmatmul.mubr.bf16.gmra.mrb[0].mxu0 %v3611
      %v3701 = vpop.f32.mrb[0].mxu0
      %v3702 = vadd.f32 0.0, %v3701
      %v3703 = vpop.f32.mrb[0].mxu0
      %v3704 = vadd.f32 0.0, %v3703
      %v3705 = vpop.f32.mrb[0].mxu0
      %v3706 = vadd.f32 0.0, %v3705
      %v3707 = vpop.f32.mrb[0].mxu0
      %v3708 = vadd.f32 0.0, %v3707
      %3709 = vmatprep.mubr.bf16.mxu0 0
      %3710 = vmatmul.mubr.bf16.gmra.mrb[0].mxu0 %v3614
      %v3711 = vpop.f32.mrb[0].mxu0
      %v3712 = vadd.f32 0.0, %v3711
      %v3713 = vpop.f32.mrb[0].mxu0
      %v3714 = vadd.f32 0.0, %v3713
      %v3715 = vpop.f32.mrb[0].mxu0
      %v3716 = vadd.f32 0.0, %v3715
      %v3717 = vpop.f32.mrb[0].mxu0
      %v3718 = vadd.f32 0.0, %v3717
      %3719 = vmatprep.mubr.bf16.mxu0 0
      %3720 = vmatmul.mubr.bf16.gmra.mrb[0].mxu0 %v3617
      %v3721 = vpop.f32.mrb[0].mxu0
      %v3722 = vadd.f32 0.0, %v3721
      %v3723 = vpop.f32.mrb[0].mxu0
      %v3724 = vadd.f32 0.0, %v3723
      %v3725 = vpop.f32.mrb[0].mxu0
      %v3726 = vadd.f32 0.0, %v3725
      %v3727 = vpop.f32.mrb[0].mxu0
      %v3728 = vadd.f32 0.0, %v3727
      %3729 = vmatprep.mubr.bf16.mxu0 0
      %3730 = vmatmul.mubr.bf16.gmra.mrb[0].mxu0 %v3620
      %v3731 = vpop.f32.mrb[0].mxu0
      %v3732 = vadd.f32 0.0, %v3731
      %v3733 = vpop.f32.mrb[0].mxu0
      %v3734 = vadd.f32 0.0, %v3733
      %v3735 = vpop.f32.mrb[0].mxu0
      %v3736 = vadd.f32 0.0, %v3735
      %v3737 = vpop.f32.mrb[0].mxu0
      %v3738 = vadd.f32 0.0, %v3737
      %3739 = vmatprep.mubr.bf16.mxu0 0
      %3740 = vmatmul.mubr.bf16.gmra.mrb[0].mxu0 %v3623
      %v3741 = vpop.f32.mrb[0].mxu0
      %v3742 = vadd.f32 0.0, %v3741
      %v3743 = vpop.f32.mrb[0].mxu0
      %v3744 = vadd.f32 0.0, %v3743
      %v3745 = vpop.f32.mrb[0].mxu0
      %v3746 = vadd.f32 0.0, %v3745
      %v3747 = vpop.f32.mrb[0].mxu0
      %v3748 = vadd.f32 0.0, %v3747
      %3749 = vmatprep.mubr.bf16.mxu0 0
      %3750 = vmatmul.mubr.bf16.gmra.mrb[0].mxu0 %v3626
      %v3751 = vpop.f32.mrb[0].mxu0
      %v3752 = vadd.f32 0.0, %v3751
      %v3753 = vpop.f32.mrb[0].mxu0
      %v3754 = vadd.f32 0.0, %v3753
      %v3755 = vpop.f32.mrb[0].mxu0
      %v3756 = vadd.f32 0.0, %v3755
      %v3757 = vpop.f32.mrb[0].mxu0
      %v3758 = vadd.f32 0.0, %v3757
      %3759 = vmatprep.mubr.bf16.mxu0 0
      %3760 = vmatmul.mubr.bf16.gmra.mrb[0].mxu0 %v3629
      %v3761 = vpop.f32.mrb[0].mxu0
      %v3762 = vadd.f32 0.0, %v3761
      %v3763 = vpop.f32.mrb[0].mxu0
      %v3764 = vadd.f32 0.0, %v3763
      %v3765 = vpop.f32.mrb[0].mxu0
      %v3766 = vadd.f32 0.0, %v3765
      %v3767 = vpop.f32.mrb[0].mxu0
      %v3768 = vadd.f32 0.0, %v3767
      %3769 = vmatprep.mubr.bf16.mxu0 0
      %3770 = vmatmul.mubr.bf16.gmra.mrb[0].mxu0 %v3632
      %v3771 = vpop.f32.mrb[0].mxu0
      %v3772 = vadd.f32 0.0, %v3771
      %v3773 = vpop.f32.mrb[0].mxu0
      %v3774 = vadd.f32 0.0, %v3773
      %v3775 = vpop.f32.mrb[0].mxu0
      %v3776 = vadd.f32 0.0, %v3775
      %v3777 = vpop.f32.mrb[0].mxu0
      %v3778 = vadd.f32 0.0, %v3777
      %3779 = vmatprep.mubr.bf16.mxu0 0
      %3780 = vmatmul.mubr.bf16.gmra.mrb[0].mxu0 %v3635
      %v3781 = vpop.f32.mrb[0].mxu0
      %v3782 = vadd.f32 0.0, %v3781
      %v3783 = vpop.f32.mrb[0].mxu0
      %v3784 = vadd.f32 0.0, %v3783
      %v3785 = vpop.f32.mrb[0].mxu0
      %v3786 = vadd.f32 0.0, %v3785
      %v3787 = vpop.f32.mrb[0].mxu0
      %v3788 = vadd.f32 0.0, %v3787
      %3789 = vmatprep.mubr.bf16.mxu0 0
      %3790 = vmatmul.mubr.bf16.gmra.mrb[0].mxu0 %v3638
      %v3791 = vpop.f32.mrb[0].mxu0
      %v3792 = vadd.f32 0.0, %v3791
      %v3793 = vpop.f32.mrb[0].mxu0
      %v3794 = vadd.f32 0.0, %v3793
      %v3795 = vpop.f32.mrb[0].mxu0
      %v3796 = vadd.f32 0.0, %v3795
      %v3797 = vpop.f32.mrb[0].mxu0
      %v3798 = vadd.f32 0.0, %v3797
      %3799 = vmatprep.mubr.bf16.mxu0 0
      %3800 = vmatmul.mubr.bf16.gmra.mrb[0].mxu0 %v3641
      %v3801 = vpop.f32.mrb[0].mxu0
      %v3802 = vadd.f32 0.0, %v3801
      %v3803 = vpop.f32.mrb[0].mxu0
      %v3804 = vadd.f32 0.0, %v3803
      %v3805 = vpop.f32.mrb[0].mxu0
      %v3806 = vadd.f32 0.0, %v3805
      %v3807 = vpop.f32.mrb[0].mxu0
      %v3808 = vadd.f32 0.0, %v3807
      %3809 = vmatprep.mubr.bf16.mxu0 0
      %3810 = vmatmul.mubr.bf16.gmra.mrb[0].mxu0 %v3644
      %v3811 = vpop.f32.mrb[0].mxu0
      %v3812 = vadd.f32 0.0, %v3811
      %v3813 = vpop.f32.mrb[0].mxu0
      %v3814 = vadd.f32 0.0, %v3813
      %v3815 = vpop.f32.mrb[0].mxu0
      %v3816 = vadd.f32 0.0, %v3815
      %v3817 = vpop.f32.mrb[0].mxu0
      %v3818 = vadd.f32 0.0, %v3817
      %3819 = vmatprep.mubr.bf16.mxu0 0
      %3820 = vmatmul.mubr.bf16.gmra.mrb[0].mxu0 %v3647
      %v3821 = vpop.f32.mrb[0].mxu0
      %v3822 = vadd.f32 0.0, %v3821
      %v3823 = vpop.f32.mrb[0].mxu0
      %v3824 = vadd.f32 0.0, %v3823
      %v3825 = vpop.f32.mrb[0].mxu0
      %v3826 = vadd.f32 0.0, %v3825
      %v3827 = vpop.f32.mrb[0].mxu0
      %v3828 = vadd.f32 0.0, %v3827
      %3829 = vmatprep.mubr.bf16.mxu0 0
      %3830 = vmatmul.mubr.bf16.gmra.mrb[0].mxu0 %v3650
      %v3831 = vpop.f32.mrb[0].mxu0
      %v3832 = vadd.f32 0.0, %v3831
      %v3833 = vpop.f32.mrb[0].mxu0
      %v3834 = vadd.f32 0.0, %v3833
      %v3835 = vpop.f32.mrb[0].mxu0
      %v3836 = vadd.f32 0.0, %v3835
      %v3837 = vpop.f32.mrb[0].mxu0
      %v3838 = vadd.f32 0.0, %v3837
      %3839 = vmatprep.mubr.bf16.mxu0 0
      %3840 = vmatmul.mubr.bf16.gmra.mrb[0].mxu0 %v3653
      %v3841 = vpop.f32.mrb[0].mxu0
      %v3842 = vadd.f32 0.0, %v3841
      %v3843 = vpop.f32.mrb[0].mxu0
      %v3844 = vadd.f32 0.0, %v3843
      %v3845 = vpop.f32.mrb[0].mxu0
      %v3846 = vadd.f32 0.0, %v3845
      %v3847 = vpop.f32.mrb[0].mxu0
      %v3848 = vadd.f32 0.0, %v3847
      %3849 = vmatprep.mubr.bf16.mxu0 0
      %3850 = vmatmul.mubr.bf16.gmra.mrb[0].mxu0 %v3656
      %v3851 = vpop.f32.mrb[0].mxu0
      %v3852 = vadd.f32 0.0, %v3851
      %v3853 = vpop.f32.mrb[0].mxu0
      %v3854 = vadd.f32 0.0, %v3853
      %v3855 = vpop.f32.mrb[0].mxu0
      %v3856 = vadd.f32 0.0, %v3855
      %v3857 = vpop.f32.mrb[0].mxu0
      %v3858 = vadd.f32 0.0, %v3857
      %3859 = vmatprep.mubr.bf16.mxu0 0
      %3860 = vmatmul.mubr.bf16.gmra.mrb[0].mxu0 %v3659
      %v3861 = vpop.f32.mrb[0].mxu0
      %v3862 = vadd.f32 0.0, %v3861
      %v3863 = vpop.f32.mrb[0].mxu0
      %v3864 = vadd.f32 0.0, %v3863
      %v3865 = vpop.f32.mrb[0].mxu0
      %v3866 = vadd.f32 0.0, %v3865
      %v3867 = vpop.f32.mrb[0].mxu0
      %v3868 = vadd.f32 0.0, %v3867
      %3869 = vmatprep.mubr.bf16.mxu0 0
      %3870 = vmatmul.mubr.bf16.gmra.mrb[0].mxu0 %v3662
      %v3871 = vpop.f32.mrb[0].mxu0
      %v3872 = vadd.f32 0.0, %v3871
      %v3873 = vpop.f32.mrb[0].mxu0
      %v3874 = vadd.f32 0.0, %v3873
      %v3875 = vpop.f32.mrb[0].mxu0
      %v3876 = vadd.f32 0.0, %v3875
      %v3877 = vpop.f32.mrb[0].mxu0
      %v3878 = vadd.f32 0.0, %v3877
      %3879 = vmatprep.mubr.bf16.mxu0 0
      %3880 = vmatmul.mubr.bf16.gmra.mrb[0].mxu0 %v3665
      %v3881 = vpop.f32.mrb[0].mxu0
      %v3882 = vadd.f32 0.0, %v3881
      %v3883 = vpop.f32.mrb[0].mxu0
      %v3884 = vadd.f32 0.0, %v3883
      %v3885 = vpop.f32.mrb[0].mxu0
      %v3886 = vpop.f32.mrb[0].mxu0
      %3887 = vdwg.mxu0
      %3888 = vst [vmem:[#allocation4] sm:$0xff] %v3702
      %3889 = vst.msk [vmem:[#allocation4 + $0x8] sm:$0xff] %vm280, %v3704
      %3890 = vst [vmem:[#allocation4 + $0x10] sm:$0xff] %v3706
      %3891 = vst.msk [vmem:[#allocation4 + $0x18] sm:$0xff] %vm280, %v3708
      %3892 = vst [vmem:[#allocation4 + $0x20] sm:$0xff] %v3712
      %3893 = vst.msk [vmem:[#allocation4 + $0x28] sm:$0xff] %vm280, %v3714
      %3894 = vst [vmem:[#allocation4 + $0x30] sm:$0xff] %v3716
      %3895 = vst.msk [vmem:[#allocation4 + $0x38] sm:$0xff] %vm280, %v3718
      %3896 = vst [vmem:[#allocation4 + $0x40] sm:$0xff] %v3722
      %3897 = vst.msk [vmem:[#allocation4 + $0x48] sm:$0xff] %vm280, %v3724
      %3898 = vst [vmem:[#allocation4 + $0x50] sm:$0xff] %v3726
      %3899 = vst.msk [vmem:[#allocation4 + $0x58] sm:$0xff] %vm280, %v3728
      %3900 = vst [vmem:[#allocation4 + $0x60] sm:$0xff] %v3732
      %3901 = vst.msk [vmem:[#allocation4 + $0x68] sm:$0xff] %vm280, %v3734
      %3902 = vst [vmem:[#allocation4 + $0x70] sm:$0xff] %v3736
      %3903 = vst.msk [vmem:[#allocation4 + $0x78] sm:$0xff] %vm280, %v3738
      %3904 = vst [vmem:[#allocation4 + $0x80] sm:$0xff] %v3742
      %3905 = vst.msk [vmem:[#allocation4 + $0x88] sm:$0xff] %vm280, %v3744
      %3906 = vst [vmem:[#allocation4 + $0x90] sm:$0xff] %v3746
      %3907 = vst.msk [vmem:[#allocation4 + $0x98] sm:$0xff] %vm280, %v3748
      %3908 = vst [vmem:[#allocation4 + $0xa0] sm:$0xff] %v3752
      %3909 = vst.msk [vmem:[#allocation4 + $0xa8] sm:$0xff] %vm280, %v3754
      %3910 = vst [vmem:[#allocation4 + $0xb0] sm:$0xff] %v3756
      %3911 = vst.msk [vmem:[#allocation4 + $0xb8] sm:$0xff] %vm280, %v3758
      %3912 = vst [vmem:[#allocation4 + $0xc0] sm:$0xff] %v3762
      %3913 = vst.msk [vmem:[#allocation4 + $0xc8] sm:$0xff] %vm280, %v3764
      %3914 = vst [vmem:[#allocation4 + $0xd0] sm:$0xff] %v3766
      %3915 = vst.msk [vmem:[#allocation4 + $0xd8] sm:$0xff] %vm280, %v3768
      %3916 = vst [vmem:[#allocation4 + $0xe0] sm:$0xff] %v3772
      %3917 = vst.msk [vmem:[#allocation4 + $0xe8] sm:$0xff] %vm280, %v3774
      %3918 = vst [vmem:[#allocation4 + $0xf0] sm:$0xff] %v3776
      %3919 = vst.msk [vmem:[#allocation4 + $0xf8] sm:$0xff] %vm280, %v3778
      %3920 = vst [vmem:[#allocation4 + $0x100] sm:$0xff] %v3782
      %3921 = vst.msk [vmem:[#allocation4 + $0x108] sm:$0xff] %vm280, %v3784
      %3922 = vst [vmem:[#allocation4 + $0x110] sm:$0xff] %v3786
      %3923 = vst.msk [vmem:[#allocation4 + $0x118] sm:$0xff] %vm280, %v3788
      %3924 = vst [vmem:[#allocation4 + $0x120] sm:$0xff] %v3792
      %3925 = vst.msk [vmem:[#allocation4 + $0x128] sm:$0xff] %vm280, %v3794
      %3926 = vst [vmem:[#allocation4 + $0x130] sm:$0xff] %v3796
      %3927 = vst.msk [vmem:[#allocation4 + $0x138] sm:$0xff] %vm280, %v3798
      %3928 = vst [vmem:[#allocation4 + $0x140] sm:$0xff] %v3802
      %3929 = vst.msk [vmem:[#allocation4 + $0x148] sm:$0xff] %vm280, %v3804
      %3930 = vst [vmem:[#allocation4 + $0x150] sm:$0xff] %v3806
      %3931 = vst.msk [vmem:[#allocation4 + $0x158] sm:$0xff] %vm280, %v3808
      %3932 = vst [vmem:[#allocation4 + $0x160] sm:$0xff] %v3812
      %3933 = vst.msk [vmem:[#allocation4 + $0x168] sm:$0xff] %vm280, %v3814
      %3934 = vst [vmem:[#allocation4 + $0x170] sm:$0xff] %v3816
      %3935 = vst.msk [vmem:[#allocation4 + $0x178] sm:$0xff] %vm280, %v3818
      %3936 = vst [vmem:[#allocation4 + $0x180] sm:$0xff] %v3822
      %3937 = vst.msk [vmem:[#allocation4 + $0x188] sm:$0xff] %vm280, %v3824
      %3938 = vst [vmem:[#allocation4 + $0x190] sm:$0xff] %v3826
      %3939 = vst.msk [vmem:[#allocation4 + $0x198] sm:$0xff] %vm280, %v3828
      %3940 = vst [vmem:[#allocation4 + $0x1a0] sm:$0xff] %v3832
      %3941 = vst.msk [vmem:[#allocation4 + $0x1a8] sm:$0xff] %vm280, %v3834
      %3942 = vst [vmem:[#allocation4 + $0x1b0] sm:$0xff] %v3836
      %3943 = vst.msk [vmem:[#allocation4 + $0x1b8] sm:$0xff] %vm280, %v3838
      %3944 = vst [vmem:[#allocation4 + $0x1c0] sm:$0xff] %v3842
      %3945 = vst.msk [vmem:[#allocation4 + $0x1c8] sm:$0xff] %vm280, %v3844
      %3946 = vst [vmem:[#allocation4 + $0x1d0] sm:$0xff] %v3846
      %3947 = vst.msk [vmem:[#allocation4 + $0x1d8] sm:$0xff] %vm280, %v3848
      %3948 = vst [vmem:[#allocation4 + $0x1e0] sm:$0xff] %v3852
      %3949 = vst.msk [vmem:[#allocation4 + $0x1e8] sm:$0xff] %vm280, %v3854
      %3950 = vst [vmem:[#allocation4 + $0x1f0] sm:$0xff] %v3856
      %3951 = vst.msk [vmem:[#allocation4 + $0x1f8] sm:$0xff] %vm280, %v3858
      %3952 = vst [vmem:[#allocation4 + $0x200] sm:$0xff] %v3862
      %3953 = vst.msk [vmem:[#allocation4 + $0x208] sm:$0xff] %vm280, %v3864
      %3954 = vst [vmem:[#allocation4 + $0x210] sm:$0xff] %v3866
      %3955 = vst.msk [vmem:[#allocation4 + $0x218] sm:$0xff] %vm280, %v3868
      %3956 = vst [vmem:[#allocation4 + $0x220] sm:$0xff] %v3872
      %3957 = vst.msk [vmem:[#allocation4 + $0x228] sm:$0xff] %vm280, %v3874
      %3958 = vst [vmem:[#allocation4 + $0x230] sm:$0xff] %v3876
      %3959 = vst.msk [vmem:[#allocation4 + $0x238] sm:$0xff] %vm280, %v3878
      %3960 = vst [vmem:[#allocation4 + $0x240] sm:$0x3] %v3882
      %3961 = vst.msk [vmem:[#allocation4 + $0x248] sm:$0x3] %vm1950, %v3884
      %v3962 = vld [vmem:[#allocation4] sm:$0xff]
      %v3963 = vld [vmem:[#allocation4 + $0x10] sm:$0xff]
      %v3964 = vld [vmem:[#allocation4 + $0x20] sm:$0xff]
      %v3965 = vld [vmem:[#allocation4 + $0x30] sm:$0xff]
      %v3966 = vld [vmem:[#allocation4 + $0x40] sm:$0xff]
      %v3967 = vld [vmem:[#allocation4 + $0x50] sm:$0xff]
      %v3968 = vld [vmem:[#allocation4 + $0x60] sm:$0xff]
      %v3969 = vld [vmem:[#allocation4 + $0x70] sm:$0xff]
      %v3970 = vld [vmem:[#allocation4 + $0x80] sm:$0xff]
      %v3971 = vld [vmem:[#allocation4 + $0x90] sm:$0xff]
      %v3972 = vld [vmem:[#allocation4 + $0xa0] sm:$0xff]
      %v3973 = vld [vmem:[#allocation4 + $0xb0] sm:$0xff]
      %v3974 = vld [vmem:[#allocation4 + $0xc0] sm:$0xff]
      %v3975 = vld [vmem:[#allocation4 + $0xd0] sm:$0xff]
      %v3976 = vld [vmem:[#allocation4 + $0xe0] sm:$0xff]
      %v3977 = vld [vmem:[#allocation4 + $0xf0] sm:$0xff]
      %v3978 = vld [vmem:[#allocation4 + $0x100] sm:$0xff]
      %v3979 = vld [vmem:[#allocation4 + $0x110] sm:$0xff]
      %v3980 = vld [vmem:[#allocation4 + $0x120] sm:$0xff]
      %v3981 = vld [vmem:[#allocation4 + $0x130] sm:$0xff]
      %v3982 = vld [vmem:[#allocation4 + $0x140] sm:$0xff]
      %v3983 = vld [vmem:[#allocation4 + $0x150] sm:$0xff]
      %v3984 = vld [vmem:[#allocation4 + $0x160] sm:$0xff]
      %v3985 = vld [vmem:[#allocation4 + $0x170] sm:$0xff]
      %v3986 = vld [vmem:[#allocation4 + $0x180] sm:$0xff]
      %v3987 = vld [vmem:[#allocation4 + $0x190] sm:$0xff]
      %v3988 = vld [vmem:[#allocation4 + $0x1a0] sm:$0xff]
      %v3989 = vld [vmem:[#allocation4 + $0x1b0] sm:$0xff]
      %v3990 = vld [vmem:[#allocation4 + $0x1c0] sm:$0xff]
      %v3991 = vld [vmem:[#allocation4 + $0x1d0] sm:$0xff]
      %v3992 = vld [vmem:[#allocation4 + $0x1e0] sm:$0xff]
      %v3993 = vld [vmem:[#allocation4 + $0x1f0] sm:$0xff]
      %v3994 = vld [vmem:[#allocation4 + $0x200] sm:$0xff]
      %v3995 = vld [vmem:[#allocation4 + $0x210] sm:$0xff]
      %v3996 = vld [vmem:[#allocation4 + $0x220] sm:$0xff]
      %v3997 = vld [vmem:[#allocation4 + $0x230] sm:$0xff]
      %v3998 = vadd.f32 %v3469, %v3962
      %v3999 = vadd.f32 %v3470, %v3963
      %v4000 = vadd.f32 %v3471, %v3964
      %v4001 = vadd.f32 %v3472, %v3965
      %v4002 = vadd.f32 %v3473, %v3966
      %v4003 = vadd.f32 %v3474, %v3967
      %v4004 = vadd.f32 %v3475, %v3968
      %v4005 = vadd.f32 %v3476, %v3969
      %v4006 = vadd.f32 %v3477, %v3970
      %v4007 = vadd.f32 %v3478, %v3971
      %v4008 = vadd.f32 %v3479, %v3972
      %v4009 = vadd.f32 %v3480, %v3973
      %v4010 = vadd.f32 %v3481, %v3974
      %v4011 = vadd.f32 %v3482, %v3975
      %v4012 = vadd.f32 %v3483, %v3976
      %v4013 = vadd.f32 %v3484, %v3977
      %v4014 = vadd.f32 %v3485, %v3978
      %v4015 = vadd.f32 %v3486, %v3979
      %v4016 = vadd.f32 %v3487, %v3980
      %v4017 = vadd.f32 %v3488, %v3981
      %v4018 = vadd.f32 %v3489, %v3982
      %v4019 = vadd.f32 %v3490, %v3983
      %v4020 = vadd.f32 %v3491, %v3984
      %v4021 = vadd.f32 %v3492, %v3985
      %v4022 = vadd.f32 %v3493, %v3986
      %v4023 = vadd.f32 %v3494, %v3987
      %v4024 = vadd.f32 %v3495, %v3988
      %v4025 = vadd.f32 %v3496, %v3989
      %v4026 = vadd.f32 %v3497, %v3990
      %v4027 = vadd.f32 %v3498, %v3991
      %v4028 = vadd.f32 %v3499, %v3992
      %v4029 = vadd.f32 %v3500, %v3993
      %v4030 = vadd.f32 %v3501, %v3994
      %v4031 = vadd.f32 %v3502, %v3995
      %v4032 = vadd.f32 %v3503, %v3996
      %v4033 = vadd.f32 %v3504, %v3997
      %v4034 = vld [vmem:[#allocation4] sm:$0xfe]
      %v4035 = vld [vmem:[#allocation4 + $0x240] sm:$0x1]
      %v4073 = vrot.slane %v4034, 1
      %v4074 = vrot.slane %v3963, 1
      %v4075 = vsel %vm2063, %v4073, %v4074
      %v4076 = vrot.slane %v3964, 1
      %v4077 = vsel %vm2063, %v4074, %v4076
      %v4078 = vrot.slane %v3965, 1
      %v4079 = vsel %vm2063, %v4076, %v4078
      %v4080 = vrot.slane %v3966, 1
      %v4081 = vsel %vm2063, %v4078, %v4080
      %v4082 = vrot.slane %v3967, 1
      %v4083 = vsel %vm2063, %v4080, %v4082
      %v4084 = vrot.slane %v3968, 1
      %v4085 = vsel %vm2063, %v4082, %v4084
      %v4086 = vrot.slane %v3969, 1
      %v4087 = vsel %vm2063, %v4084, %v4086
      %v4088 = vrot.slane %v3970, 1
      %v4089 = vsel %vm2063, %v4086, %v4088
      %v4090 = vrot.slane %v3971, 1
      %v4091 = vsel %vm2063, %v4088, %v4090
      %v4092 = vrot.slane %v3972, 1
      %v4093 = vsel %vm2063, %v4090, %v4092
      %v4094 = vrot.slane %v3973, 1
      %v4095 = vsel %vm2063, %v4092, %v4094
      %v4096 = vrot.slane %v3974, 1
      %v4097 = vsel %vm2063, %v4094, %v4096
      %v4098 = vrot.slane %v3975, 1
      %v4099 = vsel %vm2063, %v4096, %v4098
      %v4100 = vrot.slane %v3976, 1
      %v4101 = vsel %vm2063, %v4098, %v4100
      %v4102 = vrot.slane %v3977, 1
      %v4103 = vsel %vm2063, %v4100, %v4102
      %v4104 = vrot.slane %v3978, 1
      %v4105 = vsel %vm2063, %v4102, %v4104
      %v4106 = vrot.slane %v3979, 1
      %v4107 = vsel %vm2063, %v4104, %v4106
      %v4108 = vrot.slane %v3980, 1
      %v4109 = vsel %vm2063, %v4106, %v4108
      %v4110 = vrot.slane %v3981, 1
      %v4111 = vsel %vm2063, %v4108, %v4110
      %v4112 = vrot.slane %v3982, 1
      %v4113 = vsel %vm2063, %v4110, %v4112
      %v4114 = vrot.slane %v3983, 1
      %v4115 = vsel %vm2063, %v4112, %v4114
      %v4116 = vrot.slane %v3984, 1
      %v4117 = vsel %vm2063, %v4114, %v4116
      %v4118 = vrot.slane %v3985, 1
      %v4119 = vsel %vm2063, %v4116, %v4118
      %v4120 = vrot.slane %v3986, 1
      %v4121 = vsel %vm2063, %v4118, %v4120
      %v4122 = vrot.slane %v3987, 1
      %v4123 = vsel %vm2063, %v4120, %v4122
      %v4124 = vrot.slane %v3988, 1
      %v4125 = vsel %vm2063, %v4122, %v4124
      %v4126 = vrot.slane %v3989, 1
      %v4127 = vsel %vm2063, %v4124, %v4126
      %v4128 = vrot.slane %v3990, 1
      %v4129 = vsel %vm2063, %v4126, %v4128
      %v4130 = vrot.slane %v3991, 1
      %v4131 = vsel %vm2063, %v4128, %v4130
      %v4132 = vrot.slane %v3992, 1
      %v4133 = vsel %vm2063, %v4130, %v4132
      %v4134 = vrot.slane %v3993, 1
      %v4135 = vsel %vm2063, %v4132, %v4134
      %v4136 = vrot.slane %v3994, 1
      %v4137 = vsel %vm2063, %v4134, %v4136
      %v4138 = vrot.slane %v3995, 1
      %v4139 = vsel %vm2063, %v4136, %v4138
      %v4140 = vrot.slane %v3996, 1
      %v4141 = vsel %vm2063, %v4138, %v4140
      %v4142 = vrot.slane %v3997, 1
      %v4143 = vsel %vm2063, %v4140, %v4142
      %v4144 = vrot.slane %v4035, 1
      %v4145 = vsel %vm2063, %v4142, %v4144
      %4146 = vrot.lane.b32.xlu0 %v4075, 64
      %v4147 = vpop.permute.xlu0 %4146
      %4148 = vrot.lane.b32.xlu0 %v4077, 64
      %v4149 = vpop.permute.xlu0 %4148
      %4150 = vrot.lane.b32.xlu0 %v4079, 64
      %v4151 = vpop.permute.xlu0 %4150
      %4152 = vrot.lane.b32.xlu0 %v4081, 64
      %v4153 = vpop.permute.xlu0 %4152
      %4154 = vrot.lane.b32.xlu0 %v4083, 64
      %v4155 = vpop.permute.xlu0 %4154
      %4156 = vrot.lane.b32.xlu0 %v4085, 64
      %v4157 = vpop.permute.xlu0 %4156
      %4158 = vrot.lane.b32.xlu0 %v4087, 64
      %v4159 = vpop.permute.xlu0 %4158
      %4160 = vrot.lane.b32.xlu0 %v4089, 64
      %v4161 = vpop.permute.xlu0 %4160
      %4162 = vrot.lane.b32.xlu0 %v4091, 64
      %v4163 = vpop.permute.xlu0 %4162
      %4164 = vrot.lane.b32.xlu0 %v4093, 64
      %v4165 = vpop.permute.xlu0 %4164
      %4166 = vrot.lane.b32.xlu0 %v4095, 64
      %v4167 = vpop.permute.xlu0 %4166
      %4168 = vrot.lane.b32.xlu0 %v4097, 64
      %v4169 = vpop.permute.xlu0 %4168
      %4170 = vrot.lane.b32.xlu0 %v4099, 64
      %v4171 = vpop.permute.xlu0 %4170
      %4172 = vrot.lane.b32.xlu0 %v4101, 64
      %v4173 = vpop.permute.xlu0 %4172
      %4174 = vrot.lane.b32.xlu0 %v4103, 64
      %v4175 = vpop.permute.xlu0 %4174
      %4176 = vrot.lane.b32.xlu0 %v4105, 64
      %v4177 = vpop.permute.xlu0 %4176
      %4178 = vrot.lane.b32.xlu0 %v4107, 64
      %v4179 = vpop.permute.xlu0 %4178
      %4180 = vrot.lane.b32.xlu0 %v4109, 64
      %v4181 = vpop.permute.xlu0 %4180
      %4182 = vrot.lane.b32.xlu0 %v4111, 64
      %v4183 = vpop.permute.xlu0 %4182
      %4184 = vrot.lane.b32.xlu0 %v4113, 64
      %v4185 = vpop.permute.xlu0 %4184
      %4186 = vrot.lane.b32.xlu0 %v4115, 64
      %v4187 = vpop.permute.xlu0 %4186
      %4188 = vrot.lane.b32.xlu0 %v4117, 64
      %v4189 = vpop.permute.xlu0 %4188
      %4190 = vrot.lane.b32.xlu0 %v4119, 64
      %v4191 = vpop.permute.xlu0 %4190
      %4192 = vrot.lane.b32.xlu0 %v4121, 64
      %v4193 = vpop.permute.xlu0 %4192
      %4194 = vrot.lane.b32.xlu0 %v4123, 64
      %v4195 = vpop.permute.xlu0 %4194
      %4196 = vrot.lane.b32.xlu0 %v4125, 64
      %v4197 = vpop.permute.xlu0 %4196
      %4198 = vrot.lane.b32.xlu0 %v4127, 64
      %v4199 = vpop.permute.xlu0 %4198
      %4200 = vrot.lane.b32.xlu0 %v4129, 64
      %v4201 = vpop.permute.xlu0 %4200
      %4202 = vrot.lane.b32.xlu0 %v4131, 64
      %v4203 = vpop.permute.xlu0 %4202
      %4204 = vrot.lane.b32.xlu0 %v4133, 64
      %v4205 = vpop.permute.xlu0 %4204
      %4206 = vrot.lane.b32.xlu0 %v4135, 64
      %v4207 = vpop.permute.xlu0 %4206
      %4208 = vrot.lane.b32.xlu0 %v4137, 64
      %v4209 = vpop.permute.xlu0 %4208
      %4210 = vrot.lane.b32.xlu0 %v4139, 64
      %v4211 = vpop.permute.xlu0 %4210
      %4212 = vrot.lane.b32.xlu0 %v4141, 64
      %v4213 = vpop.permute.xlu0 %4212
      %4214 = vrot.lane.b32.xlu0 %v4143, 64
      %v4215 = vpop.permute.xlu0 %4214
      %4216 = vrot.lane.b32.xlu0 %v4145, 64
      %v4217 = vpop.permute.xlu0 %4216
      %v4254 = vadd.f32 %v3998, %v4147
      %v4255 = vadd.f32 %v3999, %v4149
      %v4256 = vadd.f32 %v4000, %v4151
      %v4257 = vadd.f32 %v4001, %v4153
      %v4258 = vadd.f32 %v4002, %v4155
      %v4259 = vadd.f32 %v4003, %v4157
      %v4260 = vadd.f32 %v4004, %v4159
      %v4261 = vadd.f32 %v4005, %v4161
      %v4262 = vadd.f32 %v4006, %v4163
      %v4263 = vadd.f32 %v4007, %v4165
      %v4264 = vadd.f32 %v4008, %v4167
      %v4265 = vadd.f32 %v4009, %v4169
      %v4266 = vadd.f32 %v4010, %v4171
      %v4267 = vadd.f32 %v4011, %v4173
      %v4268 = vadd.f32 %v4012, %v4175
      %v4269 = vadd.f32 %v4013, %v4177
      %v4270 = vadd.f32 %v4014, %v4179
      %v4271 = vadd.f32 %v4015, %v4181
      %v4272 = vadd.f32 %v4016, %v4183
      %v4273 = vadd.f32 %v4017, %v4185
      %v4274 = vadd.f32 %v4018, %v4187
      %v4275 = vadd.f32 %v4019, %v4189
      %v4276 = vadd.f32 %v4020, %v4191
      %v4277 = vadd.f32 %v4021, %v4193
      %v4278 = vadd.f32 %v4022, %v4195
      %v4279 = vadd.f32 %v4023, %v4197
      %v4280 = vadd.f32 %v4024, %v4199
      %v4281 = vadd.f32 %v4025, %v4201
      %v4282 = vadd.f32 %v4026, %v4203
      %v4283 = vadd.f32 %v4027, %v4205
      %v4284 = vadd.f32 %v4028, %v4207
      %v4285 = vadd.f32 %v4029, %v4209
      %v4286 = vadd.f32 %v4030, %v4211
      %v4287 = vadd.f32 %v4031, %v4213
      %v4288 = vadd.f32 %v4032, %v4215
      %v4289 = vadd.f32 %v4033, %v4217
      %v4290 = vld [vmem:[#allocation4 + $0x8] sm:$0xfc]
      %v4291 = vld [vmem:[#allocation4 + $0x18] sm:$0xff]
      %v4292 = vld [vmem:[#allocation4 + $0x28] sm:$0xff]
      %v4293 = vld [vmem:[#allocation4 + $0x38] sm:$0xff]
      %v4294 = vld [vmem:[#allocation4 + $0x48] sm:$0xff]
      %v4295 = vld [vmem:[#allocation4 + $0x58] sm:$0xff]
      %v4296 = vld [vmem:[#allocation4 + $0x68] sm:$0xff]
      %v4297 = vld [vmem:[#allocation4 + $0x78] sm:$0xff]
      %v4298 = vld [vmem:[#allocation4 + $0x88] sm:$0xff]
      %v4299 = vld [vmem:[#allocation4 + $0x98] sm:$0xff]
      %v4300 = vld [vmem:[#allocation4 + $0xa8] sm:$0xff]
      %v4301 = vld [vmem:[#allocation4 + $0xb8] sm:$0xff]
      %v4302 = vld [vmem:[#allocation4 + $0xc8] sm:$0xff]
      %v4303 = vld [vmem:[#allocation4 + $0xd8] sm:$0xff]
      %v4304 = vld [vmem:[#allocation4 + $0xe8] sm:$0xff]
      %v4305 = vld [vmem:[#allocation4 + $0xf8] sm:$0xff]
      %v4306 = vld [vmem:[#allocation4 + $0x108] sm:$0xff]
      %v4307 = vld [vmem:[#allocation4 + $0x118] sm:$0xff]
      %v4308 = vld [vmem:[#allocation4 + $0x128] sm:$0xff]
      %v4309 = vld [vmem:[#allocation4 + $0x138] sm:$0xff]
      %v4310 = vld [vmem:[#allocation4 + $0x148] sm:$0xff]
      %v4311 = vld [vmem:[#allocation4 + $0x158] sm:$0xff]
      %v4312 = vld [vmem:[#allocation4 + $0x168] sm:$0xff]
      %v4313 = vld [vmem:[#allocation4 + $0x178] sm:$0xff]
      %v4314 = vld [vmem:[#allocation4 + $0x188] sm:$0xff]
      %v4315 = vld [vmem:[#allocation4 + $0x198] sm:$0xff]
      %v4316 = vld [vmem:[#allocation4 + $0x1a8] sm:$0xff]
      %v4317 = vld [vmem:[#allocation4 + $0x1b8] sm:$0xff]
      %v4318 = vld [vmem:[#allocation4 + $0x1c8] sm:$0xff]
      %v4319 = vld [vmem:[#allocation4 + $0x1d8] sm:$0xff]
      %v4320 = vld [vmem:[#allocation4 + $0x1e8] sm:$0xff]
      %v4321 = vld [vmem:[#allocation4 + $0x1f8] sm:$0xff]
      %v4322 = vld [vmem:[#allocation4 + $0x208] sm:$0xff]
      %v4323 = vld [vmem:[#allocation4 + $0x218] sm:$0xff]
      %v4324 = vld [vmem:[#allocation4 + $0x228] sm:$0xff]
      %v4325 = vld [vmem:[#allocation4 + $0x238] sm:$0xff]
      %v4326 = vld [vmem:[#allocation4 + $0x248] sm:$0x3]
      %v4364 = vrot.slane %v4290, 2
      %v4365 = vrot.slane %v4291, 2
      %v4366 = vsel %vm2355, %v4364, %v4365
      %v4367 = vrot.slane %v4292, 2
      %v4368 = vsel %vm2355, %v4365, %v4367
      %v4369 = vrot.slane %v4293, 2
      %v4370 = vsel %vm2355, %v4367, %v4369
      %v4371 = vrot.slane %v4294, 2
      %v4372 = vsel %vm2355, %v4369, %v4371
      %v4373 = vrot.slane %v4295, 2
      %v4374 = vsel %vm2355, %v4371, %v4373
      %v4375 = vrot.slane %v4296, 2
      %v4376 = vsel %vm2355, %v4373, %v4375
      %v4377 = vrot.slane %v4297, 2
      %v4378 = vsel %vm2355, %v4375, %v4377
      %v4379 = vrot.slane %v4298, 2
      %v4380 = vsel %vm2355, %v4377, %v4379
      %v4381 = vrot.slane %v4299, 2
      %v4382 = vsel %vm2355, %v4379, %v4381
      %v4383 = vrot.slane %v4300, 2
      %v4384 = vsel %vm2355, %v4381, %v4383
      %v4385 = vrot.slane %v4301, 2
      %v4386 = vsel %vm2355, %v4383, %v4385
      %v4387 = vrot.slane %v4302, 2
      %v4388 = vsel %vm2355, %v4385, %v4387
      %v4389 = vrot.slane %v4303, 2
      %v4390 = vsel %vm2355, %v4387, %v4389
      %v4391 = vrot.slane %v4304, 2
      %v4392 = vsel %vm2355, %v4389, %v4391
      %v4393 = vrot.slane %v4305, 2
      %v4394 = vsel %vm2355, %v4391, %v4393
      %v4395 = vrot.slane %v4306, 2
      %v4396 = vsel %vm2355, %v4393, %v4395
      %v4397 = vrot.slane %v4307, 2
      %v4398 = vsel %vm2355, %v4395, %v4397
      %v4399 = vrot.slane %v4308, 2
      %v4400 = vsel %vm2355, %v4397, %v4399
      %v4401 = vrot.slane %v4309, 2
      %v4402 = vsel %vm2355, %v4399, %v4401
      %v4403 = vrot.slane %v4310, 2
      %v4404 = vsel %vm2355, %v4401, %v4403
      %v4405 = vrot.slane %v4311, 2
      %v4406 = vsel %vm2355, %v4403, %v4405
      %v4407 = vrot.slane %v4312, 2
      %v4408 = vsel %vm2355, %v4405, %v4407
      %v4409 = vrot.slane %v4313, 2
      %v4410 = vsel %vm2355, %v4407, %v4409
      %v4411 = vrot.slane %v4314, 2
      %v4412 = vsel %vm2355, %v4409, %v4411
      %v4413 = vrot.slane %v4315, 2
      %v4414 = vsel %vm2355, %v4411, %v4413
      %v4415 = vrot.slane %v4316, 2
      %v4416 = vsel %vm2355, %v4413, %v4415
      %v4417 = vrot.slane %v4317, 2
      %v4418 = vsel %vm2355, %v4415, %v4417
      %v4419 = vrot.slane %v4318, 2
      %v4420 = vsel %vm2355, %v4417, %v4419
      %v4421 = vrot.slane %v4319, 2
      %v4422 = vsel %vm2355, %v4419, %v4421
      %v4423 = vrot.slane %v4320, 2
      %v4424 = vsel %vm2355, %v4421, %v4423
      %v4425 = vrot.slane %v4321, 2
      %v4426 = vsel %vm2355, %v4423, %v4425
      %v4427 = vrot.slane %v4322, 2
      %v4428 = vsel %vm2355, %v4425, %v4427
      %v4429 = vrot.slane %v4323, 2
      %v4430 = vsel %vm2355, %v4427, %v4429
      %v4431 = vrot.slane %v4324, 2
      %v4432 = vsel %vm2355, %v4429, %v4431
      %v4433 = vrot.slane %v4325, 2
      %v4434 = vsel %vm2355, %v4431, %v4433
      %v4435 = vrot.slane %v4326, 2
      %v4436 = vsel %vm2355, %v4433, %v4435
      %v4473 = vadd.f32 %v4254, %v4366
      %v4474 = vadd.f32 %v4255, %v4368
      %v4475 = vadd.f32 %v4256, %v4370
      %v4476 = vadd.f32 %v4257, %v4372
      %v4477 = vadd.f32 %v4258, %v4374
      %v4478 = vadd.f32 %v4259, %v4376
      %v4479 = vadd.f32 %v4260, %v4378
      %v4480 = vadd.f32 %v4261, %v4380
      %v4481 = vadd.f32 %v4262, %v4382
      %v4482 = vadd.f32 %v4263, %v4384
      %v4483 = vadd.f32 %v4264, %v4386
      %v4484 = vadd.f32 %v4265, %v4388
      %v4485 = vadd.f32 %v4266, %v4390
      %v4486 = vadd.f32 %v4267, %v4392
      %v4487 = vadd.f32 %v4268, %v4394
      %v4488 = vadd.f32 %v4269, %v4396
      %v4489 = vadd.f32 %v4270, %v4398
      %v4490 = vadd.f32 %v4271, %v4400
      %v4491 = vadd.f32 %v4272, %v4402
      %v4492 = vadd.f32 %v4273, %v4404
      %v4493 = vadd.f32 %v4274, %v4406
      %v4494 = vadd.f32 %v4275, %v4408
      %v4495 = vadd.f32 %v4276, %v4410
      %v4496 = vadd.f32 %v4277, %v4412
      %v4497 = vadd.f32 %v4278, %v4414
      %v4498 = vadd.f32 %v4279, %v4416
      %v4499 = vadd.f32 %v4280, %v4418
      %v4500 = vadd.f32 %v4281, %v4420
      %v4501 = vadd.f32 %v4282, %v4422
      %v4502 = vadd.f32 %v4283, %v4424
      %v4503 = vadd.f32 %v4284, %v4426
      %v4504 = vadd.f32 %v4285, %v4428
      %v4505 = vadd.f32 %v4286, %v4430
      %v4506 = vadd.f32 %v4287, %v4432
      %v4507 = vadd.f32 %v4288, %v4434
      %v4508 = vadd.f32 %v4289, %v4436
      %v4509 = vld [vmem:[%s5 + $0x2] sm:$0x1]
      %v4510 = vlaneseq
      %v4511 = vshrl.u32 %v4510, 7
      %v4512 = vsub.s32 0, %v4511
      %v4513 = vrot.slane %v4509, %v4512
      %v4514 = vadd.f32 %v4473, %v4513
      %v4515 = vadd.f32 %v4474, %v4513
      %v4516 = vadd.f32 %v4475, %v4513
      %v4517 = vadd.f32 %v4476, %v4513
      %v4518 = vadd.f32 %v4477, %v4513
      %v4519 = vadd.f32 %v4478, %v4513
      %v4520 = vadd.f32 %v4479, %v4513
      %v4521 = vadd.f32 %v4480, %v4513
      %v4522 = vadd.f32 %v4481, %v4513
      %v4523 = vadd.f32 %v4482, %v4513
      %v4524 = vadd.f32 %v4483, %v4513
      %v4525 = vadd.f32 %v4484, %v4513
      %v4526 = vadd.f32 %v4485, %v4513
      %v4527 = vadd.f32 %v4486, %v4513
      %v4528 = vadd.f32 %v4487, %v4513
      %v4529 = vadd.f32 %v4488, %v4513
      %v4530 = vadd.f32 %v4489, %v4513
      %v4531 = vadd.f32 %v4490, %v4513
      %v4532 = vadd.f32 %v4491, %v4513
      %v4533 = vadd.f32 %v4492, %v4513
      %v4534 = vadd.f32 %v4493, %v4513
      %v4535 = vadd.f32 %v4494, %v4513
      %v4536 = vadd.f32 %v4495, %v4513
      %v4537 = vadd.f32 %v4496, %v4513
      %v4538 = vadd.f32 %v4497, %v4513
      %v4539 = vadd.f32 %v4498, %v4513
      %v4540 = vadd.f32 %v4499, %v4513
      %v4541 = vadd.f32 %v4500, %v4513
      %v4542 = vadd.f32 %v4501, %v4513
      %v4543 = vadd.f32 %v4502, %v4513
      %v4544 = vadd.f32 %v4503, %v4513
      %v4545 = vadd.f32 %v4504, %v4513
      %v4546 = vadd.f32 %v4505, %v4513
      %v4547 = vadd.f32 %v4506, %v4513
      %v4548 = vadd.f32 %v4507, %v4513
      %v4549 = vadd.f32 %v4508, %v4513
      %v4550 = vmax.f32 %v4514, 0.0
      %v4551 = vmax.f32 %v4515, 0.0
      %v4552 = vmax.f32 %v4516, 0.0
      %v4553 = vmax.f32 %v4517, 0.0
      %v4554 = vmax.f32 %v4518, 0.0
      %v4555 = vmax.f32 %v4519, 0.0
      %v4556 = vmax.f32 %v4520, 0.0
      %v4557 = vmax.f32 %v4521, 0.0
      %v4558 = vmax.f32 %v4522, 0.0
      %v4559 = vmax.f32 %v4523, 0.0
      %v4560 = vmax.f32 %v4524, 0.0
      %v4561 = vmax.f32 %v4525, 0.0
      %v4562 = vmax.f32 %v4526, 0.0
      %v4563 = vmax.f32 %v4527, 0.0
      %v4564 = vmax.f32 %v4528, 0.0
      %v4565 = vmax.f32 %v4529, 0.0
      %v4566 = vmax.f32 %v4530, 0.0
      %v4567 = vmax.f32 %v4531, 0.0
      %v4568 = vmax.f32 %v4532, 0.0
      %v4569 = vmax.f32 %v4533, 0.0
      %v4570 = vmax.f32 %v4534, 0.0
      %v4571 = vmax.f32 %v4535, 0.0
      %v4572 = vmax.f32 %v4536, 0.0
      %v4573 = vmax.f32 %v4537, 0.0
      %v4574 = vmax.f32 %v4538, 0.0
      %v4575 = vmax.f32 %v4539, 0.0
      %v4576 = vmax.f32 %v4540, 0.0
      %v4577 = vmax.f32 %v4541, 0.0
      %v4578 = vmax.f32 %v4542, 0.0
      %v4579 = vmax.f32 %v4543, 0.0
      %v4580 = vmax.f32 %v4544, 0.0
      %v4581 = vmax.f32 %v4545, 0.0
      %v4582 = vmax.f32 %v4546, 0.0
      %v4583 = vmax.f32 %v4547, 0.0
      %v4584 = vmax.f32 %v4548, 0.0
      %v4585 = vmax.f32 %v4549, 0.0
      %v4586 = vmul.f32 %v4550, %v1066
      %v4587 = vmul.f32 %v4551, %v1071
      %v4588 = vmul.f32 %v4552, %v1076
      %v4589 = vmul.f32 %v4553, %v1081
      %v4590 = vmul.f32 %v4554, %v1086
      %v4591 = vmul.f32 %v4555, %v1091
      %v4592 = vmul.f32 %v4556, %v1096
      %v4593 = vmul.f32 %v4557, %v1101
      %v4594 = vmul.f32 %v4558, %v1106
      %v4595 = vmul.f32 %v4559, %v1111
      %v4596 = vmul.f32 %v4560, %v1116
      %v4597 = vmul.f32 %v4561, %v1121
      %v4598 = vmul.f32 %v4562, %v1126
      %v4599 = vmul.f32 %v4563, %v1131
      %v4600 = vmul.f32 %v4564, %v1136
      %v4601 = vmul.f32 %v4565, %v1141
      %v4602 = vmul.f32 %v4566, %v1146
      %v4603 = vmul.f32 %v4567, %v1151
      %v4604 = vmul.f32 %v4568, %v1156
      %v4605 = vmul.f32 %v4569, %v1161
      %v4606 = vmul.f32 %v4570, %v1166
      %v4607 = vmul.f32 %v4571, %v1171
      %v4608 = vmul.f32 %v4572, %v1176
      %v4609 = vmul.f32 %v4573, %v1181
      %v4610 = vmul.f32 %v4574, %v1186
      %v4611 = vmul.f32 %v4575, %v1191
      %v4612 = vmul.f32 %v4576, %v1196
      %v4613 = vmul.f32 %v4577, %v1201
      %v4614 = vmul.f32 %v4578, %v1206
      %v4615 = vmul.f32 %v4579, %v1211
      %v4616 = vmul.f32 %v4580, %v1216
      %v4617 = vmul.f32 %v4581, %v1221
      %v4618 = vmul.f32 %v4582, %v1226
      %v4619 = vmul.f32 %v4583, %v1231
      %v4620 = vmul.f32 %v4584, %v1236
      %v4621 = vmul.f32 %v4585, %v1241
      %4658 = vrot.lane.b32.xlu0 %v4586, 64
      %v4659 = vpop.permute.xlu0 %4658
      %4660 = vrot.lane.b32.xlu0 %v4587, 64
      %v4661 = vpop.permute.xlu0 %4660
      %4662 = vrot.lane.b32.xlu0 %v4588, 64
      %v4663 = vpop.permute.xlu0 %4662
      %4664 = vrot.lane.b32.xlu0 %v4589, 64
      %v4665 = vpop.permute.xlu0 %4664
      %4666 = vrot.lane.b32.xlu0 %v4590, 64
      %v4667 = vpop.permute.xlu0 %4666
      %4668 = vrot.lane.b32.xlu0 %v4591, 64
      %v4669 = vpop.permute.xlu0 %4668
      %4670 = vrot.lane.b32.xlu0 %v4592, 64
      %v4671 = vpop.permute.xlu0 %4670
      %4672 = vrot.lane.b32.xlu0 %v4593, 64
      %v4673 = vpop.permute.xlu0 %4672
      %4674 = vrot.lane.b32.xlu0 %v4594, 64
      %v4675 = vpop.permute.xlu0 %4674
      %4676 = vrot.lane.b32.xlu0 %v4595, 64
      %v4677 = vpop.permute.xlu0 %4676
      %4678 = vrot.lane.b32.xlu0 %v4596, 64
      %v4679 = vpop.permute.xlu0 %4678
      %4680 = vrot.lane.b32.xlu0 %v4597, 64
      %v4681 = vpop.permute.xlu0 %4680
      %4682 = vrot.lane.b32.xlu0 %v4598, 64
      %v4683 = vpop.permute.xlu0 %4682
      %4684 = vrot.lane.b32.xlu0 %v4599, 64
      %v4685 = vpop.permute.xlu0 %4684
      %4686 = vrot.lane.b32.xlu0 %v4600, 64
      %v4687 = vpop.permute.xlu0 %4686
      %4688 = vrot.lane.b32.xlu0 %v4601, 64
      %v4689 = vpop.permute.xlu0 %4688
      %4690 = vrot.lane.b32.xlu0 %v4602, 64
      %v4691 = vpop.permute.xlu0 %4690
      %4692 = vrot.lane.b32.xlu0 %v4603, 64
      %v4693 = vpop.permute.xlu0 %4692
      %4694 = vrot.lane.b32.xlu0 %v4604, 64
      %v4695 = vpop.permute.xlu0 %4694
      %4696 = vrot.lane.b32.xlu0 %v4605, 64
      %v4697 = vpop.permute.xlu0 %4696
      %4698 = vrot.lane.b32.xlu0 %v4606, 64
      %v4699 = vpop.permute.xlu0 %4698
      %4700 = vrot.lane.b32.xlu0 %v4607, 64
      %v4701 = vpop.permute.xlu0 %4700
      %4702 = vrot.lane.b32.xlu0 %v4608, 64
      %v4703 = vpop.permute.xlu0 %4702
      %4704 = vrot.lane.b32.xlu0 %v4609, 64
      %v4705 = vpop.permute.xlu0 %4704
      %4706 = vrot.lane.b32.xlu0 %v4610, 64
      %v4707 = vpop.permute.xlu0 %4706
      %4708 = vrot.lane.b32.xlu0 %v4611, 64
      %v4709 = vpop.permute.xlu0 %4708
      %4710 = vrot.lane.b32.xlu0 %v4612, 64
      %v4711 = vpop.permute.xlu0 %4710
      %4712 = vrot.lane.b32.xlu0 %v4613, 64
      %v4713 = vpop.permute.xlu0 %4712
      %4714 = vrot.lane.b32.xlu0 %v4614, 64
      %v4715 = vpop.permute.xlu0 %4714
      %4716 = vrot.lane.b32.xlu0 %v4615, 64
      %v4717 = vpop.permute.xlu0 %4716
      %4718 = vrot.lane.b32.xlu0 %v4616, 64
      %v4719 = vpop.permute.xlu0 %4718
      %4720 = vrot.lane.b32.xlu0 %v4617, 64
      %v4721 = vpop.permute.xlu0 %4720
      %4722 = vrot.lane.b32.xlu0 %v4618, 64
      %v4723 = vpop.permute.xlu0 %4722
      %4724 = vrot.lane.b32.xlu0 %v4619, 64
      %v4725 = vpop.permute.xlu0 %4724
      %4726 = vrot.lane.b32.xlu0 %v4620, 64
      %v4727 = vpop.permute.xlu0 %4726
      %4728 = vrot.lane.b32.xlu0 %v4621, 64
      %v4729 = vpop.permute.xlu0 %4728
      %vm4766 = vcmask 1048064
      %4767 = vst.msk [vmem:[#allocation3 + $0x13] sm:$0xff] %vm4766, %v4659
      %4768 = vst.msk [vmem:[#allocation3 + $0x1b] sm:$0xff] %vm4766, %v4661
      %4769 = vst.msk [vmem:[#allocation3 + $0x23] sm:$0xff] %vm4766, %v4663
      %4770 = vst.msk [vmem:[#allocation3 + $0x2b] sm:$0xff] %vm4766, %v4665
      %4771 = vst.msk [vmem:[#allocation3 + $0x33] sm:$0xff] %vm4766, %v4667
      %4772 = vst.msk [vmem:[#allocation3 + $0x3b] sm:$0xff] %vm4766, %v4669
      %4773 = vst.msk [vmem:[#allocation3 + $0x43] sm:$0xff] %vm4766, %v4671
      %4774 = vst.msk [vmem:[#allocation3 + $0x4b] sm:$0xff] %vm4766, %v4673
      %4775 = vst.msk [vmem:[#allocation3 + $0x53] sm:$0xff] %vm4766, %v4675
      %4776 = vst.msk [vmem:[#allocation3 + $0x5b] sm:$0xff] %vm4766, %v4677
      %4777 = vst.msk [vmem:[#allocation3 + $0x63] sm:$0xff] %vm4766, %v4679
      %4778 = vst.msk [vmem:[#allocation3 + $0x6b] sm:$0xff] %vm4766, %v4681
      %4779 = vst.msk [vmem:[#allocation3 + $0x73] sm:$0xff] %vm4766, %v4683
      %4780 = vst.msk [vmem:[#allocation3 + $0x7b] sm:$0xff] %vm4766, %v4685
      %4781 = vst.msk [vmem:[#allocation3 + $0x83] sm:$0xff] %vm4766, %v4687
      %4782 = vst.msk [vmem:[#allocation3 + $0x8b] sm:$0xff] %vm4766, %v4689
      %4783 = vst.msk [vmem:[#allocation3 + $0x93] sm:$0xff] %vm4766, %v4691
      %4784 = vst.msk [vmem:[#allocation3 + $0x9b] sm:$0xff] %vm4766, %v4693
      %4785 = vst.msk [vmem:[#allocation3 + $0xa3] sm:$0xff] %vm4766, %v4695
      %4786 = vst.msk [vmem:[#allocation3 + $0xab] sm:$0xff] %vm4766, %v4697
      %4787 = vst.msk [vmem:[#allocation3 + $0xb3] sm:$0xff] %vm4766, %v4699
      %4788 = vst.msk [vmem:[#allocation3 + $0xbb] sm:$0xff] %vm4766, %v4701
      %4789 = vst.msk [vmem:[#allocation3 + $0xc3] sm:$0xff] %vm4766, %v4703
      %4790 = vst.msk [vmem:[#allocation3 + $0xcb] sm:$0xff] %vm4766, %v4705
      %4791 = vst.msk [vmem:[#allocation3 + $0xd3] sm:$0xff] %vm4766, %v4707
      %4792 = vst.msk [vmem:[#allocation3 + $0xdb] sm:$0xff] %vm4766, %v4709
      %4793 = vst.msk [vmem:[#allocation3 + $0xe3] sm:$0xff] %vm4766, %v4711
      %4794 = vst.msk [vmem:[#allocation3 + $0xeb] sm:$0xff] %vm4766, %v4713
      %4795 = vst.msk [vmem:[#allocation3 + $0xf3] sm:$0xff] %vm4766, %v4715
      %4796 = vst.msk [vmem:[#allocation3 + $0xfb] sm:$0xff] %vm4766, %v4717
      %4797 = vst.msk [vmem:[#allocation3 + $0x103] sm:$0xff] %vm4766, %v4719
      %4798 = vst.msk [vmem:[#allocation3 + $0x10b] sm:$0xff] %vm4766, %v4721
      %4799 = vst.msk [vmem:[#allocation3 + $0x113] sm:$0xff] %vm4766, %v4723
      %4800 = vst.msk [vmem:[#allocation3 + $0x11b] sm:$0xff] %vm4766, %v4725
      %4801 = vst.msk [vmem:[#allocation3 + $0x123] sm:$0xff] %vm4766, %v4727
      %4802 = vst.msk [vmem:[#allocation3 + $0x12b] sm:$0xff] %vm4766, %v4729
      %v4803 = vld [vmem:[#allocation3] sm:$0xff]
      %v4804 = vld [vmem:[#allocation3 + $0x8] sm:$0xff]
      %v4805 = vld [vmem:[#allocation3 + $0x10] sm:$0xff]
      %v4806 = vld [vmem:[#allocation3 + $0x18] sm:$0xff]
      %v4807 = vld [vmem:[#allocation3 + $0x20] sm:$0xff]
      %v4808 = vld [vmem:[#allocation3 + $0x28] sm:$0xff]
      %v4809 = vld [vmem:[#allocation3 + $0x30] sm:$0xff]
      %v4810 = vld [vmem:[#allocation3 + $0x38] sm:$0xff]
      %v4811 = vld [vmem:[#allocation3 + $0x40] sm:$0xff]
      %v4812 = vld [vmem:[#allocation3 + $0x48] sm:$0xff]
      %v4813 = vld [vmem:[#allocation3 + $0x50] sm:$0xff]
      %v4814 = vld [vmem:[#allocation3 + $0x58] sm:$0xff]
      %v4815 = vld [vmem:[#allocation3 + $0x60] sm:$0xff]
      %v4816 = vld [vmem:[#allocation3 + $0x68] sm:$0xff]
      %v4817 = vld [vmem:[#allocation3 + $0x70] sm:$0xff]
      %v4818 = vld [vmem:[#allocation3 + $0x78] sm:$0xff]
      %v4819 = vld [vmem:[#allocation3 + $0x80] sm:$0xff]
      %v4820 = vld [vmem:[#allocation3 + $0x88] sm:$0xff]
      %v4821 = vld [vmem:[#allocation3 + $0x90] sm:$0xff]
      %v4822 = vld [vmem:[#allocation3 + $0x98] sm:$0xff]
      %v4823 = vld [vmem:[#allocation3 + $0xa0] sm:$0xff]
      %v4824 = vld [vmem:[#allocation3 + $0xa8] sm:$0xff]
      %v4825 = vld [vmem:[#allocation3 + $0xb0] sm:$0xff]
      %v4826 = vld [vmem:[#allocation3 + $0xb8] sm:$0xff]
      %v4827 = vld [vmem:[#allocation3 + $0xc0] sm:$0xff]
      %v4828 = vld [vmem:[#allocation3 + $0xc8] sm:$0xff]
      %v4829 = vld [vmem:[#allocation3 + $0xd0] sm:$0xff]
      %v4830 = vld [vmem:[#allocation3 + $0xd8] sm:$0xff]
      %v4831 = vld [vmem:[#allocation3 + $0xe0] sm:$0xff]
      %v4832 = vld [vmem:[#allocation3 + $0xe8] sm:$0xff]
      %v4833 = vld [vmem:[#allocation3 + $0xf0] sm:$0xff]
      %v4834 = vld [vmem:[#allocation3 + $0xf8] sm:$0xff]
      %v4835 = vld [vmem:[#allocation3 + $0x100] sm:$0xff]
      %v4836 = vld [vmem:[#allocation3 + $0x108] sm:$0xff]
      %v4837 = vld [vmem:[#allocation3 + $0x110] sm:$0xff]
      %v4838 = vld [vmem:[#allocation3 + $0x118] sm:$0xff]
      %v4839 = vld [vmem:[#allocation3 + $0x120] sm:$0xff]
      %v4840 = vld [vmem:[#allocation3 + $0x128] sm:$0xff]
      %v4841 = vld [vmem:[#allocation3 + $0x130] sm:$0xff]
      %v4842 = vld [vmem:[#allocation3 + $0x138] sm:$0xff]
      %v4843 = vld [vmem:[#allocation3 + $0x140] sm:$0xff]
      %v4844 = vld [vmem:[#allocation3 + $0x148] sm:$0xf]
      %v4845 = vpack.c.bf16 %v4804, %v4803
      %v4846 = vpack.c.bf16 %v4806, %v4805
      %v4847 = vpack.c.bf16 %v4808, %v4807
      %v4848 = vpack.c.bf16 %v4810, %v4809
      %v4849 = vpack.c.bf16 %v4812, %v4811
      %v4850 = vpack.c.bf16 %v4814, %v4813
      %v4851 = vpack.c.bf16 %v4816, %v4815
      %v4852 = vpack.c.bf16 %v4818, %v4817
      %v4853 = vpack.c.bf16 %v4820, %v4819
      %v4854 = vpack.c.bf16 %v4822, %v4821
      %v4855 = vpack.c.bf16 %v4824, %v4823
      %v4856 = vpack.c.bf16 %v4826, %v4825
      %v4857 = vpack.c.bf16 %v4828, %v4827
      %v4858 = vpack.c.bf16 %v4830, %v4829
      %v4859 = vpack.c.bf16 %v4832, %v4831
      %v4860 = vpack.c.bf16 %v4834, %v4833
      %v4861 = vpack.c.bf16 %v4836, %v4835
      %v4862 = vpack.c.bf16 %v4838, %v4837
      %v4863 = vpack.c.bf16 %v4840, %v4839
      %v4864 = vpack.c.bf16 %v4842, %v4841
      %v4865 = vpack.c.bf16 %v4844, %v4843
      %v4866 = vld [vmem:[%s4] sm:$0xf]
      %v4867 = vld [vmem:[%s4 + $0x4] sm:$0xf]
      %v4868 = vld [vmem:[%s4 + $0x8] sm:$0xf]
      %v4869 = vld [vmem:[%s4 + $0xc] sm:$0xf]
      %v4870 = vld [vmem:[%s4 + $0x10] sm:$0xf]
      %v4871 = vld [vmem:[%s4 + $0x14] sm:$0xf]
      %v4872 = vld [vmem:[%s4 + $0x18] sm:$0xf]
      %v4873 = vld [vmem:[%s4 + $0x1c] sm:$0xf]
      %v4874 = vld [vmem:[%s4 + $0x20] sm:$0xf]
      %v4875 = vld [vmem:[%s4 + $0x24] sm:$0xf]
      %v4876 = vld [vmem:[%s4 + $0x28] sm:$0xf]
      %v4877 = vld [vmem:[%s4 + $0x2c] sm:$0xf]
      %v4878 = vld [vmem:[%s4 + $0x30] sm:$0xf]
      %v4879 = vld [vmem:[%s4 + $0x34] sm:$0xf]
      %v4880 = vld [vmem:[%s4 + $0x38] sm:$0xf]
      %v4881 = vld [vmem:[%s4 + $0x3c] sm:$0xf]
      %v4898 = vunpack.c.l.b16 %v4866
      %v4899 = vunpack.c.l.b16 %v4867
      %v4900 = vunpack.c.l.b16 %v4868
      %v4901 = vunpack.c.l.b16 %v4869
      %v4902 = vunpack.c.l.b16 %v4870
      %v4903 = vunpack.c.l.b16 %v4871
      %v4904 = vunpack.c.l.b16 %v4872
      %v4905 = vunpack.c.l.b16 %v4873
      %v4906 = vunpack.c.l.b16 %v4874
      %v4907 = vunpack.c.l.b16 %v4875
      %v4908 = vunpack.c.l.b16 %v4876
      %v4909 = vunpack.c.l.b16 %v4877
      %v4910 = vunpack.c.l.b16 %v4878
      %v4911 = vunpack.c.l.b16 %v4879
      %v4912 = vunpack.c.l.b16 %v4880
      %v4913 = vunpack.c.l.b16 %v4881
      %v4914 = vpack.c.b16 %v4899, %v4898
      %v4915 = vpack.c.b16 %v4901, %v4900
      %v4916 = vpack.c.b16 %v4903, %v4902
      %v4917 = vpack.c.b16 %v4905, %v4904
      %v4918 = vpack.c.b16 %v4907, %v4906
      %v4919 = vpack.c.b16 %v4909, %v4908
      %v4920 = vpack.c.b16 %v4911, %v4910
      %v4921 = vpack.c.b16 %v4913, %v4912
      %4930 = vmatprep.subr.bf16.mxu0 0
      %4931 = vmatpush1.bf16.msra.mxu0 %v4914
      %4932 = vmatprep.subr.bf16.mxu0 0
      %4933 = vmatpush1.bf16.msra.mxu0 %v4915
      %4934 = vmatprep.subr.bf16.mxu0 0
      %4935 = vmatpush1.bf16.msra.mxu0 %v4916
      %4936 = vmatprep.subr.bf16.mxu0 0
      %4937 = vmatpush1.bf16.msra.mxu0 %v4917
      %4938 = vmatprep.subr.bf16.mxu0 0
      %4939 = vmatpush1.bf16.msra.mxu0 %v4918
      %4940 = vmatprep.subr.bf16.mxu0 0
      %4941 = vmatpush1.bf16.msra.mxu0 %v4919
      %4942 = vmatprep.subr.bf16.mxu0 0
      %4943 = vmatpush1.bf16.msra.mxu0 %v4920
      %4944 = vmatprep.subr.bf16.mxu0 0
      %4945 = vmatpush1.bf16.msra.mxu0 %v4921
      %4946 = vmatprep.subr.bf16.mxu0 0
      %4947 = vmatpush1.bf16.msra.mxu0 0
      %4948 = vmatprep.subr.bf16.mxu0 0
      %4949 = vmatpush1.bf16.msra.mxu0 0
      %4950 = vmatprep.subr.bf16.mxu0 0
      %4951 = vmatpush1.bf16.msra.mxu0 0
      %4952 = vmatprep.subr.bf16.mxu0 0
      %4953 = vmatpush1.bf16.msra.mxu0 0
      %4954 = vmatprep.subr.bf16.mxu0 0
      %4955 = vmatpush1.bf16.msra.mxu0 0
      %4956 = vmatprep.subr.bf16.mxu0 0
      %4957 = vmatpush1.bf16.msra.mxu0 0
      %4958 = vmatprep.subr.bf16.mxu0 0
      %4959 = vmatpush1.bf16.msra.mxu0 0
      %4960 = vmatprep.subr.bf16.mxu0 0
      %4961 = vmatpush1.bf16.msra.mxu0 0
      %4962 = vmatprep.mubr.bf16.mxu0 0
      %4963 = vmatmul.mubr.bf16.gmra.mrb[0].mxu0 %v4845
      %v4964 = vpop.f32.mrb[0].mxu0
      %v4965 = vadd.f32 0.0, %v4964
      %v4966 = vpop.f32.mrb[0].mxu0
      %v4967 = vpop.f32.mrb[0].mxu0
      %v4968 = vadd.f32 0.0, %v4967
      %v4969 = vpop.f32.mrb[0].mxu0
      %4970 = vmatprep.mubr.bf16.mxu0 0
      %4971 = vmatmul.mubr.bf16.gmra.mrb[0].mxu0 %v4846
      %v4972 = vpop.f32.mrb[0].mxu0
      %v4973 = vadd.f32 0.0, %v4972
      %v4974 = vpop.f32.mrb[0].mxu0
      %v4975 = vpop.f32.mrb[0].mxu0
      %v4976 = vadd.f32 0.0, %v4975
      %v4977 = vpop.f32.mrb[0].mxu0
      %4978 = vmatprep.mubr.bf16.mxu0 0
      %4979 = vmatmul.mubr.bf16.gmra.mrb[0].mxu0 %v4847
      %v4980 = vpop.f32.mrb[0].mxu0
      %v4981 = vadd.f32 0.0, %v4980
      %v4982 = vpop.f32.mrb[0].mxu0
      %v4983 = vpop.f32.mrb[0].mxu0
      %v4984 = vadd.f32 0.0, %v4983
      %v4985 = vpop.f32.mrb[0].mxu0
      %4986 = vmatprep.mubr.bf16.mxu0 0
      %4987 = vmatmul.mubr.bf16.gmra.mrb[0].mxu0 %v4848
      %v4988 = vpop.f32.mrb[0].mxu0
      %v4989 = vadd.f32 0.0, %v4988
      %v4990 = vpop.f32.mrb[0].mxu0
      %v4991 = vpop.f32.mrb[0].mxu0
      %v4992 = vadd.f32 0.0, %v4991
      %v4993 = vpop.f32.mrb[0].mxu0
      %4994 = vmatprep.mubr.bf16.mxu0 0
      %4995 = vmatmul.mubr.bf16.gmra.mrb[0].mxu0 %v4849
      %v4996 = vpop.f32.mrb[0].mxu0
      %v4997 = vadd.f32 0.0, %v4996
      %v4998 = vpop.f32.mrb[0].mxu0
      %v4999 = vpop.f32.mrb[0].mxu0
      %v5000 = vadd.f32 0.0, %v4999
      %v5001 = vpop.f32.mrb[0].mxu0
      %5002 = vmatprep.mubr.bf16.mxu0 0
      %5003 = vmatmul.mubr.bf16.gmra.mrb[0].mxu0 %v4850
      %v5004 = vpop.f32.mrb[0].mxu0
      %v5005 = vadd.f32 0.0, %v5004
      %v5006 = vpop.f32.mrb[0].mxu0
      %v5007 = vpop.f32.mrb[0].mxu0
      %v5008 = vadd.f32 0.0, %v5007
      %v5009 = vpop.f32.mrb[0].mxu0
      %5010 = vmatprep.mubr.bf16.mxu0 0
      %5011 = vmatmul.mubr.bf16.gmra.mrb[0].mxu0 %v4851
      %v5012 = vpop.f32.mrb[0].mxu0
      %v5013 = vadd.f32 0.0, %v5012
      %v5014 = vpop.f32.mrb[0].mxu0
      %v5015 = vpop.f32.mrb[0].mxu0
      %v5016 = vadd.f32 0.0, %v5015
      %v5017 = vpop.f32.mrb[0].mxu0
      %5018 = vmatprep.mubr.bf16.mxu0 0
      %5019 = vmatmul.mubr.bf16.gmra.mrb[0].mxu0 %v4852
      %v5020 = vpop.f32.mrb[0].mxu0
      %v5021 = vadd.f32 0.0, %v5020
      %v5022 = vpop.f32.mrb[0].mxu0
      %v5023 = vpop.f32.mrb[0].mxu0
      %v5024 = vadd.f32 0.0, %v5023
      %v5025 = vpop.f32.mrb[0].mxu0
      %5026 = vmatprep.mubr.bf16.mxu0 0
      %5027 = vmatmul.mubr.bf16.gmra.mrb[0].mxu0 %v4853
      %v5028 = vpop.f32.mrb[0].mxu0
      %v5029 = vadd.f32 0.0, %v5028
      %v5030 = vpop.f32.mrb[0].mxu0
      %v5031 = vpop.f32.mrb[0].mxu0
      %v5032 = vadd.f32 0.0, %v5031
      %v5033 = vpop.f32.mrb[0].mxu0
      %5034 = vmatprep.mubr.bf16.mxu0 0
      %5035 = vmatmul.mubr.bf16.gmra.mrb[0].mxu0 %v4854
      %v5036 = vpop.f32.mrb[0].mxu0
      %v5037 = vadd.f32 0.0, %v5036
      %v5038 = vpop.f32.mrb[0].mxu0
      %v5039 = vpop.f32.mrb[0].mxu0
      %v5040 = vadd.f32 0.0, %v5039
      %v5041 = vpop.f32.mrb[0].mxu0
      %5042 = vmatprep.mubr.bf16.mxu0 0
      %5043 = vmatmul.mubr.bf16.gmra.mrb[0].mxu0 %v4855
      %v5044 = vpop.f32.mrb[0].mxu0
      %v5045 = vadd.f32 0.0, %v5044
      %v5046 = vpop.f32.mrb[0].mxu0
      %v5047 = vpop.f32.mrb[0].mxu0
      %v5048 = vadd.f32 0.0, %v5047
      %v5049 = vpop.f32.mrb[0].mxu0
      %5050 = vmatprep.mubr.bf16.mxu0 0
      %5051 = vmatmul.mubr.bf16.gmra.mrb[0].mxu0 %v4856
      %v5052 = vpop.f32.mrb[0].mxu0
      %v5053 = vadd.f32 0.0, %v5052
      %v5054 = vpop.f32.mrb[0].mxu0
      %v5055 = vpop.f32.mrb[0].mxu0
      %v5056 = vadd.f32 0.0, %v5055
      %v5057 = vpop.f32.mrb[0].mxu0
      %5058 = vmatprep.mubr.bf16.mxu0 0
      %5059 = vmatmul.mubr.bf16.gmra.mrb[0].mxu0 %v4857
      %v5060 = vpop.f32.mrb[0].mxu0
      %v5061 = vadd.f32 0.0, %v5060
      %v5062 = vpop.f32.mrb[0].mxu0
      %v5063 = vpop.f32.mrb[0].mxu0
      %v5064 = vadd.f32 0.0, %v5063
      %v5065 = vpop.f32.mrb[0].mxu0
      %5066 = vmatprep.mubr.bf16.mxu0 0
      %5067 = vmatmul.mubr.bf16.gmra.mrb[0].mxu0 %v4858
      %v5068 = vpop.f32.mrb[0].mxu0
      %v5069 = vadd.f32 0.0, %v5068
      %v5070 = vpop.f32.mrb[0].mxu0
      %v5071 = vpop.f32.mrb[0].mxu0
      %v5072 = vadd.f32 0.0, %v5071
      %v5073 = vpop.f32.mrb[0].mxu0
      %5074 = vmatprep.mubr.bf16.mxu0 0
      %5075 = vmatmul.mubr.bf16.gmra.mrb[0].mxu0 %v4859
      %v5076 = vpop.f32.mrb[0].mxu0
      %v5077 = vadd.f32 0.0, %v5076
      %v5078 = vpop.f32.mrb[0].mxu0
      %v5079 = vpop.f32.mrb[0].mxu0
      %v5080 = vadd.f32 0.0, %v5079
      %v5081 = vpop.f32.mrb[0].mxu0
      %5082 = vmatprep.mubr.bf16.mxu0 0
      %5083 = vmatmul.mubr.bf16.gmra.mrb[0].mxu0 %v4860
      %v5084 = vpop.f32.mrb[0].mxu0
      %v5085 = vadd.f32 0.0, %v5084
      %v5086 = vpop.f32.mrb[0].mxu0
      %v5087 = vpop.f32.mrb[0].mxu0
      %v5088 = vadd.f32 0.0, %v5087
      %v5089 = vpop.f32.mrb[0].mxu0
      %5090 = vmatprep.mubr.bf16.mxu0 0
      %5091 = vmatmul.mubr.bf16.gmra.mrb[0].mxu0 %v4861
      %v5092 = vpop.f32.mrb[0].mxu0
      %v5093 = vadd.f32 0.0, %v5092
      %v5094 = vpop.f32.mrb[0].mxu0
      %v5095 = vpop.f32.mrb[0].mxu0
      %v5096 = vadd.f32 0.0, %v5095
      %v5097 = vpop.f32.mrb[0].mxu0
      %5098 = vmatprep.mubr.bf16.mxu0 0
      %5099 = vmatmul.mubr.bf16.gmra.mrb[0].mxu0 %v4862
      %v5100 = vpop.f32.mrb[0].mxu0
      %v5101 = vadd.f32 0.0, %v5100
      %v5102 = vpop.f32.mrb[0].mxu0
      %v5103 = vpop.f32.mrb[0].mxu0
      %v5104 = vadd.f32 0.0, %v5103
      %v5105 = vpop.f32.mrb[0].mxu0
      %5106 = vmatprep.mubr.bf16.mxu0 0
      %5107 = vmatmul.mubr.bf16.gmra.mrb[0].mxu0 %v4863
      %v5108 = vpop.f32.mrb[0].mxu0
      %v5109 = vadd.f32 0.0, %v5108
      %v5110 = vpop.f32.mrb[0].mxu0
      %v5111 = vpop.f32.mrb[0].mxu0
      %v5112 = vadd.f32 0.0, %v5111
      %v5113 = vpop.f32.mrb[0].mxu0
      %5114 = vmatprep.mubr.bf16.mxu0 0
      %5115 = vmatmul.mubr.bf16.gmra.mrb[0].mxu0 %v4864
      %v5116 = vpop.f32.mrb[0].mxu0
      %v5117 = vadd.f32 0.0, %v5116
      %v5118 = vpop.f32.mrb[0].mxu0
      %v5119 = vpop.f32.mrb[0].mxu0
      %v5120 = vadd.f32 0.0, %v5119
      %v5121 = vpop.f32.mrb[0].mxu0
      %5122 = vmatprep.mubr.bf16.mxu0 0
      %5123 = vmatmul.mubr.bf16.gmra.mrb[0].mxu0 %v4865
      %v5124 = vpop.f32.mrb[0].mxu0
      %v5125 = vadd.f32 0.0, %v5124
      %v5126 = vpop.f32.mrb[0].mxu0
      %v5127 = vpop.f32.mrb[0].mxu0
      %v5128 = vadd.f32 0.0, %v5127
      %v5129 = vpop.f32.mrb[0].mxu0
      %5130 = vdwg.mxu0
      %vm5131 = vcmask 588800
      %5132 = vst.msk [vmem:[#allocation4] sm:$0xff] %vm5131, %v4965
      %5133 = vst.msk [vmem:[#allocation4 + $0x10] sm:$0xff] %vm5131, %v4968
      %5134 = vst.msk [vmem:[#allocation4 + $0x20] sm:$0xff] %vm5131, %v4973
      %5135 = vst.msk [vmem:[#allocation4 + $0x30] sm:$0xff] %vm5131, %v4976
      %5136 = vst.msk [vmem:[#allocation4 + $0x40] sm:$0xff] %vm5131, %v4981
      %5137 = vst.msk [vmem:[#allocation4 + $0x50] sm:$0xff] %vm5131, %v4984
      %5138 = vst.msk [vmem:[#allocation4 + $0x60] sm:$0xff] %vm5131, %v4989
      %5139 = vst.msk [vmem:[#allocation4 + $0x70] sm:$0xff] %vm5131, %v4992
      %5140 = vst.msk [vmem:[#allocation4 + $0x80] sm:$0xff] %vm5131, %v4997
      %5141 = vst.msk [vmem:[#allocation4 + $0x90] sm:$0xff] %vm5131, %v5000
      %5142 = vst.msk [vmem:[#allocation4 + $0xa0] sm:$0xff] %vm5131, %v5005
      %5143 = vst.msk [vmem:[#allocation4 + $0xb0] sm:$0xff] %vm5131, %v5008
      %5144 = vst.msk [vmem:[#allocation4 + $0xc0] sm:$0xff] %vm5131, %v5013
      %5145 = vst.msk [vmem:[#allocation4 + $0xd0] sm:$0xff] %vm5131, %v5016
      %5146 = vst.msk [vmem:[#allocation4 + $0xe0] sm:$0xff] %vm5131, %v5021
      %5147 = vst.msk [vmem:[#allocation4 + $0xf0] sm:$0xff] %vm5131, %v5024
      %5148 = vst.msk [vmem:[#allocation4 + $0x100] sm:$0xff] %vm5131, %v5029
      %5149 = vst.msk [vmem:[#allocation4 + $0x110] sm:$0xff] %vm5131, %v5032
      %5150 = vst.msk [vmem:[#allocation4 + $0x120] sm:$0xff] %vm5131, %v5037
      %5151 = vst.msk [vmem:[#allocation4 + $0x130] sm:$0xff] %vm5131, %v5040
      %5152 = vst.msk [vmem:[#allocation4 + $0x140] sm:$0xff] %vm5131, %v5045
      %5153 = vst.msk [vmem:[#allocation4 + $0x150] sm:$0xff] %vm5131, %v5048
      %5154 = vst.msk [vmem:[#allocation4 + $0x160] sm:$0xff] %vm5131, %v5053
      %5155 = vst.msk [vmem:[#allocation4 + $0x170] sm:$0xff] %vm5131, %v5056
      %5156 = vst.msk [vmem:[#allocation4 + $0x180] sm:$0xff] %vm5131, %v5061
      %5157 = vst.msk [vmem:[#allocation4 + $0x190] sm:$0xff] %vm5131, %v5064
      %5158 = vst.msk [vmem:[#allocation4 + $0x1a0] sm:$0xff] %vm5131, %v5069
      %5159 = vst.msk [vmem:[#allocation4 + $0x1b0] sm:$0xff] %vm5131, %v5072
      %5160 = vst.msk [vmem:[#allocation4 + $0x1c0] sm:$0xff] %vm5131, %v5077
      %5161 = vst.msk [vmem:[#allocation4 + $0x1d0] sm:$0xff] %vm5131, %v5080
      %5162 = vst.msk [vmem:[#allocation4 + $0x1e0] sm:$0xff] %vm5131, %v5085
      %5163 = vst.msk [vmem:[#allocation4 + $0x1f0] sm:$0xff] %vm5131, %v5088
      %5164 = vst.msk [vmem:[#allocation4 + $0x200] sm:$0xff] %vm5131, %v5093
      %5165 = vst.msk [vmem:[#allocation4 + $0x210] sm:$0xff] %vm5131, %v5096
      %5166 = vst.msk [vmem:[#allocation4 + $0x220] sm:$0xff] %vm5131, %v5101
      %5167 = vst.msk [vmem:[#allocation4 + $0x230] sm:$0xff] %vm5131, %v5104
      %5168 = vst.msk [vmem:[#allocation4 + $0x240] sm:$0xff] %vm5131, %v5109
      %5169 = vst.msk [vmem:[#allocation4 + $0x250] sm:$0xff] %vm5131, %v5112
      %5170 = vst.msk [vmem:[#allocation4 + $0x260] sm:$0xff] %vm5131, %v5117
      %5171 = vst.msk [vmem:[#allocation4 + $0x270] sm:$0xff] %vm5131, %v5120
      %5172 = vst.msk [vmem:[#allocation4 + $0x280] sm:$0xff] %vm5131, %v5125
      %vm5173 = vcmask 584704
      %5174 = vst.msk [vmem:[#allocation4 + $0x290] sm:$0xf] %vm5173, %v5128
      %v5175 = vld [vmem:[%s5 + $0x3] sm:$0x1]
      %v5176 = vlaneseq
      %v5177 = vshrl.u32 %v5176, 7
      %v5178 = vsub.s32 0, %v5177
      %v5179 = vrot.slane %v5175, %v5178
      %v5180 = vadd.f32 %v5179, 0.0
      %v5181 = vld [vmem:[#allocation4] sm:$0xff]
      %v5182 = vld [vmem:[#allocation4 + $0x10] sm:$0xff]
      %v5183 = vld [vmem:[#allocation4 + $0x20] sm:$0xff]
      %v5184 = vld [vmem:[#allocation4 + $0x30] sm:$0xff]
      %v5185 = vld [vmem:[#allocation4 + $0x40] sm:$0xff]
      %v5186 = vld [vmem:[#allocation4 + $0x50] sm:$0xff]
      %v5187 = vld [vmem:[#allocation4 + $0x60] sm:$0xff]
      %v5188 = vld [vmem:[#allocation4 + $0x70] sm:$0xff]
      %v5189 = vld [vmem:[#allocation4 + $0x80] sm:$0xff]
      %v5190 = vld [vmem:[#allocation4 + $0x90] sm:$0xff]
      %v5191 = vld [vmem:[#allocation4 + $0xa0] sm:$0xff]
      %v5192 = vld [vmem:[#allocation4 + $0xb0] sm:$0xff]
      %v5193 = vld [vmem:[#allocation4 + $0xc0] sm:$0xff]
      %v5194 = vld [vmem:[#allocation4 + $0xd0] sm:$0xff]
      %v5195 = vld [vmem:[#allocation4 + $0xe0] sm:$0xff]
      %v5196 = vld [vmem:[#allocation4 + $0xf0] sm:$0xff]
      %v5197 = vld [vmem:[#allocation4 + $0x100] sm:$0xff]
      %v5198 = vld [vmem:[#allocation4 + $0x110] sm:$0xff]
      %v5199 = vld [vmem:[#allocation4 + $0x120] sm:$0xff]
      %v5200 = vld [vmem:[#allocation4 + $0x130] sm:$0xff]
      %v5201 = vld [vmem:[#allocation4 + $0x140] sm:$0xff]
      %v5202 = vld [vmem:[#allocation4 + $0x150] sm:$0xff]
      %v5203 = vld [vmem:[#allocation4 + $0x160] sm:$0xff]
      %v5204 = vld [vmem:[#allocation4 + $0x170] sm:$0xff]
      %v5205 = vld [vmem:[#allocation4 + $0x180] sm:$0xff]
      %v5206 = vld [vmem:[#allocation4 + $0x190] sm:$0xff]
      %v5207 = vld [vmem:[#allocation4 + $0x1a0] sm:$0xff]
      %v5208 = vld [vmem:[#allocation4 + $0x1b0] sm:$0xff]
      %v5209 = vld [vmem:[#allocation4 + $0x1c0] sm:$0xff]
      %v5210 = vld [vmem:[#allocation4 + $0x1d0] sm:$0xff]
      %v5211 = vld [vmem:[#allocation4 + $0x1e0] sm:$0xff]
      %v5212 = vld [vmem:[#allocation4 + $0x1f0] sm:$0xff]
      %v5213 = vld [vmem:[#allocation4 + $0x200] sm:$0xff]
      %v5214 = vld [vmem:[#allocation4 + $0x210] sm:$0xff]
      %v5215 = vld [vmem:[#allocation4 + $0x220] sm:$0xff]
      %v5216 = vld [vmem:[#allocation4 + $0x230] sm:$0xff]
      %v5217 = vadd.f32 %v5180, %v5181
      %v5218 = vadd.f32 %v5180, %v5182
      %v5219 = vadd.f32 %v5180, %v5183
      %v5220 = vadd.f32 %v5180, %v5184
      %v5221 = vadd.f32 %v5180, %v5185
      %v5222 = vadd.f32 %v5180, %v5186
      %v5223 = vadd.f32 %v5180, %v5187
      %v5224 = vadd.f32 %v5180, %v5188
      %v5225 = vadd.f32 %v5180, %v5189
      %v5226 = vadd.f32 %v5180, %v5190
      %v5227 = vadd.f32 %v5180, %v5191
      %v5228 = vadd.f32 %v5180, %v5192
      %v5229 = vadd.f32 %v5180, %v5193
      %v5230 = vadd.f32 %v5180, %v5194
      %v5231 = vadd.f32 %v5180, %v5195
      %v5232 = vadd.f32 %v5180, %v5196
      %v5233 = vadd.f32 %v5180, %v5197
      %v5234 = vadd.f32 %v5180, %v5198
      %v5235 = vadd.f32 %v5180, %v5199
      %v5236 = vadd.f32 %v5180, %v5200
      %v5237 = vadd.f32 %v5180, %v5201
      %v5238 = vadd.f32 %v5180, %v5202
      %v5239 = vadd.f32 %v5180, %v5203
      %v5240 = vadd.f32 %v5180, %v5204
      %v5241 = vadd.f32 %v5180, %v5205
      %v5242 = vadd.f32 %v5180, %v5206
      %v5243 = vadd.f32 %v5180, %v5207
      %v5244 = vadd.f32 %v5180, %v5208
      %v5245 = vadd.f32 %v5180, %v5209
      %v5246 = vadd.f32 %v5180, %v5210
      %v5247 = vadd.f32 %v5180, %v5211
      %v5248 = vadd.f32 %v5180, %v5212
      %v5249 = vadd.f32 %v5180, %v5213
      %v5250 = vadd.f32 %v5180, %v5214
      %v5251 = vadd.f32 %v5180, %v5215
      %v5252 = vadd.f32 %v5180, %v5216
      %v5253 = vld [vmem:[#allocation4] sm:$0xfe]
      %v5254 = vld [vmem:[#allocation4 + $0x240] sm:$0x1]
      %v5292 = vrot.slane %v5253, 1
      %v5293 = vrot.slane %v5182, 1
      %v5294 = vsel %vm2063, %v5292, %v5293
      %v5295 = vrot.slane %v5183, 1
      %v5296 = vsel %vm2063, %v5293, %v5295
      %v5297 = vrot.slane %v5184, 1
      %v5298 = vsel %vm2063, %v5295, %v5297
      %v5299 = vrot.slane %v5185, 1
      %v5300 = vsel %vm2063, %v5297, %v5299
      %v5301 = vrot.slane %v5186, 1
      %v5302 = vsel %vm2063, %v5299, %v5301
      %v5303 = vrot.slane %v5187, 1
      %v5304 = vsel %vm2063, %v5301, %v5303
      %v5305 = vrot.slane %v5188, 1
      %v5306 = vsel %vm2063, %v5303, %v5305
      %v5307 = vrot.slane %v5189, 1
      %v5308 = vsel %vm2063, %v5305, %v5307
      %v5309 = vrot.slane %v5190, 1
      %v5310 = vsel %vm2063, %v5307, %v5309
      %v5311 = vrot.slane %v5191, 1
      %v5312 = vsel %vm2063, %v5309, %v5311
      %v5313 = vrot.slane %v5192, 1
      %v5314 = vsel %vm2063, %v5311, %v5313
      %v5315 = vrot.slane %v5193, 1
      %v5316 = vsel %vm2063, %v5313, %v5315
      %v5317 = vrot.slane %v5194, 1
      %v5318 = vsel %vm2063, %v5315, %v5317
      %v5319 = vrot.slane %v5195, 1
      %v5320 = vsel %vm2063, %v5317, %v5319
      %v5321 = vrot.slane %v5196, 1
      %v5322 = vsel %vm2063, %v5319, %v5321
      %v5323 = vrot.slane %v5197, 1
      %v5324 = vsel %vm2063, %v5321, %v5323
      %v5325 = vrot.slane %v5198, 1
      %v5326 = vsel %vm2063, %v5323, %v5325
      %v5327 = vrot.slane %v5199, 1
      %v5328 = vsel %vm2063, %v5325, %v5327
      %v5329 = vrot.slane %v5200, 1
      %v5330 = vsel %vm2063, %v5327, %v5329
      %v5331 = vrot.slane %v5201, 1
      %v5332 = vsel %vm2063, %v5329, %v5331
      %v5333 = vrot.slane %v5202, 1
      %v5334 = vsel %vm2063, %v5331, %v5333
      %v5335 = vrot.slane %v5203, 1
      %v5336 = vsel %vm2063, %v5333, %v5335
      %v5337 = vrot.slane %v5204, 1
      %v5338 = vsel %vm2063, %v5335, %v5337
      %v5339 = vrot.slane %v5205, 1
      %v5340 = vsel %vm2063, %v5337, %v5339
      %v5341 = vrot.slane %v5206, 1
      %v5342 = vsel %vm2063, %v5339, %v5341
      %v5343 = vrot.slane %v5207, 1
      %v5344 = vsel %vm2063, %v5341, %v5343
      %v5345 = vrot.slane %v5208, 1
      %v5346 = vsel %vm2063, %v5343, %v5345
      %v5347 = vrot.slane %v5209, 1
      %v5348 = vsel %vm2063, %v5345, %v5347
      %v5349 = vrot.slane %v5210, 1
      %v5350 = vsel %vm2063, %v5347, %v5349
      %v5351 = vrot.slane %v5211, 1
      %v5352 = vsel %vm2063, %v5349, %v5351
      %v5353 = vrot.slane %v5212, 1
      %v5354 = vsel %vm2063, %v5351, %v5353
      %v5355 = vrot.slane %v5213, 1
      %v5356 = vsel %vm2063, %v5353, %v5355
      %v5357 = vrot.slane %v5214, 1
      %v5358 = vsel %vm2063, %v5355, %v5357
      %v5359 = vrot.slane %v5215, 1
      %v5360 = vsel %vm2063, %v5357, %v5359
      %v5361 = vrot.slane %v5216, 1
      %v5362 = vsel %vm2063, %v5359, %v5361
      %v5363 = vrot.slane %v5254, 1
      %v5364 = vsel %vm2063, %v5361, %v5363
      %5365 = vrot.lane.b32.xlu0 %v5294, 120
      %v5366 = vpop.permute.xlu0 %5365
      %5367 = vrot.lane.b32.xlu0 %v5296, 120
      %v5368 = vpop.permute.xlu0 %5367
      %5369 = vrot.lane.b32.xlu0 %v5298, 120
      %v5370 = vpop.permute.xlu0 %5369
      %5371 = vrot.lane.b32.xlu0 %v5300, 120
      %v5372 = vpop.permute.xlu0 %5371
      %5373 = vrot.lane.b32.xlu0 %v5302, 120
      %v5374 = vpop.permute.xlu0 %5373
      %5375 = vrot.lane.b32.xlu0 %v5304, 120
      %v5376 = vpop.permute.xlu0 %5375
      %5377 = vrot.lane.b32.xlu0 %v5306, 120
      %v5378 = vpop.permute.xlu0 %5377
      %5379 = vrot.lane.b32.xlu0 %v5308, 120
      %v5380 = vpop.permute.xlu0 %5379
      %5381 = vrot.lane.b32.xlu0 %v5310, 120
      %v5382 = vpop.permute.xlu0 %5381
      %5383 = vrot.lane.b32.xlu0 %v5312, 120
      %v5384 = vpop.permute.xlu0 %5383
      %5385 = vrot.lane.b32.xlu0 %v5314, 120
      %v5386 = vpop.permute.xlu0 %5385
      %5387 = vrot.lane.b32.xlu0 %v5316, 120
      %v5388 = vpop.permute.xlu0 %5387
      %5389 = vrot.lane.b32.xlu0 %v5318, 120
      %v5390 = vpop.permute.xlu0 %5389
      %5391 = vrot.lane.b32.xlu0 %v5320, 120
      %v5392 = vpop.permute.xlu0 %5391
      %5393 = vrot.lane.b32.xlu0 %v5322, 120
      %v5394 = vpop.permute.xlu0 %5393
      %5395 = vrot.lane.b32.xlu0 %v5324, 120
      %v5396 = vpop.permute.xlu0 %5395
      %5397 = vrot.lane.b32.xlu0 %v5326, 120
      %v5398 = vpop.permute.xlu0 %5397
      %5399 = vrot.lane.b32.xlu0 %v5328, 120
      %v5400 = vpop.permute.xlu0 %5399
      %5401 = vrot.lane.b32.xlu0 %v5330, 120
      %v5402 = vpop.permute.xlu0 %5401
      %5403 = vrot.lane.b32.xlu0 %v5332, 120
      %v5404 = vpop.permute.xlu0 %5403
      %5405 = vrot.lane.b32.xlu0 %v5334, 120
      %v5406 = vpop.permute.xlu0 %5405
      %5407 = vrot.lane.b32.xlu0 %v5336, 120
      %v5408 = vpop.permute.xlu0 %5407
      %5409 = vrot.lane.b32.xlu0 %v5338, 120
      %v5410 = vpop.permute.xlu0 %5409
      %5411 = vrot.lane.b32.xlu0 %v5340, 120
      %v5412 = vpop.permute.xlu0 %5411
      %5413 = vrot.lane.b32.xlu0 %v5342, 120
      %v5414 = vpop.permute.xlu0 %5413
      %5415 = vrot.lane.b32.xlu0 %v5344, 120
      %v5416 = vpop.permute.xlu0 %5415
      %5417 = vrot.lane.b32.xlu0 %v5346, 120
      %v5418 = vpop.permute.xlu0 %5417
      %5419 = vrot.lane.b32.xlu0 %v5348, 120
      %v5420 = vpop.permute.xlu0 %5419
      %5421 = vrot.lane.b32.xlu0 %v5350, 120
      %v5422 = vpop.permute.xlu0 %5421
      %5423 = vrot.lane.b32.xlu0 %v5352, 120
      %v5424 = vpop.permute.xlu0 %5423
      %5425 = vrot.lane.b32.xlu0 %v5354, 120
      %v5426 = vpop.permute.xlu0 %5425
      %5427 = vrot.lane.b32.xlu0 %v5356, 120
      %v5428 = vpop.permute.xlu0 %5427
      %5429 = vrot.lane.b32.xlu0 %v5358, 120
      %v5430 = vpop.permute.xlu0 %5429
      %5431 = vrot.lane.b32.xlu0 %v5360, 120
      %v5432 = vpop.permute.xlu0 %5431
      %5433 = vrot.lane.b32.xlu0 %v5362, 120
      %v5434 = vpop.permute.xlu0 %5433
      %5435 = vrot.lane.b32.xlu0 %v5364, 120
      %v5436 = vpop.permute.xlu0 %5435
      %v5473 = vadd.f32 %v5217, %v5366
      %v5474 = vadd.f32 %v5218, %v5368
      %v5475 = vadd.f32 %v5219, %v5370
      %v5476 = vadd.f32 %v5220, %v5372
      %v5477 = vadd.f32 %v5221, %v5374
      %v5478 = vadd.f32 %v5222, %v5376
      %v5479 = vadd.f32 %v5223, %v5378
      %v5480 = vadd.f32 %v5224, %v5380
      %v5481 = vadd.f32 %v5225, %v5382
      %v5482 = vadd.f32 %v5226, %v5384
      %v5483 = vadd.f32 %v5227, %v5386
      %v5484 = vadd.f32 %v5228, %v5388
      %v5485 = vadd.f32 %v5229, %v5390
      %v5486 = vadd.f32 %v5230, %v5392
      %v5487 = vadd.f32 %v5231, %v5394
      %v5488 = vadd.f32 %v5232, %v5396
      %v5489 = vadd.f32 %v5233, %v5398
      %v5490 = vadd.f32 %v5234, %v5400
      %v5491 = vadd.f32 %v5235, %v5402
      %v5492 = vadd.f32 %v5236, %v5404
      %v5493 = vadd.f32 %v5237, %v5406
      %v5494 = vadd.f32 %v5238, %v5408
      %v5495 = vadd.f32 %v5239, %v5410
      %v5496 = vadd.f32 %v5240, %v5412
      %v5497 = vadd.f32 %v5241, %v5414
      %v5498 = vadd.f32 %v5242, %v5416
      %v5499 = vadd.f32 %v5243, %v5418
      %v5500 = vadd.f32 %v5244, %v5420
      %v5501 = vadd.f32 %v5245, %v5422
      %v5502 = vadd.f32 %v5246, %v5424
      %v5503 = vadd.f32 %v5247, %v5426
      %v5504 = vadd.f32 %v5248, %v5428
      %v5505 = vadd.f32 %v5249, %v5430
      %v5506 = vadd.f32 %v5250, %v5432
      %v5507 = vadd.f32 %v5251, %v5434
      %v5508 = vadd.f32 %v5252, %v5436
      %v5509 = vld [vmem:[#allocation4] sm:$0xfc]
      %v5510 = vld [vmem:[#allocation4 + $0x240] sm:$0x3]
      %v5513 = vrot.slane %v5509, 2
      %v5514 = vrot.slane %v5182, 2
      %v5515 = vsel %vm2355, %v5513, %v5514
      %v5516 = vrot.slane %v5183, 2
      %v5517 = vsel %vm2355, %v5514, %v5516
      %v5518 = vrot.slane %v5184, 2
      %v5519 = vsel %vm2355, %v5516, %v5518
      %v5520 = vrot.slane %v5185, 2
      %v5521 = vsel %vm2355, %v5518, %v5520
      %v5522 = vrot.slane %v5186, 2
      %v5523 = vsel %vm2355, %v5520, %v5522
      %v5524 = vrot.slane %v5187, 2
      %v5525 = vsel %vm2355, %v5522, %v5524
      %v5526 = vrot.slane %v5188, 2
      %v5527 = vsel %vm2355, %v5524, %v5526
      %v5528 = vrot.slane %v5189, 2
      %v5529 = vsel %vm2355, %v5526, %v5528
      %v5530 = vrot.slane %v5190, 2
      %v5531 = vsel %vm2355, %v5528, %v5530
      %v5532 = vrot.slane %v5191, 2
      %v5533 = vsel %vm2355, %v5530, %v5532
      %v5534 = vrot.slane %v5192, 2
      %v5535 = vsel %vm2355, %v5532, %v5534
      %v5536 = vrot.slane %v5193, 2
      %v5537 = vsel %vm2355, %v5534, %v5536
      %v5538 = vrot.slane %v5194, 2
      %v5539 = vsel %vm2355, %v5536, %v5538
      %v5540 = vrot.slane %v5195, 2
      %v5541 = vsel %vm2355, %v5538, %v5540
      %v5542 = vrot.slane %v5196, 2
      %v5543 = vsel %vm2355, %v5540, %v5542
      %v5544 = vrot.slane %v5197, 2
      %v5545 = vsel %vm2355, %v5542, %v5544
      %v5546 = vrot.slane %v5198, 2
      %v5547 = vsel %vm2355, %v5544, %v5546
      %v5548 = vrot.slane %v5199, 2
      %v5549 = vsel %vm2355, %v5546, %v5548
      %v5550 = vrot.slane %v5200, 2
      %v5551 = vsel %vm2355, %v5548, %v5550
      %v5552 = vrot.slane %v5201, 2
      %v5553 = vsel %vm2355, %v5550, %v5552
      %v5554 = vrot.slane %v5202, 2
      %v5555 = vsel %vm2355, %v5552, %v5554
      %v5556 = vrot.slane %v5203, 2
      %v5557 = vsel %vm2355, %v5554, %v5556
      %v5558 = vrot.slane %v5204, 2
      %v5559 = vsel %vm2355, %v5556, %v5558
      %v5560 = vrot.slane %v5205, 2
      %v5561 = vsel %vm2355, %v5558, %v5560
      %v5562 = vrot.slane %v5206, 2
      %v5563 = vsel %vm2355, %v5560, %v5562
      %v5564 = vrot.slane %v5207, 2
      %v5565 = vsel %vm2355, %v5562, %v5564
      %v5566 = vrot.slane %v5208, 2
      %v5567 = vsel %vm2355, %v5564, %v5566
      %v5568 = vrot.slane %v5209, 2
      %v5569 = vsel %vm2355, %v5566, %v5568
      %v5570 = vrot.slane %v5210, 2
      %v5571 = vsel %vm2355, %v5568, %v5570
      %v5572 = vrot.slane %v5211, 2
      %v5573 = vsel %vm2355, %v5570, %v5572
      %v5574 = vrot.slane %v5212, 2
      %v5575 = vsel %vm2355, %v5572, %v5574
      %v5576 = vrot.slane %v5213, 2
      %v5577 = vsel %vm2355, %v5574, %v5576
      %v5578 = vrot.slane %v5214, 2
      %v5579 = vsel %vm2355, %v5576, %v5578
      %v5580 = vrot.slane %v5215, 2
      %v5581 = vsel %vm2355, %v5578, %v5580
      %v5582 = vrot.slane %v5216, 2
      %v5583 = vsel %vm2355, %v5580, %v5582
      %v5584 = vrot.slane %v5510, 2
      %v5585 = vsel %vm2355, %v5582, %v5584
      %5586 = vrot.lane.b32.xlu0 %v5515, 112
      %v5587 = vpop.permute.xlu0 %5586
      %5588 = vrot.lane.b32.xlu0 %v5517, 112
      %v5589 = vpop.permute.xlu0 %5588
      %5590 = vrot.lane.b32.xlu0 %v5519, 112
      %v5591 = vpop.permute.xlu0 %5590
      %5592 = vrot.lane.b32.xlu0 %v5521, 112
      %v5593 = vpop.permute.xlu0 %5592
      %5594 = vrot.lane.b32.xlu0 %v5523, 112
      %v5595 = vpop.permute.xlu0 %5594
      %5596 = vrot.lane.b32.xlu0 %v5525, 112
      %v5597 = vpop.permute.xlu0 %5596
      %5598 = vrot.lane.b32.xlu0 %v5527, 112
      %v5599 = vpop.permute.xlu0 %5598
      %5600 = vrot.lane.b32.xlu0 %v5529, 112
      %v5601 = vpop.permute.xlu0 %5600
      %5602 = vrot.lane.b32.xlu0 %v5531, 112
      %v5603 = vpop.permute.xlu0 %5602
      %5604 = vrot.lane.b32.xlu0 %v5533, 112
      %v5605 = vpop.permute.xlu0 %5604
      %5606 = vrot.lane.b32.xlu0 %v5535, 112
      %v5607 = vpop.permute.xlu0 %5606
      %5608 = vrot.lane.b32.xlu0 %v5537, 112
      %v5609 = vpop.permute.xlu0 %5608
      %5610 = vrot.lane.b32.xlu0 %v5539, 112
      %v5611 = vpop.permute.xlu0 %5610
      %5612 = vrot.lane.b32.xlu0 %v5541, 112
      %v5613 = vpop.permute.xlu0 %5612
      %5614 = vrot.lane.b32.xlu0 %v5543, 112
      %v5615 = vpop.permute.xlu0 %5614
      %5616 = vrot.lane.b32.xlu0 %v5545, 112
      %v5617 = vpop.permute.xlu0 %5616
      %5618 = vrot.lane.b32.xlu0 %v5547, 112
      %v5619 = vpop.permute.xlu0 %5618
      %5620 = vrot.lane.b32.xlu0 %v5549, 112
      %v5621 = vpop.permute.xlu0 %5620
      %5622 = vrot.lane.b32.xlu0 %v5551, 112
      %v5623 = vpop.permute.xlu0 %5622
      %5624 = vrot.lane.b32.xlu0 %v5553, 112
      %v5625 = vpop.permute.xlu0 %5624
      %5626 = vrot.lane.b32.xlu0 %v5555, 112
      %v5627 = vpop.permute.xlu0 %5626
      %5628 = vrot.lane.b32.xlu0 %v5557, 112
      %v5629 = vpop.permute.xlu0 %5628
      %5630 = vrot.lane.b32.xlu0 %v5559, 112
      %v5631 = vpop.permute.xlu0 %5630
      %5632 = vrot.lane.b32.xlu0 %v5561, 112
      %v5633 = vpop.permute.xlu0 %5632
      %5634 = vrot.lane.b32.xlu0 %v5563, 112
      %v5635 = vpop.permute.xlu0 %5634
      %5636 = vrot.lane.b32.xlu0 %v5565, 112
      %v5637 = vpop.permute.xlu0 %5636
      %5638 = vrot.lane.b32.xlu0 %v5567, 112
      %v5639 = vpop.permute.xlu0 %5638
      %5640 = vrot.lane.b32.xlu0 %v5569, 112
      %v5641 = vpop.permute.xlu0 %5640
      %5642 = vrot.lane.b32.xlu0 %v5571, 112
      %v5643 = vpop.permute.xlu0 %5642
      %5644 = vrot.lane.b32.xlu0 %v5573, 112
      %v5645 = vpop.permute.xlu0 %5644
      %5646 = vrot.lane.b32.xlu0 %v5575, 112
      %v5647 = vpop.permute.xlu0 %5646
      %5648 = vrot.lane.b32.xlu0 %v5577, 112
      %v5649 = vpop.permute.xlu0 %5648
      %5650 = vrot.lane.b32.xlu0 %v5579, 112
      %v5651 = vpop.permute.xlu0 %5650
      %5652 = vrot.lane.b32.xlu0 %v5581, 112
      %v5653 = vpop.permute.xlu0 %5652
      %5654 = vrot.lane.b32.xlu0 %v5583, 112
      %v5655 = vpop.permute.xlu0 %5654
      %5656 = vrot.lane.b32.xlu0 %v5585, 112
      %v5657 = vpop.permute.xlu0 %5656
      %v5694 = vadd.f32 %v5473, %v5587
      %v5695 = vadd.f32 %v5474, %v5589
      %v5696 = vadd.f32 %v5475, %v5591
      %v5697 = vadd.f32 %v5476, %v5593
      %v5698 = vadd.f32 %v5477, %v5595
      %v5699 = vadd.f32 %v5478, %v5597
      %v5700 = vadd.f32 %v5479, %v5599
      %v5701 = vadd.f32 %v5480, %v5601
      %v5702 = vadd.f32 %v5481, %v5603
      %v5703 = vadd.f32 %v5482, %v5605
      %v5704 = vadd.f32 %v5483, %v5607
      %v5705 = vadd.f32 %v5484, %v5609
      %v5706 = vadd.f32 %v5485, %v5611
      %v5707 = vadd.f32 %v5486, %v5613
      %v5708 = vadd.f32 %v5487, %v5615
      %v5709 = vadd.f32 %v5488, %v5617
      %v5710 = vadd.f32 %v5489, %v5619
      %v5711 = vadd.f32 %v5490, %v5621
      %v5712 = vadd.f32 %v5491, %v5623
      %v5713 = vadd.f32 %v5492, %v5625
      %v5714 = vadd.f32 %v5493, %v5627
      %v5715 = vadd.f32 %v5494, %v5629
      %v5716 = vadd.f32 %v5495, %v5631
      %v5717 = vadd.f32 %v5496, %v5633
      %v5718 = vadd.f32 %v5497, %v5635
      %v5719 = vadd.f32 %v5498, %v5637
      %v5720 = vadd.f32 %v5499, %v5639
      %v5721 = vadd.f32 %v5500, %v5641
      %v5722 = vadd.f32 %v5501, %v5643
      %v5723 = vadd.f32 %v5502, %v5645
      %v5724 = vadd.f32 %v5503, %v5647
      %v5725 = vadd.f32 %v5504, %v5649
      %v5726 = vadd.f32 %v5505, %v5651
      %v5727 = vadd.f32 %v5506, %v5653
      %v5728 = vadd.f32 %v5507, %v5655
      %v5729 = vadd.f32 %v5508, %v5657
      %v5730 = vld [vmem:[#allocation4 + $0x20] sm:$0xfc]
      %v5731 = vld [vmem:[#allocation4 + $0x240] sm:$0xff]
      %v5732 = vld [vmem:[#allocation4 + $0x250] sm:$0xff]
      %v5733 = vld [vmem:[#allocation4 + $0x260] sm:$0x3]
      %v5738 = vrot.slane %v5730, 2
      %v5739 = vsel %vm2355, %v5738, %v5518
      %v5740 = vrot.slane %v5731, 2
      %v5741 = vsel %vm2355, %v5582, %v5740
      %v5742 = vrot.slane %v5732, 2
      %v5743 = vsel %vm2355, %v5740, %v5742
      %v5744 = vrot.slane %v5733, 2
      %v5745 = vsel %vm2355, %v5742, %v5744
      %5746 = vrot.lane.b32.xlu0 %v5739, 104
      %v5747 = vpop.permute.xlu0 %5746
      %5748 = vrot.lane.b32.xlu0 %v5521, 104
      %v5749 = vpop.permute.xlu0 %5748
      %5750 = vrot.lane.b32.xlu0 %v5523, 104
      %v5751 = vpop.permute.xlu0 %5750
      %5752 = vrot.lane.b32.xlu0 %v5525, 104
      %v5753 = vpop.permute.xlu0 %5752
      %5754 = vrot.lane.b32.xlu0 %v5527, 104
      %v5755 = vpop.permute.xlu0 %5754
      %5756 = vrot.lane.b32.xlu0 %v5529, 104
      %v5757 = vpop.permute.xlu0 %5756
      %5758 = vrot.lane.b32.xlu0 %v5531, 104
      %v5759 = vpop.permute.xlu0 %5758
      %5760 = vrot.lane.b32.xlu0 %v5533, 104
      %v5761 = vpop.permute.xlu0 %5760
      %5762 = vrot.lane.b32.xlu0 %v5535, 104
      %v5763 = vpop.permute.xlu0 %5762
      %5764 = vrot.lane.b32.xlu0 %v5537, 104
      %v5765 = vpop.permute.xlu0 %5764
      %5766 = vrot.lane.b32.xlu0 %v5539, 104
      %v5767 = vpop.permute.xlu0 %5766
      %5768 = vrot.lane.b32.xlu0 %v5541, 104
      %v5769 = vpop.permute.xlu0 %5768
      %5770 = vrot.lane.b32.xlu0 %v5543, 104
      %v5771 = vpop.permute.xlu0 %5770
      %5772 = vrot.lane.b32.xlu0 %v5545, 104
      %v5773 = vpop.permute.xlu0 %5772
      %5774 = vrot.lane.b32.xlu0 %v5547, 104
      %v5775 = vpop.permute.xlu0 %5774
      %5776 = vrot.lane.b32.xlu0 %v5549, 104
      %v5777 = vpop.permute.xlu0 %5776
      %5778 = vrot.lane.b32.xlu0 %v5551, 104
      %v5779 = vpop.permute.xlu0 %5778
      %5780 = vrot.lane.b32.xlu0 %v5553, 104
      %v5781 = vpop.permute.xlu0 %5780
      %5782 = vrot.lane.b32.xlu0 %v5555, 104
      %v5783 = vpop.permute.xlu0 %5782
      %5784 = vrot.lane.b32.xlu0 %v5557, 104
      %v5785 = vpop.permute.xlu0 %5784
      %5786 = vrot.lane.b32.xlu0 %v5559, 104
      %v5787 = vpop.permute.xlu0 %5786
      %5788 = vrot.lane.b32.xlu0 %v5561, 104
      %v5789 = vpop.permute.xlu0 %5788
      %5790 = vrot.lane.b32.xlu0 %v5563, 104
      %v5791 = vpop.permute.xlu0 %5790
      %5792 = vrot.lane.b32.xlu0 %v5565, 104
      %v5793 = vpop.permute.xlu0 %5792
      %5794 = vrot.lane.b32.xlu0 %v5567, 104
      %v5795 = vpop.permute.xlu0 %5794
      %5796 = vrot.lane.b32.xlu0 %v5569, 104
      %v5797 = vpop.permute.xlu0 %5796
      %5798 = vrot.lane.b32.xlu0 %v5571, 104
      %v5799 = vpop.permute.xlu0 %5798
      %5800 = vrot.lane.b32.xlu0 %v5573, 104
      %v5801 = vpop.permute.xlu0 %5800
      %5802 = vrot.lane.b32.xlu0 %v5575, 104
      %v5803 = vpop.permute.xlu0 %5802
      %5804 = vrot.lane.b32.xlu0 %v5577, 104
      %v5805 = vpop.permute.xlu0 %5804
      %5806 = vrot.lane.b32.xlu0 %v5579, 104
      %v5807 = vpop.permute.xlu0 %5806
      %5808 = vrot.lane.b32.xlu0 %v5581, 104
      %v5809 = vpop.permute.xlu0 %5808
      %5810 = vrot.lane.b32.xlu0 %v5583, 104
      %v5811 = vpop.permute.xlu0 %5810
      %5812 = vrot.lane.b32.xlu0 %v5741, 104
      %v5813 = vpop.permute.xlu0 %5812
      %5814 = vrot.lane.b32.xlu0 %v5743, 104
      %v5815 = vpop.permute.xlu0 %5814
      %5816 = vrot.lane.b32.xlu0 %v5745, 104
      %v5817 = vpop.permute.xlu0 %5816
      %v5854 = vadd.f32 %v5694, %v5747
      %v5855 = vadd.f32 %v5695, %v5749
      %v5856 = vadd.f32 %v5696, %v5751
      %v5857 = vadd.f32 %v5697, %v5753
      %v5858 = vadd.f32 %v5698, %v5755
      %v5859 = vadd.f32 %v5699, %v5757
      %v5860 = vadd.f32 %v5700, %v5759
      %v5861 = vadd.f32 %v5701, %v5761
      %v5862 = vadd.f32 %v5702, %v5763
      %v5863 = vadd.f32 %v5703, %v5765
      %v5864 = vadd.f32 %v5704, %v5767
      %v5865 = vadd.f32 %v5705, %v5769
      %v5866 = vadd.f32 %v5706, %v5771
      %v5867 = vadd.f32 %v5707, %v5773
      %v5868 = vadd.f32 %v5708, %v5775
      %v5869 = vadd.f32 %v5709, %v5777
      %v5870 = vadd.f32 %v5710, %v5779
      %v5871 = vadd.f32 %v5711, %v5781
      %v5872 = vadd.f32 %v5712, %v5783
      %v5873 = vadd.f32 %v5713, %v5785
      %v5874 = vadd.f32 %v5714, %v5787
      %v5875 = vadd.f32 %v5715, %v5789
      %v5876 = vadd.f32 %v5716, %v5791
      %v5877 = vadd.f32 %v5717, %v5793
      %v5878 = vadd.f32 %v5718, %v5795
      %v5879 = vadd.f32 %v5719, %v5797
      %v5880 = vadd.f32 %v5720, %v5799
      %v5881 = vadd.f32 %v5721, %v5801
      %v5882 = vadd.f32 %v5722, %v5803
      %v5883 = vadd.f32 %v5723, %v5805
      %v5884 = vadd.f32 %v5724, %v5807
      %v5885 = vadd.f32 %v5725, %v5809
      %v5886 = vadd.f32 %v5726, %v5811
      %v5887 = vadd.f32 %v5727, %v5813
      %v5888 = vadd.f32 %v5728, %v5815
      %v5889 = vadd.f32 %v5729, %v5817
      %v5890 = vld [vmem:[#allocation4 + $0x20] sm:$0xf8]
      %v5891 = vld [vmem:[#allocation4 + $0x260] sm:$0x7]
      %vm5894 = vcmask 1044480
      %v5895 = vrot.slane %v5890, 3
      %v5896 = vrot.slane %v5184, 3
      %v5897 = vsel %vm5894, %v5895, %v5896
      %v5898 = vrot.slane %v5185, 3
      %v5899 = vsel %vm5894, %v5896, %v5898
      %v5900 = vrot.slane %v5186, 3
      %v5901 = vsel %vm5894, %v5898, %v5900
      %v5902 = vrot.slane %v5187, 3
      %v5903 = vsel %vm5894, %v5900, %v5902
      %v5904 = vrot.slane %v5188, 3
      %v5905 = vsel %vm5894, %v5902, %v5904
      %v5906 = vrot.slane %v5189, 3
      %v5907 = vsel %vm5894, %v5904, %v5906
      %v5908 = vrot.slane %v5190, 3
      %v5909 = vsel %vm5894, %v5906, %v5908
      %v5910 = vrot.slane %v5191, 3
      %v5911 = vsel %vm5894, %v5908, %v5910
      %v5912 = vrot.slane %v5192, 3
      %v5913 = vsel %vm5894, %v5910, %v5912
      %v5914 = vrot.slane %v5193, 3
      %v5915 = vsel %vm5894, %v5912, %v5914
      %v5916 = vrot.slane %v5194, 3
      %v5917 = vsel %vm5894, %v5914, %v5916
      %v5918 = vrot.slane %v5195, 3
      %v5919 = vsel %vm5894, %v5916, %v5918
      %v5920 = vrot.slane %v5196, 3
      %v5921 = vsel %vm5894, %v5918, %v5920
      %v5922 = vrot.slane %v5197, 3
      %v5923 = vsel %vm5894, %v5920, %v5922
      %v5924 = vrot.slane %v5198, 3
      %v5925 = vsel %vm5894, %v5922, %v5924
      %v5926 = vrot.slane %v5199, 3
      %v5927 = vsel %vm5894, %v5924, %v5926
      %v5928 = vrot.slane %v5200, 3
      %v5929 = vsel %vm5894, %v5926, %v5928
      %v5930 = vrot.slane %v5201, 3
      %v5931 = vsel %vm5894, %v5928, %v5930
      %v5932 = vrot.slane %v5202, 3
      %v5933 = vsel %vm5894, %v5930, %v5932
      %v5934 = vrot.slane %v5203, 3
      %v5935 = vsel %vm5894, %v5932, %v5934
      %v5936 = vrot.slane %v5204, 3
      %v5937 = vsel %vm5894, %v5934, %v5936
      %v5938 = vrot.slane %v5205, 3
      %v5939 = vsel %vm5894, %v5936, %v5938
      %v5940 = vrot.slane %v5206, 3
      %v5941 = vsel %vm5894, %v5938, %v5940
      %v5942 = vrot.slane %v5207, 3
      %v5943 = vsel %vm5894, %v5940, %v5942
      %v5944 = vrot.slane %v5208, 3
      %v5945 = vsel %vm5894, %v5942, %v5944
      %v5946 = vrot.slane %v5209, 3
      %v5947 = vsel %vm5894, %v5944, %v5946
      %v5948 = vrot.slane %v5210, 3
      %v5949 = vsel %vm5894, %v5946, %v5948
      %v5950 = vrot.slane %v5211, 3
      %v5951 = vsel %vm5894, %v5948, %v5950
      %v5952 = vrot.slane %v5212, 3
      %v5953 = vsel %vm5894, %v5950, %v5952
      %v5954 = vrot.slane %v5213, 3
      %v5955 = vsel %vm5894, %v5952, %v5954
      %v5956 = vrot.slane %v5214, 3
      %v5957 = vsel %vm5894, %v5954, %v5956
      %v5958 = vrot.slane %v5215, 3
      %v5959 = vsel %vm5894, %v5956, %v5958
      %v5960 = vrot.slane %v5216, 3
      %v5961 = vsel %vm5894, %v5958, %v5960
      %v5962 = vrot.slane %v5731, 3
      %v5963 = vsel %vm5894, %v5960, %v5962
      %v5964 = vrot.slane %v5732, 3
      %v5965 = vsel %vm5894, %v5962, %v5964
      %v5966 = vrot.slane %v5891, 3
      %v5967 = vsel %vm5894, %v5964, %v5966
      %5968 = vrot.lane.b32.xlu0 %v5897, 96
      %v5969 = vpop.permute.xlu0 %5968
      %5970 = vrot.lane.b32.xlu0 %v5899, 96
      %v5971 = vpop.permute.xlu0 %5970
      %5972 = vrot.lane.b32.xlu0 %v5901, 96
      %v5973 = vpop.permute.xlu0 %5972
      %5974 = vrot.lane.b32.xlu0 %v5903, 96
      %v5975 = vpop.permute.xlu0 %5974
      %5976 = vrot.lane.b32.xlu0 %v5905, 96
      %v5977 = vpop.permute.xlu0 %5976
      %5978 = vrot.lane.b32.xlu0 %v5907, 96
      %v5979 = vpop.permute.xlu0 %5978
      %5980 = vrot.lane.b32.xlu0 %v5909, 96
      %v5981 = vpop.permute.xlu0 %5980
      %5982 = vrot.lane.b32.xlu0 %v5911, 96
      %v5983 = vpop.permute.xlu0 %5982
      %5984 = vrot.lane.b32.xlu0 %v5913, 96
      %v5985 = vpop.permute.xlu0 %5984
      %5986 = vrot.lane.b32.xlu0 %v5915, 96
      %v5987 = vpop.permute.xlu0 %5986
      %5988 = vrot.lane.b32.xlu0 %v5917, 96
      %v5989 = vpop.permute.xlu0 %5988
      %5990 = vrot.lane.b32.xlu0 %v5919, 96
      %v5991 = vpop.permute.xlu0 %5990
      %5992 = vrot.lane.b32.xlu0 %v5921, 96
      %v5993 = vpop.permute.xlu0 %5992
      %5994 = vrot.lane.b32.xlu0 %v5923, 96
      %v5995 = vpop.permute.xlu0 %5994
      %5996 = vrot.lane.b32.xlu0 %v5925, 96
      %v5997 = vpop.permute.xlu0 %5996
      %5998 = vrot.lane.b32.xlu0 %v5927, 96
      %v5999 = vpop.permute.xlu0 %5998
      %6000 = vrot.lane.b32.xlu0 %v5929, 96
      %v6001 = vpop.permute.xlu0 %6000
      %6002 = vrot.lane.b32.xlu0 %v5931, 96
      %v6003 = vpop.permute.xlu0 %6002
      %6004 = vrot.lane.b32.xlu0 %v5933, 96
      %v6005 = vpop.permute.xlu0 %6004
      %6006 = vrot.lane.b32.xlu0 %v5935, 96
      %v6007 = vpop.permute.xlu0 %6006
      %6008 = vrot.lane.b32.xlu0 %v5937, 96
      %v6009 = vpop.permute.xlu0 %6008
      %6010 = vrot.lane.b32.xlu0 %v5939, 96
      %v6011 = vpop.permute.xlu0 %6010
      %6012 = vrot.lane.b32.xlu0 %v5941, 96
      %v6013 = vpop.permute.xlu0 %6012
      %6014 = vrot.lane.b32.xlu0 %v5943, 96
      %v6015 = vpop.permute.xlu0 %6014
      %6016 = vrot.lane.b32.xlu0 %v5945, 96
      %v6017 = vpop.permute.xlu0 %6016
      %6018 = vrot.lane.b32.xlu0 %v5947, 96
      %v6019 = vpop.permute.xlu0 %6018
      %6020 = vrot.lane.b32.xlu0 %v5949, 96
      %v6021 = vpop.permute.xlu0 %6020
      %6022 = vrot.lane.b32.xlu0 %v5951, 96
      %v6023 = vpop.permute.xlu0 %6022
      %6024 = vrot.lane.b32.xlu0 %v5953, 96
      %v6025 = vpop.permute.xlu0 %6024
      %6026 = vrot.lane.b32.xlu0 %v5955, 96
      %v6027 = vpop.permute.xlu0 %6026
      %6028 = vrot.lane.b32.xlu0 %v5957, 96
      %v6029 = vpop.permute.xlu0 %6028
      %6030 = vrot.lane.b32.xlu0 %v5959, 96
      %v6031 = vpop.permute.xlu0 %6030
      %6032 = vrot.lane.b32.xlu0 %v5961, 96
      %v6033 = vpop.permute.xlu0 %6032
      %6034 = vrot.lane.b32.xlu0 %v5963, 96
      %v6035 = vpop.permute.xlu0 %6034
      %6036 = vrot.lane.b32.xlu0 %v5965, 96
      %v6037 = vpop.permute.xlu0 %6036
      %6038 = vrot.lane.b32.xlu0 %v5967, 96
      %v6039 = vpop.permute.xlu0 %6038
      %v6076 = vadd.f32 %v5854, %v5969
      %v6077 = vadd.f32 %v5855, %v5971
      %v6078 = vadd.f32 %v5856, %v5973
      %v6079 = vadd.f32 %v5857, %v5975
      %v6080 = vadd.f32 %v5858, %v5977
      %v6081 = vadd.f32 %v5859, %v5979
      %v6082 = vadd.f32 %v5860, %v5981
      %v6083 = vadd.f32 %v5861, %v5983
      %v6084 = vadd.f32 %v5862, %v5985
      %v6085 = vadd.f32 %v5863, %v5987
      %v6086 = vadd.f32 %v5864, %v5989
      %v6087 = vadd.f32 %v5865, %v5991
      %v6088 = vadd.f32 %v5866, %v5993
      %v6089 = vadd.f32 %v5867, %v5995
      %v6090 = vadd.f32 %v5868, %v5997
      %v6091 = vadd.f32 %v5869, %v5999
      %v6092 = vadd.f32 %v5870, %v6001
      %v6093 = vadd.f32 %v5871, %v6003
      %v6094 = vadd.f32 %v5872, %v6005
      %v6095 = vadd.f32 %v5873, %v6007
      %v6096 = vadd.f32 %v5874, %v6009
      %v6097 = vadd.f32 %v5875, %v6011
      %v6098 = vadd.f32 %v5876, %v6013
      %v6099 = vadd.f32 %v5877, %v6015
      %v6100 = vadd.f32 %v5878, %v6017
      %v6101 = vadd.f32 %v5879, %v6019
      %v6102 = vadd.f32 %v5880, %v6021
      %v6103 = vadd.f32 %v5881, %v6023
      %v6104 = vadd.f32 %v5882, %v6025
      %v6105 = vadd.f32 %v5883, %v6027
      %v6106 = vadd.f32 %v5884, %v6029
      %v6107 = vadd.f32 %v5885, %v6031
      %v6108 = vadd.f32 %v5886, %v6033
      %v6109 = vadd.f32 %v5887, %v6035
      %v6110 = vadd.f32 %v5888, %v6037
      %v6111 = vadd.f32 %v5889, %v6039
      %v6112 = vld [vmem:[#allocation4 + $0x20] sm:$0xf0]
      %v6113 = vld [vmem:[#allocation4 + $0x260] sm:$0xf]
      %vm6116 = vcmask 1043456
      %v6117 = vrot.slane %v6112, 4
      %v6118 = vrot.slane %v5184, 4
      %v6119 = vsel %vm6116, %v6117, %v6118
      %v6120 = vrot.slane %v5185, 4
      %v6121 = vsel %vm6116, %v6118, %v6120
      %v6122 = vrot.slane %v5186, 4
      %v6123 = vsel %vm6116, %v6120, %v6122
      %v6124 = vrot.slane %v5187, 4
      %v6125 = vsel %vm6116, %v6122, %v6124
      %v6126 = vrot.slane %v5188, 4
      %v6127 = vsel %vm6116, %v6124, %v6126
      %v6128 = vrot.slane %v5189, 4
      %v6129 = vsel %vm6116, %v6126, %v6128
      %v6130 = vrot.slane %v5190, 4
      %v6131 = vsel %vm6116, %v6128, %v6130
      %v6132 = vrot.slane %v5191, 4
      %v6133 = vsel %vm6116, %v6130, %v6132
      %v6134 = vrot.slane %v5192, 4
      %v6135 = vsel %vm6116, %v6132, %v6134
      %v6136 = vrot.slane %v5193, 4
      %v6137 = vsel %vm6116, %v6134, %v6136
      %v6138 = vrot.slane %v5194, 4
      %v6139 = vsel %vm6116, %v6136, %v6138
      %v6140 = vrot.slane %v5195, 4
      %v6141 = vsel %vm6116, %v6138, %v6140
      %v6142 = vrot.slane %v5196, 4
      %v6143 = vsel %vm6116, %v6140, %v6142
      %v6144 = vrot.slane %v5197, 4
      %v6145 = vsel %vm6116, %v6142, %v6144
      %v6146 = vrot.slane %v5198, 4
      %v6147 = vsel %vm6116, %v6144, %v6146
      %v6148 = vrot.slane %v5199, 4
      %v6149 = vsel %vm6116, %v6146, %v6148
      %v6150 = vrot.slane %v5200, 4
      %v6151 = vsel %vm6116, %v6148, %v6150
      %v6152 = vrot.slane %v5201, 4
      %v6153 = vsel %vm6116, %v6150, %v6152
      %v6154 = vrot.slane %v5202, 4
      %v6155 = vsel %vm6116, %v6152, %v6154
      %v6156 = vrot.slane %v5203, 4
      %v6157 = vsel %vm6116, %v6154, %v6156
      %v6158 = vrot.slane %v5204, 4
      %v6159 = vsel %vm6116, %v6156, %v6158
      %v6160 = vrot.slane %v5205, 4
      %v6161 = vsel %vm6116, %v6158, %v6160
      %v6162 = vrot.slane %v5206, 4
      %v6163 = vsel %vm6116, %v6160, %v6162
      %v6164 = vrot.slane %v5207, 4
      %v6165 = vsel %vm6116, %v6162, %v6164
      %v6166 = vrot.slane %v5208, 4
      %v6167 = vsel %vm6116, %v6164, %v6166
      %v6168 = vrot.slane %v5209, 4
      %v6169 = vsel %vm6116, %v6166, %v6168
      %v6170 = vrot.slane %v5210, 4
      %v6171 = vsel %vm6116, %v6168, %v6170
      %v6172 = vrot.slane %v5211, 4
      %v6173 = vsel %vm6116, %v6170, %v6172
      %v6174 = vrot.slane %v5212, 4
      %v6175 = vsel %vm6116, %v6172, %v6174
      %v6176 = vrot.slane %v5213, 4
      %v6177 = vsel %vm6116, %v6174, %v6176
      %v6178 = vrot.slane %v5214, 4
      %v6179 = vsel %vm6116, %v6176, %v6178
      %v6180 = vrot.slane %v5215, 4
      %v6181 = vsel %vm6116, %v6178, %v6180
      %v6182 = vrot.slane %v5216, 4
      %v6183 = vsel %vm6116, %v6180, %v6182
      %v6184 = vrot.slane %v5731, 4
      %v6185 = vsel %vm6116, %v6182, %v6184
      %v6186 = vrot.slane %v5732, 4
      %v6187 = vsel %vm6116, %v6184, %v6186
      %v6188 = vrot.slane %v6113, 4
      %v6189 = vsel %vm6116, %v6186, %v6188
      %6190 = vrot.lane.b32.xlu0 %v6119, 88
      %v6191 = vpop.permute.xlu0 %6190
      %6192 = vrot.lane.b32.xlu0 %v6121, 88
      %v6193 = vpop.permute.xlu0 %6192
      %6194 = vrot.lane.b32.xlu0 %v6123, 88
      %v6195 = vpop.permute.xlu0 %6194
      %6196 = vrot.lane.b32.xlu0 %v6125, 88
      %v6197 = vpop.permute.xlu0 %6196
      %6198 = vrot.lane.b32.xlu0 %v6127, 88
      %v6199 = vpop.permute.xlu0 %6198
      %6200 = vrot.lane.b32.xlu0 %v6129, 88
      %v6201 = vpop.permute.xlu0 %6200
      %6202 = vrot.lane.b32.xlu0 %v6131, 88
      %v6203 = vpop.permute.xlu0 %6202
      %6204 = vrot.lane.b32.xlu0 %v6133, 88
      %v6205 = vpop.permute.xlu0 %6204
      %6206 = vrot.lane.b32.xlu0 %v6135, 88
      %v6207 = vpop.permute.xlu0 %6206
      %6208 = vrot.lane.b32.xlu0 %v6137, 88
      %v6209 = vpop.permute.xlu0 %6208
      %6210 = vrot.lane.b32.xlu0 %v6139, 88
      %v6211 = vpop.permute.xlu0 %6210
      %6212 = vrot.lane.b32.xlu0 %v6141, 88
      %v6213 = vpop.permute.xlu0 %6212
      %6214 = vrot.lane.b32.xlu0 %v6143, 88
      %v6215 = vpop.permute.xlu0 %6214
      %6216 = vrot.lane.b32.xlu0 %v6145, 88
      %v6217 = vpop.permute.xlu0 %6216
      %6218 = vrot.lane.b32.xlu0 %v6147, 88
      %v6219 = vpop.permute.xlu0 %6218
      %6220 = vrot.lane.b32.xlu0 %v6149, 88
      %v6221 = vpop.permute.xlu0 %6220
      %6222 = vrot.lane.b32.xlu0 %v6151, 88
      %v6223 = vpop.permute.xlu0 %6222
      %6224 = vrot.lane.b32.xlu0 %v6153, 88
      %v6225 = vpop.permute.xlu0 %6224
      %6226 = vrot.lane.b32.xlu0 %v6155, 88
      %v6227 = vpop.permute.xlu0 %6226
      %6228 = vrot.lane.b32.xlu0 %v6157, 88
      %v6229 = vpop.permute.xlu0 %6228
      %6230 = vrot.lane.b32.xlu0 %v6159, 88
      %v6231 = vpop.permute.xlu0 %6230
      %6232 = vrot.lane.b32.xlu0 %v6161, 88
      %v6233 = vpop.permute.xlu0 %6232
      %6234 = vrot.lane.b32.xlu0 %v6163, 88
      %v6235 = vpop.permute.xlu0 %6234
      %6236 = vrot.lane.b32.xlu0 %v6165, 88
      %v6237 = vpop.permute.xlu0 %6236
      %6238 = vrot.lane.b32.xlu0 %v6167, 88
      %v6239 = vpop.permute.xlu0 %6238
      %6240 = vrot.lane.b32.xlu0 %v6169, 88
      %v6241 = vpop.permute.xlu0 %6240
      %6242 = vrot.lane.b32.xlu0 %v6171, 88
      %v6243 = vpop.permute.xlu0 %6242
      %6244 = vrot.lane.b32.xlu0 %v6173, 88
      %v6245 = vpop.permute.xlu0 %6244
      %6246 = vrot.lane.b32.xlu0 %v6175, 88
      %v6247 = vpop.permute.xlu0 %6246
      %6248 = vrot.lane.b32.xlu0 %v6177, 88
      %v6249 = vpop.permute.xlu0 %6248
      %6250 = vrot.lane.b32.xlu0 %v6179, 88
      %v6251 = vpop.permute.xlu0 %6250
      %6252 = vrot.lane.b32.xlu0 %v6181, 88
      %v6253 = vpop.permute.xlu0 %6252
      %6254 = vrot.lane.b32.xlu0 %v6183, 88
      %v6255 = vpop.permute.xlu0 %6254
      %6256 = vrot.lane.b32.xlu0 %v6185, 88
      %v6257 = vpop.permute.xlu0 %6256
      %6258 = vrot.lane.b32.xlu0 %v6187, 88
      %v6259 = vpop.permute.xlu0 %6258
      %6260 = vrot.lane.b32.xlu0 %v6189, 88
      %v6261 = vpop.permute.xlu0 %6260
      %v6298 = vadd.f32 %v6076, %v6191
      %v6299 = vadd.f32 %v6077, %v6193
      %v6300 = vadd.f32 %v6078, %v6195
      %v6301 = vadd.f32 %v6079, %v6197
      %v6302 = vadd.f32 %v6080, %v6199
      %v6303 = vadd.f32 %v6081, %v6201
      %v6304 = vadd.f32 %v6082, %v6203
      %v6305 = vadd.f32 %v6083, %v6205
      %v6306 = vadd.f32 %v6084, %v6207
      %v6307 = vadd.f32 %v6085, %v6209
      %v6308 = vadd.f32 %v6086, %v6211
      %v6309 = vadd.f32 %v6087, %v6213
      %v6310 = vadd.f32 %v6088, %v6215
      %v6311 = vadd.f32 %v6089, %v6217
      %v6312 = vadd.f32 %v6090, %v6219
      %v6313 = vadd.f32 %v6091, %v6221
      %v6314 = vadd.f32 %v6092, %v6223
      %v6315 = vadd.f32 %v6093, %v6225
      %v6316 = vadd.f32 %v6094, %v6227
      %v6317 = vadd.f32 %v6095, %v6229
      %v6318 = vadd.f32 %v6096, %v6231
      %v6319 = vadd.f32 %v6097, %v6233
      %v6320 = vadd.f32 %v6098, %v6235
      %v6321 = vadd.f32 %v6099, %v6237
      %v6322 = vadd.f32 %v6100, %v6239
      %v6323 = vadd.f32 %v6101, %v6241
      %v6324 = vadd.f32 %v6102, %v6243
      %v6325 = vadd.f32 %v6103, %v6245
      %v6326 = vadd.f32 %v6104, %v6247
      %v6327 = vadd.f32 %v6105, %v6249
      %v6328 = vadd.f32 %v6106, %v6251
      %v6329 = vadd.f32 %v6107, %v6253
      %v6330 = vadd.f32 %v6108, %v6255
      %v6331 = vadd.f32 %v6109, %v6257
      %v6332 = vadd.f32 %v6110, %v6259
      %v6333 = vadd.f32 %v6111, %v6261
      %v6334 = vld [vmem:[#allocation4 + $0x40] sm:$0xf0]
      %v6335 = vld [vmem:[#allocation4 + $0x260] sm:$0xff]
      %v6336 = vld [vmem:[#allocation4 + $0x270] sm:$0xff]
      %v6337 = vld [vmem:[#allocation4 + $0x280] sm:$0xf]
      %v6342 = vrot.slane %v6334, 4
      %v6343 = vsel %vm6116, %v6342, %v6122
      %v6344 = vrot.slane %v6335, 4
      %v6345 = vsel %vm6116, %v6186, %v6344
      %v6346 = vrot.slane %v6336, 4
      %v6347 = vsel %vm6116, %v6344, %v6346
      %v6348 = vrot.slane %v6337, 4
      %v6349 = vsel %vm6116, %v6346, %v6348
      %6350 = vrot.lane.b32.xlu0 %v6343, 80
      %v6351 = vpop.permute.xlu0 %6350
      %6352 = vrot.lane.b32.xlu0 %v6125, 80
      %v6353 = vpop.permute.xlu0 %6352
      %6354 = vrot.lane.b32.xlu0 %v6127, 80
      %v6355 = vpop.permute.xlu0 %6354
      %6356 = vrot.lane.b32.xlu0 %v6129, 80
      %v6357 = vpop.permute.xlu0 %6356
      %6358 = vrot.lane.b32.xlu0 %v6131, 80
      %v6359 = vpop.permute.xlu0 %6358
      %6360 = vrot.lane.b32.xlu0 %v6133, 80
      %v6361 = vpop.permute.xlu0 %6360
      %6362 = vrot.lane.b32.xlu0 %v6135, 80
      %v6363 = vpop.permute.xlu0 %6362
      %6364 = vrot.lane.b32.xlu0 %v6137, 80
      %v6365 = vpop.permute.xlu0 %6364
      %6366 = vrot.lane.b32.xlu0 %v6139, 80
      %v6367 = vpop.permute.xlu0 %6366
      %6368 = vrot.lane.b32.xlu0 %v6141, 80
      %v6369 = vpop.permute.xlu0 %6368
      %6370 = vrot.lane.b32.xlu0 %v6143, 80
      %v6371 = vpop.permute.xlu0 %6370
      %6372 = vrot.lane.b32.xlu0 %v6145, 80
      %v6373 = vpop.permute.xlu0 %6372
      %6374 = vrot.lane.b32.xlu0 %v6147, 80
      %v6375 = vpop.permute.xlu0 %6374
      %6376 = vrot.lane.b32.xlu0 %v6149, 80
      %v6377 = vpop.permute.xlu0 %6376
      %6378 = vrot.lane.b32.xlu0 %v6151, 80
      %v6379 = vpop.permute.xlu0 %6378
      %6380 = vrot.lane.b32.xlu0 %v6153, 80
      %v6381 = vpop.permute.xlu0 %6380
      %6382 = vrot.lane.b32.xlu0 %v6155, 80
      %v6383 = vpop.permute.xlu0 %6382
      %6384 = vrot.lane.b32.xlu0 %v6157, 80
      %v6385 = vpop.permute.xlu0 %6384
      %6386 = vrot.lane.b32.xlu0 %v6159, 80
      %v6387 = vpop.permute.xlu0 %6386
      %6388 = vrot.lane.b32.xlu0 %v6161, 80
      %v6389 = vpop.permute.xlu0 %6388
      %6390 = vrot.lane.b32.xlu0 %v6163, 80
      %v6391 = vpop.permute.xlu0 %6390
      %6392 = vrot.lane.b32.xlu0 %v6165, 80
      %v6393 = vpop.permute.xlu0 %6392
      %6394 = vrot.lane.b32.xlu0 %v6167, 80
      %v6395 = vpop.permute.xlu0 %6394
      %6396 = vrot.lane.b32.xlu0 %v6169, 80
      %v6397 = vpop.permute.xlu0 %6396
      %6398 = vrot.lane.b32.xlu0 %v6171, 80
      %v6399 = vpop.permute.xlu0 %6398
      %6400 = vrot.lane.b32.xlu0 %v6173, 80
      %v6401 = vpop.permute.xlu0 %6400
      %6402 = vrot.lane.b32.xlu0 %v6175, 80
      %v6403 = vpop.permute.xlu0 %6402
      %6404 = vrot.lane.b32.xlu0 %v6177, 80
      %v6405 = vpop.permute.xlu0 %6404
      %6406 = vrot.lane.b32.xlu0 %v6179, 80
      %v6407 = vpop.permute.xlu0 %6406
      %6408 = vrot.lane.b32.xlu0 %v6181, 80
      %v6409 = vpop.permute.xlu0 %6408
      %6410 = vrot.lane.b32.xlu0 %v6183, 80
      %v6411 = vpop.permute.xlu0 %6410
      %6412 = vrot.lane.b32.xlu0 %v6185, 80
      %v6413 = vpop.permute.xlu0 %6412
      %6414 = vrot.lane.b32.xlu0 %v6187, 80
      %v6415 = vpop.permute.xlu0 %6414
      %6416 = vrot.lane.b32.xlu0 %v6345, 80
      %v6417 = vpop.permute.xlu0 %6416
      %6418 = vrot.lane.b32.xlu0 %v6347, 80
      %v6419 = vpop.permute.xlu0 %6418
      %6420 = vrot.lane.b32.xlu0 %v6349, 80
      %v6421 = vpop.permute.xlu0 %6420
      %v6458 = vadd.f32 %v6298, %v6351
      %v6459 = vadd.f32 %v6299, %v6353
      %v6460 = vadd.f32 %v6300, %v6355
      %v6461 = vadd.f32 %v6301, %v6357
      %v6462 = vadd.f32 %v6302, %v6359
      %v6463 = vadd.f32 %v6303, %v6361
      %v6464 = vadd.f32 %v6304, %v6363
      %v6465 = vadd.f32 %v6305, %v6365
      %v6466 = vadd.f32 %v6306, %v6367
      %v6467 = vadd.f32 %v6307, %v6369
      %v6468 = vadd.f32 %v6308, %v6371
      %v6469 = vadd.f32 %v6309, %v6373
      %v6470 = vadd.f32 %v6310, %v6375
      %v6471 = vadd.f32 %v6311, %v6377
      %v6472 = vadd.f32 %v6312, %v6379
      %v6473 = vadd.f32 %v6313, %v6381
      %v6474 = vadd.f32 %v6314, %v6383
      %v6475 = vadd.f32 %v6315, %v6385
      %v6476 = vadd.f32 %v6316, %v6387
      %v6477 = vadd.f32 %v6317, %v6389
      %v6478 = vadd.f32 %v6318, %v6391
      %v6479 = vadd.f32 %v6319, %v6393
      %v6480 = vadd.f32 %v6320, %v6395
      %v6481 = vadd.f32 %v6321, %v6397
      %v6482 = vadd.f32 %v6322, %v6399
      %v6483 = vadd.f32 %v6323, %v6401
      %v6484 = vadd.f32 %v6324, %v6403
      %v6485 = vadd.f32 %v6325, %v6405
      %v6486 = vadd.f32 %v6326, %v6407
      %v6487 = vadd.f32 %v6327, %v6409
      %v6488 = vadd.f32 %v6328, %v6411
      %v6489 = vadd.f32 %v6329, %v6413
      %v6490 = vadd.f32 %v6330, %v6415
      %v6491 = vadd.f32 %v6331, %v6417
      %v6492 = vadd.f32 %v6332, %v6419
      %v6493 = vadd.f32 %v6333, %v6421
      %v6494 = vld [vmem:[#allocation4 + $0x40] sm:$0xe0]
      %v6495 = vld [vmem:[#allocation4 + $0x280] sm:$0x1f]
      %vm6498 = vcmask 1042432
      %v6499 = vrot.slane %v6494, 5
      %v6500 = vrot.slane %v5186, 5
      %v6501 = vsel %vm6498, %v6499, %v6500
      %v6502 = vrot.slane %v5187, 5
      %v6503 = vsel %vm6498, %v6500, %v6502
      %v6504 = vrot.slane %v5188, 5
      %v6505 = vsel %vm6498, %v6502, %v6504
      %v6506 = vrot.slane %v5189, 5
      %v6507 = vsel %vm6498, %v6504, %v6506
      %v6508 = vrot.slane %v5190, 5
      %v6509 = vsel %vm6498, %v6506, %v6508
      %v6510 = vrot.slane %v5191, 5
      %v6511 = vsel %vm6498, %v6508, %v6510
      %v6512 = vrot.slane %v5192, 5
      %v6513 = vsel %vm6498, %v6510, %v6512
      %v6514 = vrot.slane %v5193, 5
      %v6515 = vsel %vm6498, %v6512, %v6514
      %v6516 = vrot.slane %v5194, 5
      %v6517 = vsel %vm6498, %v6514, %v6516
      %v6518 = vrot.slane %v5195, 5
      %v6519 = vsel %vm6498, %v6516, %v6518
      %v6520 = vrot.slane %v5196, 5
      %v6521 = vsel %vm6498, %v6518, %v6520
      %v6522 = vrot.slane %v5197, 5
      %v6523 = vsel %vm6498, %v6520, %v6522
      %v6524 = vrot.slane %v5198, 5
      %v6525 = vsel %vm6498, %v6522, %v6524
      %v6526 = vrot.slane %v5199, 5
      %v6527 = vsel %vm6498, %v6524, %v6526
      %v6528 = vrot.slane %v5200, 5
      %v6529 = vsel %vm6498, %v6526, %v6528
      %v6530 = vrot.slane %v5201, 5
      %v6531 = vsel %vm6498, %v6528, %v6530
      %v6532 = vrot.slane %v5202, 5
      %v6533 = vsel %vm6498, %v6530, %v6532
      %v6534 = vrot.slane %v5203, 5
      %v6535 = vsel %vm6498, %v6532, %v6534
      %v6536 = vrot.slane %v5204, 5
      %v6537 = vsel %vm6498, %v6534, %v6536
      %v6538 = vrot.slane %v5205, 5
      %v6539 = vsel %vm6498, %v6536, %v6538
      %v6540 = vrot.slane %v5206, 5
      %v6541 = vsel %vm6498, %v6538, %v6540
      %v6542 = vrot.slane %v5207, 5
      %v6543 = vsel %vm6498, %v6540, %v6542
      %v6544 = vrot.slane %v5208, 5
      %v6545 = vsel %vm6498, %v6542, %v6544
      %v6546 = vrot.slane %v5209, 5
      %v6547 = vsel %vm6498, %v6544, %v6546
      %v6548 = vrot.slane %v5210, 5
      %v6549 = vsel %vm6498, %v6546, %v6548
      %v6550 = vrot.slane %v5211, 5
      %v6551 = vsel %vm6498, %v6548, %v6550
      %v6552 = vrot.slane %v5212, 5
      %v6553 = vsel %vm6498, %v6550, %v6552
      %v6554 = vrot.slane %v5213, 5
      %v6555 = vsel %vm6498, %v6552, %v6554
      %v6556 = vrot.slane %v5214, 5
      %v6557 = vsel %vm6498, %v6554, %v6556
      %v6558 = vrot.slane %v5215, 5
      %v6559 = vsel %vm6498, %v6556, %v6558
      %v6560 = vrot.slane %v5216, 5
      %v6561 = vsel %vm6498, %v6558, %v6560
      %v6562 = vrot.slane %v5731, 5
      %v6563 = vsel %vm6498, %v6560, %v6562
      %v6564 = vrot.slane %v5732, 5
      %v6565 = vsel %vm6498, %v6562, %v6564
      %v6566 = vrot.slane %v6335, 5
      %v6567 = vsel %vm6498, %v6564, %v6566
      %v6568 = vrot.slane %v6336, 5
      %v6569 = vsel %vm6498, %v6566, %v6568
      %v6570 = vrot.slane %v6495, 5
      %v6571 = vsel %vm6498, %v6568, %v6570
      %6572 = vrot.lane.b32.xlu0 %v6501, 72
      %v6573 = vpop.permute.xlu0 %6572
      %6574 = vrot.lane.b32.xlu0 %v6503, 72
      %v6575 = vpop.permute.xlu0 %6574
      %6576 = vrot.lane.b32.xlu0 %v6505, 72
      %v6577 = vpop.permute.xlu0 %6576
      %6578 = vrot.lane.b32.xlu0 %v6507, 72
      %v6579 = vpop.permute.xlu0 %6578
      %6580 = vrot.lane.b32.xlu0 %v6509, 72
      %v6581 = vpop.permute.xlu0 %6580
      %6582 = vrot.lane.b32.xlu0 %v6511, 72
      %v6583 = vpop.permute.xlu0 %6582
      %6584 = vrot.lane.b32.xlu0 %v6513, 72
      %v6585 = vpop.permute.xlu0 %6584
      %6586 = vrot.lane.b32.xlu0 %v6515, 72
      %v6587 = vpop.permute.xlu0 %6586
      %6588 = vrot.lane.b32.xlu0 %v6517, 72
      %v6589 = vpop.permute.xlu0 %6588
      %6590 = vrot.lane.b32.xlu0 %v6519, 72
      %v6591 = vpop.permute.xlu0 %6590
      %6592 = vrot.lane.b32.xlu0 %v6521, 72
      %v6593 = vpop.permute.xlu0 %6592
      %6594 = vrot.lane.b32.xlu0 %v6523, 72
      %v6595 = vpop.permute.xlu0 %6594
      %6596 = vrot.lane.b32.xlu0 %v6525, 72
      %v6597 = vpop.permute.xlu0 %6596
      %6598 = vrot.lane.b32.xlu0 %v6527, 72
      %v6599 = vpop.permute.xlu0 %6598
      %6600 = vrot.lane.b32.xlu0 %v6529, 72
      %v6601 = vpop.permute.xlu0 %6600
      %6602 = vrot.lane.b32.xlu0 %v6531, 72
      %v6603 = vpop.permute.xlu0 %6602
      %6604 = vrot.lane.b32.xlu0 %v6533, 72
      %v6605 = vpop.permute.xlu0 %6604
      %6606 = vrot.lane.b32.xlu0 %v6535, 72
      %v6607 = vpop.permute.xlu0 %6606
      %6608 = vrot.lane.b32.xlu0 %v6537, 72
      %v6609 = vpop.permute.xlu0 %6608
      %6610 = vrot.lane.b32.xlu0 %v6539, 72
      %v6611 = vpop.permute.xlu0 %6610
      %6612 = vrot.lane.b32.xlu0 %v6541, 72
      %v6613 = vpop.permute.xlu0 %6612
      %6614 = vrot.lane.b32.xlu0 %v6543, 72
      %v6615 = vpop.permute.xlu0 %6614
      %6616 = vrot.lane.b32.xlu0 %v6545, 72
      %v6617 = vpop.permute.xlu0 %6616
      %6618 = vrot.lane.b32.xlu0 %v6547, 72
      %v6619 = vpop.permute.xlu0 %6618
      %6620 = vrot.lane.b32.xlu0 %v6549, 72
      %v6621 = vpop.permute.xlu0 %6620
      %6622 = vrot.lane.b32.xlu0 %v6551, 72
      %v6623 = vpop.permute.xlu0 %6622
      %6624 = vrot.lane.b32.xlu0 %v6553, 72
      %v6625 = vpop.permute.xlu0 %6624
      %6626 = vrot.lane.b32.xlu0 %v6555, 72
      %v6627 = vpop.permute.xlu0 %6626
      %6628 = vrot.lane.b32.xlu0 %v6557, 72
      %v6629 = vpop.permute.xlu0 %6628
      %6630 = vrot.lane.b32.xlu0 %v6559, 72
      %v6631 = vpop.permute.xlu0 %6630
      %6632 = vrot.lane.b32.xlu0 %v6561, 72
      %v6633 = vpop.permute.xlu0 %6632
      %6634 = vrot.lane.b32.xlu0 %v6563, 72
      %v6635 = vpop.permute.xlu0 %6634
      %6636 = vrot.lane.b32.xlu0 %v6565, 72
      %v6637 = vpop.permute.xlu0 %6636
      %6638 = vrot.lane.b32.xlu0 %v6567, 72
      %v6639 = vpop.permute.xlu0 %6638
      %6640 = vrot.lane.b32.xlu0 %v6569, 72
      %v6641 = vpop.permute.xlu0 %6640
      %6642 = vrot.lane.b32.xlu0 %v6571, 72
      %v6643 = vpop.permute.xlu0 %6642
      %v6680 = vadd.f32 %v6458, %v6573
      %v6681 = vadd.f32 %v6459, %v6575
      %v6682 = vadd.f32 %v6460, %v6577
      %v6683 = vadd.f32 %v6461, %v6579
      %v6684 = vadd.f32 %v6462, %v6581
      %v6685 = vadd.f32 %v6463, %v6583
      %v6686 = vadd.f32 %v6464, %v6585
      %v6687 = vadd.f32 %v6465, %v6587
      %v6688 = vadd.f32 %v6466, %v6589
      %v6689 = vadd.f32 %v6467, %v6591
      %v6690 = vadd.f32 %v6468, %v6593
      %v6691 = vadd.f32 %v6469, %v6595
      %v6692 = vadd.f32 %v6470, %v6597
      %v6693 = vadd.f32 %v6471, %v6599
      %v6694 = vadd.f32 %v6472, %v6601
      %v6695 = vadd.f32 %v6473, %v6603
      %v6696 = vadd.f32 %v6474, %v6605
      %v6697 = vadd.f32 %v6475, %v6607
      %v6698 = vadd.f32 %v6476, %v6609
      %v6699 = vadd.f32 %v6477, %v6611
      %v6700 = vadd.f32 %v6478, %v6613
      %v6701 = vadd.f32 %v6479, %v6615
      %v6702 = vadd.f32 %v6480, %v6617
      %v6703 = vadd.f32 %v6481, %v6619
      %v6704 = vadd.f32 %v6482, %v6621
      %v6705 = vadd.f32 %v6483, %v6623
      %v6706 = vadd.f32 %v6484, %v6625
      %v6707 = vadd.f32 %v6485, %v6627
      %v6708 = vadd.f32 %v6486, %v6629
      %v6709 = vadd.f32 %v6487, %v6631
      %v6710 = vadd.f32 %v6488, %v6633
      %v6711 = vadd.f32 %v6489, %v6635
      %v6712 = vadd.f32 %v6490, %v6637
      %v6713 = vadd.f32 %v6491, %v6639
      %v6714 = vadd.f32 %v6492, %v6641
      %v6715 = vadd.f32 %v6493, %v6643
      %v6716 = vld [vmem:[#allocation4 + $0x40] sm:$0xc0]
      %v6717 = vld [vmem:[#allocation4 + $0x280] sm:$0x3f]
      %v6720 = vrot.slane %v6716, 6
      %v6721 = vrot.slane %v5186, 6
      %v6722 = vsel %vm539, %v6720, %v6721
      %v6723 = vrot.slane %v5187, 6
      %v6724 = vsel %vm539, %v6721, %v6723
      %v6725 = vrot.slane %v5188, 6
      %v6726 = vsel %vm539, %v6723, %v6725
      %v6727 = vrot.slane %v5189, 6
      %v6728 = vsel %vm539, %v6725, %v6727
      %v6729 = vrot.slane %v5190, 6
      %v6730 = vsel %vm539, %v6727, %v6729
      %v6731 = vrot.slane %v5191, 6
      %v6732 = vsel %vm539, %v6729, %v6731
      %v6733 = vrot.slane %v5192, 6
      %v6734 = vsel %vm539, %v6731, %v6733
      %v6735 = vrot.slane %v5193, 6
      %v6736 = vsel %vm539, %v6733, %v6735
      %v6737 = vrot.slane %v5194, 6
      %v6738 = vsel %vm539, %v6735, %v6737
      %v6739 = vrot.slane %v5195, 6
      %v6740 = vsel %vm539, %v6737, %v6739
      %v6741 = vrot.slane %v5196, 6
      %v6742 = vsel %vm539, %v6739, %v6741
      %v6743 = vrot.slane %v5197, 6
      %v6744 = vsel %vm539, %v6741, %v6743
      %v6745 = vrot.slane %v5198, 6
      %v6746 = vsel %vm539, %v6743, %v6745
      %v6747 = vrot.slane %v5199, 6
      %v6748 = vsel %vm539, %v6745, %v6747
      %v6749 = vrot.slane %v5200, 6
      %v6750 = vsel %vm539, %v6747, %v6749
      %v6751 = vrot.slane %v5201, 6
      %v6752 = vsel %vm539, %v6749, %v6751
      %v6753 = vrot.slane %v5202, 6
      %v6754 = vsel %vm539, %v6751, %v6753
      %v6755 = vrot.slane %v5203, 6
      %v6756 = vsel %vm539, %v6753, %v6755
      %v6757 = vrot.slane %v5204, 6
      %v6758 = vsel %vm539, %v6755, %v6757
      %v6759 = vrot.slane %v5205, 6
      %v6760 = vsel %vm539, %v6757, %v6759
      %v6761 = vrot.slane %v5206, 6
      %v6762 = vsel %vm539, %v6759, %v6761
      %v6763 = vrot.slane %v5207, 6
      %v6764 = vsel %vm539, %v6761, %v6763
      %v6765 = vrot.slane %v5208, 6
      %v6766 = vsel %vm539, %v6763, %v6765
      %v6767 = vrot.slane %v5209, 6
      %v6768 = vsel %vm539, %v6765, %v6767
      %v6769 = vrot.slane %v5210, 6
      %v6770 = vsel %vm539, %v6767, %v6769
      %v6771 = vrot.slane %v5211, 6
      %v6772 = vsel %vm539, %v6769, %v6771
      %v6773 = vrot.slane %v5212, 6
      %v6774 = vsel %vm539, %v6771, %v6773
      %v6775 = vrot.slane %v5213, 6
      %v6776 = vsel %vm539, %v6773, %v6775
      %v6777 = vrot.slane %v5214, 6
      %v6778 = vsel %vm539, %v6775, %v6777
      %v6779 = vrot.slane %v5215, 6
      %v6780 = vsel %vm539, %v6777, %v6779
      %v6781 = vrot.slane %v5216, 6
      %v6782 = vsel %vm539, %v6779, %v6781
      %v6783 = vrot.slane %v5731, 6
      %v6784 = vsel %vm539, %v6781, %v6783
      %v6785 = vrot.slane %v5732, 6
      %v6786 = vsel %vm539, %v6783, %v6785
      %v6787 = vrot.slane %v6335, 6
      %v6788 = vsel %vm539, %v6785, %v6787
      %v6789 = vrot.slane %v6336, 6
      %v6790 = vsel %vm539, %v6787, %v6789
      %v6791 = vrot.slane %v6717, 6
      %v6792 = vsel %vm539, %v6789, %v6791
      %6793 = vrot.lane.b32.xlu0 %v6722, 64
      %v6794 = vpop.permute.xlu0 %6793
      %6795 = vrot.lane.b32.xlu0 %v6724, 64
      %v6796 = vpop.permute.xlu0 %6795
      %6797 = vrot.lane.b32.xlu0 %v6726, 64
      %v6798 = vpop.permute.xlu0 %6797
      %6799 = vrot.lane.b32.xlu0 %v6728, 64
      %v6800 = vpop.permute.xlu0 %6799
      %6801 = vrot.lane.b32.xlu0 %v6730, 64
      %v6802 = vpop.permute.xlu0 %6801
      %6803 = vrot.lane.b32.xlu0 %v6732, 64
      %v6804 = vpop.permute.xlu0 %6803
      %6805 = vrot.lane.b32.xlu0 %v6734, 64
      %v6806 = vpop.permute.xlu0 %6805
      %6807 = vrot.lane.b32.xlu0 %v6736, 64
      %v6808 = vpop.permute.xlu0 %6807
      %6809 = vrot.lane.b32.xlu0 %v6738, 64
      %v6810 = vpop.permute.xlu0 %6809
      %6811 = vrot.lane.b32.xlu0 %v6740, 64
      %v6812 = vpop.permute.xlu0 %6811
      %6813 = vrot.lane.b32.xlu0 %v6742, 64
      %v6814 = vpop.permute.xlu0 %6813
      %6815 = vrot.lane.b32.xlu0 %v6744, 64
      %v6816 = vpop.permute.xlu0 %6815
      %6817 = vrot.lane.b32.xlu0 %v6746, 64
      %v6818 = vpop.permute.xlu0 %6817
      %6819 = vrot.lane.b32.xlu0 %v6748, 64
      %v6820 = vpop.permute.xlu0 %6819
      %6821 = vrot.lane.b32.xlu0 %v6750, 64
      %v6822 = vpop.permute.xlu0 %6821
      %6823 = vrot.lane.b32.xlu0 %v6752, 64
      %v6824 = vpop.permute.xlu0 %6823
      %6825 = vrot.lane.b32.xlu0 %v6754, 64
      %v6826 = vpop.permute.xlu0 %6825
      %6827 = vrot.lane.b32.xlu0 %v6756, 64
      %v6828 = vpop.permute.xlu0 %6827
      %6829 = vrot.lane.b32.xlu0 %v6758, 64
      %v6830 = vpop.permute.xlu0 %6829
      %6831 = vrot.lane.b32.xlu0 %v6760, 64
      %v6832 = vpop.permute.xlu0 %6831
      %6833 = vrot.lane.b32.xlu0 %v6762, 64
      %v6834 = vpop.permute.xlu0 %6833
      %6835 = vrot.lane.b32.xlu0 %v6764, 64
      %v6836 = vpop.permute.xlu0 %6835
      %6837 = vrot.lane.b32.xlu0 %v6766, 64
      %v6838 = vpop.permute.xlu0 %6837
      %6839 = vrot.lane.b32.xlu0 %v6768, 64
      %v6840 = vpop.permute.xlu0 %6839
      %6841 = vrot.lane.b32.xlu0 %v6770, 64
      %v6842 = vpop.permute.xlu0 %6841
      %6843 = vrot.lane.b32.xlu0 %v6772, 64
      %v6844 = vpop.permute.xlu0 %6843
      %6845 = vrot.lane.b32.xlu0 %v6774, 64
      %v6846 = vpop.permute.xlu0 %6845
      %6847 = vrot.lane.b32.xlu0 %v6776, 64
      %v6848 = vpop.permute.xlu0 %6847
      %6849 = vrot.lane.b32.xlu0 %v6778, 64
      %v6850 = vpop.permute.xlu0 %6849
      %6851 = vrot.lane.b32.xlu0 %v6780, 64
      %v6852 = vpop.permute.xlu0 %6851
      %6853 = vrot.lane.b32.xlu0 %v6782, 64
      %v6854 = vpop.permute.xlu0 %6853
      %6855 = vrot.lane.b32.xlu0 %v6784, 64
      %v6856 = vpop.permute.xlu0 %6855
      %6857 = vrot.lane.b32.xlu0 %v6786, 64
      %v6858 = vpop.permute.xlu0 %6857
      %6859 = vrot.lane.b32.xlu0 %v6788, 64
      %v6860 = vpop.permute.xlu0 %6859
      %6861 = vrot.lane.b32.xlu0 %v6790, 64
      %v6862 = vpop.permute.xlu0 %6861
      %6863 = vrot.lane.b32.xlu0 %v6792, 64
      %v6864 = vpop.permute.xlu0 %6863
      %v6901 = vadd.f32 %v6680, %v6794
      %v6902 = vadd.f32 %v6681, %v6796
      %v6903 = vadd.f32 %v6682, %v6798
      %v6904 = vadd.f32 %v6683, %v6800
      %v6905 = vadd.f32 %v6684, %v6802
      %v6906 = vadd.f32 %v6685, %v6804
      %v6907 = vadd.f32 %v6686, %v6806
      %v6908 = vadd.f32 %v6687, %v6808
      %v6909 = vadd.f32 %v6688, %v6810
      %v6910 = vadd.f32 %v6689, %v6812
      %v6911 = vadd.f32 %v6690, %v6814
      %v6912 = vadd.f32 %v6691, %v6816
      %v6913 = vadd.f32 %v6692, %v6818
      %v6914 = vadd.f32 %v6693, %v6820
      %v6915 = vadd.f32 %v6694, %v6822
      %v6916 = vadd.f32 %v6695, %v6824
      %v6917 = vadd.f32 %v6696, %v6826
      %v6918 = vadd.f32 %v6697, %v6828
      %v6919 = vadd.f32 %v6698, %v6830
      %v6920 = vadd.f32 %v6699, %v6832
      %v6921 = vadd.f32 %v6700, %v6834
      %v6922 = vadd.f32 %v6701, %v6836
      %v6923 = vadd.f32 %v6702, %v6838
      %v6924 = vadd.f32 %v6703, %v6840
      %v6925 = vadd.f32 %v6704, %v6842
      %v6926 = vadd.f32 %v6705, %v6844
      %v6927 = vadd.f32 %v6706, %v6846
      %v6928 = vadd.f32 %v6707, %v6848
      %v6929 = vadd.f32 %v6708, %v6850
      %v6930 = vadd.f32 %v6709, %v6852
      %v6931 = vadd.f32 %v6710, %v6854
      %v6932 = vadd.f32 %v6711, %v6856
      %v6933 = vadd.f32 %v6712, %v6858
      %v6934 = vadd.f32 %v6713, %v6860
      %v6935 = vadd.f32 %v6714, %v6862
      %v6936 = vadd.f32 %v6715, %v6864
      %vm6937 = vcmask 64512
      %6938 = vst.msk [vmem:[%s278] sm:$0xff] %vm6937, %v6901
      %6939 = vst.msk [vmem:[%s278 + $0x8] sm:$0xff] %vm6937, %v6902
      %6940 = vst.msk [vmem:[%s278 + $0x10] sm:$0xff] %vm6937, %v6903
      %6941 = vst.msk [vmem:[%s278 + $0x18] sm:$0xff] %vm6937, %v6904
      %6942 = vst.msk [vmem:[%s278 + $0x20] sm:$0xff] %vm6937, %v6905
      %6943 = vst.msk [vmem:[%s278 + $0x28] sm:$0xff] %vm6937, %v6906
      %6944 = vst.msk [vmem:[%s278 + $0x30] sm:$0xff] %vm6937, %v6907
      %6945 = vst.msk [vmem:[%s278 + $0x38] sm:$0xff] %vm6937, %v6908
      %6946 = vst.msk [vmem:[%s278 + $0x40] sm:$0xff] %vm6937, %v6909
      %6947 = vst.msk [vmem:[%s278 + $0x48] sm:$0xff] %vm6937, %v6910
      %6948 = vst.msk [vmem:[%s278 + $0x50] sm:$0xff] %vm6937, %v6911
      %6949 = vst.msk [vmem:[%s278 + $0x58] sm:$0xff] %vm6937, %v6912
      %6950 = vst.msk [vmem:[%s278 + $0x60] sm:$0xff] %vm6937, %v6913
      %6951 = vst.msk [vmem:[%s278 + $0x68] sm:$0xff] %vm6937, %v6914
      %6952 = vst.msk [vmem:[%s278 + $0x70] sm:$0xff] %vm6937, %v6915
      %6953 = vst.msk [vmem:[%s278 + $0x78] sm:$0xff] %vm6937, %v6916
      %6954 = vst.msk [vmem:[%s278 + $0x80] sm:$0xff] %vm6937, %v6917
      %6955 = vst.msk [vmem:[%s278 + $0x88] sm:$0xff] %vm6937, %v6918
      %6956 = vst.msk [vmem:[%s278 + $0x90] sm:$0xff] %vm6937, %v6919
      %6957 = vst.msk [vmem:[%s278 + $0x98] sm:$0xff] %vm6937, %v6920
      %6958 = vst.msk [vmem:[%s278 + $0xa0] sm:$0xff] %vm6937, %v6921
      %6959 = vst.msk [vmem:[%s278 + $0xa8] sm:$0xff] %vm6937, %v6922
      %6960 = vst.msk [vmem:[%s278 + $0xb0] sm:$0xff] %vm6937, %v6923
      %6961 = vst.msk [vmem:[%s278 + $0xb8] sm:$0xff] %vm6937, %v6924
      %6962 = vst.msk [vmem:[%s278 + $0xc0] sm:$0xff] %vm6937, %v6925
      %6963 = vst.msk [vmem:[%s278 + $0xc8] sm:$0xff] %vm6937, %v6926
      %6964 = vst.msk [vmem:[%s278 + $0xd0] sm:$0xff] %vm6937, %v6927
      %6965 = vst.msk [vmem:[%s278 + $0xd8] sm:$0xff] %vm6937, %v6928
      %6966 = vst.msk [vmem:[%s278 + $0xe0] sm:$0xff] %vm6937, %v6929
      %6967 = vst.msk [vmem:[%s278 + $0xe8] sm:$0xff] %vm6937, %v6930
      %6968 = vst.msk [vmem:[%s278 + $0xf0] sm:$0xff] %vm6937, %v6931
      %6969 = vst.msk [vmem:[%s278 + $0xf8] sm:$0xff] %vm6937, %v6932
      %6970 = vst.msk [vmem:[%s278 + $0x100] sm:$0xff] %vm6937, %v6933
      %6971 = vst.msk [vmem:[%s278 + $0x108] sm:$0xff] %vm6937, %v6934
      %6972 = vst.msk [vmem:[%s278 + $0x110] sm:$0xff] %vm6937, %v6935
      %6973 = vst.msk [vmem:[%s278 + $0x118] sm:$0xff] %vm6937, %v6936
      %p6974 = scmp.lt.s32.totalorder %s18, 1
      %s6975 = scalar_select %p6974, %s18, 1
      %s6976 = smul.addr %s6975, 36
      %s6977 = smul.addr %s6976, 8
      %s6978 = scalar_lea.vmem %s7, %s6977
      // Predicated region
      $region49: #{out_block_forward.1} parent=47 // pred_check
        %p6979 = pneg %p188
      $region50: #{out_block_forward.1} parent=47 // pred_check_branch
        %6981 = sbr.rel (%p6979) target = $region52
      $region51: #{out_block_forward.1} parent=47 // pred_region
        _
      $region52: #{out_block_forward.1} parent=47 // pred_fallthru
        _
    $region48: #{out_block_forward.1} parent=5 // pred_fallthru
      _
    %p6982 = scmp.le.s32.totalorder 2, %s13
    // Predicated region
    $region53: #{out_block_forward.1} parent=5 // pred_check
      %p6983 = pneg %p6982
    $region54: #{out_block_forward.1} parent=5 // pred_check_branch
      %6985 = sbr.rel (%p6983) target = $region56
    $region55: #{out_block_forward.1} parent=5 // pred_region
      %s6986 = ssub.s32 %s13, 2
      // Predicated region
      $region57: #{out_block_forward.1} parent=55 // pred_check
        %p6987 = pneg %p194
      $region58: #{out_block_forward.1} parent=55 // pred_check_branch
        %6989 = sbr.rel (%p6987) target = $region60
      $region59: #{out_block_forward.1} parent=55 // pred_region
        %p6990 = scmp.lt.s32.totalorder %s19, 1
        %s6991 = scalar_select %p6990, %s19, 1
        %s6992 = smul.addr %s6991, 36
        %s6993 = smul.addr %s6992, 8
        %s6994 = scalar_lea.vmem %s7, %s6993
      $region60: #{out_block_forward.1} parent=55 // pred_fallthru
        _
    $region56: #{out_block_forward.1} parent=5 // pred_fallthru
      _
  $region6: #{out_block_forward.1} parent=0 // loop_footer
    %s17 = sadd.s32 1, %s13
  $region7: #{out_block_forward.1} parent=0 // loop_footer_branch
    %12 = sbr.rel target = $region3
  $region8: #{out_block_forward.1} parent=0 // loop_exit
    _

</llo_original>
